<compile_context>
chip_gen: v7x
topology: tpu7x:2x2x1
jax: 0.10.0
libtpu: 0.0.40
codegen_flags: <defaults>
</compile_context>

<pallas_src>
import numpy as np
import jax
import jax.numpy as jnp
from jax import lax
from jax.experimental import pallas as pl
from jax.experimental.pallas import tpu as pltpu

DTYPE = jnp.bfloat16          # bf16 MXU path; accumulation stays f32


def _round_up(x, m):
    return ((x + m - 1) // m) * m


# ----------------------------------------------------------------------------
# Fused Pallas kernel: (cat1 conv+BN+ReLU +mul) -> (cat2 conv+BN+ReLU)
# for one batch element.  Each 3x3/stride-1/pad-1 conv is 3 band matmuls
#     acc[h, :] += A[h + kh, :] @ B[kh]
# where A is the image in padded, flattened NHWC layout (row r = zero-padded
# image row as a dense (Wp*Cin) vector) and B[kh] is a banded
# (Toeplitz-over-width) weight matrix (Wp*Cin, No).
# ----------------------------------------------------------------------------
def _ec_fused_kernel(a_ref, r_ref, b1_ref, s1_ref, t1_ref,
                     b2_ref, s2_ref, t2_ref, o_ref, y1_ref):
    # a_ref  : (1, Hp, Ka1)  padded flattened cat(edge, edge23_up)   (bf16)
    # r_ref  : (1, H,  No1)  residual "mul" in conv1 output-column layout (bf16)
    # b1_ref : (3, Ka1, No1) band weights of cat1                     (bf16)
    # s1/t1  : (1, No1) f32  folded BN scale / bias (0 on pad columns)
    # b2_ref : (3, No1, No2) band weights of cat2                     (bf16)
    # s2/t2  : (1, No2) f32  folded BN scale / bias
    # o_ref  : (1, H, No2)   dense lane-aligned output                (bf16)
    # y1_ref : (Hp, No1)     VMEM scratch holding padded conv1 output (bf16)
    H = o_ref.shape[1]
    Hp, No1 = y1_ref.shape

    # ---- cat1: 3 band matmuls back-to-back, f32 accumulation as a value ----
    acc = jnp.dot(a_ref[0, 0:H, :], b1_ref[0], preferred_element_type=jnp.float32)
    acc = acc + jnp.dot(a_ref[0, 1:H + 1, :], b1_ref[1],
                        preferred_element_type=jnp.float32)
    acc = acc + jnp.dot(a_ref[0, 2:H + 2, :], b1_ref[2],
                        preferred_element_type=jnp.float32)
    y1 = jnp.maximum(acc * s1_ref[...] + t1_ref[...], 0.0)      # folded BN + ReLU
    y1 = (y1 + r_ref[0].astype(jnp.float32)).astype(y1_ref.dtype)  # fused "+ mul"

    # Store y1 pre-padded (zero top/bottom rows) so cat2 reads it directly.
    zrow = jnp.zeros((1, No1), y1_ref.dtype)
    y1_ref[0:1, :] = zrow
    y1_ref[1:H + 1, :] = y1
    y1_ref[H + 1:Hp, :] = zrow

    # ---- cat2: same band formulation, input straight from the VMEM scratch ----
    acc2 = jnp.dot(y1_ref[0:H, :], b2_ref[0], preferred_element_type=jnp.float32)
    acc2 = acc2 + jnp.dot(y1_ref[1:H + 1, :], b2_ref[1],
                          preferred_element_type=jnp.float32)
    acc2 = acc2 + jnp.dot(y1_ref[2:H + 2, :], b2_ref[2],
                          preferred_element_type=jnp.float32)
    o_ref[0] = jnp.maximum(acc2 * s2_ref[...] + t2_ref[...], 0.0).astype(o_ref.dtype)


def _vmem_limit_bytes(Hp, H, Ka1, No1, No2):
    bf = 2
    per_step = Hp * Ka1 * bf + H * No1 * bf + H * No2 * bf        # a1 + res + out blocks
    weights = 3 * Ka1 * No1 * bf + 3 * No1 * No2 * bf + (2 * No1 + 2 * No2) * 4
    scratch = Hp * No1 * bf
    temps = H * No1 * 4 + H * No2 * 4 + 2 * H * Ka1 * bf          # f32 accs + relayouts
    total = 2 * per_step + 2 * weights + scratch + temps + (4 << 20)
    return int(min(max(total, 16 << 20), 64 << 20))               # v7x-safe cap


def ec_fused_conv(a1, res1, B1, S1, b1, B2, S2, b2):
    """Both ConvBNRs of EC in one pallas_call; returns (N, H, W*Cout) bf16."""
    N, Hp, Ka1 = a1.shape
    H = Hp - 2
    No1 = B1.shape[2]
    Ka2 = B2.shape[1]
    No2 = B2.shape[2]
    assert Ka2 == No1, (Ka2, No1)
    assert res1.shape == (N, H, No1), (res1.shape, (N, H, No1))

    cost = pl.CostEstimate(
        flops=int(2 * 3 * N * H * (Ka1 * No1 + Ka2 * No2)),
        transcendentals=0,
        bytes_accessed=int(N * (Hp * Ka1 + H * No1 + H * No2) * 2
                           + (3 * Ka1 * No1 + 3 * Ka2 * No2) * 2
                           + (2 * No1 + 2 * No2) * 4))

    return pl.pallas_call(
        _ec_fused_kernel,
        out_shape=jax.ShapeDtypeStruct((N, H, No2), DTYPE),
        grid=(N,),
        in_specs=[
            pl.BlockSpec((1, Hp, Ka1), lambda n: (n, 0, 0)),
            pl.BlockSpec((1, H, No1), lambda n: (n, 0, 0)),
            pl.BlockSpec((3, Ka1, No1), lambda n: (0, 0, 0)),   # resident across batch
            pl.BlockSpec((1, No1), lambda n: (0, 0)),
            pl.BlockSpec((1, No1), lambda n: (0, 0)),
            pl.BlockSpec((3, Ka2, No2), lambda n: (0, 0, 0)),
            pl.BlockSpec((1, No2), lambda n: (0, 0)),
            pl.BlockSpec((1, No2), lambda n: (0, 0)),
        ],
        out_specs=pl.BlockSpec((1, H, No2), lambda n: (n, 0, 0)),
        scratch_shapes=[pltpu.VMEM((Hp, No1), DTYPE)],
        compiler_params=pltpu.CompilerParams(
            dimension_semantics=("parallel",),
            vmem_limit_bytes=_vmem_limit_bytes(Hp, H, Ka1, No1, No2)),
        cost_estimate=cost,
    )(a1, res1, B1, S1, b1, B2, S2, b2)


# ----------------------------------------------------------------------------
# Weight preparation: banded (Toeplitz-over-width) matrices + folded BN cols.
# Built ONCE per (H, W) from the PyTorch OIHW weights (nothing per call).
# ----------------------------------------------------------------------------
def _band_matrices(w_oihw, W, Wp, pad_out):
    # B[kh, (w+kw)*Cin + ci, col(w,co)] = K[co, ci, kh, kw]
    # pad_out: output columns follow the padded layout col(w,co) = (w+1)*Co + co
    Co, Ci, KH, KW = w_oihw.shape
    Ka = Wp * Ci
    No = Wp * Co if pad_out else W * Co
    off = Co if pad_out else 0
    B = np.zeros((KH, Ka, No), dtype=np.float32)
    for kh in range(KH):
        for kw in range(KW):
            wk = w_oihw[:, :, kh, kw].T   # (Cin, Cout)
            for w in range(W):
                r0 = (w + kw) * Ci
                c0 = w * Co + off
                B[kh, r0:r0 + Ci, c0:c0 + Co] = wk
    return B


def _col_scale_bias(scale_ch, bias_ch, W, Wp, pad_out):
    Co = scale_ch.shape[0]
    No = Wp * Co if pad_out else W * Co
    off = Co if pad_out else 0
    S = np.zeros((1, No), np.float32)
    Bv = np.zeros((1, No), np.float32)
    for w in range(W):
        c0 = w * Co + off
        S[0, c0:c0 + Co] = scale_ch
        Bv[0, c0:c0 + Co] = bias_ch
    return S, Bv


# ----------------------------------------------------------------------------
# XLA glue: bilinear resize (align_corners=False) and AdaptiveMaxPool2d.
# ----------------------------------------------------------------------------
def _bilinear_matrix(out_size, in_size):
    U = np.zeros((out_size, in_size), dtype=np.float32)
    for i in range(out_size):
        src = (i + 0.5) * in_size / out_size - 0.5
        src = max(src, 0.0)
        i0 = min(int(np.floor(src)), in_size - 1)
        lam = src - i0
        i1 = min(i0 + 1, in_size - 1)
        U[i, i0] += 1.0 - lam
        U[i, i1] += lam
    return jnp.asarray(U)


def bilinear_resize_nhwc(x, out_h, out_w):
    if (x.shape[1], x.shape[2]) == (out_h, out_w):
        return x
    Uh = _bilinear_matrix(out_h, x.shape[1])
    Uw = _bilinear_matrix(out_w, x.shape[2])
    return jnp.einsum('ih,jw,nhwc->nijc', Uh, Uw, x,
                      precision=lax.Precision.HIGHEST)


def adaptive_max_pool_nhwc(x, out_size):
    """torch.nn.AdaptiveMaxPool2d(out_size) on NHWC (identity when H=W=out)."""
    N, H, W, C = x.shape
    if H == out_size and W == out_size:
        return x

    def pool_axis(arr, axis, in_size):
        starts = np.floor(np.arange(out_size) * in_size / out_size).astype(np.int32)
        ends = np.ceil((np.arange(out_size) + 1) * in_size / out_size).astype(np.int32)
        max_len = int((ends - starts).max())
        out = None
        for k in range(max_len):
            idx = np.minimum(starts + k, ends - 1).astype(np.int32)
            piece = jnp.take(arr, jnp.asarray(idx), axis=axis)
            out = piece if out is None else jnp.maximum(out, piece)
        return out

    x = pool_axis(x, 1, H)
    x = pool_axis(x, 2, W)
    return x


# ----------------------------------------------------------------------------
# Forward pass (jitted): NCHW only at the boundary; padded/flattened NHWC inside.
# ----------------------------------------------------------------------------
def _ec_forward(edge, edge23, B1, S1, b1, B2, S2, b2):
    N, C, H, W = edge.shape
    Cin1 = 2 * C
    Wp = B1.shape[1] // Cin1
    Co1 = B1.shape[2] // Wp
    Co2 = B2.shape[2] // W

    # NCHW -> NHWC once at the boundary.
    e_h = jnp.transpose(edge, (0, 2, 3, 1)).astype(jnp.float32)
    e23 = jnp.transpose(edge23, (0, 2, 3, 1)).astype(jnp.float32)
    e23u = bilinear_resize_nhwc(e23, H, W)

    # cat1 input: concat channels, flatten width*channels, single jnp.pad embed.
    cat = jnp.concatenate([e_h, e23u], axis=-1).astype(DTYPE)          # (N,H,W,2C)
    cat = cat.reshape(N, H, W * Cin1)
    a1 = jnp.pad(cat, ((0, 0), (1, 1), (Cin1, (Wp - W - 1) * Cin1)))   # (N,Hp,Wp*2C)

    # Residual branch: AdaptiveMaxPool2d(96)(edge23_up * edge), embedded in the
    # conv1 output-column layout so it is added inside the kernel epilogue.
    mul = adaptive_max_pool_nhwc(e_h * e23u, 96)
    Hm, Wm = mul.shape[1], mul.shape[2]
    if mul.shape[-1] != Co1:
        # PyTorch "e + mul" broadcasting: only valid when one channel count is 1.
        mul = jnp.broadcast_to(mul, mul.shape[:3] + (Co1,))
    mul = mul.astype(DTYPE).reshape(N, Hm, Wm * Co1)
    res1 = jnp.pad(mul, ((0, 0), (0, 0), (Co1, (Wp - Wm - 1) * Co1)))  # (N,H,Wp*Co1)

    # Fused cat1 + "+mul" + cat2 in one Pallas kernel; bf16 lane-dense output.
    y2 = ec_fused_conv(a1, res1, B1, S1, b1, B2, S2, b2)               # (N,H,W*Co2)

    out = y2.reshape(N, H, W, Co2)
    return jnp.transpose(out, (0, 3, 1, 2)).astype(jnp.float32)        # -> NCHW f32


_ec_forward_jit = jax.jit(_ec_forward)


def _conv_weight_init(key, cout, cin, k=3):
    fan_in = cin * k * k
    bound = 1.0 / np.sqrt(fan_in)
    w = jax.random.uniform(key, (cout, cin, k, k), jnp.float32, -bound, bound)
    return np.asarray(w)


class ECPallas:
    """Pallas/TPU port of DCNet's EC block (forward pass only).

    ConvBNR = Conv2d(3x3, stride 1, pad 1, bias=False) + BatchNorm2d + ReLU.
    BatchNorm is applied as its eval-mode affine fold (running stats at the
    PyTorch defaults).  rcab_e / rcab_t / self.relu are never used in
    EC.forward and are therefore omitted.
    """

    def __init__(self, in_channels, out_channels, key=None, eps=1e-5):
        if key is None:
            key = jax.random.PRNGKey(0)
        k1, k2 = jax.random.split(key, 2)
        self.in_channels = int(in_channels)
        self.out_channels = int(out_channels)
        # PyTorch Conv2d layout (out, in, kH, kW); ConvBNR uses bias=False.
        self.w1 = _conv_weight_init(k1, out_channels, 2 * in_channels)   # cat1
        self.w2 = _conv_weight_init(k2, out_channels, out_channels)      # cat2
        # BatchNorm2d params at PyTorch defaults, folded to scale/bias.
        gamma = np.ones(out_channels, np.float32)
        beta = np.zeros(out_channels, np.float32)
        mean = np.zeros(out_channels, np.float32)
        var = np.ones(out_channels, np.float32)
        self.s1 = gamma / np.sqrt(var + eps)
        self.b1 = beta - mean * self.s1
        self.s2 = self.s1.copy()
        self.b2 = self.b1.copy()
        self._cache = {}

    def _prepare(self, H, W):
        key = (H, W)
        if key not in self._cache:
            # Lane-aligned padded width: Wp multiple of 128 so Wp*Cin / Wp*Cout
            # are multiples of 128 (dense, unmasked vector stores/loads).
            Wp = _round_up(W + 2, 128)
            B1 = _band_matrices(self.w1, W, Wp, pad_out=True)
            B2 = _band_matrices(self.w2, W, Wp, pad_out=False)
            S1, b1 = _col_scale_bias(self.s1, self.b1, W, Wp, pad_out=True)
            S2, b2 = _col_scale_bias(self.s2, self.b2, W, Wp, pad_out=False)
            self._cache[key] = dict(
                B1=jnp.asarray(B1, DTYPE), B2=jnp.asarray(B2, DTYPE),
                S1=jnp.asarray(S1, jnp.float32), b1=jnp.asarray(b1, jnp.float32),
                S2=jnp.asarray(S2, jnp.float32), b2=jnp.asarray(b2, jnp.float32))
        return self._cache[key]

    def __call__(self, edge, edge23):
        H, W = edge.shape[2], edge.shape[3]
        p = self._prepare(H, W)
        return _ec_forward_jit(edge, edge23, p['B1'], p['S1'], p['b1'],
                               p['B2'], p['S2'], p['b2'])


# ----------------------------------------------------------------------------
# Pure-JAX reference (same bf16 rounding points) for a correctness check.
# ----------------------------------------------------------------------------
def _ref_conv3x3(x_nhwc, w_oihw):
    N, H, W, _ = x_nhwc.shape
    xp = jnp.pad(x_nhwc, ((0, 0), (1, 1), (1, 1), (0, 0)))
    out = jnp.zeros((N, H, W, w_oihw.shape[0]), jnp.float32)
    for kh in range(3):
        for kw in range(3):
            out = out + jnp.einsum('nhwc,oc->nhwo',
                                   xp[:, kh:kh + H, kw:kw + W, :],
                                   w_oihw[:, :, kh, kw],
                                   precision=lax.Precision.HIGHEST)
    return out


def _reference_forward(mod, edge, edge23):
    f32 = jnp.float32
    N, C, H, W = edge.shape
    Co = mod.out_channels
    e_h = jnp.transpose(edge, (0, 2, 3, 1)).astype(f32)
    e23 = jnp.transpose(edge23, (0, 2, 3, 1)).astype(f32)
    e23u = bilinear_resize_nhwc(e23, H, W)
    cat = jnp.concatenate([e_h, e23u], axis=-1).astype(DTYPE).astype(f32)
    w1 = jnp.asarray(mod.w1).astype(DTYPE).astype(f32)
    w2 = jnp.asarray(mod.w2).astype(DTYPE).astype(f32)
    e = jnp.maximum(_ref_conv3x3(cat, w1) * jnp.asarray(mod.s1)
                    + jnp.asarray(mod.b1), 0.0)
    mul = adaptive_max_pool_nhwc(e_h * e23u, 96)
    if mul.shape[-1] != Co:
        mul = jnp.broadcast_to(mul, mul.shape[:3] + (Co,))
    mul = mul.astype(DTYPE).astype(f32)
    x2 = (e + mul).astype(DTYPE).astype(f32)
    out = jnp.maximum(_ref_conv3x3(x2, w2) * jnp.asarray(mod.s2)
                      + jnp.asarray(mod.b2), 0.0)
    out = out.astype(DTYPE).astype(f32)          # kernel output is bf16-rounded
    return jnp.transpose(out, (0, 3, 1, 2))


if __name__ == "__main__":
    key = jax.random.PRNGKey(0)
    k_e, k_e23, k_p = jax.random.split(key, 3)

    # EC's forward adds AdaptiveMaxPool2d(96)(...) to the conv output, which
    # pins edge's spatial size to 96x96 and in_channels == out_channels.
    N, C = 2, 4
    edge = jax.random.normal(k_e, (N, C, 96, 96), jnp.float32)
    edge23 = jax.random.normal(k_e23, (N, C, 48, 48), jnp.float32)

    mod = ECPallas(in_channels=C, out_channels=C, key=k_p)

    out = mod(edge, edge23)
    out = jax.block_until_ready(out)
    assert out.shape == (N, C, 96, 96)
    assert bool(jnp.all(jnp.isfinite(out)))

    ref = jax.block_until_ready(_reference_forward(mod, edge, edge23))
    max_err = float(jnp.max(jnp.abs(out - ref)))
    assert max_err < 2e-2, f"max abs error vs reference: {max_err}"

    print("KERNEL_OK")
</pallas_src>

<mosaic_0001>
module attributes {stable_mosaic.version = 11 : i64} {
  func.func @_ec_fused_kernel(%arg0: i32, %arg1: memref<1x98x1024xbf16, #tpu.memory_space<vmem>>, %arg2: memref<1x96x512xbf16, #tpu.memory_space<vmem>>, %arg3: memref<3x1024x512xbf16, #tpu.memory_space<vmem>>, %arg4: memref<1x512xf32, #tpu.memory_space<vmem>>, %arg5: memref<1x512xf32, #tpu.memory_space<vmem>>, %arg6: memref<3x512x384xbf16, #tpu.memory_space<vmem>>, %arg7: memref<1x384xf32, #tpu.memory_space<vmem>>, %arg8: memref<1x384xf32, #tpu.memory_space<vmem>>, %arg9: memref<1x96x384xbf16, #tpu.memory_space<vmem>>, %arg10: memref<98x512xbf16, #tpu.memory_space<vmem>>) attributes {dimension_semantics = [#tpu.dimension_semantics<parallel>], iteration_bounds = array<i64: 2>, scalar_prefetch = 0 : i64, scratch_operands = 1 : i64, tpu.core_type = #tpu.core_type<tc>, window_params = [{transform_indices = @transform_0, window_bounds = array<i64: 1, 98, 1024>}, {transform_indices = @transform_1, window_bounds = array<i64: 1, 96, 512>}, {pipeline_mode = #tpu.pipeline_mode<synchronous>, transform_indices = @transform_2, window_bounds = array<i64: 3, 1024, 512>}, {pipeline_mode = #tpu.pipeline_mode<synchronous>, transform_indices = @transform_3, window_bounds = array<i64: 1, 512>}, {pipeline_mode = #tpu.pipeline_mode<synchronous>, transform_indices = @transform_4, window_bounds = array<i64: 1, 512>}, {pipeline_mode = #tpu.pipeline_mode<synchronous>, transform_indices = @transform_5, window_bounds = array<i64: 3, 512, 384>}, {pipeline_mode = #tpu.pipeline_mode<synchronous>, transform_indices = @transform_6, window_bounds = array<i64: 1, 384>}, {pipeline_mode = #tpu.pipeline_mode<synchronous>, transform_indices = @transform_7, window_bounds = array<i64: 1, 384>}, {transform_indices = @transform_8, window_bounds = array<i64: 1, 96, 384>}]} {
    %c0 = arith.constant 0 : index
    %c0_0 = arith.constant 0 : index
    %c0_1 = arith.constant 0 : index
    %0 = vector.load %arg1[%c0, %c0_0, %c0_1] : memref<1x98x1024xbf16, #tpu.memory_space<vmem>>, vector<1x96x1024xbf16>
    %1 = vector.shape_cast %0 : vector<1x96x1024xbf16> to vector<96x1024xbf16>
    %c0_2 = arith.constant 0 : index
    %c0_3 = arith.constant 0 : index
    %c0_4 = arith.constant 0 : index
    %2 = vector.load %arg3[%c0_2, %c0_3, %c0_4] : memref<3x1024x512xbf16, #tpu.memory_space<vmem>>, vector<1x1024x512xbf16>
    %3 = vector.shape_cast %2 : vector<1x1024x512xbf16> to vector<1024x512xbf16>
    %cst = arith.constant dense<0.000000e+00> : vector<96x512xf32>
    %4 = tpu.matmul %1, %3, %cst {dimension_numbers = #tpu.dot_dimension_numbers<[1], [0], [0], [1], [0, 0, 1, 1], [], []>} : vector<96x1024xbf16>, vector<1024x512xbf16>, vector<96x512xf32> -> vector<96x512xf32>
    %c0_5 = arith.constant 0 : index
    %c1 = arith.constant 1 : index
    %c0_6 = arith.constant 0 : index
    %5 = vector.load %arg1[%c0_5, %c1, %c0_6] : memref<1x98x1024xbf16, #tpu.memory_space<vmem>>, vector<1x96x1024xbf16>
    %6 = vector.shape_cast %5 : vector<1x96x1024xbf16> to vector<96x1024xbf16>
    %c1_7 = arith.constant 1 : index
    %c0_8 = arith.constant 0 : index
    %c0_9 = arith.constant 0 : index
    %7 = vector.load %arg3[%c1_7, %c0_8, %c0_9] : memref<3x1024x512xbf16, #tpu.memory_space<vmem>>, vector<1x1024x512xbf16>
    %8 = vector.shape_cast %7 : vector<1x1024x512xbf16> to vector<1024x512xbf16>
    %cst_10 = arith.constant dense<0.000000e+00> : vector<96x512xf32>
    %9 = tpu.matmul %6, %8, %cst_10 {dimension_numbers = #tpu.dot_dimension_numbers<[1], [0], [0], [1], [0, 0, 1, 1], [], []>} : vector<96x1024xbf16>, vector<1024x512xbf16>, vector<96x512xf32> -> vector<96x512xf32>
    %10 = arith.addf %4, %9 : vector<96x512xf32>
    %c0_11 = arith.constant 0 : index
    %c2 = arith.constant 2 : index
    %c0_12 = arith.constant 0 : index
    %11 = vector.load %arg1[%c0_11, %c2, %c0_12] : memref<1x98x1024xbf16, #tpu.memory_space<vmem>>, vector<1x96x1024xbf16>
    %12 = vector.shape_cast %11 : vector<1x96x1024xbf16> to vector<96x1024xbf16>
    %c2_13 = arith.constant 2 : index
    %c0_14 = arith.constant 0 : index
    %c0_15 = arith.constant 0 : index
    %13 = vector.load %arg3[%c2_13, %c0_14, %c0_15] : memref<3x1024x512xbf16, #tpu.memory_space<vmem>>, vector<1x1024x512xbf16>
    %14 = vector.shape_cast %13 : vector<1x1024x512xbf16> to vector<1024x512xbf16>
    %cst_16 = arith.constant dense<0.000000e+00> : vector<96x512xf32>
    %15 = tpu.matmul %12, %14, %cst_16 {dimension_numbers = #tpu.dot_dimension_numbers<[1], [0], [0], [1], [0, 0, 1, 1], [], []>} : vector<96x1024xbf16>, vector<1024x512xbf16>, vector<96x512xf32> -> vector<96x512xf32>
    %16 = arith.addf %10, %15 : vector<96x512xf32>
    %c0_17 = arith.constant 0 : index
    %c0_18 = arith.constant 0 : index
    %17 = vector.load %arg4[%c0_17, %c0_18] : memref<1x512xf32, #tpu.memory_space<vmem>>, vector<1x512xf32>
    %18 = vector.broadcast %17 : vector<1x512xf32> to vector<96x512xf32>
    %19 = arith.mulf %16, %18 : vector<96x512xf32>
    %c0_19 = arith.constant 0 : index
    %c0_20 = arith.constant 0 : index
    %20 = vector.load %arg5[%c0_19, %c0_20] : memref<1x512xf32, #tpu.memory_space<vmem>>, vector<1x512xf32>
    %21 = vector.broadcast %20 : vector<1x512xf32> to vector<96x512xf32>
    %22 = arith.addf %19, %21 : vector<96x512xf32>
    %cst_21 = arith.constant 0.000000e+00 : f32
    %23 = vector.broadcast %cst_21 : f32 to vector<96x512xf32>
    %24 = arith.maximumf %22, %23 : vector<96x512xf32>
    %c0_22 = arith.constant 0 : index
    %c0_23 = arith.constant 0 : index
    %c0_24 = arith.constant 0 : index
    %25 = vector.load %arg2[%c0_22, %c0_23, %c0_24] : memref<1x96x512xbf16, #tpu.memory_space<vmem>>, vector<1x96x512xbf16>
    %26 = vector.shape_cast %25 : vector<1x96x512xbf16> to vector<96x512xbf16>
    %27 = arith.extf %26 : vector<96x512xbf16> to vector<96x512xf32>
    %28 = arith.addf %24, %27 : vector<96x512xf32>
    %29 = arith.truncf %28 : vector<96x512xf32> to vector<96x512xbf16>
    %cst_25 = arith.constant 0.000000e+00 : bf16
    %30 = vector.broadcast %cst_25 : bf16 to vector<1x512xbf16>
    %c0_26 = arith.constant 0 : index
    %c0_27 = arith.constant 0 : index
    %31 = vector.load %arg10[%c0_26, %c0_27] : memref<98x512xbf16, #tpu.memory_space<vmem>>, vector<1x512xbf16>
    tpu.vector_store %arg10[%c0_26, %c0_27], %30 {strides = array<i32>} : memref<98x512xbf16, #tpu.memory_space<vmem>>, vector<1x512xbf16>,
    %c1_28 = arith.constant 1 : index
    %c0_29 = arith.constant 0 : index
    %32 = vector.load %arg10[%c1_28, %c0_29] : memref<98x512xbf16, #tpu.memory_space<vmem>>, vector<96x512xbf16>
    tpu.vector_store %arg10[%c1_28, %c0_29], %29 {strides = array<i32>} : memref<98x512xbf16, #tpu.memory_space<vmem>>, vector<96x512xbf16>,
    %c97 = arith.constant 97 : index
    %c0_30 = arith.constant 0 : index
    %33 = vector.load %arg10[%c97, %c0_30] : memref<98x512xbf16, #tpu.memory_space<vmem>>, vector<1x512xbf16>
    tpu.vector_store %arg10[%c97, %c0_30], %30 {strides = array<i32>} : memref<98x512xbf16, #tpu.memory_space<vmem>>, vector<1x512xbf16>,
    %c0_31 = arith.constant 0 : index
    %c0_32 = arith.constant 0 : index
    %34 = vector.load %arg10[%c0_31, %c0_32] : memref<98x512xbf16, #tpu.memory_space<vmem>>, vector<96x512xbf16>
    %c0_33 = arith.constant 0 : index
    %c0_34 = arith.constant 0 : index
    %c0_35 = arith.constant 0 : index
    %35 = vector.load %arg6[%c0_33, %c0_34, %c0_35] : memref<3x512x384xbf16, #tpu.memory_space<vmem>>, vector<1x512x384xbf16>
    %36 = vector.shape_cast %35 : vector<1x512x384xbf16> to vector<512x384xbf16>
    %cst_36 = arith.constant dense<0.000000e+00> : vector<96x384xf32>
    %37 = tpu.matmul %34, %36, %cst_36 {dimension_numbers = #tpu.dot_dimension_numbers<[1], [0], [0], [1], [0, 0, 1, 1], [], []>} : vector<96x512xbf16>, vector<512x384xbf16>, vector<96x384xf32> -> vector<96x384xf32>
    %c1_37 = arith.constant 1 : index
    %c0_38 = arith.constant 0 : index
    %38 = vector.load %arg10[%c1_37, %c0_38] : memref<98x512xbf16, #tpu.memory_space<vmem>>, vector<96x512xbf16>
    %c1_39 = arith.constant 1 : index
    %c0_40 = arith.constant 0 : index
    %c0_41 = arith.constant 0 : index
    %39 = vector.load %arg6[%c1_39, %c0_40, %c0_41] : memref<3x512x384xbf16, #tpu.memory_space<vmem>>, vector<1x512x384xbf16>
    %40 = vector.shape_cast %39 : vector<1x512x384xbf16> to vector<512x384xbf16>
    %cst_42 = arith.constant dense<0.000000e+00> : vector<96x384xf32>
    %41 = tpu.matmul %38, %40, %cst_42 {dimension_numbers = #tpu.dot_dimension_numbers<[1], [0], [0], [1], [0, 0, 1, 1], [], []>} : vector<96x512xbf16>, vector<512x384xbf16>, vector<96x384xf32> -> vector<96x384xf32>
    %42 = arith.addf %37, %41 : vector<96x384xf32>
    %c2_43 = arith.constant 2 : index
    %c0_44 = arith.constant 0 : index
    %43 = vector.load %arg10[%c2_43, %c0_44] : memref<98x512xbf16, #tpu.memory_space<vmem>>, vector<96x512xbf16>
    %c2_45 = arith.constant 2 : index
    %c0_46 = arith.constant 0 : index
    %c0_47 = arith.constant 0 : index
    %44 = vector.load %arg6[%c2_45, %c0_46, %c0_47] : memref<3x512x384xbf16, #tpu.memory_space<vmem>>, vector<1x512x384xbf16>
    %45 = vector.shape_cast %44 : vector<1x512x384xbf16> to vector<512x384xbf16>
    %cst_48 = arith.constant dense<0.000000e+00> : vector<96x384xf32>
    %46 = tpu.matmul %43, %45, %cst_48 {dimension_numbers = #tpu.dot_dimension_numbers<[1], [0], [0], [1], [0, 0, 1, 1], [], []>} : vector<96x512xbf16>, vector<512x384xbf16>, vector<96x384xf32> -> vector<96x384xf32>
    %47 = arith.addf %42, %46 : vector<96x384xf32>
    %c0_49 = arith.constant 0 : index
    %c0_50 = arith.constant 0 : index
    %48 = vector.load %arg7[%c0_49, %c0_50] : memref<1x384xf32, #tpu.memory_space<vmem>>, vector<1x384xf32>
    %49 = vector.broadcast %48 : vector<1x384xf32> to vector<96x384xf32>
    %50 = arith.mulf %47, %49 : vector<96x384xf32>
    %c0_51 = arith.constant 0 : index
    %c0_52 = arith.constant 0 : index
    %51 = vector.load %arg8[%c0_51, %c0_52] : memref<1x384xf32, #tpu.memory_space<vmem>>, vector<1x384xf32>
    %52 = vector.broadcast %51 : vector<1x384xf32> to vector<96x384xf32>
    %53 = arith.addf %50, %52 : vector<96x384xf32>
    %cst_53 = arith.constant 0.000000e+00 : f32
    %54 = vector.broadcast %cst_53 : f32 to vector<96x384xf32>
    %55 = arith.maximumf %53, %54 : vector<96x384xf32>
    %56 = arith.truncf %55 : vector<96x384xf32> to vector<96x384xbf16>
    %c0_54 = arith.constant 0 : index
    %c0_55 = arith.constant 0 : index
    %c0_56 = arith.constant 0 : index
    %57 = vector.load %arg9[%c0_54, %c0_55, %c0_56] : memref<1x96x384xbf16, #tpu.memory_space<vmem>>, vector<1x96x384xbf16>
    %58 = vector.shape_cast %57 : vector<1x96x384xbf16> to vector<96x384xbf16>
    %59 = vector.shape_cast %56 : vector<96x384xbf16> to vector<1x96x384xbf16>
    tpu.vector_store %arg9[%c0_54, %c0_55, %c0_56], %59 {strides = array<i32>} : memref<1x96x384xbf16, #tpu.memory_space<vmem>>, vector<1x96x384xbf16>,
    return
  }
  func.func @transform_0(%arg0: i32) -> (i32, i32, i32) {
    %c0_i32 = arith.constant 0 : i32
    %c0_i32_0 = arith.constant 0 : i32
    %c0_i32_1 = arith.constant 0 : i32
    return %arg0, %c0_i32, %c0_i32_0 : i32, i32, i32
  }
  func.func @transform_1(%arg0: i32) -> (i32, i32, i32) {
    %c0_i32 = arith.constant 0 : i32
    %c0_i32_0 = arith.constant 0 : i32
    %c0_i32_1 = arith.constant 0 : i32
    return %arg0, %c0_i32, %c0_i32_0 : i32, i32, i32
  }
  func.func @transform_2(%arg0: i32) -> (i32, i32, i32) {
    %c0_i32 = arith.constant 0 : i32
    %c0_i32_0 = arith.constant 0 : i32
    %c0_i32_1 = arith.constant 0 : i32
    %c0_i32_2 = arith.constant 0 : i32
    return %c0_i32, %c0_i32_0, %c0_i32_1 : i32, i32, i32
  }
  func.func @transform_3(%arg0: i32) -> (i32, i32) {
    %c0_i32 = arith.constant 0 : i32
    %c0_i32_0 = arith.constant 0 : i32
    %c0_i32_1 = arith.constant 0 : i32
    return %c0_i32, %c0_i32_0 : i32, i32
  }
  func.func @transform_4(%arg0: i32) -> (i32, i32) {
    %c0_i32 = arith.constant 0 : i32
    %c0_i32_0 = arith.constant 0 : i32
    %c0_i32_1 = arith.constant 0 : i32
    return %c0_i32, %c0_i32_0 : i32, i32
  }
  func.func @transform_5(%arg0: i32) -> (i32, i32, i32) {
    %c0_i32 = arith.constant 0 : i32
    %c0_i32_0 = arith.constant 0 : i32
    %c0_i32_1 = arith.constant 0 : i32
    %c0_i32_2 = arith.constant 0 : i32
    return %c0_i32, %c0_i32_0, %c0_i32_1 : i32, i32, i32
  }
  func.func @transform_6(%arg0: i32) -> (i32, i32) {
    %c0_i32 = arith.constant 0 : i32
    %c0_i32_0 = arith.constant 0 : i32
    %c0_i32_1 = arith.constant 0 : i32
    return %c0_i32, %c0_i32_0 : i32, i32
  }
  func.func @transform_7(%arg0: i32) -> (i32, i32) {
    %c0_i32 = arith.constant 0 : i32
    %c0_i32_0 = arith.constant 0 : i32
    %c0_i32_1 = arith.constant 0 : i32
    return %c0_i32, %c0_i32_0 : i32, i32
  }
  func.func @transform_8(%arg0: i32) -> (i32, i32, i32) {
    %c0_i32 = arith.constant 0 : i32
    %c0_i32_0 = arith.constant 0 : i32
    %c0_i32_1 = arith.constant 0 : i32
    return %arg0, %c0_i32, %c0_i32_0 : i32, i32, i32
  }
}

</mosaic_0001>

<llo_original>
// kernel: _ec_forward.1
$region0: #{_ec_forward.1}
  #allocation0 [shape = 'u32[]', space=smem, size = 0x4, offset = 0x4, fixed_abs, tag = 'smem constant byte address 0x4 - core index']
  #allocation1 [shape = 'u32[144,128]{1,0:T(1,128)}', space=vmem, size = 0x12000, scoped, tag = 'internal scratch']
  #allocation2 [shape = 'bf16[98,512]{1,0:T(8,128)(2,1)}', space=vmem, size = 0x1a000, scoped, tag = 'scratch operand']
  %s0 = inlined_call_operand.vmem [shape: bf16[2,98,1024], index: 0, kind: input, shape index: {}]
  %s1 = inlined_call_operand.vmem [shape: bf16[2,96,512], index: 1, kind: input, shape index: {}]
  %s2 = inlined_call_operand.vmem [shape: bf16[3,1024,512], index: 2, kind: input, shape index: {}]
  %s3 = inlined_call_operand.vmem [shape: f32[1,512], index: 3, kind: input, shape index: {}]
  %s4 = inlined_call_operand.vmem [shape: f32[1,512], index: 4, kind: input, shape index: {}]
  %s5 = inlined_call_operand.vmem [shape: bf16[3,512,384], index: 5, kind: input, shape index: {}]
  %s6 = inlined_call_operand.vmem [shape: f32[1,384], index: 6, kind: input, shape index: {}]
  %s7 = inlined_call_operand.vmem [shape: f32[1,384], index: 7, kind: input, shape index: {}]
  %s8 = inlined_call_operand.vmem [shape: bf16[2,96,384], index: 8, kind: output, shape index: {}]
  %s9 = sld [smem:[#allocation0]]
  $region65: #{_ec_forward.1} parent=0
    _
  %s11 = ssub.s32 1, %s9
  %s12 = scalar_select 0, %s11, %s9
  loop: start=0, step=1, limit=4
  $region2: #{_ec_forward.1} parent=0 // loop_pre_header
    _
  $region3: #{_ec_forward.1} parent=0 // loop_header
    %s14 = sphi 0, %s18
    %p15 = scmp.ge.s32.totalorder %s14, 4
    %s24 = sphi 0, %s26
    %s27 = sphi 0, %s24
    %s28 = sphi 0, %s27
    %s44 = sphi 0, %s28
    %s50 = sphi 0, %s52
    %s53 = sphi 0, %s50
    %s54 = sphi 0, %s53
    %s70 = sphi 0, %s54
    %s74 = sphi 0, %s74
    %s76 = sphi 0, %s74
    %s77 = sphi 0, %s76
    %s91 = sphi 0, %s77
    %s95 = sphi 0, %s95
    %s97 = sphi 0, %s95
    %s98 = sphi 0, %s97
    %s112 = sphi 0, %s98
    %s116 = sphi 0, %s116
    %s118 = sphi 0, %s116
    %s119 = sphi 0, %s118
    %s133 = sphi 0, %s119
    %s137 = sphi 0, %s137
    %s139 = sphi 0, %s137
    %s140 = sphi 0, %s139
    %s154 = sphi 0, %s140
    %s158 = sphi 0, %s158
    %s160 = sphi 0, %s158
    %s161 = sphi 0, %s160
    %s175 = sphi 0, %s161
    %s179 = sphi 0, %s179
    %s181 = sphi 0, %s179
    %s182 = sphi 0, %s181
    %s196 = sphi 0, %s182
    %s202 = sphi 0, %s204
    %s205 = sphi 0, %s202
    %s206 = sphi 0, %s205
    %s222 = sphi 0, %s206
  $region4: #{_ec_forward.1} parent=0 // loop_header_branch
    %17 = sbr.rel (%p15) target = $region8
  $region5: #{_ec_forward.1} parent=0 // loop_body
    %s19 = ssub.s32 %s14, 1
    %s20 = ssub.s32 %s14, 2
    %s21 = sadd.s32 %s14, 1
    %s22 = ssub.s32 %s14, %s21
    %p23 = scmp.eq.s32.totalorder %s22, 0
    %s25 = sadd.s32 %s24, 1
    %s26 = scalar_select %p23, %s24, %s25
    %p29 = pneg %p23
    %p30 = scmp.eq.s32.totalorder %s14, 1
    %p31 = por %p29, %p30
    %p32 = scmp.ne.s32.totalorder %s24, %s27
    %p33 = scmp.eq.s32.totalorder %s14, 0
    %p34 = por %p32, %p33
    %p35 = scmp.ne.s32.totalorder %s24, %s27
    %p36 = scmp.eq.s32.totalorder %s19, 1
    %p37 = por %p35, %p36
    %p38 = scmp.ne.s32.totalorder %s27, %s28
    %p39 = scmp.eq.s32.totalorder %s19, 0
    %p40 = por %p38, %p39
    %p41 = scmp.ne.s32.totalorder %s27, %s28
    %p42 = scmp.eq.s32.totalorder %s20, 1
    %p43 = por %p41, %p42
    %p45 = scmp.ne.s32.totalorder %s28, %s44
    %p46 = scmp.eq.s32.totalorder %s20, 0
    %p47 = por %p45, %p46
    %s48 = ssub.s32 %s14, %s21
    %p49 = scmp.eq.s32.totalorder %s48, 0
    %s51 = sadd.s32 %s50, 1
    %s52 = scalar_select %p49, %s50, %s51
    %p55 = pneg %p49
    %p56 = scmp.eq.s32.totalorder %s14, 1
    %p57 = por %p55, %p56
    %p58 = scmp.ne.s32.totalorder %s50, %s53
    %p59 = scmp.eq.s32.totalorder %s14, 0
    %p60 = por %p58, %p59
    %p61 = scmp.ne.s32.totalorder %s50, %s53
    %p62 = scmp.eq.s32.totalorder %s19, 1
    %p63 = por %p61, %p62
    %p64 = scmp.ne.s32.totalorder %s53, %s54
    %p65 = scmp.eq.s32.totalorder %s19, 0
    %p66 = por %p64, %p65
    %p67 = scmp.ne.s32.totalorder %s53, %s54
    %p68 = scmp.eq.s32.totalorder %s20, 1
    %p69 = por %p67, %p68
    %p71 = scmp.ne.s32.totalorder %s54, %s70
    %p72 = scmp.eq.s32.totalorder %s20, 0
    %p73 = por %p71, %p72
    %s75 = sadd.s32 %s74, 1
    %p78 = scmp.eq.s32.totalorder %s14, 1
    %p79 = scmp.ne.s32.totalorder %s74, %s76
    %p80 = scmp.eq.s32.totalorder %s14, 0
    %p81 = por %p79, %p80
    %p82 = scmp.ne.s32.totalorder %s74, %s76
    %p83 = scmp.eq.s32.totalorder %s19, 1
    %p84 = por %p82, %p83
    %p85 = scmp.ne.s32.totalorder %s76, %s77
    %p86 = scmp.eq.s32.totalorder %s19, 0
    %p87 = por %p85, %p86
    %p88 = scmp.ne.s32.totalorder %s76, %s77
    %p89 = scmp.eq.s32.totalorder %s20, 1
    %p90 = por %p88, %p89
    %p92 = scmp.ne.s32.totalorder %s77, %s91
    %p93 = scmp.eq.s32.totalorder %s20, 0
    %p94 = por %p92, %p93
    %s96 = sadd.s32 %s95, 1
    %p99 = scmp.eq.s32.totalorder %s14, 1
    %p100 = scmp.ne.s32.totalorder %s95, %s97
    %p101 = scmp.eq.s32.totalorder %s14, 0
    %p102 = por %p100, %p101
    %p103 = scmp.ne.s32.totalorder %s95, %s97
    %p104 = scmp.eq.s32.totalorder %s19, 1
    %p105 = por %p103, %p104
    %p106 = scmp.ne.s32.totalorder %s97, %s98
    %p107 = scmp.eq.s32.totalorder %s19, 0
    %p108 = por %p106, %p107
    %p109 = scmp.ne.s32.totalorder %s97, %s98
    %p110 = scmp.eq.s32.totalorder %s20, 1
    %p111 = por %p109, %p110
    %p113 = scmp.ne.s32.totalorder %s98, %s112
    %p114 = scmp.eq.s32.totalorder %s20, 0
    %p115 = por %p113, %p114
    %s117 = sadd.s32 %s116, 1
    %p120 = scmp.eq.s32.totalorder %s14, 1
    %p121 = scmp.ne.s32.totalorder %s116, %s118
    %p122 = scmp.eq.s32.totalorder %s14, 0
    %p123 = por %p121, %p122
    %p124 = scmp.ne.s32.totalorder %s116, %s118
    %p125 = scmp.eq.s32.totalorder %s19, 1
    %p126 = por %p124, %p125
    %p127 = scmp.ne.s32.totalorder %s118, %s119
    %p128 = scmp.eq.s32.totalorder %s19, 0
    %p129 = por %p127, %p128
    %p130 = scmp.ne.s32.totalorder %s118, %s119
    %p131 = scmp.eq.s32.totalorder %s20, 1
    %p132 = por %p130, %p131
    %p134 = scmp.ne.s32.totalorder %s119, %s133
    %p135 = scmp.eq.s32.totalorder %s20, 0
    %p136 = por %p134, %p135
    %s138 = sadd.s32 %s137, 1
    %p141 = scmp.eq.s32.totalorder %s14, 1
    %p142 = scmp.ne.s32.totalorder %s137, %s139
    %p143 = scmp.eq.s32.totalorder %s14, 0
    %p144 = por %p142, %p143
    %p145 = scmp.ne.s32.totalorder %s137, %s139
    %p146 = scmp.eq.s32.totalorder %s19, 1
    %p147 = por %p145, %p146
    %p148 = scmp.ne.s32.totalorder %s139, %s140
    %p149 = scmp.eq.s32.totalorder %s19, 0
    %p150 = por %p148, %p149
    %p151 = scmp.ne.s32.totalorder %s139, %s140
    %p152 = scmp.eq.s32.totalorder %s20, 1
    %p153 = por %p151, %p152
    %p155 = scmp.ne.s32.totalorder %s140, %s154
    %p156 = scmp.eq.s32.totalorder %s20, 0
    %p157 = por %p155, %p156
    %s159 = sadd.s32 %s158, 1
    %p162 = scmp.eq.s32.totalorder %s14, 1
    %p163 = scmp.ne.s32.totalorder %s158, %s160
    %p164 = scmp.eq.s32.totalorder %s14, 0
    %p165 = por %p163, %p164
    %p166 = scmp.ne.s32.totalorder %s158, %s160
    %p167 = scmp.eq.s32.totalorder %s19, 1
    %p168 = por %p166, %p167
    %p169 = scmp.ne.s32.totalorder %s160, %s161
    %p170 = scmp.eq.s32.totalorder %s19, 0
    %p171 = por %p169, %p170
    %p172 = scmp.ne.s32.totalorder %s160, %s161
    %p173 = scmp.eq.s32.totalorder %s20, 1
    %p174 = por %p172, %p173
    %p176 = scmp.ne.s32.totalorder %s161, %s175
    %p177 = scmp.eq.s32.totalorder %s20, 0
    %p178 = por %p176, %p177
    %s180 = sadd.s32 %s179, 1
    %p183 = scmp.eq.s32.totalorder %s14, 1
    %p184 = scmp.ne.s32.totalorder %s179, %s181
    %p185 = scmp.eq.s32.totalorder %s14, 0
    %p186 = por %p184, %p185
    %p187 = scmp.ne.s32.totalorder %s179, %s181
    %p188 = scmp.eq.s32.totalorder %s19, 1
    %p189 = por %p187, %p188
    %p190 = scmp.ne.s32.totalorder %s181, %s182
    %p191 = scmp.eq.s32.totalorder %s19, 0
    %p192 = por %p190, %p191
    %p193 = scmp.ne.s32.totalorder %s181, %s182
    %p194 = scmp.eq.s32.totalorder %s20, 1
    %p195 = por %p193, %p194
    %p197 = scmp.ne.s32.totalorder %s182, %s196
    %p198 = scmp.eq.s32.totalorder %s20, 0
    %p199 = por %p197, %p198
    %s200 = ssub.s32 %s14, %s21
    %p201 = scmp.eq.s32.totalorder %s200, 0
    %s203 = sadd.s32 %s202, 1
    %s204 = scalar_select %p201, %s202, %s203
    %p207 = pneg %p201
    %p208 = scmp.eq.s32.totalorder %s14, 1
    %p209 = por %p207, %p208
    %p210 = scmp.ne.s32.totalorder %s202, %s205
    %p211 = scmp.eq.s32.totalorder %s14, 0
    %p212 = por %p210, %p211
    %p213 = scmp.ne.s32.totalorder %s202, %s205
    %p214 = scmp.eq.s32.totalorder %s19, 1
    %p215 = por %p213, %p214
    %p216 = scmp.ne.s32.totalorder %s205, %s206
    %p217 = scmp.eq.s32.totalorder %s19, 0
    %p218 = por %p216, %p217
    %p219 = scmp.ne.s32.totalorder %s205, %s206
    %p220 = scmp.eq.s32.totalorder %s20, 1
    %p221 = por %p219, %p220
    %p223 = scmp.ne.s32.totalorder %s206, %s222
    %p224 = scmp.eq.s32.totalorder %s20, 0
    %p225 = por %p223, %p224
    %p226 = scmp.le.s32.totalorder 1, %s14
    %p227 = scmp.lt.s32.totalorder %s14, 3
    %p228 = pnand %p226, %p227
    %p229 = pneg %p228
    // Predicated region
    $region9: #{_ec_forward.1} parent=5 // pred_check
      _
    $region10: #{_ec_forward.1} parent=5 // pred_check_branch
      %231 = sbr.rel (%p228) target = $region12
    $region11: #{_ec_forward.1} parent=5 // pred_region
      %s232 = ssub.s32 %s14, 1
      // Predicated region
      $region13: #{_ec_forward.1} parent=11 // pred_check
        %p233 = pneg %p87
      $region14: #{_ec_forward.1} parent=11 // pred_check_branch
        %235 = sbr.rel (%p233) target = $region16
      $region15: #{_ec_forward.1} parent=11 // pred_region
        _
      $region16: #{_ec_forward.1} parent=11 // pred_fallthru
        _
      // Predicated region
      $region17: #{_ec_forward.1} parent=11 // pred_check
        %p236 = pneg %p108
      $region18: #{_ec_forward.1} parent=11 // pred_check_branch
        %238 = sbr.rel (%p236) target = $region20
      $region19: #{_ec_forward.1} parent=11 // pred_region
        _
      $region20: #{_ec_forward.1} parent=11 // pred_fallthru
        _
      // Predicated region
      $region21: #{_ec_forward.1} parent=11 // pred_check
        %p239 = pneg %p129
      $region22: #{_ec_forward.1} parent=11 // pred_check_branch
        %241 = sbr.rel (%p239) target = $region24
      $region23: #{_ec_forward.1} parent=11 // pred_region
        _
      $region24: #{_ec_forward.1} parent=11 // pred_fallthru
        _
      // Predicated region
      $region25: #{_ec_forward.1} parent=11 // pred_check
        %p242 = pneg %p150
      $region26: #{_ec_forward.1} parent=11 // pred_check_branch
        %244 = sbr.rel (%p242) target = $region28
      $region27: #{_ec_forward.1} parent=11 // pred_region
        _
      $region28: #{_ec_forward.1} parent=11 // pred_fallthru
        _
      // Predicated region
      $region29: #{_ec_forward.1} parent=11 // pred_check
        %p245 = pneg %p171
      $region30: #{_ec_forward.1} parent=11 // pred_check_branch
        %247 = sbr.rel (%p245) target = $region32
      $region31: #{_ec_forward.1} parent=11 // pred_region
        _
      $region32: #{_ec_forward.1} parent=11 // pred_fallthru
        _
      // Predicated region
      $region33: #{_ec_forward.1} parent=11 // pred_check
        %p248 = pneg %p192
      $region34: #{_ec_forward.1} parent=11 // pred_check_branch
        %250 = sbr.rel (%p248) target = $region36
      $region35: #{_ec_forward.1} parent=11 // pred_region
        _
      $region36: #{_ec_forward.1} parent=11 // pred_fallthru
        _
    $region12: #{_ec_forward.1} parent=5 // pred_fallthru
      _
    %p251 = scmp.lt.s32.totalorder %s14, 2
    // Predicated region
    $region37: #{_ec_forward.1} parent=5 // pred_check
      %p252 = pneg %p251
    $region38: #{_ec_forward.1} parent=5 // pred_check_branch
      %254 = sbr.rel (%p252) target = $region40
    $region39: #{_ec_forward.1} parent=5 // pred_region
      // Predicated region
      $region41: #{_ec_forward.1} parent=39 // pred_check
        %p255 = pneg %p34
      $region42: #{_ec_forward.1} parent=39 // pred_check_branch
        %257 = sbr.rel (%p255) target = $region44
      $region43: #{_ec_forward.1} parent=39 // pred_region
        %p258 = scmp.lt.s32.totalorder %s14, 1
        %s259 = scalar_select %p258, %s14, 1
        %s260 = smul.addr %s259, 104
        %s261 = smul.addr %s260, 4
        %s262 = scalar_lea.vmem %s0, %s261
      $region44: #{_ec_forward.1} parent=39 // pred_fallthru
        _
      // Predicated region
      $region45: #{_ec_forward.1} parent=39 // pred_check
        %p263 = pneg %p60
      $region46: #{_ec_forward.1} parent=39 // pred_check_branch
        %265 = sbr.rel (%p263) target = $region48
      $region47: #{_ec_forward.1} parent=39 // pred_region
        %p266 = scmp.lt.s32.totalorder %s14, 1
        %s267 = scalar_select %p266, %s14, 1
        %s268 = smul.addr %s267, 48
        %s269 = smul.addr %s268, 4
        %s270 = scalar_lea.vmem %s1, %s269
      $region48: #{_ec_forward.1} parent=39 // pred_fallthru
        _
    $region40: #{_ec_forward.1} parent=5 // pred_fallthru
      _
    %p271 = scmp.le.s32.totalorder 1, %s14
    %p272 = scmp.lt.s32.totalorder %s14, 3
    %p273 = pnand %p271, %p272
    %p274 = pneg %p273
    // Predicated region
    $region49: #{_ec_forward.1} parent=5 // pred_check
      _
    $region50: #{_ec_forward.1} parent=5 // pred_check_branch
      %276 = sbr.rel (%p273) target = $region52
    $region51: #{_ec_forward.1} parent=5 // pred_region
      %s277 = ssub.s32 %s14, 1
      %p278 = scmp.lt.s32.totalorder %s19, 1
      %s279 = scalar_select %p278, %s19, 1
      %s280 = smul.addr %s279, 104
      %s281 = smul.addr %s280, 4
      %s282 = scalar_lea.vmem %s0, %s281
      %p283 = pneg %p40
      %p284 = pneg %p37
      %p285 = scmp.lt.s32.totalorder %s19, 1
      %s286 = scalar_select %p285, %s19, 1
      %s287 = smul.addr %s286, 48
      %s288 = smul.addr %s287, 4
      %s289 = scalar_lea.vmem %s1, %s288
      %p290 = pneg %p66
      %p291 = pneg %p63
      %p292 = pneg %p87
      %p293 = pneg %p84
      %p294 = pneg %p108
      %p295 = pneg %p105
      %p296 = pneg %p129
      %p297 = pneg %p126
      %p298 = pneg %p150
      %p299 = pneg %p147
      %p300 = pneg %p171
      %p301 = pneg %p168
      %p302 = pneg %p192
      %p303 = pneg %p189
      %p304 = pneg %p218
      %p305 = pneg %p215
      %p306 = scmp.lt.s32.totalorder %s19, 1
      %s307 = scalar_select %p306, %s19, 1
      %s308 = smul.addr %s307, 36
      %s309 = smul.addr %s308, 4
      %s310 = scalar_lea.vmem %s8, %s309
      %p311 = scmp.lt.s32.totalorder %s19, 1
      %s312 = scalar_select %p311, %s19, 1
      %s313 = smul.addr %s312, 104
      %s314 = smul.addr %s313, 4
      %s315 = scalar_lea.vmem %s0, %s314
      %p316 = scmp.lt.s32.totalorder %s19, 1
      %s317 = scalar_select %p316, %s19, 1
      %s318 = smul.addr %s317, 48
      %s319 = smul.addr %s318, 4
      %s320 = scalar_lea.vmem %s1, %s319
      %p321 = scmp.lt.s32.totalorder %s19, 1
      %s322 = scalar_select %p321, %s19, 1
      %s323 = smul.addr %s322, 36
      %s324 = smul.addr %s323, 4
      %s325 = scalar_lea.vmem %s8, %s324
      %v327 = vld [vmem:[%s315] sm:$0xff]
      %v328 = vld [vmem:[%s315 + $0x8] sm:$0xff]
      %v329 = vld [vmem:[%s315 + $0x10] sm:$0xff]
      %v330 = vld [vmem:[%s315 + $0x18] sm:$0xff]
      %v331 = vld [vmem:[%s315 + $0x20] sm:$0xff]
      %v332 = vld [vmem:[%s315 + $0x28] sm:$0xff]
      %v333 = vld [vmem:[%s315 + $0x30] sm:$0xff]
      %v334 = vld [vmem:[%s315 + $0x38] sm:$0xff]
      %v335 = vld [vmem:[%s315 + $0x40] sm:$0xff]
      %v336 = vld [vmem:[%s315 + $0x48] sm:$0xff]
      %v337 = vld [vmem:[%s315 + $0x50] sm:$0xff]
      %v338 = vld [vmem:[%s315 + $0x58] sm:$0xff]
      %v339 = vld [vmem:[%s315 + $0x60] sm:$0xff]
      %v340 = vld [vmem:[%s315 + $0x68] sm:$0xff]
      %v341 = vld [vmem:[%s315 + $0x70] sm:$0xff]
      %v342 = vld [vmem:[%s315 + $0x78] sm:$0xff]
      %v343 = vld [vmem:[%s315 + $0x80] sm:$0xff]
      %v344 = vld [vmem:[%s315 + $0x88] sm:$0xff]
      %v345 = vld [vmem:[%s315 + $0x90] sm:$0xff]
      %v346 = vld [vmem:[%s315 + $0x98] sm:$0xff]
      %v347 = vld [vmem:[%s315 + $0xa0] sm:$0xff]
      %v348 = vld [vmem:[%s315 + $0xa8] sm:$0xff]
      %v349 = vld [vmem:[%s315 + $0xb0] sm:$0xff]
      %v350 = vld [vmem:[%s315 + $0xb8] sm:$0xff]
      %v351 = vld [vmem:[%s315 + $0xc0] sm:$0xff]
      %v352 = vld [vmem:[%s315 + $0xc8] sm:$0xff]
      %v353 = vld [vmem:[%s315 + $0xd0] sm:$0xff]
      %v354 = vld [vmem:[%s315 + $0xd8] sm:$0xff]
      %v355 = vld [vmem:[%s315 + $0xe0] sm:$0xff]
      %v356 = vld [vmem:[%s315 + $0xe8] sm:$0xff]
      %v357 = vld [vmem:[%s315 + $0xf0] sm:$0xff]
      %v358 = vld [vmem:[%s315 + $0xf8] sm:$0xff]
      %v359 = vld [vmem:[%s315 + $0x100] sm:$0xff]
      %v360 = vld [vmem:[%s315 + $0x108] sm:$0xff]
      %v361 = vld [vmem:[%s315 + $0x110] sm:$0xff]
      %v362 = vld [vmem:[%s315 + $0x118] sm:$0xff]
      %v363 = vld [vmem:[%s315 + $0x120] sm:$0xff]
      %v364 = vld [vmem:[%s315 + $0x128] sm:$0xff]
      %v365 = vld [vmem:[%s315 + $0x130] sm:$0xff]
      %v366 = vld [vmem:[%s315 + $0x138] sm:$0xff]
      %v367 = vld [vmem:[%s315 + $0x140] sm:$0xff]
      %v368 = vld [vmem:[%s315 + $0x148] sm:$0xff]
      %v369 = vld [vmem:[%s315 + $0x150] sm:$0xff]
      %v370 = vld [vmem:[%s315 + $0x158] sm:$0xff]
      %v371 = vld [vmem:[%s315 + $0x160] sm:$0xff]
      %v372 = vld [vmem:[%s315 + $0x168] sm:$0xff]
      %v373 = vld [vmem:[%s315 + $0x170] sm:$0xff]
      %v374 = vld [vmem:[%s315 + $0x178] sm:$0xff]
      %v375 = vld [vmem:[%s2] sm:$0xff]
      %v376 = vld [vmem:[%s2 + $0x8] sm:$0xff]
      %v377 = vld [vmem:[%s2 + $0x10] sm:$0xff]
      %v378 = vld [vmem:[%s2 + $0x18] sm:$0xff]
      %v379 = vld [vmem:[%s2 + $0x20] sm:$0xff]
      %v380 = vld [vmem:[%s2 + $0x28] sm:$0xff]
      %v381 = vld [vmem:[%s2 + $0x30] sm:$0xff]
      %v382 = vld [vmem:[%s2 + $0x38] sm:$0xff]
      %v383 = vld [vmem:[%s2 + $0x40] sm:$0xff]
      %v384 = vld [vmem:[%s2 + $0x48] sm:$0xff]
      %v385 = vld [vmem:[%s2 + $0x50] sm:$0xff]
      %v386 = vld [vmem:[%s2 + $0x58] sm:$0xff]
      %v387 = vld [vmem:[%s2 + $0x60] sm:$0xff]
      %v388 = vld [vmem:[%s2 + $0x68] sm:$0xff]
      %v389 = vld [vmem:[%s2 + $0x70] sm:$0xff]
      %v390 = vld [vmem:[%s2 + $0x78] sm:$0xff]
      %v391 = vld [vmem:[%s2 + $0x80] sm:$0xff]
      %v392 = vld [vmem:[%s2 + $0x88] sm:$0xff]
      %v393 = vld [vmem:[%s2 + $0x90] sm:$0xff]
      %v394 = vld [vmem:[%s2 + $0x98] sm:$0xff]
      %v395 = vld [vmem:[%s2 + $0xa0] sm:$0xff]
      %v396 = vld [vmem:[%s2 + $0xa8] sm:$0xff]
      %v397 = vld [vmem:[%s2 + $0xb0] sm:$0xff]
      %v398 = vld [vmem:[%s2 + $0xb8] sm:$0xff]
      %v399 = vld [vmem:[%s2 + $0xc0] sm:$0xff]
      %v400 = vld [vmem:[%s2 + $0xc8] sm:$0xff]
      %v401 = vld [vmem:[%s2 + $0xd0] sm:$0xff]
      %v402 = vld [vmem:[%s2 + $0xd8] sm:$0xff]
      %v403 = vld [vmem:[%s2 + $0xe0] sm:$0xff]
      %v404 = vld [vmem:[%s2 + $0xe8] sm:$0xff]
      %v405 = vld [vmem:[%s2 + $0xf0] sm:$0xff]
      %v406 = vld [vmem:[%s2 + $0xf8] sm:$0xff]
      %v407 = vld [vmem:[%s2 + $0x100] sm:$0xff]
      %v408 = vld [vmem:[%s2 + $0x108] sm:$0xff]
      %v409 = vld [vmem:[%s2 + $0x110] sm:$0xff]
      %v410 = vld [vmem:[%s2 + $0x118] sm:$0xff]
      %v411 = vld [vmem:[%s2 + $0x120] sm:$0xff]
      %v412 = vld [vmem:[%s2 + $0x128] sm:$0xff]
      %v413 = vld [vmem:[%s2 + $0x130] sm:$0xff]
      %v414 = vld [vmem:[%s2 + $0x138] sm:$0xff]
      %v415 = vld [vmem:[%s2 + $0x140] sm:$0xff]
      %v416 = vld [vmem:[%s2 + $0x148] sm:$0xff]
      %v417 = vld [vmem:[%s2 + $0x150] sm:$0xff]
      %v418 = vld [vmem:[%s2 + $0x158] sm:$0xff]
      %v419 = vld [vmem:[%s2 + $0x160] sm:$0xff]
      %v420 = vld [vmem:[%s2 + $0x168] sm:$0xff]
      %v421 = vld [vmem:[%s2 + $0x170] sm:$0xff]
      %v422 = vld [vmem:[%s2 + $0x178] sm:$0xff]
      %v423 = vld [vmem:[%s2 + $0x180] sm:$0xff]
      %v424 = vld [vmem:[%s2 + $0x188] sm:$0xff]
      %v425 = vld [vmem:[%s2 + $0x190] sm:$0xff]
      %v426 = vld [vmem:[%s2 + $0x198] sm:$0xff]
      %v427 = vld [vmem:[%s2 + $0x1a0] sm:$0xff]
      %v428 = vld [vmem:[%s2 + $0x1a8] sm:$0xff]
      %v429 = vld [vmem:[%s2 + $0x1b0] sm:$0xff]
      %v430 = vld [vmem:[%s2 + $0x1b8] sm:$0xff]
      %v431 = vld [vmem:[%s2 + $0x1c0] sm:$0xff]
      %v432 = vld [vmem:[%s2 + $0x1c8] sm:$0xff]
      %v433 = vld [vmem:[%s2 + $0x1d0] sm:$0xff]
      %v434 = vld [vmem:[%s2 + $0x1d8] sm:$0xff]
      %v435 = vld [vmem:[%s2 + $0x1e0] sm:$0xff]
      %v436 = vld [vmem:[%s2 + $0x1e8] sm:$0xff]
      %v437 = vld [vmem:[%s2 + $0x1f0] sm:$0xff]
      %v438 = vld [vmem:[%s2 + $0x1f8] sm:$0xff]
      %v439 = vld [vmem:[%s2 + $0x200] sm:$0xff]
      %v440 = vld [vmem:[%s2 + $0x208] sm:$0xff]
      %v441 = vld [vmem:[%s2 + $0x210] sm:$0xff]
      %v442 = vld [vmem:[%s2 + $0x218] sm:$0xff]
      %v443 = vld [vmem:[%s2 + $0x220] sm:$0xff]
      %v444 = vld [vmem:[%s2 + $0x228] sm:$0xff]
      %v445 = vld [vmem:[%s2 + $0x230] sm:$0xff]
      %v446 = vld [vmem:[%s2 + $0x238] sm:$0xff]
      %v447 = vld [vmem:[%s2 + $0x240] sm:$0xff]
      %v448 = vld [vmem:[%s2 + $0x248] sm:$0xff]
      %v449 = vld [vmem:[%s2 + $0x250] sm:$0xff]
      %v450 = vld [vmem:[%s2 + $0x258] sm:$0xff]
      %v451 = vld [vmem:[%s2 + $0x260] sm:$0xff]
      %v452 = vld [vmem:[%s2 + $0x268] sm:$0xff]
      %v453 = vld [vmem:[%s2 + $0x270] sm:$0xff]
      %v454 = vld [vmem:[%s2 + $0x278] sm:$0xff]
      %v455 = vld [vmem:[%s2 + $0x280] sm:$0xff]
      %v456 = vld [vmem:[%s2 + $0x288] sm:$0xff]
      %v457 = vld [vmem:[%s2 + $0x290] sm:$0xff]
      %v458 = vld [vmem:[%s2 + $0x298] sm:$0xff]
      %v459 = vld [vmem:[%s2 + $0x2a0] sm:$0xff]
      %v460 = vld [vmem:[%s2 + $0x2a8] sm:$0xff]
      %v461 = vld [vmem:[%s2 + $0x2b0] sm:$0xff]
      %v462 = vld [vmem:[%s2 + $0x2b8] sm:$0xff]
      %v463 = vld [vmem:[%s2 + $0x2c0] sm:$0xff]
      %v464 = vld [vmem:[%s2 + $0x2c8] sm:$0xff]
      %v465 = vld [vmem:[%s2 + $0x2d0] sm:$0xff]
      %v466 = vld [vmem:[%s2 + $0x2d8] sm:$0xff]
      %v467 = vld [vmem:[%s2 + $0x2e0] sm:$0xff]
      %v468 = vld [vmem:[%s2 + $0x2e8] sm:$0xff]
      %v469 = vld [vmem:[%s2 + $0x2f0] sm:$0xff]
      %v470 = vld [vmem:[%s2 + $0x2f8] sm:$0xff]
      %v471 = vld [vmem:[%s2 + $0x300] sm:$0xff]
      %v472 = vld [vmem:[%s2 + $0x308] sm:$0xff]
      %v473 = vld [vmem:[%s2 + $0x310] sm:$0xff]
      %v474 = vld [vmem:[%s2 + $0x318] sm:$0xff]
      %v475 = vld [vmem:[%s2 + $0x320] sm:$0xff]
      %v476 = vld [vmem:[%s2 + $0x328] sm:$0xff]
      %v477 = vld [vmem:[%s2 + $0x330] sm:$0xff]
      %v478 = vld [vmem:[%s2 + $0x338] sm:$0xff]
      %v479 = vld [vmem:[%s2 + $0x340] sm:$0xff]
      %v480 = vld [vmem:[%s2 + $0x348] sm:$0xff]
      %v481 = vld [vmem:[%s2 + $0x350] sm:$0xff]
      %v482 = vld [vmem:[%s2 + $0x358] sm:$0xff]
      %v483 = vld [vmem:[%s2 + $0x360] sm:$0xff]
      %v484 = vld [vmem:[%s2 + $0x368] sm:$0xff]
      %v485 = vld [vmem:[%s2 + $0x370] sm:$0xff]
      %v486 = vld [vmem:[%s2 + $0x378] sm:$0xff]
      %v487 = vld [vmem:[%s2 + $0x380] sm:$0xff]
      %v488 = vld [vmem:[%s2 + $0x388] sm:$0xff]
      %v489 = vld [vmem:[%s2 + $0x390] sm:$0xff]
      %v490 = vld [vmem:[%s2 + $0x398] sm:$0xff]
      %v491 = vld [vmem:[%s2 + $0x3a0] sm:$0xff]
      %v492 = vld [vmem:[%s2 + $0x3a8] sm:$0xff]
      %v493 = vld [vmem:[%s2 + $0x3b0] sm:$0xff]
      %v494 = vld [vmem:[%s2 + $0x3b8] sm:$0xff]
      %v495 = vld [vmem:[%s2 + $0x3c0] sm:$0xff]
      %v496 = vld [vmem:[%s2 + $0x3c8] sm:$0xff]
      %v497 = vld [vmem:[%s2 + $0x3d0] sm:$0xff]
      %v498 = vld [vmem:[%s2 + $0x3d8] sm:$0xff]
      %v499 = vld [vmem:[%s2 + $0x3e0] sm:$0xff]
      %v500 = vld [vmem:[%s2 + $0x3e8] sm:$0xff]
      %v501 = vld [vmem:[%s2 + $0x3f0] sm:$0xff]
      %v502 = vld [vmem:[%s2 + $0x3f8] sm:$0xff]
      %v503 = vld [vmem:[%s2 + $0x400] sm:$0xff]
      %v504 = vld [vmem:[%s2 + $0x408] sm:$0xff]
      %v505 = vld [vmem:[%s2 + $0x410] sm:$0xff]
      %v506 = vld [vmem:[%s2 + $0x418] sm:$0xff]
      %v507 = vld [vmem:[%s2 + $0x420] sm:$0xff]
      %v508 = vld [vmem:[%s2 + $0x428] sm:$0xff]
      %v509 = vld [vmem:[%s2 + $0x430] sm:$0xff]
      %v510 = vld [vmem:[%s2 + $0x438] sm:$0xff]
      %v511 = vld [vmem:[%s2 + $0x440] sm:$0xff]
      %v512 = vld [vmem:[%s2 + $0x448] sm:$0xff]
      %v513 = vld [vmem:[%s2 + $0x450] sm:$0xff]
      %v514 = vld [vmem:[%s2 + $0x458] sm:$0xff]
      %v515 = vld [vmem:[%s2 + $0x460] sm:$0xff]
      %v516 = vld [vmem:[%s2 + $0x468] sm:$0xff]
      %v517 = vld [vmem:[%s2 + $0x470] sm:$0xff]
      %v518 = vld [vmem:[%s2 + $0x478] sm:$0xff]
      %v519 = vld [vmem:[%s2 + $0x480] sm:$0xff]
      %v520 = vld [vmem:[%s2 + $0x488] sm:$0xff]
      %v521 = vld [vmem:[%s2 + $0x490] sm:$0xff]
      %v522 = vld [vmem:[%s2 + $0x498] sm:$0xff]
      %v523 = vld [vmem:[%s2 + $0x4a0] sm:$0xff]
      %v524 = vld [vmem:[%s2 + $0x4a8] sm:$0xff]
      %v525 = vld [vmem:[%s2 + $0x4b0] sm:$0xff]
      %v526 = vld [vmem:[%s2 + $0x4b8] sm:$0xff]
      %v527 = vld [vmem:[%s2 + $0x4c0] sm:$0xff]
      %v528 = vld [vmem:[%s2 + $0x4c8] sm:$0xff]
      %v529 = vld [vmem:[%s2 + $0x4d0] sm:$0xff]
      %v530 = vld [vmem:[%s2 + $0x4d8] sm:$0xff]
      %v531 = vld [vmem:[%s2 + $0x4e0] sm:$0xff]
      %v532 = vld [vmem:[%s2 + $0x4e8] sm:$0xff]
      %v533 = vld [vmem:[%s2 + $0x4f0] sm:$0xff]
      %v534 = vld [vmem:[%s2 + $0x4f8] sm:$0xff]
      %v535 = vld [vmem:[%s2 + $0x500] sm:$0xff]
      %v536 = vld [vmem:[%s2 + $0x508] sm:$0xff]
      %v537 = vld [vmem:[%s2 + $0x510] sm:$0xff]
      %v538 = vld [vmem:[%s2 + $0x518] sm:$0xff]
      %v539 = vld [vmem:[%s2 + $0x520] sm:$0xff]
      %v540 = vld [vmem:[%s2 + $0x528] sm:$0xff]
      %v541 = vld [vmem:[%s2 + $0x530] sm:$0xff]
      %v542 = vld [vmem:[%s2 + $0x538] sm:$0xff]
      %v543 = vld [vmem:[%s2 + $0x540] sm:$0xff]
      %v544 = vld [vmem:[%s2 + $0x548] sm:$0xff]
      %v545 = vld [vmem:[%s2 + $0x550] sm:$0xff]
      %v546 = vld [vmem:[%s2 + $0x558] sm:$0xff]
      %v547 = vld [vmem:[%s2 + $0x560] sm:$0xff]
      %v548 = vld [vmem:[%s2 + $0x568] sm:$0xff]
      %v549 = vld [vmem:[%s2 + $0x570] sm:$0xff]
      %v550 = vld [vmem:[%s2 + $0x578] sm:$0xff]
      %v551 = vld [vmem:[%s2 + $0x580] sm:$0xff]
      %v552 = vld [vmem:[%s2 + $0x588] sm:$0xff]
      %v553 = vld [vmem:[%s2 + $0x590] sm:$0xff]
      %v554 = vld [vmem:[%s2 + $0x598] sm:$0xff]
      %v555 = vld [vmem:[%s2 + $0x5a0] sm:$0xff]
      %v556 = vld [vmem:[%s2 + $0x5a8] sm:$0xff]
      %v557 = vld [vmem:[%s2 + $0x5b0] sm:$0xff]
      %v558 = vld [vmem:[%s2 + $0x5b8] sm:$0xff]
      %v559 = vld [vmem:[%s2 + $0x5c0] sm:$0xff]
      %v560 = vld [vmem:[%s2 + $0x5c8] sm:$0xff]
      %v561 = vld [vmem:[%s2 + $0x5d0] sm:$0xff]
      %v562 = vld [vmem:[%s2 + $0x5d8] sm:$0xff]
      %v563 = vld [vmem:[%s2 + $0x5e0] sm:$0xff]
      %v564 = vld [vmem:[%s2 + $0x5e8] sm:$0xff]
      %v565 = vld [vmem:[%s2 + $0x5f0] sm:$0xff]
      %v566 = vld [vmem:[%s2 + $0x5f8] sm:$0xff]
      %v567 = vld [vmem:[%s2 + $0x600] sm:$0xff]
      %v568 = vld [vmem:[%s2 + $0x608] sm:$0xff]
      %v569 = vld [vmem:[%s2 + $0x610] sm:$0xff]
      %v570 = vld [vmem:[%s2 + $0x618] sm:$0xff]
      %v571 = vld [vmem:[%s2 + $0x620] sm:$0xff]
      %v572 = vld [vmem:[%s2 + $0x628] sm:$0xff]
      %v573 = vld [vmem:[%s2 + $0x630] sm:$0xff]
      %v574 = vld [vmem:[%s2 + $0x638] sm:$0xff]
      %v575 = vld [vmem:[%s2 + $0x640] sm:$0xff]
      %v576 = vld [vmem:[%s2 + $0x648] sm:$0xff]
      %v577 = vld [vmem:[%s2 + $0x650] sm:$0xff]
      %v578 = vld [vmem:[%s2 + $0x658] sm:$0xff]
      %v579 = vld [vmem:[%s2 + $0x660] sm:$0xff]
      %v580 = vld [vmem:[%s2 + $0x668] sm:$0xff]
      %v581 = vld [vmem:[%s2 + $0x670] sm:$0xff]
      %v582 = vld [vmem:[%s2 + $0x678] sm:$0xff]
      %v583 = vld [vmem:[%s2 + $0x680] sm:$0xff]
      %v584 = vld [vmem:[%s2 + $0x688] sm:$0xff]
      %v585 = vld [vmem:[%s2 + $0x690] sm:$0xff]
      %v586 = vld [vmem:[%s2 + $0x698] sm:$0xff]
      %v587 = vld [vmem:[%s2 + $0x6a0] sm:$0xff]
      %v588 = vld [vmem:[%s2 + $0x6a8] sm:$0xff]
      %v589 = vld [vmem:[%s2 + $0x6b0] sm:$0xff]
      %v590 = vld [vmem:[%s2 + $0x6b8] sm:$0xff]
      %v591 = vld [vmem:[%s2 + $0x6c0] sm:$0xff]
      %v592 = vld [vmem:[%s2 + $0x6c8] sm:$0xff]
      %v593 = vld [vmem:[%s2 + $0x6d0] sm:$0xff]
      %v594 = vld [vmem:[%s2 + $0x6d8] sm:$0xff]
      %v595 = vld [vmem:[%s2 + $0x6e0] sm:$0xff]
      %v596 = vld [vmem:[%s2 + $0x6e8] sm:$0xff]
      %v597 = vld [vmem:[%s2 + $0x6f0] sm:$0xff]
      %v598 = vld [vmem:[%s2 + $0x6f8] sm:$0xff]
      %v599 = vld [vmem:[%s2 + $0x700] sm:$0xff]
      %v600 = vld [vmem:[%s2 + $0x708] sm:$0xff]
      %v601 = vld [vmem:[%s2 + $0x710] sm:$0xff]
      %v602 = vld [vmem:[%s2 + $0x718] sm:$0xff]
      %v603 = vld [vmem:[%s2 + $0x720] sm:$0xff]
      %v604 = vld [vmem:[%s2 + $0x728] sm:$0xff]
      %v605 = vld [vmem:[%s2 + $0x730] sm:$0xff]
      %v606 = vld [vmem:[%s2 + $0x738] sm:$0xff]
      %v607 = vld [vmem:[%s2 + $0x740] sm:$0xff]
      %v608 = vld [vmem:[%s2 + $0x748] sm:$0xff]
      %v609 = vld [vmem:[%s2 + $0x750] sm:$0xff]
      %v610 = vld [vmem:[%s2 + $0x758] sm:$0xff]
      %v611 = vld [vmem:[%s2 + $0x760] sm:$0xff]
      %v612 = vld [vmem:[%s2 + $0x768] sm:$0xff]
      %v613 = vld [vmem:[%s2 + $0x770] sm:$0xff]
      %v614 = vld [vmem:[%s2 + $0x778] sm:$0xff]
      %v615 = vld [vmem:[%s2 + $0x780] sm:$0xff]
      %v616 = vld [vmem:[%s2 + $0x788] sm:$0xff]
      %v617 = vld [vmem:[%s2 + $0x790] sm:$0xff]
      %v618 = vld [vmem:[%s2 + $0x798] sm:$0xff]
      %v619 = vld [vmem:[%s2 + $0x7a0] sm:$0xff]
      %v620 = vld [vmem:[%s2 + $0x7a8] sm:$0xff]
      %v621 = vld [vmem:[%s2 + $0x7b0] sm:$0xff]
      %v622 = vld [vmem:[%s2 + $0x7b8] sm:$0xff]
      %v623 = vld [vmem:[%s2 + $0x7c0] sm:$0xff]
      %v624 = vld [vmem:[%s2 + $0x7c8] sm:$0xff]
      %v625 = vld [vmem:[%s2 + $0x7d0] sm:$0xff]
      %v626 = vld [vmem:[%s2 + $0x7d8] sm:$0xff]
      %v627 = vld [vmem:[%s2 + $0x7e0] sm:$0xff]
      %v628 = vld [vmem:[%s2 + $0x7e8] sm:$0xff]
      %v629 = vld [vmem:[%s2 + $0x7f0] sm:$0xff]
      %v630 = vld [vmem:[%s2 + $0x7f8] sm:$0xff]
      %v631 = vld [vmem:[%s315 + $0x180] sm:$0x11]
      %v632 = vld [vmem:[%s315 + $0x188] sm:$0x11]
      %v633 = vld [vmem:[%s315 + $0x190] sm:$0x11]
      %v634 = vld [vmem:[%s315 + $0x198] sm:$0x11]
      %s635 = scalar_lea.vmem %s2, 2048
      %v636 = vld [vmem:[%s635] sm:$0xff]
      %v637 = vld [vmem:[%s635 + $0x8] sm:$0xff]
      %v638 = vld [vmem:[%s635 + $0x10] sm:$0xff]
      %v639 = vld [vmem:[%s635 + $0x18] sm:$0xff]
      %v640 = vld [vmem:[%s635 + $0x20] sm:$0xff]
      %v641 = vld [vmem:[%s635 + $0x28] sm:$0xff]
      %v642 = vld [vmem:[%s635 + $0x30] sm:$0xff]
      %v643 = vld [vmem:[%s635 + $0x38] sm:$0xff]
      %v644 = vld [vmem:[%s635 + $0x40] sm:$0xff]
      %v645 = vld [vmem:[%s635 + $0x48] sm:$0xff]
      %v646 = vld [vmem:[%s635 + $0x50] sm:$0xff]
      %v647 = vld [vmem:[%s635 + $0x58] sm:$0xff]
      %v648 = vld [vmem:[%s635 + $0x60] sm:$0xff]
      %v649 = vld [vmem:[%s635 + $0x68] sm:$0xff]
      %v650 = vld [vmem:[%s635 + $0x70] sm:$0xff]
      %v651 = vld [vmem:[%s635 + $0x78] sm:$0xff]
      %v652 = vld [vmem:[%s635 + $0x80] sm:$0xff]
      %v653 = vld [vmem:[%s635 + $0x88] sm:$0xff]
      %v654 = vld [vmem:[%s635 + $0x90] sm:$0xff]
      %v655 = vld [vmem:[%s635 + $0x98] sm:$0xff]
      %v656 = vld [vmem:[%s635 + $0xa0] sm:$0xff]
      %v657 = vld [vmem:[%s635 + $0xa8] sm:$0xff]
      %v658 = vld [vmem:[%s635 + $0xb0] sm:$0xff]
      %v659 = vld [vmem:[%s635 + $0xb8] sm:$0xff]
      %v660 = vld [vmem:[%s635 + $0xc0] sm:$0xff]
      %v661 = vld [vmem:[%s635 + $0xc8] sm:$0xff]
      %v662 = vld [vmem:[%s635 + $0xd0] sm:$0xff]
      %v663 = vld [vmem:[%s635 + $0xd8] sm:$0xff]
      %v664 = vld [vmem:[%s635 + $0xe0] sm:$0xff]
      %v665 = vld [vmem:[%s635 + $0xe8] sm:$0xff]
      %v666 = vld [vmem:[%s635 + $0xf0] sm:$0xff]
      %v667 = vld [vmem:[%s635 + $0xf8] sm:$0xff]
      %v668 = vld [vmem:[%s635 + $0x100] sm:$0xff]
      %v669 = vld [vmem:[%s635 + $0x108] sm:$0xff]
      %v670 = vld [vmem:[%s635 + $0x110] sm:$0xff]
      %v671 = vld [vmem:[%s635 + $0x118] sm:$0xff]
      %v672 = vld [vmem:[%s635 + $0x120] sm:$0xff]
      %v673 = vld [vmem:[%s635 + $0x128] sm:$0xff]
      %v674 = vld [vmem:[%s635 + $0x130] sm:$0xff]
      %v675 = vld [vmem:[%s635 + $0x138] sm:$0xff]
      %v676 = vld [vmem:[%s635 + $0x140] sm:$0xff]
      %v677 = vld [vmem:[%s635 + $0x148] sm:$0xff]
      %v678 = vld [vmem:[%s635 + $0x150] sm:$0xff]
      %v679 = vld [vmem:[%s635 + $0x158] sm:$0xff]
      %v680 = vld [vmem:[%s635 + $0x160] sm:$0xff]
      %v681 = vld [vmem:[%s635 + $0x168] sm:$0xff]
      %v682 = vld [vmem:[%s635 + $0x170] sm:$0xff]
      %v683 = vld [vmem:[%s635 + $0x178] sm:$0xff]
      %v684 = vld [vmem:[%s635 + $0x180] sm:$0xff]
      %v685 = vld [vmem:[%s635 + $0x188] sm:$0xff]
      %v686 = vld [vmem:[%s635 + $0x190] sm:$0xff]
      %v687 = vld [vmem:[%s635 + $0x198] sm:$0xff]
      %v688 = vld [vmem:[%s635 + $0x1a0] sm:$0xff]
      %v689 = vld [vmem:[%s635 + $0x1a8] sm:$0xff]
      %v690 = vld [vmem:[%s635 + $0x1b0] sm:$0xff]
      %v691 = vld [vmem:[%s635 + $0x1b8] sm:$0xff]
      %v692 = vld [vmem:[%s635 + $0x1c0] sm:$0xff]
      %v693 = vld [vmem:[%s635 + $0x1c8] sm:$0xff]
      %v694 = vld [vmem:[%s635 + $0x1d0] sm:$0xff]
      %v695 = vld [vmem:[%s635 + $0x1d8] sm:$0xff]
      %v696 = vld [vmem:[%s635 + $0x1e0] sm:$0xff]
      %v697 = vld [vmem:[%s635 + $0x1e8] sm:$0xff]
      %v698 = vld [vmem:[%s635 + $0x1f0] sm:$0xff]
      %v699 = vld [vmem:[%s635 + $0x1f8] sm:$0xff]
      %v700 = vld [vmem:[%s635 + $0x200] sm:$0xff]
      %v701 = vld [vmem:[%s635 + $0x208] sm:$0xff]
      %v702 = vld [vmem:[%s635 + $0x210] sm:$0xff]
      %v703 = vld [vmem:[%s635 + $0x218] sm:$0xff]
      %v704 = vld [vmem:[%s635 + $0x220] sm:$0xff]
      %v705 = vld [vmem:[%s635 + $0x228] sm:$0xff]
      %v706 = vld [vmem:[%s635 + $0x230] sm:$0xff]
      %v707 = vld [vmem:[%s635 + $0x238] sm:$0xff]
      %v708 = vld [vmem:[%s635 + $0x240] sm:$0xff]
      %v709 = vld [vmem:[%s635 + $0x248] sm:$0xff]
      %v710 = vld [vmem:[%s635 + $0x250] sm:$0xff]
      %v711 = vld [vmem:[%s635 + $0x258] sm:$0xff]
      %v712 = vld [vmem:[%s635 + $0x260] sm:$0xff]
      %v713 = vld [vmem:[%s635 + $0x268] sm:$0xff]
      %v714 = vld [vmem:[%s635 + $0x270] sm:$0xff]
      %v715 = vld [vmem:[%s635 + $0x278] sm:$0xff]
      %v716 = vld [vmem:[%s635 + $0x280] sm:$0xff]
      %v717 = vld [vmem:[%s635 + $0x288] sm:$0xff]
      %v718 = vld [vmem:[%s635 + $0x290] sm:$0xff]
      %v719 = vld [vmem:[%s635 + $0x298] sm:$0xff]
      %v720 = vld [vmem:[%s635 + $0x2a0] sm:$0xff]
      %v721 = vld [vmem:[%s635 + $0x2a8] sm:$0xff]
      %v722 = vld [vmem:[%s635 + $0x2b0] sm:$0xff]
      %v723 = vld [vmem:[%s635 + $0x2b8] sm:$0xff]
      %v724 = vld [vmem:[%s635 + $0x2c0] sm:$0xff]
      %v725 = vld [vmem:[%s635 + $0x2c8] sm:$0xff]
      %v726 = vld [vmem:[%s635 + $0x2d0] sm:$0xff]
      %v727 = vld [vmem:[%s635 + $0x2d8] sm:$0xff]
      %v728 = vld [vmem:[%s635 + $0x2e0] sm:$0xff]
      %v729 = vld [vmem:[%s635 + $0x2e8] sm:$0xff]
      %v730 = vld [vmem:[%s635 + $0x2f0] sm:$0xff]
      %v731 = vld [vmem:[%s635 + $0x2f8] sm:$0xff]
      %v732 = vld [vmem:[%s635 + $0x300] sm:$0xff]
      %v733 = vld [vmem:[%s635 + $0x308] sm:$0xff]
      %v734 = vld [vmem:[%s635 + $0x310] sm:$0xff]
      %v735 = vld [vmem:[%s635 + $0x318] sm:$0xff]
      %v736 = vld [vmem:[%s635 + $0x320] sm:$0xff]
      %v737 = vld [vmem:[%s635 + $0x328] sm:$0xff]
      %v738 = vld [vmem:[%s635 + $0x330] sm:$0xff]
      %v739 = vld [vmem:[%s635 + $0x338] sm:$0xff]
      %v740 = vld [vmem:[%s635 + $0x340] sm:$0xff]
      %v741 = vld [vmem:[%s635 + $0x348] sm:$0xff]
      %v742 = vld [vmem:[%s635 + $0x350] sm:$0xff]
      %v743 = vld [vmem:[%s635 + $0x358] sm:$0xff]
      %v744 = vld [vmem:[%s635 + $0x360] sm:$0xff]
      %v745 = vld [vmem:[%s635 + $0x368] sm:$0xff]
      %v746 = vld [vmem:[%s635 + $0x370] sm:$0xff]
      %v747 = vld [vmem:[%s635 + $0x378] sm:$0xff]
      %v748 = vld [vmem:[%s635 + $0x380] sm:$0xff]
      %v749 = vld [vmem:[%s635 + $0x388] sm:$0xff]
      %v750 = vld [vmem:[%s635 + $0x390] sm:$0xff]
      %v751 = vld [vmem:[%s635 + $0x398] sm:$0xff]
      %v752 = vld [vmem:[%s635 + $0x3a0] sm:$0xff]
      %v753 = vld [vmem:[%s635 + $0x3a8] sm:$0xff]
      %v754 = vld [vmem:[%s635 + $0x3b0] sm:$0xff]
      %v755 = vld [vmem:[%s635 + $0x3b8] sm:$0xff]
      %v756 = vld [vmem:[%s635 + $0x3c0] sm:$0xff]
      %v757 = vld [vmem:[%s635 + $0x3c8] sm:$0xff]
      %v758 = vld [vmem:[%s635 + $0x3d0] sm:$0xff]
      %v759 = vld [vmem:[%s635 + $0x3d8] sm:$0xff]
      %v760 = vld [vmem:[%s635 + $0x3e0] sm:$0xff]
      %v761 = vld [vmem:[%s635 + $0x3e8] sm:$0xff]
      %v762 = vld [vmem:[%s635 + $0x3f0] sm:$0xff]
      %v763 = vld [vmem:[%s635 + $0x3f8] sm:$0xff]
      %v764 = vld [vmem:[%s635 + $0x400] sm:$0xff]
      %v765 = vld [vmem:[%s635 + $0x408] sm:$0xff]
      %v766 = vld [vmem:[%s635 + $0x410] sm:$0xff]
      %v767 = vld [vmem:[%s635 + $0x418] sm:$0xff]
      %v768 = vld [vmem:[%s635 + $0x420] sm:$0xff]
      %v769 = vld [vmem:[%s635 + $0x428] sm:$0xff]
      %v770 = vld [vmem:[%s635 + $0x430] sm:$0xff]
      %v771 = vld [vmem:[%s635 + $0x438] sm:$0xff]
      %v772 = vld [vmem:[%s635 + $0x440] sm:$0xff]
      %v773 = vld [vmem:[%s635 + $0x448] sm:$0xff]
      %v774 = vld [vmem:[%s635 + $0x450] sm:$0xff]
      %v775 = vld [vmem:[%s635 + $0x458] sm:$0xff]
      %v776 = vld [vmem:[%s635 + $0x460] sm:$0xff]
      %v777 = vld [vmem:[%s635 + $0x468] sm:$0xff]
      %v778 = vld [vmem:[%s635 + $0x470] sm:$0xff]
      %v779 = vld [vmem:[%s635 + $0x478] sm:$0xff]
      %v780 = vld [vmem:[%s635 + $0x480] sm:$0xff]
      %v781 = vld [vmem:[%s635 + $0x488] sm:$0xff]
      %v782 = vld [vmem:[%s635 + $0x490] sm:$0xff]
      %v783 = vld [vmem:[%s635 + $0x498] sm:$0xff]
      %v784 = vld [vmem:[%s635 + $0x4a0] sm:$0xff]
      %v785 = vld [vmem:[%s635 + $0x4a8] sm:$0xff]
      %v786 = vld [vmem:[%s635 + $0x4b0] sm:$0xff]
      %v787 = vld [vmem:[%s635 + $0x4b8] sm:$0xff]
      %v788 = vld [vmem:[%s635 + $0x4c0] sm:$0xff]
      %v789 = vld [vmem:[%s635 + $0x4c8] sm:$0xff]
      %v790 = vld [vmem:[%s635 + $0x4d0] sm:$0xff]
      %v791 = vld [vmem:[%s635 + $0x4d8] sm:$0xff]
      %v792 = vld [vmem:[%s635 + $0x4e0] sm:$0xff]
      %v793 = vld [vmem:[%s635 + $0x4e8] sm:$0xff]
      %v794 = vld [vmem:[%s635 + $0x4f0] sm:$0xff]
      %v795 = vld [vmem:[%s635 + $0x4f8] sm:$0xff]
      %v796 = vld [vmem:[%s635 + $0x500] sm:$0xff]
      %v797 = vld [vmem:[%s635 + $0x508] sm:$0xff]
      %v798 = vld [vmem:[%s635 + $0x510] sm:$0xff]
      %v799 = vld [vmem:[%s635 + $0x518] sm:$0xff]
      %v800 = vld [vmem:[%s635 + $0x520] sm:$0xff]
      %v801 = vld [vmem:[%s635 + $0x528] sm:$0xff]
      %v802 = vld [vmem:[%s635 + $0x530] sm:$0xff]
      %v803 = vld [vmem:[%s635 + $0x538] sm:$0xff]
      %v804 = vld [vmem:[%s635 + $0x540] sm:$0xff]
      %v805 = vld [vmem:[%s635 + $0x548] sm:$0xff]
      %v806 = vld [vmem:[%s635 + $0x550] sm:$0xff]
      %v807 = vld [vmem:[%s635 + $0x558] sm:$0xff]
      %v808 = vld [vmem:[%s635 + $0x560] sm:$0xff]
      %v809 = vld [vmem:[%s635 + $0x568] sm:$0xff]
      %v810 = vld [vmem:[%s635 + $0x570] sm:$0xff]
      %v811 = vld [vmem:[%s635 + $0x578] sm:$0xff]
      %v812 = vld [vmem:[%s635 + $0x580] sm:$0xff]
      %v813 = vld [vmem:[%s635 + $0x588] sm:$0xff]
      %v814 = vld [vmem:[%s635 + $0x590] sm:$0xff]
      %v815 = vld [vmem:[%s635 + $0x598] sm:$0xff]
      %v816 = vld [vmem:[%s635 + $0x5a0] sm:$0xff]
      %v817 = vld [vmem:[%s635 + $0x5a8] sm:$0xff]
      %v818 = vld [vmem:[%s635 + $0x5b0] sm:$0xff]
      %v819 = vld [vmem:[%s635 + $0x5b8] sm:$0xff]
      %v820 = vld [vmem:[%s635 + $0x5c0] sm:$0xff]
      %v821 = vld [vmem:[%s635 + $0x5c8] sm:$0xff]
      %v822 = vld [vmem:[%s635 + $0x5d0] sm:$0xff]
      %v823 = vld [vmem:[%s635 + $0x5d8] sm:$0xff]
      %v824 = vld [vmem:[%s635 + $0x5e0] sm:$0xff]
      %v825 = vld [vmem:[%s635 + $0x5e8] sm:$0xff]
      %v826 = vld [vmem:[%s635 + $0x5f0] sm:$0xff]
      %v827 = vld [vmem:[%s635 + $0x5f8] sm:$0xff]
      %v828 = vld [vmem:[%s635 + $0x600] sm:$0xff]
      %v829 = vld [vmem:[%s635 + $0x608] sm:$0xff]
      %v830 = vld [vmem:[%s635 + $0x610] sm:$0xff]
      %v831 = vld [vmem:[%s635 + $0x618] sm:$0xff]
      %v832 = vld [vmem:[%s635 + $0x620] sm:$0xff]
      %v833 = vld [vmem:[%s635 + $0x628] sm:$0xff]
      %v834 = vld [vmem:[%s635 + $0x630] sm:$0xff]
      %v835 = vld [vmem:[%s635 + $0x638] sm:$0xff]
      %v836 = vld [vmem:[%s635 + $0x640] sm:$0xff]
      %v837 = vld [vmem:[%s635 + $0x648] sm:$0xff]
      %v838 = vld [vmem:[%s635 + $0x650] sm:$0xff]
      %v839 = vld [vmem:[%s635 + $0x658] sm:$0xff]
      %v840 = vld [vmem:[%s635 + $0x660] sm:$0xff]
      %v841 = vld [vmem:[%s635 + $0x668] sm:$0xff]
      %v842 = vld [vmem:[%s635 + $0x670] sm:$0xff]
      %v843 = vld [vmem:[%s635 + $0x678] sm:$0xff]
      %v844 = vld [vmem:[%s635 + $0x680] sm:$0xff]
      %v845 = vld [vmem:[%s635 + $0x688] sm:$0xff]
      %v846 = vld [vmem:[%s635 + $0x690] sm:$0xff]
      %v847 = vld [vmem:[%s635 + $0x698] sm:$0xff]
      %v848 = vld [vmem:[%s635 + $0x6a0] sm:$0xff]
      %v849 = vld [vmem:[%s635 + $0x6a8] sm:$0xff]
      %v850 = vld [vmem:[%s635 + $0x6b0] sm:$0xff]
      %v851 = vld [vmem:[%s635 + $0x6b8] sm:$0xff]
      %v852 = vld [vmem:[%s635 + $0x6c0] sm:$0xff]
      %v853 = vld [vmem:[%s635 + $0x6c8] sm:$0xff]
      %v854 = vld [vmem:[%s635 + $0x6d0] sm:$0xff]
      %v855 = vld [vmem:[%s635 + $0x6d8] sm:$0xff]
      %v856 = vld [vmem:[%s635 + $0x6e0] sm:$0xff]
      %v857 = vld [vmem:[%s635 + $0x6e8] sm:$0xff]
      %v858 = vld [vmem:[%s635 + $0x6f0] sm:$0xff]
      %v859 = vld [vmem:[%s635 + $0x6f8] sm:$0xff]
      %v860 = vld [vmem:[%s635 + $0x700] sm:$0xff]
      %v861 = vld [vmem:[%s635 + $0x708] sm:$0xff]
      %v862 = vld [vmem:[%s635 + $0x710] sm:$0xff]
      %v863 = vld [vmem:[%s635 + $0x718] sm:$0xff]
      %v864 = vld [vmem:[%s635 + $0x720] sm:$0xff]
      %v865 = vld [vmem:[%s635 + $0x728] sm:$0xff]
      %v866 = vld [vmem:[%s635 + $0x730] sm:$0xff]
      %v867 = vld [vmem:[%s635 + $0x738] sm:$0xff]
      %v868 = vld [vmem:[%s635 + $0x740] sm:$0xff]
      %v869 = vld [vmem:[%s635 + $0x748] sm:$0xff]
      %v870 = vld [vmem:[%s635 + $0x750] sm:$0xff]
      %v871 = vld [vmem:[%s635 + $0x758] sm:$0xff]
      %v872 = vld [vmem:[%s635 + $0x760] sm:$0xff]
      %v873 = vld [vmem:[%s635 + $0x768] sm:$0xff]
      %v874 = vld [vmem:[%s635 + $0x770] sm:$0xff]
      %v875 = vld [vmem:[%s635 + $0x778] sm:$0xff]
      %v876 = vld [vmem:[%s635 + $0x780] sm:$0xff]
      %v877 = vld [vmem:[%s635 + $0x788] sm:$0xff]
      %v878 = vld [vmem:[%s635 + $0x790] sm:$0xff]
      %v879 = vld [vmem:[%s635 + $0x798] sm:$0xff]
      %v880 = vld [vmem:[%s635 + $0x7a0] sm:$0xff]
      %v881 = vld [vmem:[%s635 + $0x7a8] sm:$0xff]
      %v882 = vld [vmem:[%s635 + $0x7b0] sm:$0xff]
      %v883 = vld [vmem:[%s635 + $0x7b8] sm:$0xff]
      %v884 = vld [vmem:[%s635 + $0x7c0] sm:$0xff]
      %v885 = vld [vmem:[%s635 + $0x7c8] sm:$0xff]
      %v886 = vld [vmem:[%s635 + $0x7d0] sm:$0xff]
      %v887 = vld [vmem:[%s635 + $0x7d8] sm:$0xff]
      %v888 = vld [vmem:[%s635 + $0x7e0] sm:$0xff]
      %v889 = vld [vmem:[%s635 + $0x7e8] sm:$0xff]
      %v890 = vld [vmem:[%s635 + $0x7f0] sm:$0xff]
      %v891 = vld [vmem:[%s635 + $0x7f8] sm:$0xff]
      %v944 = vunpack.c.l.b16 %v327
      %v945 = vunpack.c.h.b16 %v327
      %v946 = vunpack.c.l.b16 %v328
      %v947 = vunpack.c.h.b16 %v328
      %v948 = vunpack.c.l.b16 %v329
      %v949 = vunpack.c.h.b16 %v329
      %v950 = vunpack.c.l.b16 %v330
      %v951 = vunpack.c.h.b16 %v330
      %v952 = vunpack.c.l.b16 %v331
      %v953 = vunpack.c.h.b16 %v331
      %v954 = vunpack.c.l.b16 %v332
      %v955 = vunpack.c.h.b16 %v332
      %v956 = vunpack.c.l.b16 %v333
      %v957 = vunpack.c.h.b16 %v333
      %v958 = vunpack.c.l.b16 %v334
      %v959 = vunpack.c.h.b16 %v334
      %v960 = vunpack.c.l.b16 %v335
      %v961 = vunpack.c.h.b16 %v335
      %v962 = vunpack.c.l.b16 %v336
      %v963 = vunpack.c.h.b16 %v336
      %v964 = vunpack.c.l.b16 %v337
      %v965 = vunpack.c.h.b16 %v337
      %v966 = vunpack.c.l.b16 %v338
      %v967 = vunpack.c.h.b16 %v338
      %v968 = vunpack.c.l.b16 %v339
      %v969 = vunpack.c.h.b16 %v339
      %v970 = vunpack.c.l.b16 %v340
      %v971 = vunpack.c.h.b16 %v340
      %v972 = vunpack.c.l.b16 %v341
      %v973 = vunpack.c.h.b16 %v341
      %v974 = vunpack.c.l.b16 %v342
      %v975 = vunpack.c.h.b16 %v342
      %v976 = vunpack.c.l.b16 %v343
      %v977 = vunpack.c.h.b16 %v343
      %v978 = vunpack.c.l.b16 %v344
      %v979 = vunpack.c.h.b16 %v344
      %v980 = vunpack.c.l.b16 %v345
      %v981 = vunpack.c.h.b16 %v345
      %v982 = vunpack.c.l.b16 %v346
      %v983 = vunpack.c.h.b16 %v346
      %v984 = vunpack.c.l.b16 %v347
      %v985 = vunpack.c.h.b16 %v347
      %v986 = vunpack.c.l.b16 %v348
      %v987 = vunpack.c.h.b16 %v348
      %v988 = vunpack.c.l.b16 %v349
      %v989 = vunpack.c.h.b16 %v349
      %v990 = vunpack.c.l.b16 %v350
      %v991 = vunpack.c.h.b16 %v350
      %v992 = vunpack.c.l.b16 %v351
      %v993 = vunpack.c.h.b16 %v351
      %v994 = vunpack.c.l.b16 %v352
      %v995 = vunpack.c.h.b16 %v352
      %v996 = vunpack.c.l.b16 %v353
      %v997 = vunpack.c.h.b16 %v353
      %v998 = vunpack.c.l.b16 %v354
      %v999 = vunpack.c.h.b16 %v354
      %v1000 = vunpack.c.l.b16 %v355
      %v1001 = vunpack.c.h.b16 %v355
      %v1002 = vunpack.c.l.b16 %v356
      %v1003 = vunpack.c.h.b16 %v356
      %v1004 = vunpack.c.l.b16 %v357
      %v1005 = vunpack.c.h.b16 %v357
      %v1006 = vunpack.c.l.b16 %v358
      %v1007 = vunpack.c.h.b16 %v358
      %v1008 = vunpack.c.l.b16 %v359
      %v1009 = vunpack.c.h.b16 %v359
      %v1010 = vunpack.c.l.b16 %v360
      %v1011 = vunpack.c.h.b16 %v360
      %v1012 = vunpack.c.l.b16 %v361
      %v1013 = vunpack.c.h.b16 %v361
      %v1014 = vunpack.c.l.b16 %v362
      %v1015 = vunpack.c.h.b16 %v362
      %v1016 = vunpack.c.l.b16 %v363
      %v1017 = vunpack.c.h.b16 %v363
      %v1018 = vunpack.c.l.b16 %v364
      %v1019 = vunpack.c.h.b16 %v364
      %v1020 = vunpack.c.l.b16 %v365
      %v1021 = vunpack.c.h.b16 %v365
      %v1022 = vunpack.c.l.b16 %v366
      %v1023 = vunpack.c.h.b16 %v366
      %v1024 = vunpack.c.l.b16 %v367
      %v1025 = vunpack.c.h.b16 %v367
      %v1026 = vunpack.c.l.b16 %v368
      %v1027 = vunpack.c.h.b16 %v368
      %v1028 = vunpack.c.l.b16 %v369
      %v1029 = vunpack.c.h.b16 %v369
      %v1030 = vunpack.c.l.b16 %v370
      %v1031 = vunpack.c.h.b16 %v370
      %v1032 = vunpack.c.l.b16 %v371
      %v1033 = vunpack.c.h.b16 %v371
      %v1034 = vunpack.c.l.b16 %v372
      %v1035 = vunpack.c.h.b16 %v372
      %v1036 = vunpack.c.l.b16 %v373
      %v1037 = vunpack.c.h.b16 %v373
      %v1038 = vunpack.c.l.b16 %v374
      %v1039 = vunpack.c.h.b16 %v374
      %v1040 = vunpack.c.l.b16 %v631
      %v1041 = vunpack.c.h.b16 %v631
      %v1042 = vunpack.c.l.b16 %v632
      %v1043 = vunpack.c.h.b16 %v632
      %v1044 = vunpack.c.l.b16 %v633
      %v1045 = vunpack.c.h.b16 %v633
      %v1046 = vunpack.c.l.b16 %v634
      %v1047 = vunpack.c.h.b16 %v634
      %v1048 = vpack.c.b16 %v952, %v944
      %v1049 = vpack.c.b16 %v953, %v945
      %v1050 = vpack.c.b16 %v954, %v946
      %v1051 = vpack.c.b16 %v955, %v947
      %v1052 = vpack.c.b16 %v956, %v948
      %v1053 = vpack.c.b16 %v957, %v949
      %v1054 = vpack.c.b16 %v958, %v950
      %v1055 = vpack.c.b16 %v959, %v951
      %v1056 = vpack.c.b16 %v968, %v960
      %v1057 = vpack.c.b16 %v969, %v961
      %v1058 = vpack.c.b16 %v970, %v962
      %v1059 = vpack.c.b16 %v971, %v963
      %v1060 = vpack.c.b16 %v972, %v964
      %v1061 = vpack.c.b16 %v973, %v965
      %v1062 = vpack.c.b16 %v974, %v966
      %v1063 = vpack.c.b16 %v975, %v967
      %v1064 = vpack.c.b16 %v984, %v976
      %v1065 = vpack.c.b16 %v985, %v977
      %v1066 = vpack.c.b16 %v986, %v978
      %v1067 = vpack.c.b16 %v987, %v979
      %v1068 = vpack.c.b16 %v988, %v980
      %v1069 = vpack.c.b16 %v989, %v981
      %v1070 = vpack.c.b16 %v990, %v982
      %v1071 = vpack.c.b16 %v991, %v983
      %v1072 = vpack.c.b16 %v1000, %v992
      %v1073 = vpack.c.b16 %v1001, %v993
      %v1074 = vpack.c.b16 %v1002, %v994
      %v1075 = vpack.c.b16 %v1003, %v995
      %v1076 = vpack.c.b16 %v1004, %v996
      %v1077 = vpack.c.b16 %v1005, %v997
      %v1078 = vpack.c.b16 %v1006, %v998
      %v1079 = vpack.c.b16 %v1007, %v999
      %v1080 = vpack.c.b16 %v1016, %v1008
      %v1081 = vpack.c.b16 %v1017, %v1009
      %v1082 = vpack.c.b16 %v1018, %v1010
      %v1083 = vpack.c.b16 %v1019, %v1011
      %v1084 = vpack.c.b16 %v1020, %v1012
      %v1085 = vpack.c.b16 %v1021, %v1013
      %v1086 = vpack.c.b16 %v1022, %v1014
      %v1087 = vpack.c.b16 %v1023, %v1015
      %v1088 = vpack.c.b16 %v1032, %v1024
      %v1089 = vpack.c.b16 %v1033, %v1025
      %v1090 = vpack.c.b16 %v1034, %v1026
      %v1091 = vpack.c.b16 %v1035, %v1027
      %v1092 = vpack.c.b16 %v1036, %v1028
      %v1093 = vpack.c.b16 %v1037, %v1029
      %v1094 = vpack.c.b16 %v1038, %v1030
      %v1095 = vpack.c.b16 %v1039, %v1031
      %v1096 = vpack.c.b16 %v1040, %v1040
      %v1097 = vpack.c.b16 %v1041, %v1041
      %v1098 = vpack.c.b16 %v1042, %v1042
      %v1099 = vpack.c.b16 %v1043, %v1043
      %v1100 = vpack.c.b16 %v1044, %v1044
      %v1101 = vpack.c.b16 %v1045, %v1045
      %v1102 = vpack.c.b16 %v1046, %v1046
      %v1103 = vpack.c.b16 %v1047, %v1047
      %vm1104 = vsmask.f32 7424
      %v1106 = vshrl.u32 %v1048, 16
      %v1108 = vshll.u32 %v1048, 16
      %v1110 = vrot.slane %v1108, 1
      %v1111 = vor.u32 %v1106, %v1110
      %v1113 = vshll.u32 %v1056, 16
      %v1115 = vrot.slane %v1113, 1
      %v1116 = vsel %vm1104, %v1111, %v1115
      %v1118 = vshrl.u32 %v1049, 16
      %v1120 = vshll.u32 %v1049, 16
      %v1122 = vrot.slane %v1120, 1
      %v1123 = vor.u32 %v1118, %v1122
      %v1125 = vshll.u32 %v1057, 16
      %v1127 = vrot.slane %v1125, 1
      %v1128 = vsel %vm1104, %v1123, %v1127
      %v1130 = vshrl.u32 %v1050, 16
      %v1132 = vshll.u32 %v1050, 16
      %v1134 = vrot.slane %v1132, 1
      %v1135 = vor.u32 %v1130, %v1134
      %v1137 = vshll.u32 %v1058, 16
      %v1139 = vrot.slane %v1137, 1
      %v1140 = vsel %vm1104, %v1135, %v1139
      %v1142 = vshrl.u32 %v1051, 16
      %v1144 = vshll.u32 %v1051, 16
      %v1146 = vrot.slane %v1144, 1
      %v1147 = vor.u32 %v1142, %v1146
      %v1149 = vshll.u32 %v1059, 16
      %v1151 = vrot.slane %v1149, 1
      %v1152 = vsel %vm1104, %v1147, %v1151
      %v1154 = vshrl.u32 %v1052, 16
      %v1156 = vshll.u32 %v1052, 16
      %v1158 = vrot.slane %v1156, 1
      %v1159 = vor.u32 %v1154, %v1158
      %v1161 = vshll.u32 %v1060, 16
      %v1163 = vrot.slane %v1161, 1
      %v1164 = vsel %vm1104, %v1159, %v1163
      %v1166 = vshrl.u32 %v1053, 16
      %v1168 = vshll.u32 %v1053, 16
      %v1170 = vrot.slane %v1168, 1
      %v1171 = vor.u32 %v1166, %v1170
      %v1173 = vshll.u32 %v1061, 16
      %v1175 = vrot.slane %v1173, 1
      %v1176 = vsel %vm1104, %v1171, %v1175
      %v1178 = vshrl.u32 %v1054, 16
      %v1180 = vshll.u32 %v1054, 16
      %v1182 = vrot.slane %v1180, 1
      %v1183 = vor.u32 %v1178, %v1182
      %v1185 = vshll.u32 %v1062, 16
      %v1187 = vrot.slane %v1185, 1
      %v1188 = vsel %vm1104, %v1183, %v1187
      %v1190 = vshrl.u32 %v1055, 16
      %v1192 = vshll.u32 %v1055, 16
      %v1194 = vrot.slane %v1192, 1
      %v1195 = vor.u32 %v1190, %v1194
      %v1197 = vshll.u32 %v1063, 16
      %v1199 = vrot.slane %v1197, 1
      %v1200 = vsel %vm1104, %v1195, %v1199
      %v1201 = vshrl.u32 %v1056, 16
      %v1203 = vor.u32 %v1201, %v1115
      %v1205 = vshll.u32 %v1064, 16
      %v1207 = vrot.slane %v1205, 1
      %v1208 = vsel %vm1104, %v1203, %v1207
      %v1209 = vshrl.u32 %v1057, 16
      %v1211 = vor.u32 %v1209, %v1127
      %v1213 = vshll.u32 %v1065, 16
      %v1215 = vrot.slane %v1213, 1
      %v1216 = vsel %vm1104, %v1211, %v1215
      %v1217 = vshrl.u32 %v1058, 16
      %v1219 = vor.u32 %v1217, %v1139
      %v1221 = vshll.u32 %v1066, 16
      %v1223 = vrot.slane %v1221, 1
      %v1224 = vsel %vm1104, %v1219, %v1223
      %v1225 = vshrl.u32 %v1059, 16
      %v1227 = vor.u32 %v1225, %v1151
      %v1229 = vshll.u32 %v1067, 16
      %v1231 = vrot.slane %v1229, 1
      %v1232 = vsel %vm1104, %v1227, %v1231
      %v1233 = vshrl.u32 %v1060, 16
      %v1235 = vor.u32 %v1233, %v1163
      %v1237 = vshll.u32 %v1068, 16
      %v1239 = vrot.slane %v1237, 1
      %v1240 = vsel %vm1104, %v1235, %v1239
      %v1241 = vshrl.u32 %v1061, 16
      %v1243 = vor.u32 %v1241, %v1175
      %v1245 = vshll.u32 %v1069, 16
      %v1247 = vrot.slane %v1245, 1
      %v1248 = vsel %vm1104, %v1243, %v1247
      %v1249 = vshrl.u32 %v1062, 16
      %v1251 = vor.u32 %v1249, %v1187
      %v1253 = vshll.u32 %v1070, 16
      %v1255 = vrot.slane %v1253, 1
      %v1256 = vsel %vm1104, %v1251, %v1255
      %v1257 = vshrl.u32 %v1063, 16
      %v1259 = vor.u32 %v1257, %v1199
      %v1261 = vshll.u32 %v1071, 16
      %v1263 = vrot.slane %v1261, 1
      %v1264 = vsel %vm1104, %v1259, %v1263
      %v1265 = vshrl.u32 %v1064, 16
      %v1267 = vor.u32 %v1265, %v1207
      %v1269 = vshll.u32 %v1072, 16
      %v1271 = vrot.slane %v1269, 1
      %v1272 = vsel %vm1104, %v1267, %v1271
      %v1273 = vshrl.u32 %v1065, 16
      %v1275 = vor.u32 %v1273, %v1215
      %v1277 = vshll.u32 %v1073, 16
      %v1279 = vrot.slane %v1277, 1
      %v1280 = vsel %vm1104, %v1275, %v1279
      %v1281 = vshrl.u32 %v1066, 16
      %v1283 = vor.u32 %v1281, %v1223
      %v1285 = vshll.u32 %v1074, 16
      %v1287 = vrot.slane %v1285, 1
      %v1288 = vsel %vm1104, %v1283, %v1287
      %v1289 = vshrl.u32 %v1067, 16
      %v1291 = vor.u32 %v1289, %v1231
      %v1293 = vshll.u32 %v1075, 16
      %v1295 = vrot.slane %v1293, 1
      %v1296 = vsel %vm1104, %v1291, %v1295
      %v1297 = vshrl.u32 %v1068, 16
      %v1299 = vor.u32 %v1297, %v1239
      %v1301 = vshll.u32 %v1076, 16
      %v1303 = vrot.slane %v1301, 1
      %v1304 = vsel %vm1104, %v1299, %v1303
      %v1305 = vshrl.u32 %v1069, 16
      %v1307 = vor.u32 %v1305, %v1247
      %v1309 = vshll.u32 %v1077, 16
      %v1311 = vrot.slane %v1309, 1
      %v1312 = vsel %vm1104, %v1307, %v1311
      %v1313 = vshrl.u32 %v1070, 16
      %v1315 = vor.u32 %v1313, %v1255
      %v1317 = vshll.u32 %v1078, 16
      %v1319 = vrot.slane %v1317, 1
      %v1320 = vsel %vm1104, %v1315, %v1319
      %v1321 = vshrl.u32 %v1071, 16
      %v1323 = vor.u32 %v1321, %v1263
      %v1325 = vshll.u32 %v1079, 16
      %v1327 = vrot.slane %v1325, 1
      %v1328 = vsel %vm1104, %v1323, %v1327
      %v1329 = vshrl.u32 %v1072, 16
      %v1331 = vor.u32 %v1329, %v1271
      %v1333 = vshll.u32 %v1080, 16
      %v1335 = vrot.slane %v1333, 1
      %v1336 = vsel %vm1104, %v1331, %v1335
      %v1337 = vshrl.u32 %v1073, 16
      %v1339 = vor.u32 %v1337, %v1279
      %v1341 = vshll.u32 %v1081, 16
      %v1343 = vrot.slane %v1341, 1
      %v1344 = vsel %vm1104, %v1339, %v1343
      %v1345 = vshrl.u32 %v1074, 16
      %v1347 = vor.u32 %v1345, %v1287
      %v1349 = vshll.u32 %v1082, 16
      %v1351 = vrot.slane %v1349, 1
      %v1352 = vsel %vm1104, %v1347, %v1351
      %v1353 = vshrl.u32 %v1075, 16
      %v1355 = vor.u32 %v1353, %v1295
      %v1357 = vshll.u32 %v1083, 16
      %v1359 = vrot.slane %v1357, 1
      %v1360 = vsel %vm1104, %v1355, %v1359
      %v1361 = vshrl.u32 %v1076, 16
      %v1363 = vor.u32 %v1361, %v1303
      %v1365 = vshll.u32 %v1084, 16
      %v1367 = vrot.slane %v1365, 1
      %v1368 = vsel %vm1104, %v1363, %v1367
      %v1369 = vshrl.u32 %v1077, 16
      %v1371 = vor.u32 %v1369, %v1311
      %v1373 = vshll.u32 %v1085, 16
      %v1375 = vrot.slane %v1373, 1
      %v1376 = vsel %vm1104, %v1371, %v1375
      %v1377 = vshrl.u32 %v1078, 16
      %v1379 = vor.u32 %v1377, %v1319
      %v1381 = vshll.u32 %v1086, 16
      %v1383 = vrot.slane %v1381, 1
      %v1384 = vsel %vm1104, %v1379, %v1383
      %v1385 = vshrl.u32 %v1079, 16
      %v1387 = vor.u32 %v1385, %v1327
      %v1389 = vshll.u32 %v1087, 16
      %v1391 = vrot.slane %v1389, 1
      %v1392 = vsel %vm1104, %v1387, %v1391
      %v1393 = vshrl.u32 %v1080, 16
      %v1395 = vor.u32 %v1393, %v1335
      %v1397 = vshll.u32 %v1088, 16
      %v1399 = vrot.slane %v1397, 1
      %v1400 = vsel %vm1104, %v1395, %v1399
      %v1401 = vshrl.u32 %v1081, 16
      %v1403 = vor.u32 %v1401, %v1343
      %v1405 = vshll.u32 %v1089, 16
      %v1407 = vrot.slane %v1405, 1
      %v1408 = vsel %vm1104, %v1403, %v1407
      %v1409 = vshrl.u32 %v1082, 16
      %v1411 = vor.u32 %v1409, %v1351
      %v1413 = vshll.u32 %v1090, 16
      %v1415 = vrot.slane %v1413, 1
      %v1416 = vsel %vm1104, %v1411, %v1415
      %v1417 = vshrl.u32 %v1083, 16
      %v1419 = vor.u32 %v1417, %v1359
      %v1421 = vshll.u32 %v1091, 16
      %v1423 = vrot.slane %v1421, 1
      %v1424 = vsel %vm1104, %v1419, %v1423
      %v1425 = vshrl.u32 %v1084, 16
      %v1427 = vor.u32 %v1425, %v1367
      %v1429 = vshll.u32 %v1092, 16
      %v1431 = vrot.slane %v1429, 1
      %v1432 = vsel %vm1104, %v1427, %v1431
      %v1433 = vshrl.u32 %v1085, 16
      %v1435 = vor.u32 %v1433, %v1375
      %v1437 = vshll.u32 %v1093, 16
      %v1439 = vrot.slane %v1437, 1
      %v1440 = vsel %vm1104, %v1435, %v1439
      %v1441 = vshrl.u32 %v1086, 16
      %v1443 = vor.u32 %v1441, %v1383
      %v1445 = vshll.u32 %v1094, 16
      %v1447 = vrot.slane %v1445, 1
      %v1448 = vsel %vm1104, %v1443, %v1447
      %v1449 = vshrl.u32 %v1087, 16
      %v1451 = vor.u32 %v1449, %v1391
      %v1453 = vshll.u32 %v1095, 16
      %v1455 = vrot.slane %v1453, 1
      %v1456 = vsel %vm1104, %v1451, %v1455
      %v1457 = vshrl.u32 %v1088, 16
      %v1459 = vor.u32 %v1457, %v1399
      %v1461 = vshll.u32 %v1096, 16
      %v1463 = vrot.slane %v1461, 1
      %v1464 = vsel %vm1104, %v1459, %v1463
      %v1465 = vshrl.u32 %v1089, 16
      %v1467 = vor.u32 %v1465, %v1407
      %v1469 = vshll.u32 %v1097, 16
      %v1471 = vrot.slane %v1469, 1
      %v1472 = vsel %vm1104, %v1467, %v1471
      %v1473 = vshrl.u32 %v1090, 16
      %v1475 = vor.u32 %v1473, %v1415
      %v1477 = vshll.u32 %v1098, 16
      %v1479 = vrot.slane %v1477, 1
      %v1480 = vsel %vm1104, %v1475, %v1479
      %v1481 = vshrl.u32 %v1091, 16
      %v1483 = vor.u32 %v1481, %v1423
      %v1485 = vshll.u32 %v1099, 16
      %v1487 = vrot.slane %v1485, 1
      %v1488 = vsel %vm1104, %v1483, %v1487
      %v1489 = vshrl.u32 %v1092, 16
      %v1491 = vor.u32 %v1489, %v1431
      %v1493 = vshll.u32 %v1100, 16
      %v1495 = vrot.slane %v1493, 1
      %v1496 = vsel %vm1104, %v1491, %v1495
      %v1497 = vshrl.u32 %v1093, 16
      %v1499 = vor.u32 %v1497, %v1439
      %v1501 = vshll.u32 %v1101, 16
      %v1503 = vrot.slane %v1501, 1
      %v1504 = vsel %vm1104, %v1499, %v1503
      %v1505 = vshrl.u32 %v1094, 16
      %v1507 = vor.u32 %v1505, %v1447
      %v1509 = vshll.u32 %v1102, 16
      %v1511 = vrot.slane %v1509, 1
      %v1512 = vsel %vm1104, %v1507, %v1511
      %v1513 = vshrl.u32 %v1095, 16
      %v1515 = vor.u32 %v1513, %v1455
      %v1517 = vshll.u32 %v1103, 16
      %v1519 = vrot.slane %v1517, 1
      %v1520 = vsel %vm1104, %v1515, %v1519
      %v1825 = vunpack.c.l.b16 %v636
      %v1826 = vunpack.c.h.b16 %v636
      %v1827 = vunpack.c.l.b16 %v637
      %v1828 = vunpack.c.h.b16 %v637
      %v1829 = vunpack.c.l.b16 %v638
      %v1830 = vunpack.c.h.b16 %v638
      %v1831 = vunpack.c.l.b16 %v639
      %v1832 = vunpack.c.h.b16 %v639
      %v1833 = vunpack.c.l.b16 %v640
      %v1834 = vunpack.c.h.b16 %v640
      %v1835 = vunpack.c.l.b16 %v641
      %v1836 = vunpack.c.h.b16 %v641
      %v1837 = vunpack.c.l.b16 %v642
      %v1838 = vunpack.c.h.b16 %v642
      %v1839 = vunpack.c.l.b16 %v643
      %v1840 = vunpack.c.h.b16 %v643
      %v1841 = vunpack.c.l.b16 %v644
      %v1842 = vunpack.c.h.b16 %v644
      %v1843 = vunpack.c.l.b16 %v645
      %v1844 = vunpack.c.h.b16 %v645
      %v1845 = vunpack.c.l.b16 %v646
      %v1846 = vunpack.c.h.b16 %v646
      %v1847 = vunpack.c.l.b16 %v647
      %v1848 = vunpack.c.h.b16 %v647
      %v1849 = vunpack.c.l.b16 %v648
      %v1850 = vunpack.c.h.b16 %v648
      %v1851 = vunpack.c.l.b16 %v649
      %v1852 = vunpack.c.h.b16 %v649
      %v1853 = vunpack.c.l.b16 %v650
      %v1854 = vunpack.c.h.b16 %v650
      %v1855 = vunpack.c.l.b16 %v651
      %v1856 = vunpack.c.h.b16 %v651
      %v1857 = vunpack.c.l.b16 %v652
      %v1858 = vunpack.c.h.b16 %v652
      %v1859 = vunpack.c.l.b16 %v653
      %v1860 = vunpack.c.h.b16 %v653
      %v1861 = vunpack.c.l.b16 %v654
      %v1862 = vunpack.c.h.b16 %v654
      %v1863 = vunpack.c.l.b16 %v655
      %v1864 = vunpack.c.h.b16 %v655
      %v1865 = vunpack.c.l.b16 %v656
      %v1866 = vunpack.c.h.b16 %v656
      %v1867 = vunpack.c.l.b16 %v657
      %v1868 = vunpack.c.h.b16 %v657
      %v1869 = vunpack.c.l.b16 %v658
      %v1870 = vunpack.c.h.b16 %v658
      %v1871 = vunpack.c.l.b16 %v659
      %v1872 = vunpack.c.h.b16 %v659
      %v1873 = vunpack.c.l.b16 %v660
      %v1874 = vunpack.c.h.b16 %v660
      %v1875 = vunpack.c.l.b16 %v661
      %v1876 = vunpack.c.h.b16 %v661
      %v1877 = vunpack.c.l.b16 %v662
      %v1878 = vunpack.c.h.b16 %v662
      %v1879 = vunpack.c.l.b16 %v663
      %v1880 = vunpack.c.h.b16 %v663
      %v1881 = vunpack.c.l.b16 %v664
      %v1882 = vunpack.c.h.b16 %v664
      %v1883 = vunpack.c.l.b16 %v665
      %v1884 = vunpack.c.h.b16 %v665
      %v1885 = vunpack.c.l.b16 %v666
      %v1886 = vunpack.c.h.b16 %v666
      %v1887 = vunpack.c.l.b16 %v667
      %v1888 = vunpack.c.h.b16 %v667
      %v1889 = vunpack.c.l.b16 %v668
      %v1890 = vunpack.c.h.b16 %v668
      %v1891 = vunpack.c.l.b16 %v669
      %v1892 = vunpack.c.h.b16 %v669
      %v1893 = vunpack.c.l.b16 %v670
      %v1894 = vunpack.c.h.b16 %v670
      %v1895 = vunpack.c.l.b16 %v671
      %v1896 = vunpack.c.h.b16 %v671
      %v1897 = vunpack.c.l.b16 %v672
      %v1898 = vunpack.c.h.b16 %v672
      %v1899 = vunpack.c.l.b16 %v673
      %v1900 = vunpack.c.h.b16 %v673
      %v1901 = vunpack.c.l.b16 %v674
      %v1902 = vunpack.c.h.b16 %v674
      %v1903 = vunpack.c.l.b16 %v675
      %v1904 = vunpack.c.h.b16 %v675
      %v1905 = vunpack.c.l.b16 %v676
      %v1906 = vunpack.c.h.b16 %v676
      %v1907 = vunpack.c.l.b16 %v677
      %v1908 = vunpack.c.h.b16 %v677
      %v1909 = vunpack.c.l.b16 %v678
      %v1910 = vunpack.c.h.b16 %v678
      %v1911 = vunpack.c.l.b16 %v679
      %v1912 = vunpack.c.h.b16 %v679
      %v1913 = vunpack.c.l.b16 %v680
      %v1914 = vunpack.c.h.b16 %v680
      %v1915 = vunpack.c.l.b16 %v681
      %v1916 = vunpack.c.h.b16 %v681
      %v1917 = vunpack.c.l.b16 %v682
      %v1918 = vunpack.c.h.b16 %v682
      %v1919 = vunpack.c.l.b16 %v683
      %v1920 = vunpack.c.h.b16 %v683
      %v1921 = vunpack.c.l.b16 %v684
      %v1922 = vunpack.c.h.b16 %v684
      %v1923 = vunpack.c.l.b16 %v685
      %v1924 = vunpack.c.h.b16 %v685
      %v1925 = vunpack.c.l.b16 %v686
      %v1926 = vunpack.c.h.b16 %v686
      %v1927 = vunpack.c.l.b16 %v687
      %v1928 = vunpack.c.h.b16 %v687
      %v1929 = vunpack.c.l.b16 %v688
      %v1930 = vunpack.c.h.b16 %v688
      %v1931 = vunpack.c.l.b16 %v689
      %v1932 = vunpack.c.h.b16 %v689
      %v1933 = vunpack.c.l.b16 %v690
      %v1934 = vunpack.c.h.b16 %v690
      %v1935 = vunpack.c.l.b16 %v691
      %v1936 = vunpack.c.h.b16 %v691
      %v1937 = vunpack.c.l.b16 %v692
      %v1938 = vunpack.c.h.b16 %v692
      %v1939 = vunpack.c.l.b16 %v693
      %v1940 = vunpack.c.h.b16 %v693
      %v1941 = vunpack.c.l.b16 %v694
      %v1942 = vunpack.c.h.b16 %v694
      %v1943 = vunpack.c.l.b16 %v695
      %v1944 = vunpack.c.h.b16 %v695
      %v1945 = vunpack.c.l.b16 %v696
      %v1946 = vunpack.c.h.b16 %v696
      %v1947 = vunpack.c.l.b16 %v697
      %v1948 = vunpack.c.h.b16 %v697
      %v1949 = vunpack.c.l.b16 %v698
      %v1950 = vunpack.c.h.b16 %v698
      %v1951 = vunpack.c.l.b16 %v699
      %v1952 = vunpack.c.h.b16 %v699
      %v1953 = vunpack.c.l.b16 %v700
      %v1954 = vunpack.c.h.b16 %v700
      %v1955 = vunpack.c.l.b16 %v701
      %v1956 = vunpack.c.h.b16 %v701
      %v1957 = vunpack.c.l.b16 %v702
      %v1958 = vunpack.c.h.b16 %v702
      %v1959 = vunpack.c.l.b16 %v703
      %v1960 = vunpack.c.h.b16 %v703
      %v1961 = vunpack.c.l.b16 %v704
      %v1962 = vunpack.c.h.b16 %v704
      %v1963 = vunpack.c.l.b16 %v705
      %v1964 = vunpack.c.h.b16 %v705
      %v1965 = vunpack.c.l.b16 %v706
      %v1966 = vunpack.c.h.b16 %v706
      %v1967 = vunpack.c.l.b16 %v707
      %v1968 = vunpack.c.h.b16 %v707
      %v1969 = vunpack.c.l.b16 %v708
      %v1970 = vunpack.c.h.b16 %v708
      %v1971 = vunpack.c.l.b16 %v709
      %v1972 = vunpack.c.h.b16 %v709
      %v1973 = vunpack.c.l.b16 %v710
      %v1974 = vunpack.c.h.b16 %v710
      %v1975 = vunpack.c.l.b16 %v711
      %v1976 = vunpack.c.h.b16 %v711
      %v1977 = vunpack.c.l.b16 %v712
      %v1978 = vunpack.c.h.b16 %v712
      %v1979 = vunpack.c.l.b16 %v713
      %v1980 = vunpack.c.h.b16 %v713
      %v1981 = vunpack.c.l.b16 %v714
      %v1982 = vunpack.c.h.b16 %v714
      %v1983 = vunpack.c.l.b16 %v715
      %v1984 = vunpack.c.h.b16 %v715
      %v1985 = vunpack.c.l.b16 %v716
      %v1986 = vunpack.c.h.b16 %v716
      %v1987 = vunpack.c.l.b16 %v717
      %v1988 = vunpack.c.h.b16 %v717
      %v1989 = vunpack.c.l.b16 %v718
      %v1990 = vunpack.c.h.b16 %v718
      %v1991 = vunpack.c.l.b16 %v719
      %v1992 = vunpack.c.h.b16 %v719
      %v1993 = vunpack.c.l.b16 %v720
      %v1994 = vunpack.c.h.b16 %v720
      %v1995 = vunpack.c.l.b16 %v721
      %v1996 = vunpack.c.h.b16 %v721
      %v1997 = vunpack.c.l.b16 %v722
      %v1998 = vunpack.c.h.b16 %v722
      %v1999 = vunpack.c.l.b16 %v723
      %v2000 = vunpack.c.h.b16 %v723
      %v2001 = vunpack.c.l.b16 %v724
      %v2002 = vunpack.c.h.b16 %v724
      %v2003 = vunpack.c.l.b16 %v725
      %v2004 = vunpack.c.h.b16 %v725
      %v2005 = vunpack.c.l.b16 %v726
      %v2006 = vunpack.c.h.b16 %v726
      %v2007 = vunpack.c.l.b16 %v727
      %v2008 = vunpack.c.h.b16 %v727
      %v2009 = vunpack.c.l.b16 %v728
      %v2010 = vunpack.c.h.b16 %v728
      %v2011 = vunpack.c.l.b16 %v729
      %v2012 = vunpack.c.h.b16 %v729
      %v2013 = vunpack.c.l.b16 %v730
      %v2014 = vunpack.c.h.b16 %v730
      %v2015 = vunpack.c.l.b16 %v731
      %v2016 = vunpack.c.h.b16 %v731
      %v2017 = vunpack.c.l.b16 %v732
      %v2018 = vunpack.c.h.b16 %v732
      %v2019 = vunpack.c.l.b16 %v733
      %v2020 = vunpack.c.h.b16 %v733
      %v2021 = vunpack.c.l.b16 %v734
      %v2022 = vunpack.c.h.b16 %v734
      %v2023 = vunpack.c.l.b16 %v735
      %v2024 = vunpack.c.h.b16 %v735
      %v2025 = vunpack.c.l.b16 %v736
      %v2026 = vunpack.c.h.b16 %v736
      %v2027 = vunpack.c.l.b16 %v737
      %v2028 = vunpack.c.h.b16 %v737
      %v2029 = vunpack.c.l.b16 %v738
      %v2030 = vunpack.c.h.b16 %v738
      %v2031 = vunpack.c.l.b16 %v739
      %v2032 = vunpack.c.h.b16 %v739
      %v2033 = vunpack.c.l.b16 %v740
      %v2034 = vunpack.c.h.b16 %v740
      %v2035 = vunpack.c.l.b16 %v741
      %v2036 = vunpack.c.h.b16 %v741
      %v2037 = vunpack.c.l.b16 %v742
      %v2038 = vunpack.c.h.b16 %v742
      %v2039 = vunpack.c.l.b16 %v743
      %v2040 = vunpack.c.h.b16 %v743
      %v2041 = vunpack.c.l.b16 %v744
      %v2042 = vunpack.c.h.b16 %v744
      %v2043 = vunpack.c.l.b16 %v745
      %v2044 = vunpack.c.h.b16 %v745
      %v2045 = vunpack.c.l.b16 %v746
      %v2046 = vunpack.c.h.b16 %v746
      %v2047 = vunpack.c.l.b16 %v747
      %v2048 = vunpack.c.h.b16 %v747
      %v2049 = vunpack.c.l.b16 %v748
      %v2050 = vunpack.c.h.b16 %v748
      %v2051 = vunpack.c.l.b16 %v749
      %v2052 = vunpack.c.h.b16 %v749
      %v2053 = vunpack.c.l.b16 %v750
      %v2054 = vunpack.c.h.b16 %v750
      %v2055 = vunpack.c.l.b16 %v751
      %v2056 = vunpack.c.h.b16 %v751
      %v2057 = vunpack.c.l.b16 %v752
      %v2058 = vunpack.c.h.b16 %v752
      %v2059 = vunpack.c.l.b16 %v753
      %v2060 = vunpack.c.h.b16 %v753
      %v2061 = vunpack.c.l.b16 %v754
      %v2062 = vunpack.c.h.b16 %v754
      %v2063 = vunpack.c.l.b16 %v755
      %v2064 = vunpack.c.h.b16 %v755
      %v2065 = vunpack.c.l.b16 %v756
      %v2066 = vunpack.c.h.b16 %v756
      %v2067 = vunpack.c.l.b16 %v757
      %v2068 = vunpack.c.h.b16 %v757
      %v2069 = vunpack.c.l.b16 %v758
      %v2070 = vunpack.c.h.b16 %v758
      %v2071 = vunpack.c.l.b16 %v759
      %v2072 = vunpack.c.h.b16 %v759
      %v2073 = vunpack.c.l.b16 %v760
      %v2074 = vunpack.c.h.b16 %v760
      %v2075 = vunpack.c.l.b16 %v761
      %v2076 = vunpack.c.h.b16 %v761
      %v2077 = vunpack.c.l.b16 %v762
      %v2078 = vunpack.c.h.b16 %v762
      %v2079 = vunpack.c.l.b16 %v763
      %v2080 = vunpack.c.h.b16 %v763
      %v2081 = vunpack.c.l.b16 %v764
      %v2082 = vunpack.c.h.b16 %v764
      %v2083 = vunpack.c.l.b16 %v765
      %v2084 = vunpack.c.h.b16 %v765
      %v2085 = vunpack.c.l.b16 %v766
      %v2086 = vunpack.c.h.b16 %v766
      %v2087 = vunpack.c.l.b16 %v767
      %v2088 = vunpack.c.h.b16 %v767
      %v2089 = vunpack.c.l.b16 %v768
      %v2090 = vunpack.c.h.b16 %v768
      %v2091 = vunpack.c.l.b16 %v769
      %v2092 = vunpack.c.h.b16 %v769
      %v2093 = vunpack.c.l.b16 %v770
      %v2094 = vunpack.c.h.b16 %v770
      %v2095 = vunpack.c.l.b16 %v771
      %v2096 = vunpack.c.h.b16 %v771
      %v2097 = vunpack.c.l.b16 %v772
      %v2098 = vunpack.c.h.b16 %v772
      %v2099 = vunpack.c.l.b16 %v773
      %v2100 = vunpack.c.h.b16 %v773
      %v2101 = vunpack.c.l.b16 %v774
      %v2102 = vunpack.c.h.b16 %v774
      %v2103 = vunpack.c.l.b16 %v775
      %v2104 = vunpack.c.h.b16 %v775
      %v2105 = vunpack.c.l.b16 %v776
      %v2106 = vunpack.c.h.b16 %v776
      %v2107 = vunpack.c.l.b16 %v777
      %v2108 = vunpack.c.h.b16 %v777
      %v2109 = vunpack.c.l.b16 %v778
      %v2110 = vunpack.c.h.b16 %v778
      %v2111 = vunpack.c.l.b16 %v779
      %v2112 = vunpack.c.h.b16 %v779
      %v2113 = vunpack.c.l.b16 %v780
      %v2114 = vunpack.c.h.b16 %v780
      %v2115 = vunpack.c.l.b16 %v781
      %v2116 = vunpack.c.h.b16 %v781
      %v2117 = vunpack.c.l.b16 %v782
      %v2118 = vunpack.c.h.b16 %v782
      %v2119 = vunpack.c.l.b16 %v783
      %v2120 = vunpack.c.h.b16 %v783
      %v2121 = vunpack.c.l.b16 %v784
      %v2122 = vunpack.c.h.b16 %v784
      %v2123 = vunpack.c.l.b16 %v785
      %v2124 = vunpack.c.h.b16 %v785
      %v2125 = vunpack.c.l.b16 %v786
      %v2126 = vunpack.c.h.b16 %v786
      %v2127 = vunpack.c.l.b16 %v787
      %v2128 = vunpack.c.h.b16 %v787
      %v2129 = vunpack.c.l.b16 %v788
      %v2130 = vunpack.c.h.b16 %v788
      %v2131 = vunpack.c.l.b16 %v789
      %v2132 = vunpack.c.h.b16 %v789
      %v2133 = vunpack.c.l.b16 %v790
      %v2134 = vunpack.c.h.b16 %v790
      %v2135 = vunpack.c.l.b16 %v791
      %v2136 = vunpack.c.h.b16 %v791
      %v2137 = vunpack.c.l.b16 %v792
      %v2138 = vunpack.c.h.b16 %v792
      %v2139 = vunpack.c.l.b16 %v793
      %v2140 = vunpack.c.h.b16 %v793
      %v2141 = vunpack.c.l.b16 %v794
      %v2142 = vunpack.c.h.b16 %v794
      %v2143 = vunpack.c.l.b16 %v795
      %v2144 = vunpack.c.h.b16 %v795
      %v2145 = vunpack.c.l.b16 %v796
      %v2146 = vunpack.c.h.b16 %v796
      %v2147 = vunpack.c.l.b16 %v797
      %v2148 = vunpack.c.h.b16 %v797
      %v2149 = vunpack.c.l.b16 %v798
      %v2150 = vunpack.c.h.b16 %v798
      %v2151 = vunpack.c.l.b16 %v799
      %v2152 = vunpack.c.h.b16 %v799
      %v2153 = vunpack.c.l.b16 %v800
      %v2154 = vunpack.c.h.b16 %v800
      %v2155 = vunpack.c.l.b16 %v801
      %v2156 = vunpack.c.h.b16 %v801
      %v2157 = vunpack.c.l.b16 %v802
      %v2158 = vunpack.c.h.b16 %v802
      %v2159 = vunpack.c.l.b16 %v803
      %v2160 = vunpack.c.h.b16 %v803
      %v2161 = vunpack.c.l.b16 %v804
      %v2162 = vunpack.c.h.b16 %v804
      %v2163 = vunpack.c.l.b16 %v805
      %v2164 = vunpack.c.h.b16 %v805
      %v2165 = vunpack.c.l.b16 %v806
      %v2166 = vunpack.c.h.b16 %v806
      %v2167 = vunpack.c.l.b16 %v807
      %v2168 = vunpack.c.h.b16 %v807
      %v2169 = vunpack.c.l.b16 %v808
      %v2170 = vunpack.c.h.b16 %v808
      %v2171 = vunpack.c.l.b16 %v809
      %v2172 = vunpack.c.h.b16 %v809
      %v2173 = vunpack.c.l.b16 %v810
      %v2174 = vunpack.c.h.b16 %v810
      %v2175 = vunpack.c.l.b16 %v811
      %v2176 = vunpack.c.h.b16 %v811
      %v2177 = vunpack.c.l.b16 %v812
      %v2178 = vunpack.c.h.b16 %v812
      %v2179 = vunpack.c.l.b16 %v813
      %v2180 = vunpack.c.h.b16 %v813
      %v2181 = vunpack.c.l.b16 %v814
      %v2182 = vunpack.c.h.b16 %v814
      %v2183 = vunpack.c.l.b16 %v815
      %v2184 = vunpack.c.h.b16 %v815
      %v2185 = vunpack.c.l.b16 %v816
      %v2186 = vunpack.c.h.b16 %v816
      %v2187 = vunpack.c.l.b16 %v817
      %v2188 = vunpack.c.h.b16 %v817
      %v2189 = vunpack.c.l.b16 %v818
      %v2190 = vunpack.c.h.b16 %v818
      %v2191 = vunpack.c.l.b16 %v819
      %v2192 = vunpack.c.h.b16 %v819
      %v2193 = vunpack.c.l.b16 %v820
      %v2194 = vunpack.c.h.b16 %v820
      %v2195 = vunpack.c.l.b16 %v821
      %v2196 = vunpack.c.h.b16 %v821
      %v2197 = vunpack.c.l.b16 %v822
      %v2198 = vunpack.c.h.b16 %v822
      %v2199 = vunpack.c.l.b16 %v823
      %v2200 = vunpack.c.h.b16 %v823
      %v2201 = vunpack.c.l.b16 %v824
      %v2202 = vunpack.c.h.b16 %v824
      %v2203 = vunpack.c.l.b16 %v825
      %v2204 = vunpack.c.h.b16 %v825
      %v2205 = vunpack.c.l.b16 %v826
      %v2206 = vunpack.c.h.b16 %v826
      %v2207 = vunpack.c.l.b16 %v827
      %v2208 = vunpack.c.h.b16 %v827
      %v2209 = vunpack.c.l.b16 %v828
      %v2210 = vunpack.c.h.b16 %v828
      %v2211 = vunpack.c.l.b16 %v829
      %v2212 = vunpack.c.h.b16 %v829
      %v2213 = vunpack.c.l.b16 %v830
      %v2214 = vunpack.c.h.b16 %v830
      %v2215 = vunpack.c.l.b16 %v831
      %v2216 = vunpack.c.h.b16 %v831
      %v2217 = vunpack.c.l.b16 %v832
      %v2218 = vunpack.c.h.b16 %v832
      %v2219 = vunpack.c.l.b16 %v833
      %v2220 = vunpack.c.h.b16 %v833
      %v2221 = vunpack.c.l.b16 %v834
      %v2222 = vunpack.c.h.b16 %v834
      %v2223 = vunpack.c.l.b16 %v835
      %v2224 = vunpack.c.h.b16 %v835
      %v2225 = vunpack.c.l.b16 %v836
      %v2226 = vunpack.c.h.b16 %v836
      %v2227 = vunpack.c.l.b16 %v837
      %v2228 = vunpack.c.h.b16 %v837
      %v2229 = vunpack.c.l.b16 %v838
      %v2230 = vunpack.c.h.b16 %v838
      %v2231 = vunpack.c.l.b16 %v839
      %v2232 = vunpack.c.h.b16 %v839
      %v2233 = vunpack.c.l.b16 %v840
      %v2234 = vunpack.c.h.b16 %v840
      %v2235 = vunpack.c.l.b16 %v841
      %v2236 = vunpack.c.h.b16 %v841
      %v2237 = vunpack.c.l.b16 %v842
      %v2238 = vunpack.c.h.b16 %v842
      %v2239 = vunpack.c.l.b16 %v843
      %v2240 = vunpack.c.h.b16 %v843
      %v2241 = vunpack.c.l.b16 %v844
      %v2242 = vunpack.c.h.b16 %v844
      %v2243 = vunpack.c.l.b16 %v845
      %v2244 = vunpack.c.h.b16 %v845
      %v2245 = vunpack.c.l.b16 %v846
      %v2246 = vunpack.c.h.b16 %v846
      %v2247 = vunpack.c.l.b16 %v847
      %v2248 = vunpack.c.h.b16 %v847
      %v2249 = vunpack.c.l.b16 %v848
      %v2250 = vunpack.c.h.b16 %v848
      %v2251 = vunpack.c.l.b16 %v849
      %v2252 = vunpack.c.h.b16 %v849
      %v2253 = vunpack.c.l.b16 %v850
      %v2254 = vunpack.c.h.b16 %v850
      %v2255 = vunpack.c.l.b16 %v851
      %v2256 = vunpack.c.h.b16 %v851
      %v2257 = vunpack.c.l.b16 %v852
      %v2258 = vunpack.c.h.b16 %v852
      %v2259 = vunpack.c.l.b16 %v853
      %v2260 = vunpack.c.h.b16 %v853
      %v2261 = vunpack.c.l.b16 %v854
      %v2262 = vunpack.c.h.b16 %v854
      %v2263 = vunpack.c.l.b16 %v855
      %v2264 = vunpack.c.h.b16 %v855
      %v2265 = vunpack.c.l.b16 %v856
      %v2266 = vunpack.c.h.b16 %v856
      %v2267 = vunpack.c.l.b16 %v857
      %v2268 = vunpack.c.h.b16 %v857
      %v2269 = vunpack.c.l.b16 %v858
      %v2270 = vunpack.c.h.b16 %v858
      %v2271 = vunpack.c.l.b16 %v859
      %v2272 = vunpack.c.h.b16 %v859
      %v2273 = vunpack.c.l.b16 %v860
      %v2274 = vunpack.c.h.b16 %v860
      %v2275 = vunpack.c.l.b16 %v861
      %v2276 = vunpack.c.h.b16 %v861
      %v2277 = vunpack.c.l.b16 %v862
      %v2278 = vunpack.c.h.b16 %v862
      %v2279 = vunpack.c.l.b16 %v863
      %v2280 = vunpack.c.h.b16 %v863
      %v2281 = vunpack.c.l.b16 %v864
      %v2282 = vunpack.c.h.b16 %v864
      %v2283 = vunpack.c.l.b16 %v865
      %v2284 = vunpack.c.h.b16 %v865
      %v2285 = vunpack.c.l.b16 %v866
      %v2286 = vunpack.c.h.b16 %v866
      %v2287 = vunpack.c.l.b16 %v867
      %v2288 = vunpack.c.h.b16 %v867
      %v2289 = vunpack.c.l.b16 %v868
      %v2290 = vunpack.c.h.b16 %v868
      %v2291 = vunpack.c.l.b16 %v869
      %v2292 = vunpack.c.h.b16 %v869
      %v2293 = vunpack.c.l.b16 %v870
      %v2294 = vunpack.c.h.b16 %v870
      %v2295 = vunpack.c.l.b16 %v871
      %v2296 = vunpack.c.h.b16 %v871
      %v2297 = vunpack.c.l.b16 %v872
      %v2298 = vunpack.c.h.b16 %v872
      %v2299 = vunpack.c.l.b16 %v873
      %v2300 = vunpack.c.h.b16 %v873
      %v2301 = vunpack.c.l.b16 %v874
      %v2302 = vunpack.c.h.b16 %v874
      %v2303 = vunpack.c.l.b16 %v875
      %v2304 = vunpack.c.h.b16 %v875
      %v2305 = vunpack.c.l.b16 %v876
      %v2306 = vunpack.c.h.b16 %v876
      %v2307 = vunpack.c.l.b16 %v877
      %v2308 = vunpack.c.h.b16 %v877
      %v2309 = vunpack.c.l.b16 %v878
      %v2310 = vunpack.c.h.b16 %v878
      %v2311 = vunpack.c.l.b16 %v879
      %v2312 = vunpack.c.h.b16 %v879
      %v2313 = vunpack.c.l.b16 %v880
      %v2314 = vunpack.c.h.b16 %v880
      %v2315 = vunpack.c.l.b16 %v881
      %v2316 = vunpack.c.h.b16 %v881
      %v2317 = vunpack.c.l.b16 %v882
      %v2318 = vunpack.c.h.b16 %v882
      %v2319 = vunpack.c.l.b16 %v883
      %v2320 = vunpack.c.h.b16 %v883
      %v2321 = vunpack.c.l.b16 %v884
      %v2322 = vunpack.c.h.b16 %v884
      %v2323 = vunpack.c.l.b16 %v885
      %v2324 = vunpack.c.h.b16 %v885
      %v2325 = vunpack.c.l.b16 %v886
      %v2326 = vunpack.c.h.b16 %v886
      %v2327 = vunpack.c.l.b16 %v887
      %v2328 = vunpack.c.h.b16 %v887
      %v2329 = vunpack.c.l.b16 %v888
      %v2330 = vunpack.c.h.b16 %v888
      %v2331 = vunpack.c.l.b16 %v889
      %v2332 = vunpack.c.h.b16 %v889
      %v2333 = vunpack.c.l.b16 %v890
      %v2334 = vunpack.c.h.b16 %v890
      %v2335 = vunpack.c.l.b16 %v891
      %v2336 = vunpack.c.h.b16 %v891
      %v2337 = vpack.c.b16 %v1829, %v1825
      %v2338 = vpack.c.b16 %v1830, %v1826
      %v2339 = vpack.c.b16 %v1831, %v1827
      %v2340 = vpack.c.b16 %v1832, %v1828
      %v2341 = vpack.c.b16 %v1837, %v1833
      %v2342 = vpack.c.b16 %v1838, %v1834
      %v2343 = vpack.c.b16 %v1839, %v1835
      %v2344 = vpack.c.b16 %v1840, %v1836
      %v2345 = vpack.c.b16 %v1845, %v1841
      %v2346 = vpack.c.b16 %v1846, %v1842
      %v2347 = vpack.c.b16 %v1847, %v1843
      %v2348 = vpack.c.b16 %v1848, %v1844
      %v2349 = vpack.c.b16 %v1853, %v1849
      %v2350 = vpack.c.b16 %v1854, %v1850
      %v2351 = vpack.c.b16 %v1855, %v1851
      %v2352 = vpack.c.b16 %v1856, %v1852
      %v2353 = vpack.c.b16 %v1861, %v1857
      %v2354 = vpack.c.b16 %v1862, %v1858
      %v2355 = vpack.c.b16 %v1863, %v1859
      %v2356 = vpack.c.b16 %v1864, %v1860
      %v2357 = vpack.c.b16 %v1869, %v1865
      %v2358 = vpack.c.b16 %v1870, %v1866
      %v2359 = vpack.c.b16 %v1871, %v1867
      %v2360 = vpack.c.b16 %v1872, %v1868
      %v2361 = vpack.c.b16 %v1877, %v1873
      %v2362 = vpack.c.b16 %v1878, %v1874
      %v2363 = vpack.c.b16 %v1879, %v1875
      %v2364 = vpack.c.b16 %v1880, %v1876
      %v2365 = vpack.c.b16 %v1885, %v1881
      %v2366 = vpack.c.b16 %v1886, %v1882
      %v2367 = vpack.c.b16 %v1887, %v1883
      %v2368 = vpack.c.b16 %v1888, %v1884
      %v2369 = vpack.c.b16 %v1893, %v1889
      %v2370 = vpack.c.b16 %v1894, %v1890
      %v2371 = vpack.c.b16 %v1895, %v1891
      %v2372 = vpack.c.b16 %v1896, %v1892
      %v2373 = vpack.c.b16 %v1901, %v1897
      %v2374 = vpack.c.b16 %v1902, %v1898
      %v2375 = vpack.c.b16 %v1903, %v1899
      %v2376 = vpack.c.b16 %v1904, %v1900
      %v2377 = vpack.c.b16 %v1909, %v1905
      %v2378 = vpack.c.b16 %v1910, %v1906
      %v2379 = vpack.c.b16 %v1911, %v1907
      %v2380 = vpack.c.b16 %v1912, %v1908
      %v2381 = vpack.c.b16 %v1917, %v1913
      %v2382 = vpack.c.b16 %v1918, %v1914
      %v2383 = vpack.c.b16 %v1919, %v1915
      %v2384 = vpack.c.b16 %v1920, %v1916
      %v2385 = vpack.c.b16 %v1925, %v1921
      %v2386 = vpack.c.b16 %v1926, %v1922
      %v2387 = vpack.c.b16 %v1927, %v1923
      %v2388 = vpack.c.b16 %v1928, %v1924
      %v2389 = vpack.c.b16 %v1933, %v1929
      %v2390 = vpack.c.b16 %v1934, %v1930
      %v2391 = vpack.c.b16 %v1935, %v1931
      %v2392 = vpack.c.b16 %v1936, %v1932
      %v2393 = vpack.c.b16 %v1941, %v1937
      %v2394 = vpack.c.b16 %v1942, %v1938
      %v2395 = vpack.c.b16 %v1943, %v1939
      %v2396 = vpack.c.b16 %v1944, %v1940
      %v2397 = vpack.c.b16 %v1949, %v1945
      %v2398 = vpack.c.b16 %v1950, %v1946
      %v2399 = vpack.c.b16 %v1951, %v1947
      %v2400 = vpack.c.b16 %v1952, %v1948
      %v2401 = vpack.c.b16 %v1957, %v1953
      %v2402 = vpack.c.b16 %v1958, %v1954
      %v2403 = vpack.c.b16 %v1959, %v1955
      %v2404 = vpack.c.b16 %v1960, %v1956
      %v2405 = vpack.c.b16 %v1965, %v1961
      %v2406 = vpack.c.b16 %v1966, %v1962
      %v2407 = vpack.c.b16 %v1967, %v1963
      %v2408 = vpack.c.b16 %v1968, %v1964
      %v2409 = vpack.c.b16 %v1973, %v1969
      %v2410 = vpack.c.b16 %v1974, %v1970
      %v2411 = vpack.c.b16 %v1975, %v1971
      %v2412 = vpack.c.b16 %v1976, %v1972
      %v2413 = vpack.c.b16 %v1981, %v1977
      %v2414 = vpack.c.b16 %v1982, %v1978
      %v2415 = vpack.c.b16 %v1983, %v1979
      %v2416 = vpack.c.b16 %v1984, %v1980
      %v2417 = vpack.c.b16 %v1989, %v1985
      %v2418 = vpack.c.b16 %v1990, %v1986
      %v2419 = vpack.c.b16 %v1991, %v1987
      %v2420 = vpack.c.b16 %v1992, %v1988
      %v2421 = vpack.c.b16 %v1997, %v1993
      %v2422 = vpack.c.b16 %v1998, %v1994
      %v2423 = vpack.c.b16 %v1999, %v1995
      %v2424 = vpack.c.b16 %v2000, %v1996
      %v2425 = vpack.c.b16 %v2005, %v2001
      %v2426 = vpack.c.b16 %v2006, %v2002
      %v2427 = vpack.c.b16 %v2007, %v2003
      %v2428 = vpack.c.b16 %v2008, %v2004
      %v2429 = vpack.c.b16 %v2013, %v2009
      %v2430 = vpack.c.b16 %v2014, %v2010
      %v2431 = vpack.c.b16 %v2015, %v2011
      %v2432 = vpack.c.b16 %v2016, %v2012
      %v2433 = vpack.c.b16 %v2021, %v2017
      %v2434 = vpack.c.b16 %v2022, %v2018
      %v2435 = vpack.c.b16 %v2023, %v2019
      %v2436 = vpack.c.b16 %v2024, %v2020
      %v2437 = vpack.c.b16 %v2029, %v2025
      %v2438 = vpack.c.b16 %v2030, %v2026
      %v2439 = vpack.c.b16 %v2031, %v2027
      %v2440 = vpack.c.b16 %v2032, %v2028
      %v2441 = vpack.c.b16 %v2037, %v2033
      %v2442 = vpack.c.b16 %v2038, %v2034
      %v2443 = vpack.c.b16 %v2039, %v2035
      %v2444 = vpack.c.b16 %v2040, %v2036
      %v2445 = vpack.c.b16 %v2045, %v2041
      %v2446 = vpack.c.b16 %v2046, %v2042
      %v2447 = vpack.c.b16 %v2047, %v2043
      %v2448 = vpack.c.b16 %v2048, %v2044
      %v2449 = vpack.c.b16 %v2053, %v2049
      %v2450 = vpack.c.b16 %v2054, %v2050
      %v2451 = vpack.c.b16 %v2055, %v2051
      %v2452 = vpack.c.b16 %v2056, %v2052
      %v2453 = vpack.c.b16 %v2061, %v2057
      %v2454 = vpack.c.b16 %v2062, %v2058
      %v2455 = vpack.c.b16 %v2063, %v2059
      %v2456 = vpack.c.b16 %v2064, %v2060
      %v2457 = vpack.c.b16 %v2069, %v2065
      %v2458 = vpack.c.b16 %v2070, %v2066
      %v2459 = vpack.c.b16 %v2071, %v2067
      %v2460 = vpack.c.b16 %v2072, %v2068
      %v2461 = vpack.c.b16 %v2077, %v2073
      %v2462 = vpack.c.b16 %v2078, %v2074
      %v2463 = vpack.c.b16 %v2079, %v2075
      %v2464 = vpack.c.b16 %v2080, %v2076
      %v2465 = vpack.c.b16 %v2085, %v2081
      %v2466 = vpack.c.b16 %v2086, %v2082
      %v2467 = vpack.c.b16 %v2087, %v2083
      %v2468 = vpack.c.b16 %v2088, %v2084
      %v2469 = vpack.c.b16 %v2093, %v2089
      %v2470 = vpack.c.b16 %v2094, %v2090
      %v2471 = vpack.c.b16 %v2095, %v2091
      %v2472 = vpack.c.b16 %v2096, %v2092
      %v2473 = vpack.c.b16 %v2101, %v2097
      %v2474 = vpack.c.b16 %v2102, %v2098
      %v2475 = vpack.c.b16 %v2103, %v2099
      %v2476 = vpack.c.b16 %v2104, %v2100
      %v2477 = vpack.c.b16 %v2109, %v2105
      %v2478 = vpack.c.b16 %v2110, %v2106
      %v2479 = vpack.c.b16 %v2111, %v2107
      %v2480 = vpack.c.b16 %v2112, %v2108
      %v2481 = vpack.c.b16 %v2117, %v2113
      %v2482 = vpack.c.b16 %v2118, %v2114
      %v2483 = vpack.c.b16 %v2119, %v2115
      %v2484 = vpack.c.b16 %v2120, %v2116
      %v2485 = vpack.c.b16 %v2125, %v2121
      %v2486 = vpack.c.b16 %v2126, %v2122
      %v2487 = vpack.c.b16 %v2127, %v2123
      %v2488 = vpack.c.b16 %v2128, %v2124
      %v2489 = vpack.c.b16 %v2133, %v2129
      %v2490 = vpack.c.b16 %v2134, %v2130
      %v2491 = vpack.c.b16 %v2135, %v2131
      %v2492 = vpack.c.b16 %v2136, %v2132
      %v2493 = vpack.c.b16 %v2141, %v2137
      %v2494 = vpack.c.b16 %v2142, %v2138
      %v2495 = vpack.c.b16 %v2143, %v2139
      %v2496 = vpack.c.b16 %v2144, %v2140
      %v2497 = vpack.c.b16 %v2149, %v2145
      %v2498 = vpack.c.b16 %v2150, %v2146
      %v2499 = vpack.c.b16 %v2151, %v2147
      %v2500 = vpack.c.b16 %v2152, %v2148
      %v2501 = vpack.c.b16 %v2157, %v2153
      %v2502 = vpack.c.b16 %v2158, %v2154
      %v2503 = vpack.c.b16 %v2159, %v2155
      %v2504 = vpack.c.b16 %v2160, %v2156
      %v2505 = vpack.c.b16 %v2165, %v2161
      %v2506 = vpack.c.b16 %v2166, %v2162
      %v2507 = vpack.c.b16 %v2167, %v2163
      %v2508 = vpack.c.b16 %v2168, %v2164
      %v2509 = vpack.c.b16 %v2173, %v2169
      %v2510 = vpack.c.b16 %v2174, %v2170
      %v2511 = vpack.c.b16 %v2175, %v2171
      %v2512 = vpack.c.b16 %v2176, %v2172
      %v2513 = vpack.c.b16 %v2181, %v2177
      %v2514 = vpack.c.b16 %v2182, %v2178
      %v2515 = vpack.c.b16 %v2183, %v2179
      %v2516 = vpack.c.b16 %v2184, %v2180
      %v2517 = vpack.c.b16 %v2189, %v2185
      %v2518 = vpack.c.b16 %v2190, %v2186
      %v2519 = vpack.c.b16 %v2191, %v2187
      %v2520 = vpack.c.b16 %v2192, %v2188
      %v2521 = vpack.c.b16 %v2197, %v2193
      %v2522 = vpack.c.b16 %v2198, %v2194
      %v2523 = vpack.c.b16 %v2199, %v2195
      %v2524 = vpack.c.b16 %v2200, %v2196
      %v2525 = vpack.c.b16 %v2205, %v2201
      %v2526 = vpack.c.b16 %v2206, %v2202
      %v2527 = vpack.c.b16 %v2207, %v2203
      %v2528 = vpack.c.b16 %v2208, %v2204
      %v2529 = vpack.c.b16 %v2213, %v2209
      %v2530 = vpack.c.b16 %v2214, %v2210
      %v2531 = vpack.c.b16 %v2215, %v2211
      %v2532 = vpack.c.b16 %v2216, %v2212
      %v2533 = vpack.c.b16 %v2221, %v2217
      %v2534 = vpack.c.b16 %v2222, %v2218
      %v2535 = vpack.c.b16 %v2223, %v2219
      %v2536 = vpack.c.b16 %v2224, %v2220
      %v2537 = vpack.c.b16 %v2229, %v2225
      %v2538 = vpack.c.b16 %v2230, %v2226
      %v2539 = vpack.c.b16 %v2231, %v2227
      %v2540 = vpack.c.b16 %v2232, %v2228
      %v2541 = vpack.c.b16 %v2237, %v2233
      %v2542 = vpack.c.b16 %v2238, %v2234
      %v2543 = vpack.c.b16 %v2239, %v2235
      %v2544 = vpack.c.b16 %v2240, %v2236
      %v2545 = vpack.c.b16 %v2245, %v2241
      %v2546 = vpack.c.b16 %v2246, %v2242
      %v2547 = vpack.c.b16 %v2247, %v2243
      %v2548 = vpack.c.b16 %v2248, %v2244
      %v2549 = vpack.c.b16 %v2253, %v2249
      %v2550 = vpack.c.b16 %v2254, %v2250
      %v2551 = vpack.c.b16 %v2255, %v2251
      %v2552 = vpack.c.b16 %v2256, %v2252
      %v2553 = vpack.c.b16 %v2261, %v2257
      %v2554 = vpack.c.b16 %v2262, %v2258
      %v2555 = vpack.c.b16 %v2263, %v2259
      %v2556 = vpack.c.b16 %v2264, %v2260
      %v2557 = vpack.c.b16 %v2269, %v2265
      %v2558 = vpack.c.b16 %v2270, %v2266
      %v2559 = vpack.c.b16 %v2271, %v2267
      %v2560 = vpack.c.b16 %v2272, %v2268
      %v2561 = vpack.c.b16 %v2277, %v2273
      %v2562 = vpack.c.b16 %v2278, %v2274
      %v2563 = vpack.c.b16 %v2279, %v2275
      %v2564 = vpack.c.b16 %v2280, %v2276
      %v2565 = vpack.c.b16 %v2285, %v2281
      %v2566 = vpack.c.b16 %v2286, %v2282
      %v2567 = vpack.c.b16 %v2287, %v2283
      %v2568 = vpack.c.b16 %v2288, %v2284
      %v2569 = vpack.c.b16 %v2293, %v2289
      %v2570 = vpack.c.b16 %v2294, %v2290
      %v2571 = vpack.c.b16 %v2295, %v2291
      %v2572 = vpack.c.b16 %v2296, %v2292
      %v2573 = vpack.c.b16 %v2301, %v2297
      %v2574 = vpack.c.b16 %v2302, %v2298
      %v2575 = vpack.c.b16 %v2303, %v2299
      %v2576 = vpack.c.b16 %v2304, %v2300
      %v2577 = vpack.c.b16 %v2309, %v2305
      %v2578 = vpack.c.b16 %v2310, %v2306
      %v2579 = vpack.c.b16 %v2311, %v2307
      %v2580 = vpack.c.b16 %v2312, %v2308
      %v2581 = vpack.c.b16 %v2317, %v2313
      %v2582 = vpack.c.b16 %v2318, %v2314
      %v2583 = vpack.c.b16 %v2319, %v2315
      %v2584 = vpack.c.b16 %v2320, %v2316
      %v2585 = vpack.c.b16 %v2325, %v2321
      %v2586 = vpack.c.b16 %v2326, %v2322
      %v2587 = vpack.c.b16 %v2327, %v2323
      %v2588 = vpack.c.b16 %v2328, %v2324
      %v2589 = vpack.c.b16 %v2333, %v2329
      %v2590 = vpack.c.b16 %v2334, %v2330
      %v2591 = vpack.c.b16 %v2335, %v2331
      %v2592 = vpack.c.b16 %v2336, %v2332
      %2849 = vmatprep.subr.bf16.mxu0 %v2338
      %2850 = vmatpush1.bf16.msra.mxu0 %v2337
      %2851 = vmatprep.subr.bf16.mxu0 %v2342
      %2852 = vmatpush1.bf16.msra.mxu0 %v2341
      %2853 = vmatprep.subr.bf16.mxu0 %v2346
      %2854 = vmatpush1.bf16.msra.mxu0 %v2345
      %2855 = vmatprep.subr.bf16.mxu0 %v2350
      %2856 = vmatpush1.bf16.msra.mxu0 %v2349
      %2857 = vmatprep.subr.bf16.mxu0 %v2354
      %2858 = vmatpush1.bf16.msra.mxu0 %v2353
      %2859 = vmatprep.subr.bf16.mxu0 %v2358
      %2860 = vmatpush1.bf16.msra.mxu0 %v2357
      %2861 = vmatprep.subr.bf16.mxu0 %v2362
      %2862 = vmatpush1.bf16.msra.mxu0 %v2361
      %2863 = vmatprep.subr.bf16.mxu0 %v2366
      %2864 = vmatpush1.bf16.msra.mxu0 %v2365
      %2865 = vmatprep.subr.bf16.mxu0 %v2370
      %2866 = vmatpush1.bf16.msra.mxu0 %v2369
      %2867 = vmatprep.subr.bf16.mxu0 %v2374
      %2868 = vmatpush1.bf16.msra.mxu0 %v2373
      %2869 = vmatprep.subr.bf16.mxu0 %v2378
      %2870 = vmatpush1.bf16.msra.mxu0 %v2377
      %2871 = vmatprep.subr.bf16.mxu0 %v2382
      %2872 = vmatpush1.bf16.msra.mxu0 %v2381
      %2873 = vmatprep.subr.bf16.mxu0 %v2386
      %2874 = vmatpush1.bf16.msra.mxu0 %v2385
      %2875 = vmatprep.subr.bf16.mxu0 %v2390
      %2876 = vmatpush1.bf16.msra.mxu0 %v2389
      %2877 = vmatprep.subr.bf16.mxu0 %v2394
      %2878 = vmatpush1.bf16.msra.mxu0 %v2393
      %2879 = vmatprep.subr.bf16.mxu0 %v2398
      %2880 = vmatpush1.bf16.msra.mxu0 %v2397
      %2881 = vmatprep.mubr.bf16.mxu0 %v1128
      %2882 = vmatmul.mubr.bf16.gmra.mrb[0].mxu0 %v1116
      %v2883 = vpop.f32.mrb[0].mxu0
      %v2884 = vadd.f32 0.0, %v2883
      %v2885 = vpop.f32.mrb[0].mxu0
      %v2886 = vadd.f32 0.0, %v2885
      %v2887 = vpop.f32.mrb[0].mxu0
      %v2888 = vadd.f32 0.0, %v2887
      %v2889 = vpop.f32.mrb[0].mxu0
      %v2890 = vadd.f32 0.0, %v2889
      %2891 = vmatprep.mubr.bf16.mxu0 %v1216
      %2892 = vmatmul.mubr.bf16.gmra.mrb[0].mxu0 %v1208
      %v2893 = vpop.f32.mrb[0].mxu0
      %v2894 = vadd.f32 0.0, %v2893
      %v2895 = vpop.f32.mrb[0].mxu0
      %v2896 = vadd.f32 0.0, %v2895
      %v2897 = vpop.f32.mrb[0].mxu0
      %v2898 = vadd.f32 0.0, %v2897
      %v2899 = vpop.f32.mrb[0].mxu0
      %v2900 = vadd.f32 0.0, %v2899
      %2901 = vmatprep.mubr.bf16.mxu0 %v1280
      %2902 = vmatmul.mubr.bf16.gmra.mrb[0].mxu0 %v1272
      %v2903 = vpop.f32.mrb[0].mxu0
      %v2904 = vadd.f32 0.0, %v2903
      %v2905 = vpop.f32.mrb[0].mxu0
      %v2906 = vadd.f32 0.0, %v2905
      %v2907 = vpop.f32.mrb[0].mxu0
      %v2908 = vadd.f32 0.0, %v2907
      %v2909 = vpop.f32.mrb[0].mxu0
      %v2910 = vadd.f32 0.0, %v2909
      %2911 = vmatprep.mubr.bf16.mxu0 %v1344
      %2912 = vmatmul.mubr.bf16.gmra.mrb[0].mxu0 %v1336
      %v2913 = vpop.f32.mrb[0].mxu0
      %v2914 = vadd.f32 0.0, %v2913
      %v2915 = vpop.f32.mrb[0].mxu0
      %v2916 = vadd.f32 0.0, %v2915
      %v2917 = vpop.f32.mrb[0].mxu0
      %v2918 = vadd.f32 0.0, %v2917
      %v2919 = vpop.f32.mrb[0].mxu0
      %v2920 = vadd.f32 0.0, %v2919
      %2921 = vmatprep.mubr.bf16.mxu0 %v1408
      %2922 = vmatmul.mubr.bf16.gmra.mrb[0].mxu0 %v1400
      %v2923 = vpop.f32.mrb[0].mxu0
      %v2924 = vadd.f32 0.0, %v2923
      %v2925 = vpop.f32.mrb[0].mxu0
      %v2926 = vadd.f32 0.0, %v2925
      %v2927 = vpop.f32.mrb[0].mxu0
      %v2928 = vadd.f32 0.0, %v2927
      %v2929 = vpop.f32.mrb[0].mxu0
      %v2930 = vadd.f32 0.0, %v2929
      %2931 = vmatprep.mubr.bf16.mxu0 %v1472
      %2932 = vmatmul.mubr.bf16.gmra.mrb[0].mxu0 %v1464
      %v2933 = vpop.f32.mrb[0].mxu0
      %v2934 = vadd.f32 0.0, %v2933
      %v2935 = vpop.f32.mrb[0].mxu0
      %v2936 = vadd.f32 0.0, %v2935
      %v2937 = vpop.f32.mrb[0].mxu0
      %v2938 = vadd.f32 0.0, %v2937
      %v2939 = vpop.f32.mrb[0].mxu0
      %v2940 = vadd.f32 0.0, %v2939
      %2941 = vdwg.mxu0
      %2942 = vmatprep.subr.bf16.mxu0 %v2402
      %2943 = vmatpush1.bf16.msra.mxu0 %v2401
      %2944 = vmatprep.subr.bf16.mxu0 %v2406
      %2945 = vmatpush1.bf16.msra.mxu0 %v2405
      %2946 = vmatprep.subr.bf16.mxu0 %v2410
      %2947 = vmatpush1.bf16.msra.mxu0 %v2409
      %2948 = vmatprep.subr.bf16.mxu0 %v2414
      %2949 = vmatpush1.bf16.msra.mxu0 %v2413
      %2950 = vmatprep.subr.bf16.mxu0 %v2418
      %2951 = vmatpush1.bf16.msra.mxu0 %v2417
      %2952 = vmatprep.subr.bf16.mxu0 %v2422
      %2953 = vmatpush1.bf16.msra.mxu0 %v2421
      %2954 = vmatprep.subr.bf16.mxu0 %v2426
      %2955 = vmatpush1.bf16.msra.mxu0 %v2425
      %2956 = vmatprep.subr.bf16.mxu0 %v2430
      %2957 = vmatpush1.bf16.msra.mxu0 %v2429
      %2958 = vmatprep.subr.bf16.mxu0 %v2434
      %2959 = vmatpush1.bf16.msra.mxu0 %v2433
      %2960 = vmatprep.subr.bf16.mxu0 %v2438
      %2961 = vmatpush1.bf16.msra.mxu0 %v2437
      %2962 = vmatprep.subr.bf16.mxu0 %v2442
      %2963 = vmatpush1.bf16.msra.mxu0 %v2441
      %2964 = vmatprep.subr.bf16.mxu0 %v2446
      %2965 = vmatpush1.bf16.msra.mxu0 %v2445
      %2966 = vmatprep.subr.bf16.mxu0 %v2450
      %2967 = vmatpush1.bf16.msra.mxu0 %v2449
      %2968 = vmatprep.subr.bf16.mxu0 %v2454
      %2969 = vmatpush1.bf16.msra.mxu0 %v2453
      %2970 = vmatprep.subr.bf16.mxu0 %v2458
      %2971 = vmatpush1.bf16.msra.mxu0 %v2457
      %2972 = vmatprep.subr.bf16.mxu0 %v2462
      %2973 = vmatpush1.bf16.msra.mxu0 %v2461
      %2974 = vmatprep.mubr.bf16.mxu0 %v1152
      %2975 = vmatmul.mubr.bf16.gmra.mrb[0].mxu0 %v1140
      %v2976 = vpop.f32.mrb[0].mxu0
      %v2977 = vadd.f32 %v2884, %v2976
      %v2978 = vpop.f32.mrb[0].mxu0
      %v2979 = vadd.f32 %v2886, %v2978
      %v2980 = vpop.f32.mrb[0].mxu0
      %v2981 = vadd.f32 %v2888, %v2980
      %v2982 = vpop.f32.mrb[0].mxu0
      %v2983 = vadd.f32 %v2890, %v2982
      %2984 = vmatprep.mubr.bf16.mxu0 %v1232
      %2985 = vmatmul.mubr.bf16.gmra.mrb[0].mxu0 %v1224
      %v2986 = vpop.f32.mrb[0].mxu0
      %v2987 = vadd.f32 %v2894, %v2986
      %v2988 = vpop.f32.mrb[0].mxu0
      %v2989 = vadd.f32 %v2896, %v2988
      %v2990 = vpop.f32.mrb[0].mxu0
      %v2991 = vadd.f32 %v2898, %v2990
      %v2992 = vpop.f32.mrb[0].mxu0
      %v2993 = vadd.f32 %v2900, %v2992
      %2994 = vmatprep.mubr.bf16.mxu0 %v1296
      %2995 = vmatmul.mubr.bf16.gmra.mrb[0].mxu0 %v1288
      %v2996 = vpop.f32.mrb[0].mxu0
      %v2997 = vadd.f32 %v2904, %v2996
      %v2998 = vpop.f32.mrb[0].mxu0
      %v2999 = vadd.f32 %v2906, %v2998
      %v3000 = vpop.f32.mrb[0].mxu0
      %v3001 = vadd.f32 %v2908, %v3000
      %v3002 = vpop.f32.mrb[0].mxu0
      %v3003 = vadd.f32 %v2910, %v3002
      %3004 = vmatprep.mubr.bf16.mxu0 %v1360
      %3005 = vmatmul.mubr.bf16.gmra.mrb[0].mxu0 %v1352
      %v3006 = vpop.f32.mrb[0].mxu0
      %v3007 = vadd.f32 %v2914, %v3006
      %v3008 = vpop.f32.mrb[0].mxu0
      %v3009 = vadd.f32 %v2916, %v3008
      %v3010 = vpop.f32.mrb[0].mxu0
      %v3011 = vadd.f32 %v2918, %v3010
      %v3012 = vpop.f32.mrb[0].mxu0
      %v3013 = vadd.f32 %v2920, %v3012
      %3014 = vmatprep.mubr.bf16.mxu0 %v1424
      %3015 = vmatmul.mubr.bf16.gmra.mrb[0].mxu0 %v1416
      %v3016 = vpop.f32.mrb[0].mxu0
      %v3017 = vadd.f32 %v2924, %v3016
      %v3018 = vpop.f32.mrb[0].mxu0
      %v3019 = vadd.f32 %v2926, %v3018
      %v3020 = vpop.f32.mrb[0].mxu0
      %v3021 = vadd.f32 %v2928, %v3020
      %v3022 = vpop.f32.mrb[0].mxu0
      %v3023 = vadd.f32 %v2930, %v3022
      %3024 = vmatprep.mubr.bf16.mxu0 %v1488
      %3025 = vmatmul.mubr.bf16.gmra.mrb[0].mxu0 %v1480
      %v3026 = vpop.f32.mrb[0].mxu0
      %v3027 = vadd.f32 %v2934, %v3026
      %v3028 = vpop.f32.mrb[0].mxu0
      %v3029 = vadd.f32 %v2936, %v3028
      %v3030 = vpop.f32.mrb[0].mxu0
      %v3031 = vadd.f32 %v2938, %v3030
      %v3032 = vpop.f32.mrb[0].mxu0
      %v3033 = vadd.f32 %v2940, %v3032
      %3034 = vdwg.mxu0
      %3035 = vmatprep.subr.bf16.mxu0 %v2466
      %3036 = vmatpush1.bf16.msra.mxu0 %v2465
      %3037 = vmatprep.subr.bf16.mxu0 %v2470
      %3038 = vmatpush1.bf16.msra.mxu0 %v2469
      %3039 = vmatprep.subr.bf16.mxu0 %v2474
      %3040 = vmatpush1.bf16.msra.mxu0 %v2473
      %3041 = vmatprep.subr.bf16.mxu0 %v2478
      %3042 = vmatpush1.bf16.msra.mxu0 %v2477
      %3043 = vmatprep.subr.bf16.mxu0 %v2482
      %3044 = vmatpush1.bf16.msra.mxu0 %v2481
      %3045 = vmatprep.subr.bf16.mxu0 %v2486
      %3046 = vmatpush1.bf16.msra.mxu0 %v2485
      %3047 = vmatprep.subr.bf16.mxu0 %v2490
      %3048 = vmatpush1.bf16.msra.mxu0 %v2489
      %3049 = vmatprep.subr.bf16.mxu0 %v2494
      %3050 = vmatpush1.bf16.msra.mxu0 %v2493
      %3051 = vmatprep.subr.bf16.mxu0 %v2498
      %3052 = vmatpush1.bf16.msra.mxu0 %v2497
      %3053 = vmatprep.subr.bf16.mxu0 %v2502
      %3054 = vmatpush1.bf16.msra.mxu0 %v2501
      %3055 = vmatprep.subr.bf16.mxu0 %v2506
      %3056 = vmatpush1.bf16.msra.mxu0 %v2505
      %3057 = vmatprep.subr.bf16.mxu0 %v2510
      %3058 = vmatpush1.bf16.msra.mxu0 %v2509
      %3059 = vmatprep.subr.bf16.mxu0 %v2514
      %3060 = vmatpush1.bf16.msra.mxu0 %v2513
      %3061 = vmatprep.subr.bf16.mxu0 %v2518
      %3062 = vmatpush1.bf16.msra.mxu0 %v2517
      %3063 = vmatprep.subr.bf16.mxu0 %v2522
      %3064 = vmatpush1.bf16.msra.mxu0 %v2521
      %3065 = vmatprep.subr.bf16.mxu0 %v2526
      %3066 = vmatpush1.bf16.msra.mxu0 %v2525
      %3067 = vmatprep.mubr.bf16.mxu0 %v1176
      %3068 = vmatmul.mubr.bf16.gmra.mrb[0].mxu0 %v1164
      %v3069 = vpop.f32.mrb[0].mxu0
      %v3070 = vadd.f32 %v2977, %v3069
      %v3071 = vpop.f32.mrb[0].mxu0
      %v3072 = vadd.f32 %v2979, %v3071
      %v3073 = vpop.f32.mrb[0].mxu0
      %v3074 = vadd.f32 %v2981, %v3073
      %v3075 = vpop.f32.mrb[0].mxu0
      %v3076 = vadd.f32 %v2983, %v3075
      %3077 = vmatprep.mubr.bf16.mxu0 %v1248
      %3078 = vmatmul.mubr.bf16.gmra.mrb[0].mxu0 %v1240
      %v3079 = vpop.f32.mrb[0].mxu0
      %v3080 = vadd.f32 %v2987, %v3079
      %v3081 = vpop.f32.mrb[0].mxu0
      %v3082 = vadd.f32 %v2989, %v3081
      %v3083 = vpop.f32.mrb[0].mxu0
      %v3084 = vadd.f32 %v2991, %v3083
      %v3085 = vpop.f32.mrb[0].mxu0
      %v3086 = vadd.f32 %v2993, %v3085
      %3087 = vmatprep.mubr.bf16.mxu0 %v1312
      %3088 = vmatmul.mubr.bf16.gmra.mrb[0].mxu0 %v1304
      %v3089 = vpop.f32.mrb[0].mxu0
      %v3090 = vadd.f32 %v2997, %v3089
      %v3091 = vpop.f32.mrb[0].mxu0
      %v3092 = vadd.f32 %v2999, %v3091
      %v3093 = vpop.f32.mrb[0].mxu0
      %v3094 = vadd.f32 %v3001, %v3093
      %v3095 = vpop.f32.mrb[0].mxu0
      %v3096 = vadd.f32 %v3003, %v3095
      %3097 = vmatprep.mubr.bf16.mxu0 %v1376
      %3098 = vmatmul.mubr.bf16.gmra.mrb[0].mxu0 %v1368
      %v3099 = vpop.f32.mrb[0].mxu0
      %v3100 = vadd.f32 %v3007, %v3099
      %v3101 = vpop.f32.mrb[0].mxu0
      %v3102 = vadd.f32 %v3009, %v3101
      %v3103 = vpop.f32.mrb[0].mxu0
      %v3104 = vadd.f32 %v3011, %v3103
      %v3105 = vpop.f32.mrb[0].mxu0
      %v3106 = vadd.f32 %v3013, %v3105
      %3107 = vmatprep.mubr.bf16.mxu0 %v1440
      %3108 = vmatmul.mubr.bf16.gmra.mrb[0].mxu0 %v1432
      %v3109 = vpop.f32.mrb[0].mxu0
      %v3110 = vadd.f32 %v3017, %v3109
      %v3111 = vpop.f32.mrb[0].mxu0
      %v3112 = vadd.f32 %v3019, %v3111
      %v3113 = vpop.f32.mrb[0].mxu0
      %v3114 = vadd.f32 %v3021, %v3113
      %v3115 = vpop.f32.mrb[0].mxu0
      %v3116 = vadd.f32 %v3023, %v3115
      %3117 = vmatprep.mubr.bf16.mxu0 %v1504
      %3118 = vmatmul.mubr.bf16.gmra.mrb[0].mxu0 %v1496
      %v3119 = vpop.f32.mrb[0].mxu0
      %v3120 = vadd.f32 %v3027, %v3119
      %v3121 = vpop.f32.mrb[0].mxu0
      %v3122 = vadd.f32 %v3029, %v3121
      %v3123 = vpop.f32.mrb[0].mxu0
      %v3124 = vadd.f32 %v3031, %v3123
      %v3125 = vpop.f32.mrb[0].mxu0
      %v3126 = vadd.f32 %v3033, %v3125
      %3127 = vdwg.mxu0
      %3128 = vmatprep.subr.bf16.mxu0 %v2530
      %3129 = vmatpush1.bf16.msra.mxu0 %v2529
      %3130 = vmatprep.subr.bf16.mxu0 %v2534
      %3131 = vmatpush1.bf16.msra.mxu0 %v2533
      %3132 = vmatprep.subr.bf16.mxu0 %v2538
      %3133 = vmatpush1.bf16.msra.mxu0 %v2537
      %3134 = vmatprep.subr.bf16.mxu0 %v2542
      %3135 = vmatpush1.bf16.msra.mxu0 %v2541
      %3136 = vmatprep.subr.bf16.mxu0 %v2546
      %3137 = vmatpush1.bf16.msra.mxu0 %v2545
      %3138 = vmatprep.subr.bf16.mxu0 %v2550
      %3139 = vmatpush1.bf16.msra.mxu0 %v2549
      %3140 = vmatprep.subr.bf16.mxu0 %v2554
      %3141 = vmatpush1.bf16.msra.mxu0 %v2553
      %3142 = vmatprep.subr.bf16.mxu0 %v2558
      %3143 = vmatpush1.bf16.msra.mxu0 %v2557
      %3144 = vmatprep.subr.bf16.mxu0 %v2562
      %3145 = vmatpush1.bf16.msra.mxu0 %v2561
      %3146 = vmatprep.subr.bf16.mxu0 %v2566
      %3147 = vmatpush1.bf16.msra.mxu0 %v2565
      %3148 = vmatprep.subr.bf16.mxu0 %v2570
      %3149 = vmatpush1.bf16.msra.mxu0 %v2569
      %3150 = vmatprep.subr.bf16.mxu0 %v2574
      %3151 = vmatpush1.bf16.msra.mxu0 %v2573
      %3152 = vmatprep.subr.bf16.mxu0 %v2578
      %3153 = vmatpush1.bf16.msra.mxu0 %v2577
      %3154 = vmatprep.subr.bf16.mxu0 %v2582
      %3155 = vmatpush1.bf16.msra.mxu0 %v2581
      %3156 = vmatprep.subr.bf16.mxu0 %v2586
      %3157 = vmatpush1.bf16.msra.mxu0 %v2585
      %3158 = vmatprep.subr.bf16.mxu0 %v2590
      %3159 = vmatpush1.bf16.msra.mxu0 %v2589
      %3160 = vmatprep.mubr.bf16.mxu0 %v1200
      %3161 = vmatmul.mubr.bf16.gmra.mrb[0].mxu0 %v1188
      %v3162 = vpop.f32.mrb[0].mxu0
      %v3163 = vadd.f32 %v3070, %v3162
      %v3164 = vpop.f32.mrb[0].mxu0
      %v3165 = vadd.f32 %v3072, %v3164
      %v3166 = vpop.f32.mrb[0].mxu0
      %v3167 = vadd.f32 %v3074, %v3166
      %v3168 = vpop.f32.mrb[0].mxu0
      %v3169 = vadd.f32 %v3076, %v3168
      %3170 = vmatprep.mubr.bf16.mxu0 %v1264
      %3171 = vmatmul.mubr.bf16.gmra.mrb[0].mxu0 %v1256
      %v3172 = vpop.f32.mrb[0].mxu0
      %v3173 = vadd.f32 %v3080, %v3172
      %v3174 = vpop.f32.mrb[0].mxu0
      %v3175 = vadd.f32 %v3082, %v3174
      %v3176 = vpop.f32.mrb[0].mxu0
      %v3177 = vadd.f32 %v3084, %v3176
      %v3178 = vpop.f32.mrb[0].mxu0
      %v3179 = vadd.f32 %v3086, %v3178
      %3180 = vmatprep.mubr.bf16.mxu0 %v1328
      %3181 = vmatmul.mubr.bf16.gmra.mrb[0].mxu0 %v1320
      %v3182 = vpop.f32.mrb[0].mxu0
      %v3183 = vadd.f32 %v3090, %v3182
      %v3184 = vpop.f32.mrb[0].mxu0
      %v3185 = vadd.f32 %v3092, %v3184
      %v3186 = vpop.f32.mrb[0].mxu0
      %v3187 = vadd.f32 %v3094, %v3186
      %v3188 = vpop.f32.mrb[0].mxu0
      %v3189 = vadd.f32 %v3096, %v3188
      %3190 = vmatprep.mubr.bf16.mxu0 %v1392
      %3191 = vmatmul.mubr.bf16.gmra.mrb[0].mxu0 %v1384
      %v3192 = vpop.f32.mrb[0].mxu0
      %v3193 = vadd.f32 %v3100, %v3192
      %v3194 = vpop.f32.mrb[0].mxu0
      %v3195 = vadd.f32 %v3102, %v3194
      %v3196 = vpop.f32.mrb[0].mxu0
      %v3197 = vadd.f32 %v3104, %v3196
      %v3198 = vpop.f32.mrb[0].mxu0
      %v3199 = vadd.f32 %v3106, %v3198
      %3200 = vmatprep.mubr.bf16.mxu0 %v1456
      %3201 = vmatmul.mubr.bf16.gmra.mrb[0].mxu0 %v1448
      %v3202 = vpop.f32.mrb[0].mxu0
      %v3203 = vadd.f32 %v3110, %v3202
      %v3204 = vpop.f32.mrb[0].mxu0
      %v3205 = vadd.f32 %v3112, %v3204
      %v3206 = vpop.f32.mrb[0].mxu0
      %v3207 = vadd.f32 %v3114, %v3206
      %v3208 = vpop.f32.mrb[0].mxu0
      %v3209 = vadd.f32 %v3116, %v3208
      %3210 = vmatprep.mubr.bf16.mxu0 %v1520
      %3211 = vmatmul.mubr.bf16.gmra.mrb[0].mxu0 %v1512
      %v3212 = vpop.f32.mrb[0].mxu0
      %v3213 = vadd.f32 %v3120, %v3212
      %v3214 = vpop.f32.mrb[0].mxu0
      %v3215 = vadd.f32 %v3122, %v3214
      %v3216 = vpop.f32.mrb[0].mxu0
      %v3217 = vadd.f32 %v3124, %v3216
      %v3218 = vpop.f32.mrb[0].mxu0
      %v3219 = vadd.f32 %v3126, %v3218
      %3220 = vdwg.mxu0
      %3221 = vmatprep.subr.bf16.mxu0 %v2340
      %3222 = vmatpush1.bf16.msra.mxu0 %v2339
      %3223 = vmatprep.subr.bf16.mxu0 %v2344
      %3224 = vmatpush1.bf16.msra.mxu0 %v2343
      %3225 = vmatprep.subr.bf16.mxu0 %v2348
      %3226 = vmatpush1.bf16.msra.mxu0 %v2347
      %3227 = vmatprep.subr.bf16.mxu0 %v2352
      %3228 = vmatpush1.bf16.msra.mxu0 %v2351
      %3229 = vmatprep.subr.bf16.mxu0 %v2356
      %3230 = vmatpush1.bf16.msra.mxu0 %v2355
      %3231 = vmatprep.subr.bf16.mxu0 %v2360
      %3232 = vmatpush1.bf16.msra.mxu0 %v2359
      %3233 = vmatprep.subr.bf16.mxu0 %v2364
      %3234 = vmatpush1.bf16.msra.mxu0 %v2363
      %3235 = vmatprep.subr.bf16.mxu0 %v2368
      %3236 = vmatpush1.bf16.msra.mxu0 %v2367
      %3237 = vmatprep.subr.bf16.mxu0 %v2372
      %3238 = vmatpush1.bf16.msra.mxu0 %v2371
      %3239 = vmatprep.subr.bf16.mxu0 %v2376
      %3240 = vmatpush1.bf16.msra.mxu0 %v2375
      %3241 = vmatprep.subr.bf16.mxu0 %v2380
      %3242 = vmatpush1.bf16.msra.mxu0 %v2379
      %3243 = vmatprep.subr.bf16.mxu0 %v2384
      %3244 = vmatpush1.bf16.msra.mxu0 %v2383
      %3245 = vmatprep.subr.bf16.mxu0 %v2388
      %3246 = vmatpush1.bf16.msra.mxu0 %v2387
      %3247 = vmatprep.subr.bf16.mxu0 %v2392
      %3248 = vmatpush1.bf16.msra.mxu0 %v2391
      %3249 = vmatprep.subr.bf16.mxu0 %v2396
      %3250 = vmatpush1.bf16.msra.mxu0 %v2395
      %3251 = vmatprep.subr.bf16.mxu0 %v2400
      %3252 = vmatpush1.bf16.msra.mxu0 %v2399
      %3253 = vmatprep.mubr.bf16.mxu0 %v1128
      %3254 = vmatmul.mubr.bf16.gmra.mrb[0].mxu0 %v1116
      %v3255 = vpop.f32.mrb[0].mxu0
      %v3256 = vadd.f32 0.0, %v3255
      %v3257 = vpop.f32.mrb[0].mxu0
      %v3258 = vadd.f32 0.0, %v3257
      %v3259 = vpop.f32.mrb[0].mxu0
      %v3260 = vadd.f32 0.0, %v3259
      %v3261 = vpop.f32.mrb[0].mxu0
      %v3262 = vadd.f32 0.0, %v3261
      %3263 = vmatprep.mubr.bf16.mxu0 %v1216
      %3264 = vmatmul.mubr.bf16.gmra.mrb[0].mxu0 %v1208
      %v3265 = vpop.f32.mrb[0].mxu0
      %v3266 = vadd.f32 0.0, %v3265
      %v3267 = vpop.f32.mrb[0].mxu0
      %v3268 = vadd.f32 0.0, %v3267
      %v3269 = vpop.f32.mrb[0].mxu0
      %v3270 = vadd.f32 0.0, %v3269
      %v3271 = vpop.f32.mrb[0].mxu0
      %v3272 = vadd.f32 0.0, %v3271
      %3273 = vmatprep.mubr.bf16.mxu0 %v1280
      %3274 = vmatmul.mubr.bf16.gmra.mrb[0].mxu0 %v1272
      %v3275 = vpop.f32.mrb[0].mxu0
      %v3276 = vadd.f32 0.0, %v3275
      %v3277 = vpop.f32.mrb[0].mxu0
      %v3278 = vadd.f32 0.0, %v3277
      %v3279 = vpop.f32.mrb[0].mxu0
      %v3280 = vadd.f32 0.0, %v3279
      %v3281 = vpop.f32.mrb[0].mxu0
      %v3282 = vadd.f32 0.0, %v3281
      %3283 = vmatprep.mubr.bf16.mxu0 %v1344
      %3284 = vmatmul.mubr.bf16.gmra.mrb[0].mxu0 %v1336
      %v3285 = vpop.f32.mrb[0].mxu0
      %v3286 = vadd.f32 0.0, %v3285
      %v3287 = vpop.f32.mrb[0].mxu0
      %v3288 = vadd.f32 0.0, %v3287
      %v3289 = vpop.f32.mrb[0].mxu0
      %v3290 = vadd.f32 0.0, %v3289
      %v3291 = vpop.f32.mrb[0].mxu0
      %v3292 = vadd.f32 0.0, %v3291
      %3293 = vmatprep.mubr.bf16.mxu0 %v1408
      %3294 = vmatmul.mubr.bf16.gmra.mrb[0].mxu0 %v1400
      %v3295 = vpop.f32.mrb[0].mxu0
      %v3296 = vadd.f32 0.0, %v3295
      %v3297 = vpop.f32.mrb[0].mxu0
      %v3298 = vadd.f32 0.0, %v3297
      %v3299 = vpop.f32.mrb[0].mxu0
      %v3300 = vadd.f32 0.0, %v3299
      %v3301 = vpop.f32.mrb[0].mxu0
      %v3302 = vadd.f32 0.0, %v3301
      %3303 = vmatprep.mubr.bf16.mxu0 %v1472
      %3304 = vmatmul.mubr.bf16.gmra.mrb[0].mxu0 %v1464
      %v3305 = vpop.f32.mrb[0].mxu0
      %v3306 = vadd.f32 0.0, %v3305
      %v3307 = vpop.f32.mrb[0].mxu0
      %v3308 = vadd.f32 0.0, %v3307
      %v3309 = vpop.f32.mrb[0].mxu0
      %v3310 = vadd.f32 0.0, %v3309
      %v3311 = vpop.f32.mrb[0].mxu0
      %v3312 = vadd.f32 0.0, %v3311
      %3313 = vdwg.mxu0
      %3314 = vmatprep.subr.bf16.mxu0 %v2404
      %3315 = vmatpush1.bf16.msra.mxu0 %v2403
      %3316 = vmatprep.subr.bf16.mxu0 %v2408
      %3317 = vmatpush1.bf16.msra.mxu0 %v2407
      %3318 = vmatprep.subr.bf16.mxu0 %v2412
      %3319 = vmatpush1.bf16.msra.mxu0 %v2411
      %3320 = vmatprep.subr.bf16.mxu0 %v2416
      %3321 = vmatpush1.bf16.msra.mxu0 %v2415
      %3322 = vmatprep.subr.bf16.mxu0 %v2420
      %3323 = vmatpush1.bf16.msra.mxu0 %v2419
      %3324 = vmatprep.subr.bf16.mxu0 %v2424
      %3325 = vmatpush1.bf16.msra.mxu0 %v2423
      %3326 = vmatprep.subr.bf16.mxu0 %v2428
      %3327 = vmatpush1.bf16.msra.mxu0 %v2427
      %3328 = vmatprep.subr.bf16.mxu0 %v2432
      %3329 = vmatpush1.bf16.msra.mxu0 %v2431
      %3330 = vmatprep.subr.bf16.mxu0 %v2436
      %3331 = vmatpush1.bf16.msra.mxu0 %v2435
      %3332 = vmatprep.subr.bf16.mxu0 %v2440
      %3333 = vmatpush1.bf16.msra.mxu0 %v2439
      %3334 = vmatprep.subr.bf16.mxu0 %v2444
      %3335 = vmatpush1.bf16.msra.mxu0 %v2443
      %3336 = vmatprep.subr.bf16.mxu0 %v2448
      %3337 = vmatpush1.bf16.msra.mxu0 %v2447
      %3338 = vmatprep.subr.bf16.mxu0 %v2452
      %3339 = vmatpush1.bf16.msra.mxu0 %v2451
      %3340 = vmatprep.subr.bf16.mxu0 %v2456
      %3341 = vmatpush1.bf16.msra.mxu0 %v2455
      %3342 = vmatprep.subr.bf16.mxu0 %v2460
      %3343 = vmatpush1.bf16.msra.mxu0 %v2459
      %3344 = vmatprep.subr.bf16.mxu0 %v2464
      %3345 = vmatpush1.bf16.msra.mxu0 %v2463
      %3346 = vmatprep.mubr.bf16.mxu0 %v1152
      %3347 = vmatmul.mubr.bf16.gmra.mrb[0].mxu0 %v1140
      %v3348 = vpop.f32.mrb[0].mxu0
      %v3349 = vadd.f32 %v3256, %v3348
      %v3350 = vpop.f32.mrb[0].mxu0
      %v3351 = vadd.f32 %v3258, %v3350
      %v3352 = vpop.f32.mrb[0].mxu0
      %v3353 = vadd.f32 %v3260, %v3352
      %v3354 = vpop.f32.mrb[0].mxu0
      %v3355 = vadd.f32 %v3262, %v3354
      %3356 = vmatprep.mubr.bf16.mxu0 %v1232
      %3357 = vmatmul.mubr.bf16.gmra.mrb[0].mxu0 %v1224
      %v3358 = vpop.f32.mrb[0].mxu0
      %v3359 = vadd.f32 %v3266, %v3358
      %v3360 = vpop.f32.mrb[0].mxu0
      %v3361 = vadd.f32 %v3268, %v3360
      %v3362 = vpop.f32.mrb[0].mxu0
      %v3363 = vadd.f32 %v3270, %v3362
      %v3364 = vpop.f32.mrb[0].mxu0
      %v3365 = vadd.f32 %v3272, %v3364
      %3366 = vmatprep.mubr.bf16.mxu0 %v1296
      %3367 = vmatmul.mubr.bf16.gmra.mrb[0].mxu0 %v1288
      %v3368 = vpop.f32.mrb[0].mxu0
      %v3369 = vadd.f32 %v3276, %v3368
      %v3370 = vpop.f32.mrb[0].mxu0
      %v3371 = vadd.f32 %v3278, %v3370
      %v3372 = vpop.f32.mrb[0].mxu0
      %v3373 = vadd.f32 %v3280, %v3372
      %v3374 = vpop.f32.mrb[0].mxu0
      %v3375 = vadd.f32 %v3282, %v3374
      %3376 = vmatprep.mubr.bf16.mxu0 %v1360
      %3377 = vmatmul.mubr.bf16.gmra.mrb[0].mxu0 %v1352
      %v3378 = vpop.f32.mrb[0].mxu0
      %v3379 = vadd.f32 %v3286, %v3378
      %v3380 = vpop.f32.mrb[0].mxu0
      %v3381 = vadd.f32 %v3288, %v3380
      %v3382 = vpop.f32.mrb[0].mxu0
      %v3383 = vadd.f32 %v3290, %v3382
      %v3384 = vpop.f32.mrb[0].mxu0
      %v3385 = vadd.f32 %v3292, %v3384
      %3386 = vmatprep.mubr.bf16.mxu0 %v1424
      %3387 = vmatmul.mubr.bf16.gmra.mrb[0].mxu0 %v1416
      %v3388 = vpop.f32.mrb[0].mxu0
      %v3389 = vadd.f32 %v3296, %v3388
      %v3390 = vpop.f32.mrb[0].mxu0
      %v3391 = vadd.f32 %v3298, %v3390
      %v3392 = vpop.f32.mrb[0].mxu0
      %v3393 = vadd.f32 %v3300, %v3392
      %v3394 = vpop.f32.mrb[0].mxu0
      %v3395 = vadd.f32 %v3302, %v3394
      %3396 = vmatprep.mubr.bf16.mxu0 %v1488
      %3397 = vmatmul.mubr.bf16.gmra.mrb[0].mxu0 %v1480
      %v3398 = vpop.f32.mrb[0].mxu0
      %v3399 = vadd.f32 %v3306, %v3398
      %v3400 = vpop.f32.mrb[0].mxu0
      %v3401 = vadd.f32 %v3308, %v3400
      %v3402 = vpop.f32.mrb[0].mxu0
      %v3403 = vadd.f32 %v3310, %v3402
      %v3404 = vpop.f32.mrb[0].mxu0
      %v3405 = vadd.f32 %v3312, %v3404
      %3406 = vdwg.mxu0
      %3407 = vmatprep.subr.bf16.mxu0 %v2468
      %3408 = vmatpush1.bf16.msra.mxu0 %v2467
      %3409 = vmatprep.subr.bf16.mxu0 %v2472
      %3410 = vmatpush1.bf16.msra.mxu0 %v2471
      %3411 = vmatprep.subr.bf16.mxu0 %v2476
      %3412 = vmatpush1.bf16.msra.mxu0 %v2475
      %3413 = vmatprep.subr.bf16.mxu0 %v2480
      %3414 = vmatpush1.bf16.msra.mxu0 %v2479
      %3415 = vmatprep.subr.bf16.mxu0 %v2484
      %3416 = vmatpush1.bf16.msra.mxu0 %v2483
      %3417 = vmatprep.subr.bf16.mxu0 %v2488
      %3418 = vmatpush1.bf16.msra.mxu0 %v2487
      %3419 = vmatprep.subr.bf16.mxu0 %v2492
      %3420 = vmatpush1.bf16.msra.mxu0 %v2491
      %3421 = vmatprep.subr.bf16.mxu0 %v2496
      %3422 = vmatpush1.bf16.msra.mxu0 %v2495
      %3423 = vmatprep.subr.bf16.mxu0 %v2500
      %3424 = vmatpush1.bf16.msra.mxu0 %v2499
      %3425 = vmatprep.subr.bf16.mxu0 %v2504
      %3426 = vmatpush1.bf16.msra.mxu0 %v2503
      %3427 = vmatprep.subr.bf16.mxu0 %v2508
      %3428 = vmatpush1.bf16.msra.mxu0 %v2507
      %3429 = vmatprep.subr.bf16.mxu0 %v2512
      %3430 = vmatpush1.bf16.msra.mxu0 %v2511
      %3431 = vmatprep.subr.bf16.mxu0 %v2516
      %3432 = vmatpush1.bf16.msra.mxu0 %v2515
      %3433 = vmatprep.subr.bf16.mxu0 %v2520
      %3434 = vmatpush1.bf16.msra.mxu0 %v2519
      %3435 = vmatprep.subr.bf16.mxu0 %v2524
      %3436 = vmatpush1.bf16.msra.mxu0 %v2523
      %3437 = vmatprep.subr.bf16.mxu0 %v2528
      %3438 = vmatpush1.bf16.msra.mxu0 %v2527
      %3439 = vmatprep.mubr.bf16.mxu0 %v1176
      %3440 = vmatmul.mubr.bf16.gmra.mrb[0].mxu0 %v1164
      %v3441 = vpop.f32.mrb[0].mxu0
      %v3442 = vadd.f32 %v3349, %v3441
      %v3443 = vpop.f32.mrb[0].mxu0
      %v3444 = vadd.f32 %v3351, %v3443
      %v3445 = vpop.f32.mrb[0].mxu0
      %v3446 = vadd.f32 %v3353, %v3445
      %v3447 = vpop.f32.mrb[0].mxu0
      %v3448 = vadd.f32 %v3355, %v3447
      %3449 = vmatprep.mubr.bf16.mxu0 %v1248
      %3450 = vmatmul.mubr.bf16.gmra.mrb[0].mxu0 %v1240
      %v3451 = vpop.f32.mrb[0].mxu0
      %v3452 = vadd.f32 %v3359, %v3451
      %v3453 = vpop.f32.mrb[0].mxu0
      %v3454 = vadd.f32 %v3361, %v3453
      %v3455 = vpop.f32.mrb[0].mxu0
      %v3456 = vadd.f32 %v3363, %v3455
      %v3457 = vpop.f32.mrb[0].mxu0
      %v3458 = vadd.f32 %v3365, %v3457
      %3459 = vmatprep.mubr.bf16.mxu0 %v1312
      %3460 = vmatmul.mubr.bf16.gmra.mrb[0].mxu0 %v1304
      %v3461 = vpop.f32.mrb[0].mxu0
      %v3462 = vadd.f32 %v3369, %v3461
      %v3463 = vpop.f32.mrb[0].mxu0
      %v3464 = vadd.f32 %v3371, %v3463
      %v3465 = vpop.f32.mrb[0].mxu0
      %v3466 = vadd.f32 %v3373, %v3465
      %v3467 = vpop.f32.mrb[0].mxu0
      %v3468 = vadd.f32 %v3375, %v3467
      %3469 = vmatprep.mubr.bf16.mxu0 %v1376
      %3470 = vmatmul.mubr.bf16.gmra.mrb[0].mxu0 %v1368
      %v3471 = vpop.f32.mrb[0].mxu0
      %v3472 = vadd.f32 %v3379, %v3471
      %v3473 = vpop.f32.mrb[0].mxu0
      %v3474 = vadd.f32 %v3381, %v3473
      %v3475 = vpop.f32.mrb[0].mxu0
      %v3476 = vadd.f32 %v3383, %v3475
      %v3477 = vpop.f32.mrb[0].mxu0
      %v3478 = vadd.f32 %v3385, %v3477
      %3479 = vmatprep.mubr.bf16.mxu0 %v1440
      %3480 = vmatmul.mubr.bf16.gmra.mrb[0].mxu0 %v1432
      %v3481 = vpop.f32.mrb[0].mxu0
      %v3482 = vadd.f32 %v3389, %v3481
      %v3483 = vpop.f32.mrb[0].mxu0
      %v3484 = vadd.f32 %v3391, %v3483
      %v3485 = vpop.f32.mrb[0].mxu0
      %v3486 = vadd.f32 %v3393, %v3485
      %v3487 = vpop.f32.mrb[0].mxu0
      %v3488 = vadd.f32 %v3395, %v3487
      %3489 = vmatprep.mubr.bf16.mxu0 %v1504
      %3490 = vmatmul.mubr.bf16.gmra.mrb[0].mxu0 %v1496
      %v3491 = vpop.f32.mrb[0].mxu0
      %v3492 = vadd.f32 %v3399, %v3491
      %v3493 = vpop.f32.mrb[0].mxu0
      %v3494 = vadd.f32 %v3401, %v3493
      %v3495 = vpop.f32.mrb[0].mxu0
      %v3496 = vadd.f32 %v3403, %v3495
      %v3497 = vpop.f32.mrb[0].mxu0
      %v3498 = vadd.f32 %v3405, %v3497
      %3499 = vdwg.mxu0
      %3500 = vmatprep.subr.bf16.mxu0 %v2532
      %3501 = vmatpush1.bf16.msra.mxu0 %v2531
      %3502 = vmatprep.subr.bf16.mxu0 %v2536
      %3503 = vmatpush1.bf16.msra.mxu0 %v2535
      %3504 = vmatprep.subr.bf16.mxu0 %v2540
      %3505 = vmatpush1.bf16.msra.mxu0 %v2539
      %3506 = vmatprep.subr.bf16.mxu0 %v2544
      %3507 = vmatpush1.bf16.msra.mxu0 %v2543
      %3508 = vmatprep.subr.bf16.mxu0 %v2548
      %3509 = vmatpush1.bf16.msra.mxu0 %v2547
      %3510 = vmatprep.subr.bf16.mxu0 %v2552
      %3511 = vmatpush1.bf16.msra.mxu0 %v2551
      %3512 = vmatprep.subr.bf16.mxu0 %v2556
      %3513 = vmatpush1.bf16.msra.mxu0 %v2555
      %3514 = vmatprep.subr.bf16.mxu0 %v2560
      %3515 = vmatpush1.bf16.msra.mxu0 %v2559
      %3516 = vmatprep.subr.bf16.mxu0 %v2564
      %3517 = vmatpush1.bf16.msra.mxu0 %v2563
      %3518 = vmatprep.subr.bf16.mxu0 %v2568
      %3519 = vmatpush1.bf16.msra.mxu0 %v2567
      %3520 = vmatprep.subr.bf16.mxu0 %v2572
      %3521 = vmatpush1.bf16.msra.mxu0 %v2571
      %3522 = vmatprep.subr.bf16.mxu0 %v2576
      %3523 = vmatpush1.bf16.msra.mxu0 %v2575
      %3524 = vmatprep.subr.bf16.mxu0 %v2580
      %3525 = vmatpush1.bf16.msra.mxu0 %v2579
      %3526 = vmatprep.subr.bf16.mxu0 %v2584
      %3527 = vmatpush1.bf16.msra.mxu0 %v2583
      %3528 = vmatprep.subr.bf16.mxu0 %v2588
      %3529 = vmatpush1.bf16.msra.mxu0 %v2587
      %3530 = vmatprep.subr.bf16.mxu0 %v2592
      %3531 = vmatpush1.bf16.msra.mxu0 %v2591
      %3532 = vmatprep.mubr.bf16.mxu0 %v1200
      %3533 = vmatmul.mubr.bf16.gmra.mrb[0].mxu0 %v1188
      %v3534 = vpop.f32.mrb[0].mxu0
      %v3535 = vadd.f32 %v3442, %v3534
      %v3536 = vpop.f32.mrb[0].mxu0
      %v3537 = vadd.f32 %v3444, %v3536
      %v3538 = vpop.f32.mrb[0].mxu0
      %v3539 = vadd.f32 %v3446, %v3538
      %v3540 = vpop.f32.mrb[0].mxu0
      %v3541 = vadd.f32 %v3448, %v3540
      %3542 = vmatprep.mubr.bf16.mxu0 %v1264
      %3543 = vmatmul.mubr.bf16.gmra.mrb[0].mxu0 %v1256
      %v3544 = vpop.f32.mrb[0].mxu0
      %v3545 = vadd.f32 %v3452, %v3544
      %v3546 = vpop.f32.mrb[0].mxu0
      %v3547 = vadd.f32 %v3454, %v3546
      %v3548 = vpop.f32.mrb[0].mxu0
      %v3549 = vadd.f32 %v3456, %v3548
      %v3550 = vpop.f32.mrb[0].mxu0
      %v3551 = vadd.f32 %v3458, %v3550
      %3552 = vmatprep.mubr.bf16.mxu0 %v1328
      %3553 = vmatmul.mubr.bf16.gmra.mrb[0].mxu0 %v1320
      %v3554 = vpop.f32.mrb[0].mxu0
      %v3555 = vadd.f32 %v3462, %v3554
      %v3556 = vpop.f32.mrb[0].mxu0
      %v3557 = vadd.f32 %v3464, %v3556
      %v3558 = vpop.f32.mrb[0].mxu0
      %v3559 = vadd.f32 %v3466, %v3558
      %v3560 = vpop.f32.mrb[0].mxu0
      %v3561 = vadd.f32 %v3468, %v3560
      %3562 = vmatprep.mubr.bf16.mxu0 %v1392
      %3563 = vmatmul.mubr.bf16.gmra.mrb[0].mxu0 %v1384
      %v3564 = vpop.f32.mrb[0].mxu0
      %v3565 = vadd.f32 %v3472, %v3564
      %v3566 = vpop.f32.mrb[0].mxu0
      %v3567 = vadd.f32 %v3474, %v3566
      %v3568 = vpop.f32.mrb[0].mxu0
      %v3569 = vadd.f32 %v3476, %v3568
      %v3570 = vpop.f32.mrb[0].mxu0
      %v3571 = vadd.f32 %v3478, %v3570
      %3572 = vmatprep.mubr.bf16.mxu0 %v1456
      %3573 = vmatmul.mubr.bf16.gmra.mrb[0].mxu0 %v1448
      %v3574 = vpop.f32.mrb[0].mxu0
      %v3575 = vadd.f32 %v3482, %v3574
      %v3576 = vpop.f32.mrb[0].mxu0
      %v3577 = vadd.f32 %v3484, %v3576
      %v3578 = vpop.f32.mrb[0].mxu0
      %v3579 = vadd.f32 %v3486, %v3578
      %v3580 = vpop.f32.mrb[0].mxu0
      %v3581 = vadd.f32 %v3488, %v3580
      %3582 = vmatprep.mubr.bf16.mxu0 %v1520
      %3583 = vmatmul.mubr.bf16.gmra.mrb[0].mxu0 %v1512
      %v3584 = vpop.f32.mrb[0].mxu0
      %v3585 = vadd.f32 %v3492, %v3584
      %v3586 = vpop.f32.mrb[0].mxu0
      %v3587 = vadd.f32 %v3494, %v3586
      %v3588 = vpop.f32.mrb[0].mxu0
      %v3589 = vadd.f32 %v3496, %v3588
      %v3590 = vpop.f32.mrb[0].mxu0
      %v3591 = vadd.f32 %v3498, %v3590
      %3592 = vdwg.mxu0
      %v3897 = vunpack.c.l.b16 %v375
      %v3898 = vunpack.c.h.b16 %v375
      %v3899 = vunpack.c.l.b16 %v376
      %v3900 = vunpack.c.h.b16 %v376
      %v3901 = vunpack.c.l.b16 %v377
      %v3902 = vunpack.c.h.b16 %v377
      %v3903 = vunpack.c.l.b16 %v378
      %v3904 = vunpack.c.h.b16 %v378
      %v3905 = vunpack.c.l.b16 %v379
      %v3906 = vunpack.c.h.b16 %v379
      %v3907 = vunpack.c.l.b16 %v380
      %v3908 = vunpack.c.h.b16 %v380
      %v3909 = vunpack.c.l.b16 %v381
      %v3910 = vunpack.c.h.b16 %v381
      %v3911 = vunpack.c.l.b16 %v382
      %v3912 = vunpack.c.h.b16 %v382
      %v3913 = vunpack.c.l.b16 %v383
      %v3914 = vunpack.c.h.b16 %v383
      %v3915 = vunpack.c.l.b16 %v384
      %v3916 = vunpack.c.h.b16 %v384
      %v3917 = vunpack.c.l.b16 %v385
      %v3918 = vunpack.c.h.b16 %v385
      %v3919 = vunpack.c.l.b16 %v386
      %v3920 = vunpack.c.h.b16 %v386
      %v3921 = vunpack.c.l.b16 %v387
      %v3922 = vunpack.c.h.b16 %v387
      %v3923 = vunpack.c.l.b16 %v388
      %v3924 = vunpack.c.h.b16 %v388
      %v3925 = vunpack.c.l.b16 %v389
      %v3926 = vunpack.c.h.b16 %v389
      %v3927 = vunpack.c.l.b16 %v390
      %v3928 = vunpack.c.h.b16 %v390
      %v3929 = vunpack.c.l.b16 %v391
      %v3930 = vunpack.c.h.b16 %v391
      %v3931 = vunpack.c.l.b16 %v392
      %v3932 = vunpack.c.h.b16 %v392
      %v3933 = vunpack.c.l.b16 %v393
      %v3934 = vunpack.c.h.b16 %v393
      %v3935 = vunpack.c.l.b16 %v394
      %v3936 = vunpack.c.h.b16 %v394
      %v3937 = vunpack.c.l.b16 %v395
      %v3938 = vunpack.c.h.b16 %v395
      %v3939 = vunpack.c.l.b16 %v396
      %v3940 = vunpack.c.h.b16 %v396
      %v3941 = vunpack.c.l.b16 %v397
      %v3942 = vunpack.c.h.b16 %v397
      %v3943 = vunpack.c.l.b16 %v398
      %v3944 = vunpack.c.h.b16 %v398
      %v3945 = vunpack.c.l.b16 %v399
      %v3946 = vunpack.c.h.b16 %v399
      %v3947 = vunpack.c.l.b16 %v400
      %v3948 = vunpack.c.h.b16 %v400
      %v3949 = vunpack.c.l.b16 %v401
      %v3950 = vunpack.c.h.b16 %v401
      %v3951 = vunpack.c.l.b16 %v402
      %v3952 = vunpack.c.h.b16 %v402
      %v3953 = vunpack.c.l.b16 %v403
      %v3954 = vunpack.c.h.b16 %v403
      %v3955 = vunpack.c.l.b16 %v404
      %v3956 = vunpack.c.h.b16 %v404
      %v3957 = vunpack.c.l.b16 %v405
      %v3958 = vunpack.c.h.b16 %v405
      %v3959 = vunpack.c.l.b16 %v406
      %v3960 = vunpack.c.h.b16 %v406
      %v3961 = vunpack.c.l.b16 %v407
      %v3962 = vunpack.c.h.b16 %v407
      %v3963 = vunpack.c.l.b16 %v408
      %v3964 = vunpack.c.h.b16 %v408
      %v3965 = vunpack.c.l.b16 %v409
      %v3966 = vunpack.c.h.b16 %v409
      %v3967 = vunpack.c.l.b16 %v410
      %v3968 = vunpack.c.h.b16 %v410
      %v3969 = vunpack.c.l.b16 %v411
      %v3970 = vunpack.c.h.b16 %v411
      %v3971 = vunpack.c.l.b16 %v412
      %v3972 = vunpack.c.h.b16 %v412
      %v3973 = vunpack.c.l.b16 %v413
      %v3974 = vunpack.c.h.b16 %v413
      %v3975 = vunpack.c.l.b16 %v414
      %v3976 = vunpack.c.h.b16 %v414
      %v3977 = vunpack.c.l.b16 %v415
      %v3978 = vunpack.c.h.b16 %v415
      %v3979 = vunpack.c.l.b16 %v416
      %v3980 = vunpack.c.h.b16 %v416
      %v3981 = vunpack.c.l.b16 %v417
      %v3982 = vunpack.c.h.b16 %v417
      %v3983 = vunpack.c.l.b16 %v418
      %v3984 = vunpack.c.h.b16 %v418
      %v3985 = vunpack.c.l.b16 %v419
      %v3986 = vunpack.c.h.b16 %v419
      %v3987 = vunpack.c.l.b16 %v420
      %v3988 = vunpack.c.h.b16 %v420
      %v3989 = vunpack.c.l.b16 %v421
      %v3990 = vunpack.c.h.b16 %v421
      %v3991 = vunpack.c.l.b16 %v422
      %v3992 = vunpack.c.h.b16 %v422
      %v3993 = vunpack.c.l.b16 %v423
      %v3994 = vunpack.c.h.b16 %v423
      %v3995 = vunpack.c.l.b16 %v424
      %v3996 = vunpack.c.h.b16 %v424
      %v3997 = vunpack.c.l.b16 %v425
      %v3998 = vunpack.c.h.b16 %v425
      %v3999 = vunpack.c.l.b16 %v426
      %v4000 = vunpack.c.h.b16 %v426
      %v4001 = vunpack.c.l.b16 %v427
      %v4002 = vunpack.c.h.b16 %v427
      %v4003 = vunpack.c.l.b16 %v428
      %v4004 = vunpack.c.h.b16 %v428
      %v4005 = vunpack.c.l.b16 %v429
      %v4006 = vunpack.c.h.b16 %v429
      %v4007 = vunpack.c.l.b16 %v430
      %v4008 = vunpack.c.h.b16 %v430
      %v4009 = vunpack.c.l.b16 %v431
      %v4010 = vunpack.c.h.b16 %v431
      %v4011 = vunpack.c.l.b16 %v432
      %v4012 = vunpack.c.h.b16 %v432
      %v4013 = vunpack.c.l.b16 %v433
      %v4014 = vunpack.c.h.b16 %v433
      %v4015 = vunpack.c.l.b16 %v434
      %v4016 = vunpack.c.h.b16 %v434
      %v4017 = vunpack.c.l.b16 %v435
      %v4018 = vunpack.c.h.b16 %v435
      %v4019 = vunpack.c.l.b16 %v436
      %v4020 = vunpack.c.h.b16 %v436
      %v4021 = vunpack.c.l.b16 %v437
      %v4022 = vunpack.c.h.b16 %v437
      %v4023 = vunpack.c.l.b16 %v438
      %v4024 = vunpack.c.h.b16 %v438
      %v4025 = vunpack.c.l.b16 %v439
      %v4026 = vunpack.c.h.b16 %v439
      %v4027 = vunpack.c.l.b16 %v440
      %v4028 = vunpack.c.h.b16 %v440
      %v4029 = vunpack.c.l.b16 %v441
      %v4030 = vunpack.c.h.b16 %v441
      %v4031 = vunpack.c.l.b16 %v442
      %v4032 = vunpack.c.h.b16 %v442
      %v4033 = vunpack.c.l.b16 %v443
      %v4034 = vunpack.c.h.b16 %v443
      %v4035 = vunpack.c.l.b16 %v444
      %v4036 = vunpack.c.h.b16 %v444
      %v4037 = vunpack.c.l.b16 %v445
      %v4038 = vunpack.c.h.b16 %v445
      %v4039 = vunpack.c.l.b16 %v446
      %v4040 = vunpack.c.h.b16 %v446
      %v4041 = vunpack.c.l.b16 %v447
      %v4042 = vunpack.c.h.b16 %v447
      %v4043 = vunpack.c.l.b16 %v448
      %v4044 = vunpack.c.h.b16 %v448
      %v4045 = vunpack.c.l.b16 %v449
      %v4046 = vunpack.c.h.b16 %v449
      %v4047 = vunpack.c.l.b16 %v450
      %v4048 = vunpack.c.h.b16 %v450
      %v4049 = vunpack.c.l.b16 %v451
      %v4050 = vunpack.c.h.b16 %v451
      %v4051 = vunpack.c.l.b16 %v452
      %v4052 = vunpack.c.h.b16 %v452
      %v4053 = vunpack.c.l.b16 %v453
      %v4054 = vunpack.c.h.b16 %v453
      %v4055 = vunpack.c.l.b16 %v454
      %v4056 = vunpack.c.h.b16 %v454
      %v4057 = vunpack.c.l.b16 %v455
      %v4058 = vunpack.c.h.b16 %v455
      %v4059 = vunpack.c.l.b16 %v456
      %v4060 = vunpack.c.h.b16 %v456
      %v4061 = vunpack.c.l.b16 %v457
      %v4062 = vunpack.c.h.b16 %v457
      %v4063 = vunpack.c.l.b16 %v458
      %v4064 = vunpack.c.h.b16 %v458
      %v4065 = vunpack.c.l.b16 %v459
      %v4066 = vunpack.c.h.b16 %v459
      %v4067 = vunpack.c.l.b16 %v460
      %v4068 = vunpack.c.h.b16 %v460
      %v4069 = vunpack.c.l.b16 %v461
      %v4070 = vunpack.c.h.b16 %v461
      %v4071 = vunpack.c.l.b16 %v462
      %v4072 = vunpack.c.h.b16 %v462
      %v4073 = vunpack.c.l.b16 %v463
      %v4074 = vunpack.c.h.b16 %v463
      %v4075 = vunpack.c.l.b16 %v464
      %v4076 = vunpack.c.h.b16 %v464
      %v4077 = vunpack.c.l.b16 %v465
      %v4078 = vunpack.c.h.b16 %v465
      %v4079 = vunpack.c.l.b16 %v466
      %v4080 = vunpack.c.h.b16 %v466
      %v4081 = vunpack.c.l.b16 %v467
      %v4082 = vunpack.c.h.b16 %v467
      %v4083 = vunpack.c.l.b16 %v468
      %v4084 = vunpack.c.h.b16 %v468
      %v4085 = vunpack.c.l.b16 %v469
      %v4086 = vunpack.c.h.b16 %v469
      %v4087 = vunpack.c.l.b16 %v470
      %v4088 = vunpack.c.h.b16 %v470
      %v4089 = vunpack.c.l.b16 %v471
      %v4090 = vunpack.c.h.b16 %v471
      %v4091 = vunpack.c.l.b16 %v472
      %v4092 = vunpack.c.h.b16 %v472
      %v4093 = vunpack.c.l.b16 %v473
      %v4094 = vunpack.c.h.b16 %v473
      %v4095 = vunpack.c.l.b16 %v474
      %v4096 = vunpack.c.h.b16 %v474
      %v4097 = vunpack.c.l.b16 %v475
      %v4098 = vunpack.c.h.b16 %v475
      %v4099 = vunpack.c.l.b16 %v476
      %v4100 = vunpack.c.h.b16 %v476
      %v4101 = vunpack.c.l.b16 %v477
      %v4102 = vunpack.c.h.b16 %v477
      %v4103 = vunpack.c.l.b16 %v478
      %v4104 = vunpack.c.h.b16 %v478
      %v4105 = vunpack.c.l.b16 %v479
      %v4106 = vunpack.c.h.b16 %v479
      %v4107 = vunpack.c.l.b16 %v480
      %v4108 = vunpack.c.h.b16 %v480
      %v4109 = vunpack.c.l.b16 %v481
      %v4110 = vunpack.c.h.b16 %v481
      %v4111 = vunpack.c.l.b16 %v482
      %v4112 = vunpack.c.h.b16 %v482
      %v4113 = vunpack.c.l.b16 %v483
      %v4114 = vunpack.c.h.b16 %v483
      %v4115 = vunpack.c.l.b16 %v484
      %v4116 = vunpack.c.h.b16 %v484
      %v4117 = vunpack.c.l.b16 %v485
      %v4118 = vunpack.c.h.b16 %v485
      %v4119 = vunpack.c.l.b16 %v486
      %v4120 = vunpack.c.h.b16 %v486
      %v4121 = vunpack.c.l.b16 %v487
      %v4122 = vunpack.c.h.b16 %v487
      %v4123 = vunpack.c.l.b16 %v488
      %v4124 = vunpack.c.h.b16 %v488
      %v4125 = vunpack.c.l.b16 %v489
      %v4126 = vunpack.c.h.b16 %v489
      %v4127 = vunpack.c.l.b16 %v490
      %v4128 = vunpack.c.h.b16 %v490
      %v4129 = vunpack.c.l.b16 %v491
      %v4130 = vunpack.c.h.b16 %v491
      %v4131 = vunpack.c.l.b16 %v492
      %v4132 = vunpack.c.h.b16 %v492
      %v4133 = vunpack.c.l.b16 %v493
      %v4134 = vunpack.c.h.b16 %v493
      %v4135 = vunpack.c.l.b16 %v494
      %v4136 = vunpack.c.h.b16 %v494
      %v4137 = vunpack.c.l.b16 %v495
      %v4138 = vunpack.c.h.b16 %v495
      %v4139 = vunpack.c.l.b16 %v496
      %v4140 = vunpack.c.h.b16 %v496
      %v4141 = vunpack.c.l.b16 %v497
      %v4142 = vunpack.c.h.b16 %v497
      %v4143 = vunpack.c.l.b16 %v498
      %v4144 = vunpack.c.h.b16 %v498
      %v4145 = vunpack.c.l.b16 %v499
      %v4146 = vunpack.c.h.b16 %v499
      %v4147 = vunpack.c.l.b16 %v500
      %v4148 = vunpack.c.h.b16 %v500
      %v4149 = vunpack.c.l.b16 %v501
      %v4150 = vunpack.c.h.b16 %v501
      %v4151 = vunpack.c.l.b16 %v502
      %v4152 = vunpack.c.h.b16 %v502
      %v4153 = vunpack.c.l.b16 %v503
      %v4154 = vunpack.c.h.b16 %v503
      %v4155 = vunpack.c.l.b16 %v504
      %v4156 = vunpack.c.h.b16 %v504
      %v4157 = vunpack.c.l.b16 %v505
      %v4158 = vunpack.c.h.b16 %v505
      %v4159 = vunpack.c.l.b16 %v506
      %v4160 = vunpack.c.h.b16 %v506
      %v4161 = vunpack.c.l.b16 %v507
      %v4162 = vunpack.c.h.b16 %v507
      %v4163 = vunpack.c.l.b16 %v508
      %v4164 = vunpack.c.h.b16 %v508
      %v4165 = vunpack.c.l.b16 %v509
      %v4166 = vunpack.c.h.b16 %v509
      %v4167 = vunpack.c.l.b16 %v510
      %v4168 = vunpack.c.h.b16 %v510
      %v4169 = vunpack.c.l.b16 %v511
      %v4170 = vunpack.c.h.b16 %v511
      %v4171 = vunpack.c.l.b16 %v512
      %v4172 = vunpack.c.h.b16 %v512
      %v4173 = vunpack.c.l.b16 %v513
      %v4174 = vunpack.c.h.b16 %v513
      %v4175 = vunpack.c.l.b16 %v514
      %v4176 = vunpack.c.h.b16 %v514
      %v4177 = vunpack.c.l.b16 %v515
      %v4178 = vunpack.c.h.b16 %v515
      %v4179 = vunpack.c.l.b16 %v516
      %v4180 = vunpack.c.h.b16 %v516
      %v4181 = vunpack.c.l.b16 %v517
      %v4182 = vunpack.c.h.b16 %v517
      %v4183 = vunpack.c.l.b16 %v518
      %v4184 = vunpack.c.h.b16 %v518
      %v4185 = vunpack.c.l.b16 %v519
      %v4186 = vunpack.c.h.b16 %v519
      %v4187 = vunpack.c.l.b16 %v520
      %v4188 = vunpack.c.h.b16 %v520
      %v4189 = vunpack.c.l.b16 %v521
      %v4190 = vunpack.c.h.b16 %v521
      %v4191 = vunpack.c.l.b16 %v522
      %v4192 = vunpack.c.h.b16 %v522
      %v4193 = vunpack.c.l.b16 %v523
      %v4194 = vunpack.c.h.b16 %v523
      %v4195 = vunpack.c.l.b16 %v524
      %v4196 = vunpack.c.h.b16 %v524
      %v4197 = vunpack.c.l.b16 %v525
      %v4198 = vunpack.c.h.b16 %v525
      %v4199 = vunpack.c.l.b16 %v526
      %v4200 = vunpack.c.h.b16 %v526
      %v4201 = vunpack.c.l.b16 %v527
      %v4202 = vunpack.c.h.b16 %v527
      %v4203 = vunpack.c.l.b16 %v528
      %v4204 = vunpack.c.h.b16 %v528
      %v4205 = vunpack.c.l.b16 %v529
      %v4206 = vunpack.c.h.b16 %v529
      %v4207 = vunpack.c.l.b16 %v530
      %v4208 = vunpack.c.h.b16 %v530
      %v4209 = vunpack.c.l.b16 %v531
      %v4210 = vunpack.c.h.b16 %v531
      %v4211 = vunpack.c.l.b16 %v532
      %v4212 = vunpack.c.h.b16 %v532
      %v4213 = vunpack.c.l.b16 %v533
      %v4214 = vunpack.c.h.b16 %v533
      %v4215 = vunpack.c.l.b16 %v534
      %v4216 = vunpack.c.h.b16 %v534
      %v4217 = vunpack.c.l.b16 %v535
      %v4218 = vunpack.c.h.b16 %v535
      %v4219 = vunpack.c.l.b16 %v536
      %v4220 = vunpack.c.h.b16 %v536
      %v4221 = vunpack.c.l.b16 %v537
      %v4222 = vunpack.c.h.b16 %v537
      %v4223 = vunpack.c.l.b16 %v538
      %v4224 = vunpack.c.h.b16 %v538
      %v4225 = vunpack.c.l.b16 %v539
      %v4226 = vunpack.c.h.b16 %v539
      %v4227 = vunpack.c.l.b16 %v540
      %v4228 = vunpack.c.h.b16 %v540
      %v4229 = vunpack.c.l.b16 %v541
      %v4230 = vunpack.c.h.b16 %v541
      %v4231 = vunpack.c.l.b16 %v542
      %v4232 = vunpack.c.h.b16 %v542
      %v4233 = vunpack.c.l.b16 %v543
      %v4234 = vunpack.c.h.b16 %v543
      %v4235 = vunpack.c.l.b16 %v544
      %v4236 = vunpack.c.h.b16 %v544
      %v4237 = vunpack.c.l.b16 %v545
      %v4238 = vunpack.c.h.b16 %v545
      %v4239 = vunpack.c.l.b16 %v546
      %v4240 = vunpack.c.h.b16 %v546
      %v4241 = vunpack.c.l.b16 %v547
      %v4242 = vunpack.c.h.b16 %v547
      %v4243 = vunpack.c.l.b16 %v548
      %v4244 = vunpack.c.h.b16 %v548
      %v4245 = vunpack.c.l.b16 %v549
      %v4246 = vunpack.c.h.b16 %v549
      %v4247 = vunpack.c.l.b16 %v550
      %v4248 = vunpack.c.h.b16 %v550
      %v4249 = vunpack.c.l.b16 %v551
      %v4250 = vunpack.c.h.b16 %v551
      %v4251 = vunpack.c.l.b16 %v552
      %v4252 = vunpack.c.h.b16 %v552
      %v4253 = vunpack.c.l.b16 %v553
      %v4254 = vunpack.c.h.b16 %v553
      %v4255 = vunpack.c.l.b16 %v554
      %v4256 = vunpack.c.h.b16 %v554
      %v4257 = vunpack.c.l.b16 %v555
      %v4258 = vunpack.c.h.b16 %v555
      %v4259 = vunpack.c.l.b16 %v556
      %v4260 = vunpack.c.h.b16 %v556
      %v4261 = vunpack.c.l.b16 %v557
      %v4262 = vunpack.c.h.b16 %v557
      %v4263 = vunpack.c.l.b16 %v558
      %v4264 = vunpack.c.h.b16 %v558
      %v4265 = vunpack.c.l.b16 %v559
      %v4266 = vunpack.c.h.b16 %v559
      %v4267 = vunpack.c.l.b16 %v560
      %v4268 = vunpack.c.h.b16 %v560
      %v4269 = vunpack.c.l.b16 %v561
      %v4270 = vunpack.c.h.b16 %v561
      %v4271 = vunpack.c.l.b16 %v562
      %v4272 = vunpack.c.h.b16 %v562
      %v4273 = vunpack.c.l.b16 %v563
      %v4274 = vunpack.c.h.b16 %v563
      %v4275 = vunpack.c.l.b16 %v564
      %v4276 = vunpack.c.h.b16 %v564
      %v4277 = vunpack.c.l.b16 %v565
      %v4278 = vunpack.c.h.b16 %v565
      %v4279 = vunpack.c.l.b16 %v566
      %v4280 = vunpack.c.h.b16 %v566
      %v4281 = vunpack.c.l.b16 %v567
      %v4282 = vunpack.c.h.b16 %v567
      %v4283 = vunpack.c.l.b16 %v568
      %v4284 = vunpack.c.h.b16 %v568
      %v4285 = vunpack.c.l.b16 %v569
      %v4286 = vunpack.c.h.b16 %v569
      %v4287 = vunpack.c.l.b16 %v570
      %v4288 = vunpack.c.h.b16 %v570
      %v4289 = vunpack.c.l.b16 %v571
      %v4290 = vunpack.c.h.b16 %v571
      %v4291 = vunpack.c.l.b16 %v572
      %v4292 = vunpack.c.h.b16 %v572
      %v4293 = vunpack.c.l.b16 %v573
      %v4294 = vunpack.c.h.b16 %v573
      %v4295 = vunpack.c.l.b16 %v574
      %v4296 = vunpack.c.h.b16 %v574
      %v4297 = vunpack.c.l.b16 %v575
      %v4298 = vunpack.c.h.b16 %v575
      %v4299 = vunpack.c.l.b16 %v576
      %v4300 = vunpack.c.h.b16 %v576
      %v4301 = vunpack.c.l.b16 %v577
      %v4302 = vunpack.c.h.b16 %v577
      %v4303 = vunpack.c.l.b16 %v578
      %v4304 = vunpack.c.h.b16 %v578
      %v4305 = vunpack.c.l.b16 %v579
      %v4306 = vunpack.c.h.b16 %v579
      %v4307 = vunpack.c.l.b16 %v580
      %v4308 = vunpack.c.h.b16 %v580
      %v4309 = vunpack.c.l.b16 %v581
      %v4310 = vunpack.c.h.b16 %v581
      %v4311 = vunpack.c.l.b16 %v582
      %v4312 = vunpack.c.h.b16 %v582
      %v4313 = vunpack.c.l.b16 %v583
      %v4314 = vunpack.c.h.b16 %v583
      %v4315 = vunpack.c.l.b16 %v584
      %v4316 = vunpack.c.h.b16 %v584
      %v4317 = vunpack.c.l.b16 %v585
      %v4318 = vunpack.c.h.b16 %v585
      %v4319 = vunpack.c.l.b16 %v586
      %v4320 = vunpack.c.h.b16 %v586
      %v4321 = vunpack.c.l.b16 %v587
      %v4322 = vunpack.c.h.b16 %v587
      %v4323 = vunpack.c.l.b16 %v588
      %v4324 = vunpack.c.h.b16 %v588
      %v4325 = vunpack.c.l.b16 %v589
      %v4326 = vunpack.c.h.b16 %v589
      %v4327 = vunpack.c.l.b16 %v590
      %v4328 = vunpack.c.h.b16 %v590
      %v4329 = vunpack.c.l.b16 %v591
      %v4330 = vunpack.c.h.b16 %v591
      %v4331 = vunpack.c.l.b16 %v592
      %v4332 = vunpack.c.h.b16 %v592
      %v4333 = vunpack.c.l.b16 %v593
      %v4334 = vunpack.c.h.b16 %v593
      %v4335 = vunpack.c.l.b16 %v594
      %v4336 = vunpack.c.h.b16 %v594
      %v4337 = vunpack.c.l.b16 %v595
      %v4338 = vunpack.c.h.b16 %v595
      %v4339 = vunpack.c.l.b16 %v596
      %v4340 = vunpack.c.h.b16 %v596
      %v4341 = vunpack.c.l.b16 %v597
      %v4342 = vunpack.c.h.b16 %v597
      %v4343 = vunpack.c.l.b16 %v598
      %v4344 = vunpack.c.h.b16 %v598
      %v4345 = vunpack.c.l.b16 %v599
      %v4346 = vunpack.c.h.b16 %v599
      %v4347 = vunpack.c.l.b16 %v600
      %v4348 = vunpack.c.h.b16 %v600
      %v4349 = vunpack.c.l.b16 %v601
      %v4350 = vunpack.c.h.b16 %v601
      %v4351 = vunpack.c.l.b16 %v602
      %v4352 = vunpack.c.h.b16 %v602
      %v4353 = vunpack.c.l.b16 %v603
      %v4354 = vunpack.c.h.b16 %v603
      %v4355 = vunpack.c.l.b16 %v604
      %v4356 = vunpack.c.h.b16 %v604
      %v4357 = vunpack.c.l.b16 %v605
      %v4358 = vunpack.c.h.b16 %v605
      %v4359 = vunpack.c.l.b16 %v606
      %v4360 = vunpack.c.h.b16 %v606
      %v4361 = vunpack.c.l.b16 %v607
      %v4362 = vunpack.c.h.b16 %v607
      %v4363 = vunpack.c.l.b16 %v608
      %v4364 = vunpack.c.h.b16 %v608
      %v4365 = vunpack.c.l.b16 %v609
      %v4366 = vunpack.c.h.b16 %v609
      %v4367 = vunpack.c.l.b16 %v610
      %v4368 = vunpack.c.h.b16 %v610
      %v4369 = vunpack.c.l.b16 %v611
      %v4370 = vunpack.c.h.b16 %v611
      %v4371 = vunpack.c.l.b16 %v612
      %v4372 = vunpack.c.h.b16 %v612
      %v4373 = vunpack.c.l.b16 %v613
      %v4374 = vunpack.c.h.b16 %v613
      %v4375 = vunpack.c.l.b16 %v614
      %v4376 = vunpack.c.h.b16 %v614
      %v4377 = vunpack.c.l.b16 %v615
      %v4378 = vunpack.c.h.b16 %v615
      %v4379 = vunpack.c.l.b16 %v616
      %v4380 = vunpack.c.h.b16 %v616
      %v4381 = vunpack.c.l.b16 %v617
      %v4382 = vunpack.c.h.b16 %v617
      %v4383 = vunpack.c.l.b16 %v618
      %v4384 = vunpack.c.h.b16 %v618
      %v4385 = vunpack.c.l.b16 %v619
      %v4386 = vunpack.c.h.b16 %v619
      %v4387 = vunpack.c.l.b16 %v620
      %v4388 = vunpack.c.h.b16 %v620
      %v4389 = vunpack.c.l.b16 %v621
      %v4390 = vunpack.c.h.b16 %v621
      %v4391 = vunpack.c.l.b16 %v622
      %v4392 = vunpack.c.h.b16 %v622
      %v4393 = vunpack.c.l.b16 %v623
      %v4394 = vunpack.c.h.b16 %v623
      %v4395 = vunpack.c.l.b16 %v624
      %v4396 = vunpack.c.h.b16 %v624
      %v4397 = vunpack.c.l.b16 %v625
      %v4398 = vunpack.c.h.b16 %v625
      %v4399 = vunpack.c.l.b16 %v626
      %v4400 = vunpack.c.h.b16 %v626
      %v4401 = vunpack.c.l.b16 %v627
      %v4402 = vunpack.c.h.b16 %v627
      %v4403 = vunpack.c.l.b16 %v628
      %v4404 = vunpack.c.h.b16 %v628
      %v4405 = vunpack.c.l.b16 %v629
      %v4406 = vunpack.c.h.b16 %v629
      %v4407 = vunpack.c.l.b16 %v630
      %v4408 = vunpack.c.h.b16 %v630
      %v4409 = vpack.c.b16 %v3901, %v3897
      %v4410 = vpack.c.b16 %v3902, %v3898
      %v4411 = vpack.c.b16 %v3903, %v3899
      %v4412 = vpack.c.b16 %v3904, %v3900
      %v4413 = vpack.c.b16 %v3909, %v3905
      %v4414 = vpack.c.b16 %v3910, %v3906
      %v4415 = vpack.c.b16 %v3911, %v3907
      %v4416 = vpack.c.b16 %v3912, %v3908
      %v4417 = vpack.c.b16 %v3917, %v3913
      %v4418 = vpack.c.b16 %v3918, %v3914
      %v4419 = vpack.c.b16 %v3919, %v3915
      %v4420 = vpack.c.b16 %v3920, %v3916
      %v4421 = vpack.c.b16 %v3925, %v3921
      %v4422 = vpack.c.b16 %v3926, %v3922
      %v4423 = vpack.c.b16 %v3927, %v3923
      %v4424 = vpack.c.b16 %v3928, %v3924
      %v4425 = vpack.c.b16 %v3933, %v3929
      %v4426 = vpack.c.b16 %v3934, %v3930
      %v4427 = vpack.c.b16 %v3935, %v3931
      %v4428 = vpack.c.b16 %v3936, %v3932
      %v4429 = vpack.c.b16 %v3941, %v3937
      %v4430 = vpack.c.b16 %v3942, %v3938
      %v4431 = vpack.c.b16 %v3943, %v3939
      %v4432 = vpack.c.b16 %v3944, %v3940
      %v4433 = vpack.c.b16 %v3949, %v3945
      %v4434 = vpack.c.b16 %v3950, %v3946
      %v4435 = vpack.c.b16 %v3951, %v3947
      %v4436 = vpack.c.b16 %v3952, %v3948
      %v4437 = vpack.c.b16 %v3957, %v3953
      %v4438 = vpack.c.b16 %v3958, %v3954
      %v4439 = vpack.c.b16 %v3959, %v3955
      %v4440 = vpack.c.b16 %v3960, %v3956
      %v4441 = vpack.c.b16 %v3965, %v3961
      %v4442 = vpack.c.b16 %v3966, %v3962
      %v4443 = vpack.c.b16 %v3967, %v3963
      %v4444 = vpack.c.b16 %v3968, %v3964
      %v4445 = vpack.c.b16 %v3973, %v3969
      %v4446 = vpack.c.b16 %v3974, %v3970
      %v4447 = vpack.c.b16 %v3975, %v3971
      %v4448 = vpack.c.b16 %v3976, %v3972
      %v4449 = vpack.c.b16 %v3981, %v3977
      %v4450 = vpack.c.b16 %v3982, %v3978
      %v4451 = vpack.c.b16 %v3983, %v3979
      %v4452 = vpack.c.b16 %v3984, %v3980
      %v4453 = vpack.c.b16 %v3989, %v3985
      %v4454 = vpack.c.b16 %v3990, %v3986
      %v4455 = vpack.c.b16 %v3991, %v3987
      %v4456 = vpack.c.b16 %v3992, %v3988
      %v4457 = vpack.c.b16 %v3997, %v3993
      %v4458 = vpack.c.b16 %v3998, %v3994
      %v4459 = vpack.c.b16 %v3999, %v3995
      %v4460 = vpack.c.b16 %v4000, %v3996
      %v4461 = vpack.c.b16 %v4005, %v4001
      %v4462 = vpack.c.b16 %v4006, %v4002
      %v4463 = vpack.c.b16 %v4007, %v4003
      %v4464 = vpack.c.b16 %v4008, %v4004
      %v4465 = vpack.c.b16 %v4013, %v4009
      %v4466 = vpack.c.b16 %v4014, %v4010
      %v4467 = vpack.c.b16 %v4015, %v4011
      %v4468 = vpack.c.b16 %v4016, %v4012
      %v4469 = vpack.c.b16 %v4021, %v4017
      %v4470 = vpack.c.b16 %v4022, %v4018
      %v4471 = vpack.c.b16 %v4023, %v4019
      %v4472 = vpack.c.b16 %v4024, %v4020
      %v4473 = vpack.c.b16 %v4029, %v4025
      %v4474 = vpack.c.b16 %v4030, %v4026
      %v4475 = vpack.c.b16 %v4031, %v4027
      %v4476 = vpack.c.b16 %v4032, %v4028
      %v4477 = vpack.c.b16 %v4037, %v4033
      %v4478 = vpack.c.b16 %v4038, %v4034
      %v4479 = vpack.c.b16 %v4039, %v4035
      %v4480 = vpack.c.b16 %v4040, %v4036
      %v4481 = vpack.c.b16 %v4045, %v4041
      %v4482 = vpack.c.b16 %v4046, %v4042
      %v4483 = vpack.c.b16 %v4047, %v4043
      %v4484 = vpack.c.b16 %v4048, %v4044
      %v4485 = vpack.c.b16 %v4053, %v4049
      %v4486 = vpack.c.b16 %v4054, %v4050
      %v4487 = vpack.c.b16 %v4055, %v4051
      %v4488 = vpack.c.b16 %v4056, %v4052
      %v4489 = vpack.c.b16 %v4061, %v4057
      %v4490 = vpack.c.b16 %v4062, %v4058
      %v4491 = vpack.c.b16 %v4063, %v4059
      %v4492 = vpack.c.b16 %v4064, %v4060
      %v4493 = vpack.c.b16 %v4069, %v4065
      %v4494 = vpack.c.b16 %v4070, %v4066
      %v4495 = vpack.c.b16 %v4071, %v4067
      %v4496 = vpack.c.b16 %v4072, %v4068
      %v4497 = vpack.c.b16 %v4077, %v4073
      %v4498 = vpack.c.b16 %v4078, %v4074
      %v4499 = vpack.c.b16 %v4079, %v4075
      %v4500 = vpack.c.b16 %v4080, %v4076
      %v4501 = vpack.c.b16 %v4085, %v4081
      %v4502 = vpack.c.b16 %v4086, %v4082
      %v4503 = vpack.c.b16 %v4087, %v4083
      %v4504 = vpack.c.b16 %v4088, %v4084
      %v4505 = vpack.c.b16 %v4093, %v4089
      %v4506 = vpack.c.b16 %v4094, %v4090
      %v4507 = vpack.c.b16 %v4095, %v4091
      %v4508 = vpack.c.b16 %v4096, %v4092
      %v4509 = vpack.c.b16 %v4101, %v4097
      %v4510 = vpack.c.b16 %v4102, %v4098
      %v4511 = vpack.c.b16 %v4103, %v4099
      %v4512 = vpack.c.b16 %v4104, %v4100
      %v4513 = vpack.c.b16 %v4109, %v4105
      %v4514 = vpack.c.b16 %v4110, %v4106
      %v4515 = vpack.c.b16 %v4111, %v4107
      %v4516 = vpack.c.b16 %v4112, %v4108
      %v4517 = vpack.c.b16 %v4117, %v4113
      %v4518 = vpack.c.b16 %v4118, %v4114
      %v4519 = vpack.c.b16 %v4119, %v4115
      %v4520 = vpack.c.b16 %v4120, %v4116
      %v4521 = vpack.c.b16 %v4125, %v4121
      %v4522 = vpack.c.b16 %v4126, %v4122
      %v4523 = vpack.c.b16 %v4127, %v4123
      %v4524 = vpack.c.b16 %v4128, %v4124
      %v4525 = vpack.c.b16 %v4133, %v4129
      %v4526 = vpack.c.b16 %v4134, %v4130
      %v4527 = vpack.c.b16 %v4135, %v4131
      %v4528 = vpack.c.b16 %v4136, %v4132
      %v4529 = vpack.c.b16 %v4141, %v4137
      %v4530 = vpack.c.b16 %v4142, %v4138
      %v4531 = vpack.c.b16 %v4143, %v4139
      %v4532 = vpack.c.b16 %v4144, %v4140
      %v4533 = vpack.c.b16 %v4149, %v4145
      %v4534 = vpack.c.b16 %v4150, %v4146
      %v4535 = vpack.c.b16 %v4151, %v4147
      %v4536 = vpack.c.b16 %v4152, %v4148
      %v4537 = vpack.c.b16 %v4157, %v4153
      %v4538 = vpack.c.b16 %v4158, %v4154
      %v4539 = vpack.c.b16 %v4159, %v4155
      %v4540 = vpack.c.b16 %v4160, %v4156
      %v4541 = vpack.c.b16 %v4165, %v4161
      %v4542 = vpack.c.b16 %v4166, %v4162
      %v4543 = vpack.c.b16 %v4167, %v4163
      %v4544 = vpack.c.b16 %v4168, %v4164
      %v4545 = vpack.c.b16 %v4173, %v4169
      %v4546 = vpack.c.b16 %v4174, %v4170
      %v4547 = vpack.c.b16 %v4175, %v4171
      %v4548 = vpack.c.b16 %v4176, %v4172
      %v4549 = vpack.c.b16 %v4181, %v4177
      %v4550 = vpack.c.b16 %v4182, %v4178
      %v4551 = vpack.c.b16 %v4183, %v4179
      %v4552 = vpack.c.b16 %v4184, %v4180
      %v4553 = vpack.c.b16 %v4189, %v4185
      %v4554 = vpack.c.b16 %v4190, %v4186
      %v4555 = vpack.c.b16 %v4191, %v4187
      %v4556 = vpack.c.b16 %v4192, %v4188
      %v4557 = vpack.c.b16 %v4197, %v4193
      %v4558 = vpack.c.b16 %v4198, %v4194
      %v4559 = vpack.c.b16 %v4199, %v4195
      %v4560 = vpack.c.b16 %v4200, %v4196
      %v4561 = vpack.c.b16 %v4205, %v4201
      %v4562 = vpack.c.b16 %v4206, %v4202
      %v4563 = vpack.c.b16 %v4207, %v4203
      %v4564 = vpack.c.b16 %v4208, %v4204
      %v4565 = vpack.c.b16 %v4213, %v4209
      %v4566 = vpack.c.b16 %v4214, %v4210
      %v4567 = vpack.c.b16 %v4215, %v4211
      %v4568 = vpack.c.b16 %v4216, %v4212
      %v4569 = vpack.c.b16 %v4221, %v4217
      %v4570 = vpack.c.b16 %v4222, %v4218
      %v4571 = vpack.c.b16 %v4223, %v4219
      %v4572 = vpack.c.b16 %v4224, %v4220
      %v4573 = vpack.c.b16 %v4229, %v4225
      %v4574 = vpack.c.b16 %v4230, %v4226
      %v4575 = vpack.c.b16 %v4231, %v4227
      %v4576 = vpack.c.b16 %v4232, %v4228
      %v4577 = vpack.c.b16 %v4237, %v4233
      %v4578 = vpack.c.b16 %v4238, %v4234
      %v4579 = vpack.c.b16 %v4239, %v4235
      %v4580 = vpack.c.b16 %v4240, %v4236
      %v4581 = vpack.c.b16 %v4245, %v4241
      %v4582 = vpack.c.b16 %v4246, %v4242
      %v4583 = vpack.c.b16 %v4247, %v4243
      %v4584 = vpack.c.b16 %v4248, %v4244
      %v4585 = vpack.c.b16 %v4253, %v4249
      %v4586 = vpack.c.b16 %v4254, %v4250
      %v4587 = vpack.c.b16 %v4255, %v4251
      %v4588 = vpack.c.b16 %v4256, %v4252
      %v4589 = vpack.c.b16 %v4261, %v4257
      %v4590 = vpack.c.b16 %v4262, %v4258
      %v4591 = vpack.c.b16 %v4263, %v4259
      %v4592 = vpack.c.b16 %v4264, %v4260
      %v4593 = vpack.c.b16 %v4269, %v4265
      %v4594 = vpack.c.b16 %v4270, %v4266
      %v4595 = vpack.c.b16 %v4271, %v4267
      %v4596 = vpack.c.b16 %v4272, %v4268
      %v4597 = vpack.c.b16 %v4277, %v4273
      %v4598 = vpack.c.b16 %v4278, %v4274
      %v4599 = vpack.c.b16 %v4279, %v4275
      %v4600 = vpack.c.b16 %v4280, %v4276
      %v4601 = vpack.c.b16 %v4285, %v4281
      %v4602 = vpack.c.b16 %v4286, %v4282
      %v4603 = vpack.c.b16 %v4287, %v4283
      %v4604 = vpack.c.b16 %v4288, %v4284
      %v4605 = vpack.c.b16 %v4293, %v4289
      %v4606 = vpack.c.b16 %v4294, %v4290
      %v4607 = vpack.c.b16 %v4295, %v4291
      %v4608 = vpack.c.b16 %v4296, %v4292
      %v4609 = vpack.c.b16 %v4301, %v4297
      %v4610 = vpack.c.b16 %v4302, %v4298
      %v4611 = vpack.c.b16 %v4303, %v4299
      %v4612 = vpack.c.b16 %v4304, %v4300
      %v4613 = vpack.c.b16 %v4309, %v4305
      %v4614 = vpack.c.b16 %v4310, %v4306
      %v4615 = vpack.c.b16 %v4311, %v4307
      %v4616 = vpack.c.b16 %v4312, %v4308
      %v4617 = vpack.c.b16 %v4317, %v4313
      %v4618 = vpack.c.b16 %v4318, %v4314
      %v4619 = vpack.c.b16 %v4319, %v4315
      %v4620 = vpack.c.b16 %v4320, %v4316
      %v4621 = vpack.c.b16 %v4325, %v4321
      %v4622 = vpack.c.b16 %v4326, %v4322
      %v4623 = vpack.c.b16 %v4327, %v4323
      %v4624 = vpack.c.b16 %v4328, %v4324
      %v4625 = vpack.c.b16 %v4333, %v4329
      %v4626 = vpack.c.b16 %v4334, %v4330
      %v4627 = vpack.c.b16 %v4335, %v4331
      %v4628 = vpack.c.b16 %v4336, %v4332
      %v4629 = vpack.c.b16 %v4341, %v4337
      %v4630 = vpack.c.b16 %v4342, %v4338
      %v4631 = vpack.c.b16 %v4343, %v4339
      %v4632 = vpack.c.b16 %v4344, %v4340
      %v4633 = vpack.c.b16 %v4349, %v4345
      %v4634 = vpack.c.b16 %v4350, %v4346
      %v4635 = vpack.c.b16 %v4351, %v4347
      %v4636 = vpack.c.b16 %v4352, %v4348
      %v4637 = vpack.c.b16 %v4357, %v4353
      %v4638 = vpack.c.b16 %v4358, %v4354
      %v4639 = vpack.c.b16 %v4359, %v4355
      %v4640 = vpack.c.b16 %v4360, %v4356
      %v4641 = vpack.c.b16 %v4365, %v4361
      %v4642 = vpack.c.b16 %v4366, %v4362
      %v4643 = vpack.c.b16 %v4367, %v4363
      %v4644 = vpack.c.b16 %v4368, %v4364
      %v4645 = vpack.c.b16 %v4373, %v4369
      %v4646 = vpack.c.b16 %v4374, %v4370
      %v4647 = vpack.c.b16 %v4375, %v4371
      %v4648 = vpack.c.b16 %v4376, %v4372
      %v4649 = vpack.c.b16 %v4381, %v4377
      %v4650 = vpack.c.b16 %v4382, %v4378
      %v4651 = vpack.c.b16 %v4383, %v4379
      %v4652 = vpack.c.b16 %v4384, %v4380
      %v4653 = vpack.c.b16 %v4389, %v4385
      %v4654 = vpack.c.b16 %v4390, %v4386
      %v4655 = vpack.c.b16 %v4391, %v4387
      %v4656 = vpack.c.b16 %v4392, %v4388
      %v4657 = vpack.c.b16 %v4397, %v4393
      %v4658 = vpack.c.b16 %v4398, %v4394
      %v4659 = vpack.c.b16 %v4399, %v4395
      %v4660 = vpack.c.b16 %v4400, %v4396
      %v4661 = vpack.c.b16 %v4405, %v4401
      %v4662 = vpack.c.b16 %v4406, %v4402
      %v4663 = vpack.c.b16 %v4407, %v4403
      %v4664 = vpack.c.b16 %v4408, %v4404
      %4921 = vmatprep.subr.bf16.mxu0 %v4410
      %4922 = vmatpush1.bf16.msra.mxu0 %v4409
      %4923 = vmatprep.subr.bf16.mxu0 %v4414
      %4924 = vmatpush1.bf16.msra.mxu0 %v4413
      %4925 = vmatprep.subr.bf16.mxu0 %v4418
      %4926 = vmatpush1.bf16.msra.mxu0 %v4417
      %4927 = vmatprep.subr.bf16.mxu0 %v4422
      %4928 = vmatpush1.bf16.msra.mxu0 %v4421
      %4929 = vmatprep.subr.bf16.mxu0 %v4426
      %4930 = vmatpush1.bf16.msra.mxu0 %v4425
      %4931 = vmatprep.subr.bf16.mxu0 %v4430
      %4932 = vmatpush1.bf16.msra.mxu0 %v4429
      %4933 = vmatprep.subr.bf16.mxu0 %v4434
      %4934 = vmatpush1.bf16.msra.mxu0 %v4433
      %4935 = vmatprep.subr.bf16.mxu0 %v4438
      %4936 = vmatpush1.bf16.msra.mxu0 %v4437
      %4937 = vmatprep.subr.bf16.mxu0 %v4442
      %4938 = vmatpush1.bf16.msra.mxu0 %v4441
      %4939 = vmatprep.subr.bf16.mxu0 %v4446
      %4940 = vmatpush1.bf16.msra.mxu0 %v4445
      %4941 = vmatprep.subr.bf16.mxu0 %v4450
      %4942 = vmatpush1.bf16.msra.mxu0 %v4449
      %4943 = vmatprep.subr.bf16.mxu0 %v4454
      %4944 = vmatpush1.bf16.msra.mxu0 %v4453
      %4945 = vmatprep.subr.bf16.mxu0 %v4458
      %4946 = vmatpush1.bf16.msra.mxu0 %v4457
      %4947 = vmatprep.subr.bf16.mxu0 %v4462
      %4948 = vmatpush1.bf16.msra.mxu0 %v4461
      %4949 = vmatprep.subr.bf16.mxu0 %v4466
      %4950 = vmatpush1.bf16.msra.mxu0 %v4465
      %4951 = vmatprep.subr.bf16.mxu0 %v4470
      %4952 = vmatpush1.bf16.msra.mxu0 %v4469
      %4953 = vmatprep.mubr.bf16.mxu0 %v1049
      %4954 = vmatmul.mubr.bf16.gmra.mrb[0].mxu0 %v1048
      %v4955 = vpop.f32.mrb[0].mxu0
      %v4956 = vadd.f32 %v3163, %v4955
      %v4957 = vpop.f32.mrb[0].mxu0
      %v4958 = vadd.f32 %v3165, %v4957
      %v4959 = vpop.f32.mrb[0].mxu0
      %v4960 = vadd.f32 %v3167, %v4959
      %v4961 = vpop.f32.mrb[0].mxu0
      %v4962 = vadd.f32 %v3169, %v4961
      %4963 = vmatprep.mubr.bf16.mxu0 %v1057
      %4964 = vmatmul.mubr.bf16.gmra.mrb[0].mxu0 %v1056
      %v4965 = vpop.f32.mrb[0].mxu0
      %v4966 = vadd.f32 %v3173, %v4965
      %v4967 = vpop.f32.mrb[0].mxu0
      %v4968 = vadd.f32 %v3175, %v4967
      %v4969 = vpop.f32.mrb[0].mxu0
      %v4970 = vadd.f32 %v3177, %v4969
      %v4971 = vpop.f32.mrb[0].mxu0
      %v4972 = vadd.f32 %v3179, %v4971
      %4973 = vmatprep.mubr.bf16.mxu0 %v1065
      %4974 = vmatmul.mubr.bf16.gmra.mrb[0].mxu0 %v1064
      %v4975 = vpop.f32.mrb[0].mxu0
      %v4976 = vadd.f32 %v3183, %v4975
      %v4977 = vpop.f32.mrb[0].mxu0
      %v4978 = vadd.f32 %v3185, %v4977
      %v4979 = vpop.f32.mrb[0].mxu0
      %v4980 = vadd.f32 %v3187, %v4979
      %v4981 = vpop.f32.mrb[0].mxu0
      %v4982 = vadd.f32 %v3189, %v4981
      %4983 = vmatprep.mubr.bf16.mxu0 %v1073
      %4984 = vmatmul.mubr.bf16.gmra.mrb[0].mxu0 %v1072
      %v4985 = vpop.f32.mrb[0].mxu0
      %v4986 = vadd.f32 %v3193, %v4985
      %v4987 = vpop.f32.mrb[0].mxu0
      %v4988 = vadd.f32 %v3195, %v4987
      %v4989 = vpop.f32.mrb[0].mxu0
      %v4990 = vadd.f32 %v3197, %v4989
      %v4991 = vpop.f32.mrb[0].mxu0
      %v4992 = vadd.f32 %v3199, %v4991
      %4993 = vmatprep.mubr.bf16.mxu0 %v1081
      %4994 = vmatmul.mubr.bf16.gmra.mrb[0].mxu0 %v1080
      %v4995 = vpop.f32.mrb[0].mxu0
      %v4996 = vadd.f32 %v3203, %v4995
      %v4997 = vpop.f32.mrb[0].mxu0
      %v4998 = vadd.f32 %v3205, %v4997
      %v4999 = vpop.f32.mrb[0].mxu0
      %v5000 = vadd.f32 %v3207, %v4999
      %v5001 = vpop.f32.mrb[0].mxu0
      %v5002 = vadd.f32 %v3209, %v5001
      %5003 = vmatprep.mubr.bf16.mxu0 %v1089
      %5004 = vmatmul.mubr.bf16.gmra.mrb[0].mxu0 %v1088
      %v5005 = vpop.f32.mrb[0].mxu0
      %v5006 = vadd.f32 %v3213, %v5005
      %v5007 = vpop.f32.mrb[0].mxu0
      %v5008 = vadd.f32 %v3215, %v5007
      %v5009 = vpop.f32.mrb[0].mxu0
      %v5010 = vadd.f32 %v3217, %v5009
      %v5011 = vpop.f32.mrb[0].mxu0
      %v5012 = vadd.f32 %v3219, %v5011
      %5013 = vdwg.mxu0
      %5014 = vmatprep.subr.bf16.mxu0 %v4474
      %5015 = vmatpush1.bf16.msra.mxu0 %v4473
      %5016 = vmatprep.subr.bf16.mxu0 %v4478
      %5017 = vmatpush1.bf16.msra.mxu0 %v4477
      %5018 = vmatprep.subr.bf16.mxu0 %v4482
      %5019 = vmatpush1.bf16.msra.mxu0 %v4481
      %5020 = vmatprep.subr.bf16.mxu0 %v4486
      %5021 = vmatpush1.bf16.msra.mxu0 %v4485
      %5022 = vmatprep.subr.bf16.mxu0 %v4490
      %5023 = vmatpush1.bf16.msra.mxu0 %v4489
      %5024 = vmatprep.subr.bf16.mxu0 %v4494
      %5025 = vmatpush1.bf16.msra.mxu0 %v4493
      %5026 = vmatprep.subr.bf16.mxu0 %v4498
      %5027 = vmatpush1.bf16.msra.mxu0 %v4497
      %5028 = vmatprep.subr.bf16.mxu0 %v4502
      %5029 = vmatpush1.bf16.msra.mxu0 %v4501
      %5030 = vmatprep.subr.bf16.mxu0 %v4506
      %5031 = vmatpush1.bf16.msra.mxu0 %v4505
      %5032 = vmatprep.subr.bf16.mxu0 %v4510
      %5033 = vmatpush1.bf16.msra.mxu0 %v4509
      %5034 = vmatprep.subr.bf16.mxu0 %v4514
      %5035 = vmatpush1.bf16.msra.mxu0 %v4513
      %5036 = vmatprep.subr.bf16.mxu0 %v4518
      %5037 = vmatpush1.bf16.msra.mxu0 %v4517
      %5038 = vmatprep.subr.bf16.mxu0 %v4522
      %5039 = vmatpush1.bf16.msra.mxu0 %v4521
      %5040 = vmatprep.subr.bf16.mxu0 %v4526
      %5041 = vmatpush1.bf16.msra.mxu0 %v4525
      %5042 = vmatprep.subr.bf16.mxu0 %v4530
      %5043 = vmatpush1.bf16.msra.mxu0 %v4529
      %5044 = vmatprep.subr.bf16.mxu0 %v4534
      %5045 = vmatpush1.bf16.msra.mxu0 %v4533
      %5046 = vmatprep.mubr.bf16.mxu0 %v1051
      %5047 = vmatmul.mubr.bf16.gmra.mrb[0].mxu0 %v1050
      %v5048 = vpop.f32.mrb[0].mxu0
      %v5049 = vadd.f32 %v4956, %v5048
      %v5050 = vpop.f32.mrb[0].mxu0
      %v5051 = vadd.f32 %v4958, %v5050
      %v5052 = vpop.f32.mrb[0].mxu0
      %v5053 = vadd.f32 %v4960, %v5052
      %v5054 = vpop.f32.mrb[0].mxu0
      %v5055 = vadd.f32 %v4962, %v5054
      %5056 = vmatprep.mubr.bf16.mxu0 %v1059
      %5057 = vmatmul.mubr.bf16.gmra.mrb[0].mxu0 %v1058
      %v5058 = vpop.f32.mrb[0].mxu0
      %v5059 = vadd.f32 %v4966, %v5058
      %v5060 = vpop.f32.mrb[0].mxu0
      %v5061 = vadd.f32 %v4968, %v5060
      %v5062 = vpop.f32.mrb[0].mxu0
      %v5063 = vadd.f32 %v4970, %v5062
      %v5064 = vpop.f32.mrb[0].mxu0
      %v5065 = vadd.f32 %v4972, %v5064
      %5066 = vmatprep.mubr.bf16.mxu0 %v1067
      %5067 = vmatmul.mubr.bf16.gmra.mrb[0].mxu0 %v1066
      %v5068 = vpop.f32.mrb[0].mxu0
      %v5069 = vadd.f32 %v4976, %v5068
      %v5070 = vpop.f32.mrb[0].mxu0
      %v5071 = vadd.f32 %v4978, %v5070
      %v5072 = vpop.f32.mrb[0].mxu0
      %v5073 = vadd.f32 %v4980, %v5072
      %v5074 = vpop.f32.mrb[0].mxu0
      %v5075 = vadd.f32 %v4982, %v5074
      %5076 = vmatprep.mubr.bf16.mxu0 %v1075
      %5077 = vmatmul.mubr.bf16.gmra.mrb[0].mxu0 %v1074
      %v5078 = vpop.f32.mrb[0].mxu0
      %v5079 = vadd.f32 %v4986, %v5078
      %v5080 = vpop.f32.mrb[0].mxu0
      %v5081 = vadd.f32 %v4988, %v5080
      %v5082 = vpop.f32.mrb[0].mxu0
      %v5083 = vadd.f32 %v4990, %v5082
      %v5084 = vpop.f32.mrb[0].mxu0
      %v5085 = vadd.f32 %v4992, %v5084
      %5086 = vmatprep.mubr.bf16.mxu0 %v1083
      %5087 = vmatmul.mubr.bf16.gmra.mrb[0].mxu0 %v1082
      %v5088 = vpop.f32.mrb[0].mxu0
      %v5089 = vadd.f32 %v4996, %v5088
      %v5090 = vpop.f32.mrb[0].mxu0
      %v5091 = vadd.f32 %v4998, %v5090
      %v5092 = vpop.f32.mrb[0].mxu0
      %v5093 = vadd.f32 %v5000, %v5092
      %v5094 = vpop.f32.mrb[0].mxu0
      %v5095 = vadd.f32 %v5002, %v5094
      %5096 = vmatprep.mubr.bf16.mxu0 %v1091
      %5097 = vmatmul.mubr.bf16.gmra.mrb[0].mxu0 %v1090
      %v5098 = vpop.f32.mrb[0].mxu0
      %v5099 = vadd.f32 %v5006, %v5098
      %v5100 = vpop.f32.mrb[0].mxu0
      %v5101 = vadd.f32 %v5008, %v5100
      %v5102 = vpop.f32.mrb[0].mxu0
      %v5103 = vadd.f32 %v5010, %v5102
      %v5104 = vpop.f32.mrb[0].mxu0
      %v5105 = vadd.f32 %v5012, %v5104
      %5106 = vdwg.mxu0
      %5107 = vmatprep.subr.bf16.mxu0 %v4538
      %5108 = vmatpush1.bf16.msra.mxu0 %v4537
      %5109 = vmatprep.subr.bf16.mxu0 %v4542
      %5110 = vmatpush1.bf16.msra.mxu0 %v4541
      %5111 = vmatprep.subr.bf16.mxu0 %v4546
      %5112 = vmatpush1.bf16.msra.mxu0 %v4545
      %5113 = vmatprep.subr.bf16.mxu0 %v4550
      %5114 = vmatpush1.bf16.msra.mxu0 %v4549
      %5115 = vmatprep.subr.bf16.mxu0 %v4554
      %5116 = vmatpush1.bf16.msra.mxu0 %v4553
      %5117 = vmatprep.subr.bf16.mxu0 %v4558
      %5118 = vmatpush1.bf16.msra.mxu0 %v4557
      %5119 = vmatprep.subr.bf16.mxu0 %v4562
      %5120 = vmatpush1.bf16.msra.mxu0 %v4561
      %5121 = vmatprep.subr.bf16.mxu0 %v4566
      %5122 = vmatpush1.bf16.msra.mxu0 %v4565
      %5123 = vmatprep.subr.bf16.mxu0 %v4570
      %5124 = vmatpush1.bf16.msra.mxu0 %v4569
      %5125 = vmatprep.subr.bf16.mxu0 %v4574
      %5126 = vmatpush1.bf16.msra.mxu0 %v4573
      %5127 = vmatprep.subr.bf16.mxu0 %v4578
      %5128 = vmatpush1.bf16.msra.mxu0 %v4577
      %5129 = vmatprep.subr.bf16.mxu0 %v4582
      %5130 = vmatpush1.bf16.msra.mxu0 %v4581
      %5131 = vmatprep.subr.bf16.mxu0 %v4586
      %5132 = vmatpush1.bf16.msra.mxu0 %v4585
      %5133 = vmatprep.subr.bf16.mxu0 %v4590
      %5134 = vmatpush1.bf16.msra.mxu0 %v4589
      %5135 = vmatprep.subr.bf16.mxu0 %v4594
      %5136 = vmatpush1.bf16.msra.mxu0 %v4593
      %5137 = vmatprep.subr.bf16.mxu0 %v4598
      %5138 = vmatpush1.bf16.msra.mxu0 %v4597
      %5139 = vmatprep.mubr.bf16.mxu0 %v1053
      %5140 = vmatmul.mubr.bf16.gmra.mrb[0].mxu0 %v1052
      %v5141 = vpop.f32.mrb[0].mxu0
      %v5142 = vadd.f32 %v5049, %v5141
      %v5143 = vpop.f32.mrb[0].mxu0
      %v5144 = vadd.f32 %v5051, %v5143
      %v5145 = vpop.f32.mrb[0].mxu0
      %v5146 = vadd.f32 %v5053, %v5145
      %v5147 = vpop.f32.mrb[0].mxu0
      %v5148 = vadd.f32 %v5055, %v5147
      %5149 = vmatprep.mubr.bf16.mxu0 %v1061
      %5150 = vmatmul.mubr.bf16.gmra.mrb[0].mxu0 %v1060
      %v5151 = vpop.f32.mrb[0].mxu0
      %v5152 = vadd.f32 %v5059, %v5151
      %v5153 = vpop.f32.mrb[0].mxu0
      %v5154 = vadd.f32 %v5061, %v5153
      %v5155 = vpop.f32.mrb[0].mxu0
      %v5156 = vadd.f32 %v5063, %v5155
      %v5157 = vpop.f32.mrb[0].mxu0
      %v5158 = vadd.f32 %v5065, %v5157
      %5159 = vmatprep.mubr.bf16.mxu0 %v1069
      %5160 = vmatmul.mubr.bf16.gmra.mrb[0].mxu0 %v1068
      %v5161 = vpop.f32.mrb[0].mxu0
      %v5162 = vadd.f32 %v5069, %v5161
      %v5163 = vpop.f32.mrb[0].mxu0
      %v5164 = vadd.f32 %v5071, %v5163
      %v5165 = vpop.f32.mrb[0].mxu0
      %v5166 = vadd.f32 %v5073, %v5165
      %v5167 = vpop.f32.mrb[0].mxu0
      %v5168 = vadd.f32 %v5075, %v5167
      %5169 = vmatprep.mubr.bf16.mxu0 %v1077
      %5170 = vmatmul.mubr.bf16.gmra.mrb[0].mxu0 %v1076
      %v5171 = vpop.f32.mrb[0].mxu0
      %v5172 = vadd.f32 %v5079, %v5171
      %v5173 = vpop.f32.mrb[0].mxu0
      %v5174 = vadd.f32 %v5081, %v5173
      %v5175 = vpop.f32.mrb[0].mxu0
      %v5176 = vadd.f32 %v5083, %v5175
      %v5177 = vpop.f32.mrb[0].mxu0
      %v5178 = vadd.f32 %v5085, %v5177
      %5179 = vmatprep.mubr.bf16.mxu0 %v1085
      %5180 = vmatmul.mubr.bf16.gmra.mrb[0].mxu0 %v1084
      %v5181 = vpop.f32.mrb[0].mxu0
      %v5182 = vadd.f32 %v5089, %v5181
      %v5183 = vpop.f32.mrb[0].mxu0
      %v5184 = vadd.f32 %v5091, %v5183
      %v5185 = vpop.f32.mrb[0].mxu0
      %v5186 = vadd.f32 %v5093, %v5185
      %v5187 = vpop.f32.mrb[0].mxu0
      %v5188 = vadd.f32 %v5095, %v5187
      %5189 = vmatprep.mubr.bf16.mxu0 %v1093
      %5190 = vmatmul.mubr.bf16.gmra.mrb[0].mxu0 %v1092
      %v5191 = vpop.f32.mrb[0].mxu0
      %v5192 = vadd.f32 %v5099, %v5191
      %v5193 = vpop.f32.mrb[0].mxu0
      %v5194 = vadd.f32 %v5101, %v5193
      %v5195 = vpop.f32.mrb[0].mxu0
      %v5196 = vadd.f32 %v5103, %v5195
      %v5197 = vpop.f32.mrb[0].mxu0
      %v5198 = vadd.f32 %v5105, %v5197
      %5199 = vdwg.mxu0
      %5200 = vmatprep.subr.bf16.mxu0 %v4602
      %5201 = vmatpush1.bf16.msra.mxu0 %v4601
      %5202 = vmatprep.subr.bf16.mxu0 %v4606
      %5203 = vmatpush1.bf16.msra.mxu0 %v4605
      %5204 = vmatprep.subr.bf16.mxu0 %v4610
      %5205 = vmatpush1.bf16.msra.mxu0 %v4609
      %5206 = vmatprep.subr.bf16.mxu0 %v4614
      %5207 = vmatpush1.bf16.msra.mxu0 %v4613
      %5208 = vmatprep.subr.bf16.mxu0 %v4618
      %5209 = vmatpush1.bf16.msra.mxu0 %v4617
      %5210 = vmatprep.subr.bf16.mxu0 %v4622
      %5211 = vmatpush1.bf16.msra.mxu0 %v4621
      %5212 = vmatprep.subr.bf16.mxu0 %v4626
      %5213 = vmatpush1.bf16.msra.mxu0 %v4625
      %5214 = vmatprep.subr.bf16.mxu0 %v4630
      %5215 = vmatpush1.bf16.msra.mxu0 %v4629
      %5216 = vmatprep.subr.bf16.mxu0 %v4634
      %5217 = vmatpush1.bf16.msra.mxu0 %v4633
      %5218 = vmatprep.subr.bf16.mxu0 %v4638
      %5219 = vmatpush1.bf16.msra.mxu0 %v4637
      %5220 = vmatprep.subr.bf16.mxu0 %v4642
      %5221 = vmatpush1.bf16.msra.mxu0 %v4641
      %5222 = vmatprep.subr.bf16.mxu0 %v4646
      %5223 = vmatpush1.bf16.msra.mxu0 %v4645
      %5224 = vmatprep.subr.bf16.mxu0 %v4650
      %5225 = vmatpush1.bf16.msra.mxu0 %v4649
      %5226 = vmatprep.subr.bf16.mxu0 %v4654
      %5227 = vmatpush1.bf16.msra.mxu0 %v4653
      %5228 = vmatprep.subr.bf16.mxu0 %v4658
      %5229 = vmatpush1.bf16.msra.mxu0 %v4657
      %5230 = vmatprep.subr.bf16.mxu0 %v4662
      %5231 = vmatpush1.bf16.msra.mxu0 %v4661
      %5232 = vmatprep.mubr.bf16.mxu0 %v1055
      %5233 = vmatmul.mubr.bf16.gmra.mrb[0].mxu0 %v1054
      %v5234 = vpop.f32.mrb[0].mxu0
      %v5235 = vadd.f32 %v5142, %v5234
      %v5236 = vpop.f32.mrb[0].mxu0
      %v5237 = vadd.f32 %v5144, %v5236
      %v5238 = vpop.f32.mrb[0].mxu0
      %v5239 = vadd.f32 %v5146, %v5238
      %v5240 = vpop.f32.mrb[0].mxu0
      %v5241 = vadd.f32 %v5148, %v5240
      %5242 = vmatprep.mubr.bf16.mxu0 %v1063
      %5243 = vmatmul.mubr.bf16.gmra.mrb[0].mxu0 %v1062
      %v5244 = vpop.f32.mrb[0].mxu0
      %v5245 = vadd.f32 %v5152, %v5244
      %v5246 = vpop.f32.mrb[0].mxu0
      %v5247 = vadd.f32 %v5154, %v5246
      %v5248 = vpop.f32.mrb[0].mxu0
      %v5249 = vadd.f32 %v5156, %v5248
      %v5250 = vpop.f32.mrb[0].mxu0
      %v5251 = vadd.f32 %v5158, %v5250
      %5252 = vmatprep.mubr.bf16.mxu0 %v1071
      %5253 = vmatmul.mubr.bf16.gmra.mrb[0].mxu0 %v1070
      %v5254 = vpop.f32.mrb[0].mxu0
      %v5255 = vadd.f32 %v5162, %v5254
      %v5256 = vpop.f32.mrb[0].mxu0
      %v5257 = vadd.f32 %v5164, %v5256
      %v5258 = vpop.f32.mrb[0].mxu0
      %v5259 = vadd.f32 %v5166, %v5258
      %v5260 = vpop.f32.mrb[0].mxu0
      %v5261 = vadd.f32 %v5168, %v5260
      %5262 = vmatprep.mubr.bf16.mxu0 %v1079
      %5263 = vmatmul.mubr.bf16.gmra.mrb[0].mxu0 %v1078
      %v5264 = vpop.f32.mrb[0].mxu0
      %v5265 = vadd.f32 %v5172, %v5264
      %v5266 = vpop.f32.mrb[0].mxu0
      %v5267 = vadd.f32 %v5174, %v5266
      %v5268 = vpop.f32.mrb[0].mxu0
      %v5269 = vadd.f32 %v5176, %v5268
      %v5270 = vpop.f32.mrb[0].mxu0
      %v5271 = vadd.f32 %v5178, %v5270
      %5272 = vmatprep.mubr.bf16.mxu0 %v1087
      %5273 = vmatmul.mubr.bf16.gmra.mrb[0].mxu0 %v1086
      %v5274 = vpop.f32.mrb[0].mxu0
      %v5275 = vadd.f32 %v5182, %v5274
      %v5276 = vpop.f32.mrb[0].mxu0
      %v5277 = vadd.f32 %v5184, %v5276
      %v5278 = vpop.f32.mrb[0].mxu0
      %v5279 = vadd.f32 %v5186, %v5278
      %v5280 = vpop.f32.mrb[0].mxu0
      %v5281 = vadd.f32 %v5188, %v5280
      %5282 = vmatprep.mubr.bf16.mxu0 %v1095
      %5283 = vmatmul.mubr.bf16.gmra.mrb[0].mxu0 %v1094
      %v5284 = vpop.f32.mrb[0].mxu0
      %v5285 = vadd.f32 %v5192, %v5284
      %v5286 = vpop.f32.mrb[0].mxu0
      %v5287 = vadd.f32 %v5194, %v5286
      %v5288 = vpop.f32.mrb[0].mxu0
      %v5289 = vadd.f32 %v5196, %v5288
      %v5290 = vpop.f32.mrb[0].mxu0
      %v5291 = vadd.f32 %v5198, %v5290
      %5292 = vdwg.mxu0
      %5293 = vmatprep.subr.bf16.mxu0 %v4412
      %5294 = vmatpush1.bf16.msra.mxu0 %v4411
      %5295 = vmatprep.subr.bf16.mxu0 %v4416
      %5296 = vmatpush1.bf16.msra.mxu0 %v4415
      %5297 = vmatprep.subr.bf16.mxu0 %v4420
      %5298 = vmatpush1.bf16.msra.mxu0 %v4419
      %5299 = vmatprep.subr.bf16.mxu0 %v4424
      %5300 = vmatpush1.bf16.msra.mxu0 %v4423
      %5301 = vmatprep.subr.bf16.mxu0 %v4428
      %5302 = vmatpush1.bf16.msra.mxu0 %v4427
      %5303 = vmatprep.subr.bf16.mxu0 %v4432
      %5304 = vmatpush1.bf16.msra.mxu0 %v4431
      %5305 = vmatprep.subr.bf16.mxu0 %v4436
      %5306 = vmatpush1.bf16.msra.mxu0 %v4435
      %5307 = vmatprep.subr.bf16.mxu0 %v4440
      %5308 = vmatpush1.bf16.msra.mxu0 %v4439
      %5309 = vmatprep.subr.bf16.mxu0 %v4444
      %5310 = vmatpush1.bf16.msra.mxu0 %v4443
      %5311 = vmatprep.subr.bf16.mxu0 %v4448
      %5312 = vmatpush1.bf16.msra.mxu0 %v4447
      %5313 = vmatprep.subr.bf16.mxu0 %v4452
      %5314 = vmatpush1.bf16.msra.mxu0 %v4451
      %5315 = vmatprep.subr.bf16.mxu0 %v4456
      %5316 = vmatpush1.bf16.msra.mxu0 %v4455
      %5317 = vmatprep.subr.bf16.mxu0 %v4460
      %5318 = vmatpush1.bf16.msra.mxu0 %v4459
      %5319 = vmatprep.subr.bf16.mxu0 %v4464
      %5320 = vmatpush1.bf16.msra.mxu0 %v4463
      %5321 = vmatprep.subr.bf16.mxu0 %v4468
      %5322 = vmatpush1.bf16.msra.mxu0 %v4467
      %5323 = vmatprep.subr.bf16.mxu0 %v4472
      %5324 = vmatpush1.bf16.msra.mxu0 %v4471
      %5325 = vmatprep.mubr.bf16.mxu0 %v1049
      %5326 = vmatmul.mubr.bf16.gmra.mrb[0].mxu0 %v1048
      %v5327 = vpop.f32.mrb[0].mxu0
      %v5328 = vadd.f32 %v3535, %v5327
      %v5329 = vpop.f32.mrb[0].mxu0
      %v5330 = vadd.f32 %v3537, %v5329
      %v5331 = vpop.f32.mrb[0].mxu0
      %v5332 = vadd.f32 %v3539, %v5331
      %v5333 = vpop.f32.mrb[0].mxu0
      %v5334 = vadd.f32 %v3541, %v5333
      %5335 = vmatprep.mubr.bf16.mxu0 %v1057
      %5336 = vmatmul.mubr.bf16.gmra.mrb[0].mxu0 %v1056
      %v5337 = vpop.f32.mrb[0].mxu0
      %v5338 = vadd.f32 %v3545, %v5337
      %v5339 = vpop.f32.mrb[0].mxu0
      %v5340 = vadd.f32 %v3547, %v5339
      %v5341 = vpop.f32.mrb[0].mxu0
      %v5342 = vadd.f32 %v3549, %v5341
      %v5343 = vpop.f32.mrb[0].mxu0
      %v5344 = vadd.f32 %v3551, %v5343
      %5345 = vmatprep.mubr.bf16.mxu0 %v1065
      %5346 = vmatmul.mubr.bf16.gmra.mrb[0].mxu0 %v1064
      %v5347 = vpop.f32.mrb[0].mxu0
      %v5348 = vadd.f32 %v3555, %v5347
      %v5349 = vpop.f32.mrb[0].mxu0
      %v5350 = vadd.f32 %v3557, %v5349
      %v5351 = vpop.f32.mrb[0].mxu0
      %v5352 = vadd.f32 %v3559, %v5351
      %v5353 = vpop.f32.mrb[0].mxu0
      %v5354 = vadd.f32 %v3561, %v5353
      %5355 = vmatprep.mubr.bf16.mxu0 %v1073
      %5356 = vmatmul.mubr.bf16.gmra.mrb[0].mxu0 %v1072
      %v5357 = vpop.f32.mrb[0].mxu0
      %v5358 = vadd.f32 %v3565, %v5357
      %v5359 = vpop.f32.mrb[0].mxu0
      %v5360 = vadd.f32 %v3567, %v5359
      %v5361 = vpop.f32.mrb[0].mxu0
      %v5362 = vadd.f32 %v3569, %v5361
      %v5363 = vpop.f32.mrb[0].mxu0
      %v5364 = vadd.f32 %v3571, %v5363
      %5365 = vmatprep.mubr.bf16.mxu0 %v1081
      %5366 = vmatmul.mubr.bf16.gmra.mrb[0].mxu0 %v1080
      %v5367 = vpop.f32.mrb[0].mxu0
      %v5368 = vadd.f32 %v3575, %v5367
      %v5369 = vpop.f32.mrb[0].mxu0
      %v5370 = vadd.f32 %v3577, %v5369
      %v5371 = vpop.f32.mrb[0].mxu0
      %v5372 = vadd.f32 %v3579, %v5371
      %v5373 = vpop.f32.mrb[0].mxu0
      %v5374 = vadd.f32 %v3581, %v5373
      %5375 = vmatprep.mubr.bf16.mxu0 %v1089
      %5376 = vmatmul.mubr.bf16.gmra.mrb[0].mxu0 %v1088
      %v5377 = vpop.f32.mrb[0].mxu0
      %v5378 = vadd.f32 %v3585, %v5377
      %v5379 = vpop.f32.mrb[0].mxu0
      %v5380 = vadd.f32 %v3587, %v5379
      %v5381 = vpop.f32.mrb[0].mxu0
      %v5382 = vadd.f32 %v3589, %v5381
      %v5383 = vpop.f32.mrb[0].mxu0
      %v5384 = vadd.f32 %v3591, %v5383
      %5385 = vdwg.mxu0
      %5386 = vmatprep.subr.bf16.mxu0 %v4476
      %5387 = vmatpush1.bf16.msra.mxu0 %v4475
      %5388 = vmatprep.subr.bf16.mxu0 %v4480
      %5389 = vmatpush1.bf16.msra.mxu0 %v4479
      %5390 = vmatprep.subr.bf16.mxu0 %v4484
      %5391 = vmatpush1.bf16.msra.mxu0 %v4483
      %5392 = vmatprep.subr.bf16.mxu0 %v4488
      %5393 = vmatpush1.bf16.msra.mxu0 %v4487
      %5394 = vmatprep.subr.bf16.mxu0 %v4492
      %5395 = vmatpush1.bf16.msra.mxu0 %v4491
      %5396 = vmatprep.subr.bf16.mxu0 %v4496
      %5397 = vmatpush1.bf16.msra.mxu0 %v4495
      %5398 = vmatprep.subr.bf16.mxu0 %v4500
      %5399 = vmatpush1.bf16.msra.mxu0 %v4499
      %5400 = vmatprep.subr.bf16.mxu0 %v4504
      %5401 = vmatpush1.bf16.msra.mxu0 %v4503
      %5402 = vmatprep.subr.bf16.mxu0 %v4508
      %5403 = vmatpush1.bf16.msra.mxu0 %v4507
      %5404 = vmatprep.subr.bf16.mxu0 %v4512
      %5405 = vmatpush1.bf16.msra.mxu0 %v4511
      %5406 = vmatprep.subr.bf16.mxu0 %v4516
      %5407 = vmatpush1.bf16.msra.mxu0 %v4515
      %5408 = vmatprep.subr.bf16.mxu0 %v4520
      %5409 = vmatpush1.bf16.msra.mxu0 %v4519
      %5410 = vmatprep.subr.bf16.mxu0 %v4524
      %5411 = vmatpush1.bf16.msra.mxu0 %v4523
      %5412 = vmatprep.subr.bf16.mxu0 %v4528
      %5413 = vmatpush1.bf16.msra.mxu0 %v4527
      %5414 = vmatprep.subr.bf16.mxu0 %v4532
      %5415 = vmatpush1.bf16.msra.mxu0 %v4531
      %5416 = vmatprep.subr.bf16.mxu0 %v4536
      %5417 = vmatpush1.bf16.msra.mxu0 %v4535
      %5418 = vmatprep.mubr.bf16.mxu0 %v1051
      %5419 = vmatmul.mubr.bf16.gmra.mrb[0].mxu0 %v1050
      %v5420 = vpop.f32.mrb[0].mxu0
      %v5421 = vadd.f32 %v5328, %v5420
      %v5422 = vpop.f32.mrb[0].mxu0
      %v5423 = vadd.f32 %v5330, %v5422
      %v5424 = vpop.f32.mrb[0].mxu0
      %v5425 = vadd.f32 %v5332, %v5424
      %v5426 = vpop.f32.mrb[0].mxu0
      %v5427 = vadd.f32 %v5334, %v5426
      %5428 = vmatprep.mubr.bf16.mxu0 %v1059
      %5429 = vmatmul.mubr.bf16.gmra.mrb[0].mxu0 %v1058
      %v5430 = vpop.f32.mrb[0].mxu0
      %v5431 = vadd.f32 %v5338, %v5430
      %v5432 = vpop.f32.mrb[0].mxu0
      %v5433 = vadd.f32 %v5340, %v5432
      %v5434 = vpop.f32.mrb[0].mxu0
      %v5435 = vadd.f32 %v5342, %v5434
      %v5436 = vpop.f32.mrb[0].mxu0
      %v5437 = vadd.f32 %v5344, %v5436
      %5438 = vmatprep.mubr.bf16.mxu0 %v1067
      %5439 = vmatmul.mubr.bf16.gmra.mrb[0].mxu0 %v1066
      %v5440 = vpop.f32.mrb[0].mxu0
      %v5441 = vadd.f32 %v5348, %v5440
      %v5442 = vpop.f32.mrb[0].mxu0
      %v5443 = vadd.f32 %v5350, %v5442
      %v5444 = vpop.f32.mrb[0].mxu0
      %v5445 = vadd.f32 %v5352, %v5444
      %v5446 = vpop.f32.mrb[0].mxu0
      %v5447 = vadd.f32 %v5354, %v5446
      %5448 = vmatprep.mubr.bf16.mxu0 %v1075
      %5449 = vmatmul.mubr.bf16.gmra.mrb[0].mxu0 %v1074
      %v5450 = vpop.f32.mrb[0].mxu0
      %v5451 = vadd.f32 %v5358, %v5450
      %v5452 = vpop.f32.mrb[0].mxu0
      %v5453 = vadd.f32 %v5360, %v5452
      %v5454 = vpop.f32.mrb[0].mxu0
      %v5455 = vadd.f32 %v5362, %v5454
      %v5456 = vpop.f32.mrb[0].mxu0
      %v5457 = vadd.f32 %v5364, %v5456
      %5458 = vmatprep.mubr.bf16.mxu0 %v1083
      %5459 = vmatmul.mubr.bf16.gmra.mrb[0].mxu0 %v1082
      %v5460 = vpop.f32.mrb[0].mxu0
      %v5461 = vadd.f32 %v5368, %v5460
      %v5462 = vpop.f32.mrb[0].mxu0
      %v5463 = vadd.f32 %v5370, %v5462
      %v5464 = vpop.f32.mrb[0].mxu0
      %v5465 = vadd.f32 %v5372, %v5464
      %v5466 = vpop.f32.mrb[0].mxu0
      %v5467 = vadd.f32 %v5374, %v5466
      %5468 = vmatprep.mubr.bf16.mxu0 %v1091
      %5469 = vmatmul.mubr.bf16.gmra.mrb[0].mxu0 %v1090
      %v5470 = vpop.f32.mrb[0].mxu0
      %v5471 = vadd.f32 %v5378, %v5470
      %v5472 = vpop.f32.mrb[0].mxu0
      %v5473 = vadd.f32 %v5380, %v5472
      %v5474 = vpop.f32.mrb[0].mxu0
      %v5475 = vadd.f32 %v5382, %v5474
      %v5476 = vpop.f32.mrb[0].mxu0
      %v5477 = vadd.f32 %v5384, %v5476
      %5478 = vdwg.mxu0
      %5479 = vmatprep.subr.bf16.mxu0 %v4540
      %5480 = vmatpush1.bf16.msra.mxu0 %v4539
      %5481 = vmatprep.subr.bf16.mxu0 %v4544
      %5482 = vmatpush1.bf16.msra.mxu0 %v4543
      %5483 = vmatprep.subr.bf16.mxu0 %v4548
      %5484 = vmatpush1.bf16.msra.mxu0 %v4547
      %5485 = vmatprep.subr.bf16.mxu0 %v4552
      %5486 = vmatpush1.bf16.msra.mxu0 %v4551
      %5487 = vmatprep.subr.bf16.mxu0 %v4556
      %5488 = vmatpush1.bf16.msra.mxu0 %v4555
      %5489 = vmatprep.subr.bf16.mxu0 %v4560
      %5490 = vmatpush1.bf16.msra.mxu0 %v4559
      %5491 = vmatprep.subr.bf16.mxu0 %v4564
      %5492 = vmatpush1.bf16.msra.mxu0 %v4563
      %5493 = vmatprep.subr.bf16.mxu0 %v4568
      %5494 = vmatpush1.bf16.msra.mxu0 %v4567
      %5495 = vmatprep.subr.bf16.mxu0 %v4572
      %5496 = vmatpush1.bf16.msra.mxu0 %v4571
      %5497 = vmatprep.subr.bf16.mxu0 %v4576
      %5498 = vmatpush1.bf16.msra.mxu0 %v4575
      %5499 = vmatprep.subr.bf16.mxu0 %v4580
      %5500 = vmatpush1.bf16.msra.mxu0 %v4579
      %5501 = vmatprep.subr.bf16.mxu0 %v4584
      %5502 = vmatpush1.bf16.msra.mxu0 %v4583
      %5503 = vmatprep.subr.bf16.mxu0 %v4588
      %5504 = vmatpush1.bf16.msra.mxu0 %v4587
      %5505 = vmatprep.subr.bf16.mxu0 %v4592
      %5506 = vmatpush1.bf16.msra.mxu0 %v4591
      %5507 = vmatprep.subr.bf16.mxu0 %v4596
      %5508 = vmatpush1.bf16.msra.mxu0 %v4595
      %5509 = vmatprep.subr.bf16.mxu0 %v4600
      %5510 = vmatpush1.bf16.msra.mxu0 %v4599
      %5511 = vmatprep.mubr.bf16.mxu0 %v1053
      %5512 = vmatmul.mubr.bf16.gmra.mrb[0].mxu0 %v1052
      %v5513 = vpop.f32.mrb[0].mxu0
      %v5514 = vadd.f32 %v5421, %v5513
      %v5515 = vpop.f32.mrb[0].mxu0
      %v5516 = vadd.f32 %v5423, %v5515
      %v5517 = vpop.f32.mrb[0].mxu0
      %v5518 = vadd.f32 %v5425, %v5517
      %v5519 = vpop.f32.mrb[0].mxu0
      %v5520 = vadd.f32 %v5427, %v5519
      %5521 = vmatprep.mubr.bf16.mxu0 %v1061
      %5522 = vmatmul.mubr.bf16.gmra.mrb[0].mxu0 %v1060
      %v5523 = vpop.f32.mrb[0].mxu0
      %v5524 = vadd.f32 %v5431, %v5523
      %v5525 = vpop.f32.mrb[0].mxu0
      %v5526 = vadd.f32 %v5433, %v5525
      %v5527 = vpop.f32.mrb[0].mxu0
      %v5528 = vadd.f32 %v5435, %v5527
      %v5529 = vpop.f32.mrb[0].mxu0
      %v5530 = vadd.f32 %v5437, %v5529
      %5531 = vmatprep.mubr.bf16.mxu0 %v1069
      %5532 = vmatmul.mubr.bf16.gmra.mrb[0].mxu0 %v1068
      %v5533 = vpop.f32.mrb[0].mxu0
      %v5534 = vadd.f32 %v5441, %v5533
      %v5535 = vpop.f32.mrb[0].mxu0
      %v5536 = vadd.f32 %v5443, %v5535
      %v5537 = vpop.f32.mrb[0].mxu0
      %v5538 = vadd.f32 %v5445, %v5537
      %v5539 = vpop.f32.mrb[0].mxu0
      %v5540 = vadd.f32 %v5447, %v5539
      %5541 = vmatprep.mubr.bf16.mxu0 %v1077
      %5542 = vmatmul.mubr.bf16.gmra.mrb[0].mxu0 %v1076
      %v5543 = vpop.f32.mrb[0].mxu0
      %v5544 = vadd.f32 %v5451, %v5543
      %v5545 = vpop.f32.mrb[0].mxu0
      %v5546 = vadd.f32 %v5453, %v5545
      %v5547 = vpop.f32.mrb[0].mxu0
      %v5548 = vadd.f32 %v5455, %v5547
      %v5549 = vpop.f32.mrb[0].mxu0
      %v5550 = vadd.f32 %v5457, %v5549
      %5551 = vmatprep.mubr.bf16.mxu0 %v1085
      %5552 = vmatmul.mubr.bf16.gmra.mrb[0].mxu0 %v1084
      %v5553 = vpop.f32.mrb[0].mxu0
      %v5554 = vadd.f32 %v5461, %v5553
      %v5555 = vpop.f32.mrb[0].mxu0
      %v5556 = vadd.f32 %v5463, %v5555
      %v5557 = vpop.f32.mrb[0].mxu0
      %v5558 = vadd.f32 %v5465, %v5557
      %v5559 = vpop.f32.mrb[0].mxu0
      %v5560 = vadd.f32 %v5467, %v5559
      %5561 = vmatprep.mubr.bf16.mxu0 %v1093
      %5562 = vmatmul.mubr.bf16.gmra.mrb[0].mxu0 %v1092
      %v5563 = vpop.f32.mrb[0].mxu0
      %v5564 = vadd.f32 %v5471, %v5563
      %v5565 = vpop.f32.mrb[0].mxu0
      %v5566 = vadd.f32 %v5473, %v5565
      %v5567 = vpop.f32.mrb[0].mxu0
      %v5568 = vadd.f32 %v5475, %v5567
      %v5569 = vpop.f32.mrb[0].mxu0
      %v5570 = vadd.f32 %v5477, %v5569
      %5571 = vdwg.mxu0
      %5572 = vmatprep.subr.bf16.mxu0 %v4604
      %5573 = vmatpush1.bf16.msra.mxu0 %v4603
      %5574 = vmatprep.subr.bf16.mxu0 %v4608
      %5575 = vmatpush1.bf16.msra.mxu0 %v4607
      %5576 = vmatprep.subr.bf16.mxu0 %v4612
      %5577 = vmatpush1.bf16.msra.mxu0 %v4611
      %5578 = vmatprep.subr.bf16.mxu0 %v4616
      %5579 = vmatpush1.bf16.msra.mxu0 %v4615
      %5580 = vmatprep.subr.bf16.mxu0 %v4620
      %5581 = vmatpush1.bf16.msra.mxu0 %v4619
      %5582 = vmatprep.subr.bf16.mxu0 %v4624
      %5583 = vmatpush1.bf16.msra.mxu0 %v4623
      %5584 = vmatprep.subr.bf16.mxu0 %v4628
      %5585 = vmatpush1.bf16.msra.mxu0 %v4627
      %5586 = vmatprep.subr.bf16.mxu0 %v4632
      %5587 = vmatpush1.bf16.msra.mxu0 %v4631
      %5588 = vmatprep.subr.bf16.mxu0 %v4636
      %5589 = vmatpush1.bf16.msra.mxu0 %v4635
      %5590 = vmatprep.subr.bf16.mxu0 %v4640
      %5591 = vmatpush1.bf16.msra.mxu0 %v4639
      %5592 = vmatprep.subr.bf16.mxu0 %v4644
      %5593 = vmatpush1.bf16.msra.mxu0 %v4643
      %5594 = vmatprep.subr.bf16.mxu0 %v4648
      %5595 = vmatpush1.bf16.msra.mxu0 %v4647
      %5596 = vmatprep.subr.bf16.mxu0 %v4652
      %5597 = vmatpush1.bf16.msra.mxu0 %v4651
      %5598 = vmatprep.subr.bf16.mxu0 %v4656
      %5599 = vmatpush1.bf16.msra.mxu0 %v4655
      %5600 = vmatprep.subr.bf16.mxu0 %v4660
      %5601 = vmatpush1.bf16.msra.mxu0 %v4659
      %5602 = vmatprep.subr.bf16.mxu0 %v4664
      %5603 = vmatpush1.bf16.msra.mxu0 %v4663
      %5604 = vmatprep.mubr.bf16.mxu0 %v1055
      %5605 = vmatmul.mubr.bf16.gmra.mrb[0].mxu0 %v1054
      %v5606 = vpop.f32.mrb[0].mxu0
      %v5607 = vadd.f32 %v5514, %v5606
      %v5608 = vpop.f32.mrb[0].mxu0
      %v5609 = vadd.f32 %v5516, %v5608
      %v5610 = vpop.f32.mrb[0].mxu0
      %v5611 = vadd.f32 %v5518, %v5610
      %v5612 = vpop.f32.mrb[0].mxu0
      %v5613 = vadd.f32 %v5520, %v5612
      %5614 = vmatprep.mubr.bf16.mxu0 %v1063
      %5615 = vmatmul.mubr.bf16.gmra.mrb[0].mxu0 %v1062
      %v5616 = vpop.f32.mrb[0].mxu0
      %v5617 = vadd.f32 %v5524, %v5616
      %v5618 = vpop.f32.mrb[0].mxu0
      %v5619 = vadd.f32 %v5526, %v5618
      %v5620 = vpop.f32.mrb[0].mxu0
      %v5621 = vadd.f32 %v5528, %v5620
      %v5622 = vpop.f32.mrb[0].mxu0
      %v5623 = vadd.f32 %v5530, %v5622
      %5624 = vmatprep.mubr.bf16.mxu0 %v1071
      %5625 = vmatmul.mubr.bf16.gmra.mrb[0].mxu0 %v1070
      %v5626 = vpop.f32.mrb[0].mxu0
      %v5627 = vadd.f32 %v5534, %v5626
      %v5628 = vpop.f32.mrb[0].mxu0
      %v5629 = vadd.f32 %v5536, %v5628
      %v5630 = vpop.f32.mrb[0].mxu0
      %v5631 = vadd.f32 %v5538, %v5630
      %v5632 = vpop.f32.mrb[0].mxu0
      %v5633 = vadd.f32 %v5540, %v5632
      %5634 = vmatprep.mubr.bf16.mxu0 %v1079
      %5635 = vmatmul.mubr.bf16.gmra.mrb[0].mxu0 %v1078
      %v5636 = vpop.f32.mrb[0].mxu0
      %v5637 = vadd.f32 %v5544, %v5636
      %v5638 = vpop.f32.mrb[0].mxu0
      %v5639 = vadd.f32 %v5546, %v5638
      %v5640 = vpop.f32.mrb[0].mxu0
      %v5641 = vadd.f32 %v5548, %v5640
      %v5642 = vpop.f32.mrb[0].mxu0
      %v5643 = vadd.f32 %v5550, %v5642
      %5644 = vmatprep.mubr.bf16.mxu0 %v1087
      %5645 = vmatmul.mubr.bf16.gmra.mrb[0].mxu0 %v1086
      %v5646 = vpop.f32.mrb[0].mxu0
      %v5647 = vadd.f32 %v5554, %v5646
      %v5648 = vpop.f32.mrb[0].mxu0
      %v5649 = vadd.f32 %v5556, %v5648
      %v5650 = vpop.f32.mrb[0].mxu0
      %v5651 = vadd.f32 %v5558, %v5650
      %v5652 = vpop.f32.mrb[0].mxu0
      %v5653 = vadd.f32 %v5560, %v5652
      %5654 = vmatprep.mubr.bf16.mxu0 %v1095
      %5655 = vmatmul.mubr.bf16.gmra.mrb[0].mxu0 %v1094
      %v5656 = vpop.f32.mrb[0].mxu0
      %v5657 = vadd.f32 %v5564, %v5656
      %v5658 = vpop.f32.mrb[0].mxu0
      %v5659 = vadd.f32 %v5566, %v5658
      %v5660 = vpop.f32.mrb[0].mxu0
      %v5661 = vadd.f32 %v5568, %v5660
      %v5662 = vpop.f32.mrb[0].mxu0
      %v5663 = vadd.f32 %v5570, %v5662
      %5664 = vdwg.mxu0
      %v5665 = vld [vmem:[%s315] sm:$0xee]
      %v5666 = vld [vmem:[%s315 + $0x8] sm:$0xee]
      %v5667 = vld [vmem:[%s315 + $0x10] sm:$0xee]
      %v5668 = vld [vmem:[%s315 + $0x18] sm:$0xee]
      %s5669 = scalar_lea.vmem %s2, 4096
      %v5670 = vld [vmem:[%s5669] sm:$0xff]
      %v5671 = vld [vmem:[%s5669 + $0x8] sm:$0xff]
      %v5672 = vld [vmem:[%s5669 + $0x10] sm:$0xff]
      %v5673 = vld [vmem:[%s5669 + $0x18] sm:$0xff]
      %v5674 = vld [vmem:[%s5669 + $0x20] sm:$0xff]
      %v5675 = vld [vmem:[%s5669 + $0x28] sm:$0xff]
      %v5676 = vld [vmem:[%s5669 + $0x30] sm:$0xff]
      %v5677 = vld [vmem:[%s5669 + $0x38] sm:$0xff]
      %v5678 = vld [vmem:[%s5669 + $0x40] sm:$0xff]
      %v5679 = vld [vmem:[%s5669 + $0x48] sm:$0xff]
      %v5680 = vld [vmem:[%s5669 + $0x50] sm:$0xff]
      %v5681 = vld [vmem:[%s5669 + $0x58] sm:$0xff]
      %v5682 = vld [vmem:[%s5669 + $0x60] sm:$0xff]
      %v5683 = vld [vmem:[%s5669 + $0x68] sm:$0xff]
      %v5684 = vld [vmem:[%s5669 + $0x70] sm:$0xff]
      %v5685 = vld [vmem:[%s5669 + $0x78] sm:$0xff]
      %v5686 = vld [vmem:[%s5669 + $0x80] sm:$0xff]
      %v5687 = vld [vmem:[%s5669 + $0x88] sm:$0xff]
      %v5688 = vld [vmem:[%s5669 + $0x90] sm:$0xff]
      %v5689 = vld [vmem:[%s5669 + $0x98] sm:$0xff]
      %v5690 = vld [vmem:[%s5669 + $0xa0] sm:$0xff]
      %v5691 = vld [vmem:[%s5669 + $0xa8] sm:$0xff]
      %v5692 = vld [vmem:[%s5669 + $0xb0] sm:$0xff]
      %v5693 = vld [vmem:[%s5669 + $0xb8] sm:$0xff]
      %v5694 = vld [vmem:[%s5669 + $0xc0] sm:$0xff]
      %v5695 = vld [vmem:[%s5669 + $0xc8] sm:$0xff]
      %v5696 = vld [vmem:[%s5669 + $0xd0] sm:$0xff]
      %v5697 = vld [vmem:[%s5669 + $0xd8] sm:$0xff]
      %v5698 = vld [vmem:[%s5669 + $0xe0] sm:$0xff]
      %v5699 = vld [vmem:[%s5669 + $0xe8] sm:$0xff]
      %v5700 = vld [vmem:[%s5669 + $0xf0] sm:$0xff]
      %v5701 = vld [vmem:[%s5669 + $0xf8] sm:$0xff]
      %v5702 = vld [vmem:[%s5669 + $0x100] sm:$0xff]
      %v5703 = vld [vmem:[%s5669 + $0x108] sm:$0xff]
      %v5704 = vld [vmem:[%s5669 + $0x110] sm:$0xff]
      %v5705 = vld [vmem:[%s5669 + $0x118] sm:$0xff]
      %v5706 = vld [vmem:[%s5669 + $0x120] sm:$0xff]
      %v5707 = vld [vmem:[%s5669 + $0x128] sm:$0xff]
      %v5708 = vld [vmem:[%s5669 + $0x130] sm:$0xff]
      %v5709 = vld [vmem:[%s5669 + $0x138] sm:$0xff]
      %v5710 = vld [vmem:[%s5669 + $0x140] sm:$0xff]
      %v5711 = vld [vmem:[%s5669 + $0x148] sm:$0xff]
      %v5712 = vld [vmem:[%s5669 + $0x150] sm:$0xff]
      %v5713 = vld [vmem:[%s5669 + $0x158] sm:$0xff]
      %v5714 = vld [vmem:[%s5669 + $0x160] sm:$0xff]
      %v5715 = vld [vmem:[%s5669 + $0x168] sm:$0xff]
      %v5716 = vld [vmem:[%s5669 + $0x170] sm:$0xff]
      %v5717 = vld [vmem:[%s5669 + $0x178] sm:$0xff]
      %v5718 = vld [vmem:[%s5669 + $0x180] sm:$0xff]
      %v5719 = vld [vmem:[%s5669 + $0x188] sm:$0xff]
      %v5720 = vld [vmem:[%s5669 + $0x190] sm:$0xff]
      %v5721 = vld [vmem:[%s5669 + $0x198] sm:$0xff]
      %v5722 = vld [vmem:[%s5669 + $0x1a0] sm:$0xff]
      %v5723 = vld [vmem:[%s5669 + $0x1a8] sm:$0xff]
      %v5724 = vld [vmem:[%s5669 + $0x1b0] sm:$0xff]
      %v5725 = vld [vmem:[%s5669 + $0x1b8] sm:$0xff]
      %v5726 = vld [vmem:[%s5669 + $0x1c0] sm:$0xff]
      %v5727 = vld [vmem:[%s5669 + $0x1c8] sm:$0xff]
      %v5728 = vld [vmem:[%s5669 + $0x1d0] sm:$0xff]
      %v5729 = vld [vmem:[%s5669 + $0x1d8] sm:$0xff]
      %v5730 = vld [vmem:[%s5669 + $0x1e0] sm:$0xff]
      %v5731 = vld [vmem:[%s5669 + $0x1e8] sm:$0xff]
      %v5732 = vld [vmem:[%s5669 + $0x1f0] sm:$0xff]
      %v5733 = vld [vmem:[%s5669 + $0x1f8] sm:$0xff]
      %v5734 = vld [vmem:[%s5669 + $0x200] sm:$0xff]
      %v5735 = vld [vmem:[%s5669 + $0x208] sm:$0xff]
      %v5736 = vld [vmem:[%s5669 + $0x210] sm:$0xff]
      %v5737 = vld [vmem:[%s5669 + $0x218] sm:$0xff]
      %v5738 = vld [vmem:[%s5669 + $0x220] sm:$0xff]
      %v5739 = vld [vmem:[%s5669 + $0x228] sm:$0xff]
      %v5740 = vld [vmem:[%s5669 + $0x230] sm:$0xff]
      %v5741 = vld [vmem:[%s5669 + $0x238] sm:$0xff]
      %v5742 = vld [vmem:[%s5669 + $0x240] sm:$0xff]
      %v5743 = vld [vmem:[%s5669 + $0x248] sm:$0xff]
      %v5744 = vld [vmem:[%s5669 + $0x250] sm:$0xff]
      %v5745 = vld [vmem:[%s5669 + $0x258] sm:$0xff]
      %v5746 = vld [vmem:[%s5669 + $0x260] sm:$0xff]
      %v5747 = vld [vmem:[%s5669 + $0x268] sm:$0xff]
      %v5748 = vld [vmem:[%s5669 + $0x270] sm:$0xff]
      %v5749 = vld [vmem:[%s5669 + $0x278] sm:$0xff]
      %v5750 = vld [vmem:[%s5669 + $0x280] sm:$0xff]
      %v5751 = vld [vmem:[%s5669 + $0x288] sm:$0xff]
      %v5752 = vld [vmem:[%s5669 + $0x290] sm:$0xff]
      %v5753 = vld [vmem:[%s5669 + $0x298] sm:$0xff]
      %v5754 = vld [vmem:[%s5669 + $0x2a0] sm:$0xff]
      %v5755 = vld [vmem:[%s5669 + $0x2a8] sm:$0xff]
      %v5756 = vld [vmem:[%s5669 + $0x2b0] sm:$0xff]
      %v5757 = vld [vmem:[%s5669 + $0x2b8] sm:$0xff]
      %v5758 = vld [vmem:[%s5669 + $0x2c0] sm:$0xff]
      %v5759 = vld [vmem:[%s5669 + $0x2c8] sm:$0xff]
      %v5760 = vld [vmem:[%s5669 + $0x2d0] sm:$0xff]
      %v5761 = vld [vmem:[%s5669 + $0x2d8] sm:$0xff]
      %v5762 = vld [vmem:[%s5669 + $0x2e0] sm:$0xff]
      %v5763 = vld [vmem:[%s5669 + $0x2e8] sm:$0xff]
      %v5764 = vld [vmem:[%s5669 + $0x2f0] sm:$0xff]
      %v5765 = vld [vmem:[%s5669 + $0x2f8] sm:$0xff]
      %v5766 = vld [vmem:[%s5669 + $0x300] sm:$0xff]
      %v5767 = vld [vmem:[%s5669 + $0x308] sm:$0xff]
      %v5768 = vld [vmem:[%s5669 + $0x310] sm:$0xff]
      %v5769 = vld [vmem:[%s5669 + $0x318] sm:$0xff]
      %v5770 = vld [vmem:[%s5669 + $0x320] sm:$0xff]
      %v5771 = vld [vmem:[%s5669 + $0x328] sm:$0xff]
      %v5772 = vld [vmem:[%s5669 + $0x330] sm:$0xff]
      %v5773 = vld [vmem:[%s5669 + $0x338] sm:$0xff]
      %v5774 = vld [vmem:[%s5669 + $0x340] sm:$0xff]
      %v5775 = vld [vmem:[%s5669 + $0x348] sm:$0xff]
      %v5776 = vld [vmem:[%s5669 + $0x350] sm:$0xff]
      %v5777 = vld [vmem:[%s5669 + $0x358] sm:$0xff]
      %v5778 = vld [vmem:[%s5669 + $0x360] sm:$0xff]
      %v5779 = vld [vmem:[%s5669 + $0x368] sm:$0xff]
      %v5780 = vld [vmem:[%s5669 + $0x370] sm:$0xff]
      %v5781 = vld [vmem:[%s5669 + $0x378] sm:$0xff]
      %v5782 = vld [vmem:[%s5669 + $0x380] sm:$0xff]
      %v5783 = vld [vmem:[%s5669 + $0x388] sm:$0xff]
      %v5784 = vld [vmem:[%s5669 + $0x390] sm:$0xff]
      %v5785 = vld [vmem:[%s5669 + $0x398] sm:$0xff]
      %v5786 = vld [vmem:[%s5669 + $0x3a0] sm:$0xff]
      %v5787 = vld [vmem:[%s5669 + $0x3a8] sm:$0xff]
      %v5788 = vld [vmem:[%s5669 + $0x3b0] sm:$0xff]
      %v5789 = vld [vmem:[%s5669 + $0x3b8] sm:$0xff]
      %v5790 = vld [vmem:[%s5669 + $0x3c0] sm:$0xff]
      %v5791 = vld [vmem:[%s5669 + $0x3c8] sm:$0xff]
      %v5792 = vld [vmem:[%s5669 + $0x3d0] sm:$0xff]
      %v5793 = vld [vmem:[%s5669 + $0x3d8] sm:$0xff]
      %v5794 = vld [vmem:[%s5669 + $0x3e0] sm:$0xff]
      %v5795 = vld [vmem:[%s5669 + $0x3e8] sm:$0xff]
      %v5796 = vld [vmem:[%s5669 + $0x3f0] sm:$0xff]
      %v5797 = vld [vmem:[%s5669 + $0x3f8] sm:$0xff]
      %v5798 = vld [vmem:[%s5669 + $0x400] sm:$0xff]
      %v5799 = vld [vmem:[%s5669 + $0x408] sm:$0xff]
      %v5800 = vld [vmem:[%s5669 + $0x410] sm:$0xff]
      %v5801 = vld [vmem:[%s5669 + $0x418] sm:$0xff]
      %v5802 = vld [vmem:[%s5669 + $0x420] sm:$0xff]
      %v5803 = vld [vmem:[%s5669 + $0x428] sm:$0xff]
      %v5804 = vld [vmem:[%s5669 + $0x430] sm:$0xff]
      %v5805 = vld [vmem:[%s5669 + $0x438] sm:$0xff]
      %v5806 = vld [vmem:[%s5669 + $0x440] sm:$0xff]
      %v5807 = vld [vmem:[%s5669 + $0x448] sm:$0xff]
      %v5808 = vld [vmem:[%s5669 + $0x450] sm:$0xff]
      %v5809 = vld [vmem:[%s5669 + $0x458] sm:$0xff]
      %v5810 = vld [vmem:[%s5669 + $0x460] sm:$0xff]
      %v5811 = vld [vmem:[%s5669 + $0x468] sm:$0xff]
      %v5812 = vld [vmem:[%s5669 + $0x470] sm:$0xff]
      %v5813 = vld [vmem:[%s5669 + $0x478] sm:$0xff]
      %v5814 = vld [vmem:[%s5669 + $0x480] sm:$0xff]
      %v5815 = vld [vmem:[%s5669 + $0x488] sm:$0xff]
      %v5816 = vld [vmem:[%s5669 + $0x490] sm:$0xff]
      %v5817 = vld [vmem:[%s5669 + $0x498] sm:$0xff]
      %v5818 = vld [vmem:[%s5669 + $0x4a0] sm:$0xff]
      %v5819 = vld [vmem:[%s5669 + $0x4a8] sm:$0xff]
      %v5820 = vld [vmem:[%s5669 + $0x4b0] sm:$0xff]
      %v5821 = vld [vmem:[%s5669 + $0x4b8] sm:$0xff]
      %v5822 = vld [vmem:[%s5669 + $0x4c0] sm:$0xff]
      %v5823 = vld [vmem:[%s5669 + $0x4c8] sm:$0xff]
      %v5824 = vld [vmem:[%s5669 + $0x4d0] sm:$0xff]
      %v5825 = vld [vmem:[%s5669 + $0x4d8] sm:$0xff]
      %v5826 = vld [vmem:[%s5669 + $0x4e0] sm:$0xff]
      %v5827 = vld [vmem:[%s5669 + $0x4e8] sm:$0xff]
      %v5828 = vld [vmem:[%s5669 + $0x4f0] sm:$0xff]
      %v5829 = vld [vmem:[%s5669 + $0x4f8] sm:$0xff]
      %v5830 = vld [vmem:[%s5669 + $0x500] sm:$0xff]
      %v5831 = vld [vmem:[%s5669 + $0x508] sm:$0xff]
      %v5832 = vld [vmem:[%s5669 + $0x510] sm:$0xff]
      %v5833 = vld [vmem:[%s5669 + $0x518] sm:$0xff]
      %v5834 = vld [vmem:[%s5669 + $0x520] sm:$0xff]
      %v5835 = vld [vmem:[%s5669 + $0x528] sm:$0xff]
      %v5836 = vld [vmem:[%s5669 + $0x530] sm:$0xff]
      %v5837 = vld [vmem:[%s5669 + $0x538] sm:$0xff]
      %v5838 = vld [vmem:[%s5669 + $0x540] sm:$0xff]
      %v5839 = vld [vmem:[%s5669 + $0x548] sm:$0xff]
      %v5840 = vld [vmem:[%s5669 + $0x550] sm:$0xff]
      %v5841 = vld [vmem:[%s5669 + $0x558] sm:$0xff]
      %v5842 = vld [vmem:[%s5669 + $0x560] sm:$0xff]
      %v5843 = vld [vmem:[%s5669 + $0x568] sm:$0xff]
      %v5844 = vld [vmem:[%s5669 + $0x570] sm:$0xff]
      %v5845 = vld [vmem:[%s5669 + $0x578] sm:$0xff]
      %v5846 = vld [vmem:[%s5669 + $0x580] sm:$0xff]
      %v5847 = vld [vmem:[%s5669 + $0x588] sm:$0xff]
      %v5848 = vld [vmem:[%s5669 + $0x590] sm:$0xff]
      %v5849 = vld [vmem:[%s5669 + $0x598] sm:$0xff]
      %v5850 = vld [vmem:[%s5669 + $0x5a0] sm:$0xff]
      %v5851 = vld [vmem:[%s5669 + $0x5a8] sm:$0xff]
      %v5852 = vld [vmem:[%s5669 + $0x5b0] sm:$0xff]
      %v5853 = vld [vmem:[%s5669 + $0x5b8] sm:$0xff]
      %v5854 = vld [vmem:[%s5669 + $0x5c0] sm:$0xff]
      %v5855 = vld [vmem:[%s5669 + $0x5c8] sm:$0xff]
      %v5856 = vld [vmem:[%s5669 + $0x5d0] sm:$0xff]
      %v5857 = vld [vmem:[%s5669 + $0x5d8] sm:$0xff]
      %v5858 = vld [vmem:[%s5669 + $0x5e0] sm:$0xff]
      %v5859 = vld [vmem:[%s5669 + $0x5e8] sm:$0xff]
      %v5860 = vld [vmem:[%s5669 + $0x5f0] sm:$0xff]
      %v5861 = vld [vmem:[%s5669 + $0x5f8] sm:$0xff]
      %v5862 = vld [vmem:[%s5669 + $0x600] sm:$0xff]
      %v5863 = vld [vmem:[%s5669 + $0x608] sm:$0xff]
      %v5864 = vld [vmem:[%s5669 + $0x610] sm:$0xff]
      %v5865 = vld [vmem:[%s5669 + $0x618] sm:$0xff]
      %v5866 = vld [vmem:[%s5669 + $0x620] sm:$0xff]
      %v5867 = vld [vmem:[%s5669 + $0x628] sm:$0xff]
      %v5868 = vld [vmem:[%s5669 + $0x630] sm:$0xff]
      %v5869 = vld [vmem:[%s5669 + $0x638] sm:$0xff]
      %v5870 = vld [vmem:[%s5669 + $0x640] sm:$0xff]
      %v5871 = vld [vmem:[%s5669 + $0x648] sm:$0xff]
      %v5872 = vld [vmem:[%s5669 + $0x650] sm:$0xff]
      %v5873 = vld [vmem:[%s5669 + $0x658] sm:$0xff]
      %v5874 = vld [vmem:[%s5669 + $0x660] sm:$0xff]
      %v5875 = vld [vmem:[%s5669 + $0x668] sm:$0xff]
      %v5876 = vld [vmem:[%s5669 + $0x670] sm:$0xff]
      %v5877 = vld [vmem:[%s5669 + $0x678] sm:$0xff]
      %v5878 = vld [vmem:[%s5669 + $0x680] sm:$0xff]
      %v5879 = vld [vmem:[%s5669 + $0x688] sm:$0xff]
      %v5880 = vld [vmem:[%s5669 + $0x690] sm:$0xff]
      %v5881 = vld [vmem:[%s5669 + $0x698] sm:$0xff]
      %v5882 = vld [vmem:[%s5669 + $0x6a0] sm:$0xff]
      %v5883 = vld [vmem:[%s5669 + $0x6a8] sm:$0xff]
      %v5884 = vld [vmem:[%s5669 + $0x6b0] sm:$0xff]
      %v5885 = vld [vmem:[%s5669 + $0x6b8] sm:$0xff]
      %v5886 = vld [vmem:[%s5669 + $0x6c0] sm:$0xff]
      %v5887 = vld [vmem:[%s5669 + $0x6c8] sm:$0xff]
      %v5888 = vld [vmem:[%s5669 + $0x6d0] sm:$0xff]
      %v5889 = vld [vmem:[%s5669 + $0x6d8] sm:$0xff]
      %v5890 = vld [vmem:[%s5669 + $0x6e0] sm:$0xff]
      %v5891 = vld [vmem:[%s5669 + $0x6e8] sm:$0xff]
      %v5892 = vld [vmem:[%s5669 + $0x6f0] sm:$0xff]
      %v5893 = vld [vmem:[%s5669 + $0x6f8] sm:$0xff]
      %v5894 = vld [vmem:[%s5669 + $0x700] sm:$0xff]
      %v5895 = vld [vmem:[%s5669 + $0x708] sm:$0xff]
      %v5896 = vld [vmem:[%s5669 + $0x710] sm:$0xff]
      %v5897 = vld [vmem:[%s5669 + $0x718] sm:$0xff]
      %v5898 = vld [vmem:[%s5669 + $0x720] sm:$0xff]
      %v5899 = vld [vmem:[%s5669 + $0x728] sm:$0xff]
      %v5900 = vld [vmem:[%s5669 + $0x730] sm:$0xff]
      %v5901 = vld [vmem:[%s5669 + $0x738] sm:$0xff]
      %v5902 = vld [vmem:[%s5669 + $0x740] sm:$0xff]
      %v5903 = vld [vmem:[%s5669 + $0x748] sm:$0xff]
      %v5904 = vld [vmem:[%s5669 + $0x750] sm:$0xff]
      %v5905 = vld [vmem:[%s5669 + $0x758] sm:$0xff]
      %v5906 = vld [vmem:[%s5669 + $0x760] sm:$0xff]
      %v5907 = vld [vmem:[%s5669 + $0x768] sm:$0xff]
      %v5908 = vld [vmem:[%s5669 + $0x770] sm:$0xff]
      %v5909 = vld [vmem:[%s5669 + $0x778] sm:$0xff]
      %v5910 = vld [vmem:[%s5669 + $0x780] sm:$0xff]
      %v5911 = vld [vmem:[%s5669 + $0x788] sm:$0xff]
      %v5912 = vld [vmem:[%s5669 + $0x790] sm:$0xff]
      %v5913 = vld [vmem:[%s5669 + $0x798] sm:$0xff]
      %v5914 = vld [vmem:[%s5669 + $0x7a0] sm:$0xff]
      %v5915 = vld [vmem:[%s5669 + $0x7a8] sm:$0xff]
      %v5916 = vld [vmem:[%s5669 + $0x7b0] sm:$0xff]
      %v5917 = vld [vmem:[%s5669 + $0x7b8] sm:$0xff]
      %v5918 = vld [vmem:[%s5669 + $0x7c0] sm:$0xff]
      %v5919 = vld [vmem:[%s5669 + $0x7c8] sm:$0xff]
      %v5920 = vld [vmem:[%s5669 + $0x7d0] sm:$0xff]
      %v5921 = vld [vmem:[%s5669 + $0x7d8] sm:$0xff]
      %v5922 = vld [vmem:[%s5669 + $0x7e0] sm:$0xff]
      %v5923 = vld [vmem:[%s5669 + $0x7e8] sm:$0xff]
      %v5924 = vld [vmem:[%s5669 + $0x7f0] sm:$0xff]
      %v5925 = vld [vmem:[%s5669 + $0x7f8] sm:$0xff]
      %v5930 = vunpack.c.l.b16 %v5665
      %v5931 = vunpack.c.h.b16 %v5665
      %v5932 = vunpack.c.l.b16 %v5666
      %v5933 = vunpack.c.h.b16 %v5666
      %v5934 = vunpack.c.l.b16 %v5667
      %v5935 = vunpack.c.h.b16 %v5667
      %v5936 = vunpack.c.l.b16 %v5668
      %v5937 = vunpack.c.h.b16 %v5668
      %v5938 = vpack.c.b16 %v952, %v5930
      %v5939 = vpack.c.b16 %v953, %v5931
      %v5940 = vpack.c.b16 %v954, %v5932
      %v5941 = vpack.c.b16 %v955, %v5933
      %v5942 = vpack.c.b16 %v956, %v5934
      %v5943 = vpack.c.b16 %v957, %v5935
      %v5944 = vpack.c.b16 %v958, %v5936
      %v5945 = vpack.c.b16 %v959, %v5937
      %vm5946 = vcmask 1046528
      %v5947 = vrot.slane %v5938, 1
      %v5948 = vrot.slane %v1056, 1
      %v5949 = vsel %vm5946, %v5947, %v5948
      %v5950 = vrot.slane %v5939, 1
      %v5951 = vrot.slane %v1057, 1
      %v5952 = vsel %vm5946, %v5950, %v5951
      %v5953 = vrot.slane %v5940, 1
      %v5954 = vrot.slane %v1058, 1
      %v5955 = vsel %vm5946, %v5953, %v5954
      %v5956 = vrot.slane %v5941, 1
      %v5957 = vrot.slane %v1059, 1
      %v5958 = vsel %vm5946, %v5956, %v5957
      %v5959 = vrot.slane %v5942, 1
      %v5960 = vrot.slane %v1060, 1
      %v5961 = vsel %vm5946, %v5959, %v5960
      %v5962 = vrot.slane %v5943, 1
      %v5963 = vrot.slane %v1061, 1
      %v5964 = vsel %vm5946, %v5962, %v5963
      %v5965 = vrot.slane %v5944, 1
      %v5966 = vrot.slane %v1062, 1
      %v5967 = vsel %vm5946, %v5965, %v5966
      %v5968 = vrot.slane %v5945, 1
      %v5969 = vrot.slane %v1063, 1
      %v5970 = vsel %vm5946, %v5968, %v5969
      %v5971 = vrot.slane %v1064, 1
      %v5972 = vsel %vm5946, %v5948, %v5971
      %v5973 = vrot.slane %v1065, 1
      %v5974 = vsel %vm5946, %v5951, %v5973
      %v5975 = vrot.slane %v1066, 1
      %v5976 = vsel %vm5946, %v5954, %v5975
      %v5977 = vrot.slane %v1067, 1
      %v5978 = vsel %vm5946, %v5957, %v5977
      %v5979 = vrot.slane %v1068, 1
      %v5980 = vsel %vm5946, %v5960, %v5979
      %v5981 = vrot.slane %v1069, 1
      %v5982 = vsel %vm5946, %v5963, %v5981
      %v5983 = vrot.slane %v1070, 1
      %v5984 = vsel %vm5946, %v5966, %v5983
      %v5985 = vrot.slane %v1071, 1
      %v5986 = vsel %vm5946, %v5969, %v5985
      %v5987 = vrot.slane %v1072, 1
      %v5988 = vsel %vm5946, %v5971, %v5987
      %v5989 = vrot.slane %v1073, 1
      %v5990 = vsel %vm5946, %v5973, %v5989
      %v5991 = vrot.slane %v1074, 1
      %v5992 = vsel %vm5946, %v5975, %v5991
      %v5993 = vrot.slane %v1075, 1
      %v5994 = vsel %vm5946, %v5977, %v5993
      %v5995 = vrot.slane %v1076, 1
      %v5996 = vsel %vm5946, %v5979, %v5995
      %v5997 = vrot.slane %v1077, 1
      %v5998 = vsel %vm5946, %v5981, %v5997
      %v5999 = vrot.slane %v1078, 1
      %v6000 = vsel %vm5946, %v5983, %v5999
      %v6001 = vrot.slane %v1079, 1
      %v6002 = vsel %vm5946, %v5985, %v6001
      %v6003 = vrot.slane %v1080, 1
      %v6004 = vsel %vm5946, %v5987, %v6003
      %v6005 = vrot.slane %v1081, 1
      %v6006 = vsel %vm5946, %v5989, %v6005
      %v6007 = vrot.slane %v1082, 1
      %v6008 = vsel %vm5946, %v5991, %v6007
      %v6009 = vrot.slane %v1083, 1
      %v6010 = vsel %vm5946, %v5993, %v6009
      %v6011 = vrot.slane %v1084, 1
      %v6012 = vsel %vm5946, %v5995, %v6011
      %v6013 = vrot.slane %v1085, 1
      %v6014 = vsel %vm5946, %v5997, %v6013
      %v6015 = vrot.slane %v1086, 1
      %v6016 = vsel %vm5946, %v5999, %v6015
      %v6017 = vrot.slane %v1087, 1
      %v6018 = vsel %vm5946, %v6001, %v6017
      %v6019 = vrot.slane %v1088, 1
      %v6020 = vsel %vm5946, %v6003, %v6019
      %v6021 = vrot.slane %v1089, 1
      %v6022 = vsel %vm5946, %v6005, %v6021
      %v6023 = vrot.slane %v1090, 1
      %v6024 = vsel %vm5946, %v6007, %v6023
      %v6025 = vrot.slane %v1091, 1
      %v6026 = vsel %vm5946, %v6009, %v6025
      %v6027 = vrot.slane %v1092, 1
      %v6028 = vsel %vm5946, %v6011, %v6027
      %v6029 = vrot.slane %v1093, 1
      %v6030 = vsel %vm5946, %v6013, %v6029
      %v6031 = vrot.slane %v1094, 1
      %v6032 = vsel %vm5946, %v6015, %v6031
      %v6033 = vrot.slane %v1095, 1
      %v6034 = vsel %vm5946, %v6017, %v6033
      %v6035 = vrot.slane %v1096, 1
      %v6036 = vsel %vm5946, %v6019, %v6035
      %v6037 = vrot.slane %v1097, 1
      %v6038 = vsel %vm5946, %v6021, %v6037
      %v6039 = vrot.slane %v1098, 1
      %v6040 = vsel %vm5946, %v6023, %v6039
      %v6041 = vrot.slane %v1099, 1
      %v6042 = vsel %vm5946, %v6025, %v6041
      %v6043 = vrot.slane %v1100, 1
      %v6044 = vsel %vm5946, %v6027, %v6043
      %v6045 = vrot.slane %v1101, 1
      %v6046 = vsel %vm5946, %v6029, %v6045
      %v6047 = vrot.slane %v1102, 1
      %v6048 = vsel %vm5946, %v6031, %v6047
      %v6049 = vrot.slane %v1103, 1
      %v6050 = vsel %vm5946, %v6033, %v6049
      %v6355 = vunpack.c.l.b16 %v5670
      %v6356 = vunpack.c.h.b16 %v5670
      %v6357 = vunpack.c.l.b16 %v5671
      %v6358 = vunpack.c.h.b16 %v5671
      %v6359 = vunpack.c.l.b16 %v5672
      %v6360 = vunpack.c.h.b16 %v5672
      %v6361 = vunpack.c.l.b16 %v5673
      %v6362 = vunpack.c.h.b16 %v5673
      %v6363 = vunpack.c.l.b16 %v5674
      %v6364 = vunpack.c.h.b16 %v5674
      %v6365 = vunpack.c.l.b16 %v5675
      %v6366 = vunpack.c.h.b16 %v5675
      %v6367 = vunpack.c.l.b16 %v5676
      %v6368 = vunpack.c.h.b16 %v5676
      %v6369 = vunpack.c.l.b16 %v5677
      %v6370 = vunpack.c.h.b16 %v5677
      %v6371 = vunpack.c.l.b16 %v5678
      %v6372 = vunpack.c.h.b16 %v5678
      %v6373 = vunpack.c.l.b16 %v5679
      %v6374 = vunpack.c.h.b16 %v5679
      %v6375 = vunpack.c.l.b16 %v5680
      %v6376 = vunpack.c.h.b16 %v5680
      %v6377 = vunpack.c.l.b16 %v5681
      %v6378 = vunpack.c.h.b16 %v5681
      %v6379 = vunpack.c.l.b16 %v5682
      %v6380 = vunpack.c.h.b16 %v5682
      %v6381 = vunpack.c.l.b16 %v5683
      %v6382 = vunpack.c.h.b16 %v5683
      %v6383 = vunpack.c.l.b16 %v5684
      %v6384 = vunpack.c.h.b16 %v5684
      %v6385 = vunpack.c.l.b16 %v5685
      %v6386 = vunpack.c.h.b16 %v5685
      %v6387 = vunpack.c.l.b16 %v5686
      %v6388 = vunpack.c.h.b16 %v5686
      %v6389 = vunpack.c.l.b16 %v5687
      %v6390 = vunpack.c.h.b16 %v5687
      %v6391 = vunpack.c.l.b16 %v5688
      %v6392 = vunpack.c.h.b16 %v5688
      %v6393 = vunpack.c.l.b16 %v5689
      %v6394 = vunpack.c.h.b16 %v5689
      %v6395 = vunpack.c.l.b16 %v5690
      %v6396 = vunpack.c.h.b16 %v5690
      %v6397 = vunpack.c.l.b16 %v5691
      %v6398 = vunpack.c.h.b16 %v5691
      %v6399 = vunpack.c.l.b16 %v5692
      %v6400 = vunpack.c.h.b16 %v5692
      %v6401 = vunpack.c.l.b16 %v5693
      %v6402 = vunpack.c.h.b16 %v5693
      %v6403 = vunpack.c.l.b16 %v5694
      %v6404 = vunpack.c.h.b16 %v5694
      %v6405 = vunpack.c.l.b16 %v5695
      %v6406 = vunpack.c.h.b16 %v5695
      %v6407 = vunpack.c.l.b16 %v5696
      %v6408 = vunpack.c.h.b16 %v5696
      %v6409 = vunpack.c.l.b16 %v5697
      %v6410 = vunpack.c.h.b16 %v5697
      %v6411 = vunpack.c.l.b16 %v5698
      %v6412 = vunpack.c.h.b16 %v5698
      %v6413 = vunpack.c.l.b16 %v5699
      %v6414 = vunpack.c.h.b16 %v5699
      %v6415 = vunpack.c.l.b16 %v5700
      %v6416 = vunpack.c.h.b16 %v5700
      %v6417 = vunpack.c.l.b16 %v5701
      %v6418 = vunpack.c.h.b16 %v5701
      %v6419 = vunpack.c.l.b16 %v5702
      %v6420 = vunpack.c.h.b16 %v5702
      %v6421 = vunpack.c.l.b16 %v5703
      %v6422 = vunpack.c.h.b16 %v5703
      %v6423 = vunpack.c.l.b16 %v5704
      %v6424 = vunpack.c.h.b16 %v5704
      %v6425 = vunpack.c.l.b16 %v5705
      %v6426 = vunpack.c.h.b16 %v5705
      %v6427 = vunpack.c.l.b16 %v5706
      %v6428 = vunpack.c.h.b16 %v5706
      %v6429 = vunpack.c.l.b16 %v5707
      %v6430 = vunpack.c.h.b16 %v5707
      %v6431 = vunpack.c.l.b16 %v5708
      %v6432 = vunpack.c.h.b16 %v5708
      %v6433 = vunpack.c.l.b16 %v5709
      %v6434 = vunpack.c.h.b16 %v5709
      %v6435 = vunpack.c.l.b16 %v5710
      %v6436 = vunpack.c.h.b16 %v5710
      %v6437 = vunpack.c.l.b16 %v5711
      %v6438 = vunpack.c.h.b16 %v5711
      %v6439 = vunpack.c.l.b16 %v5712
      %v6440 = vunpack.c.h.b16 %v5712
      %v6441 = vunpack.c.l.b16 %v5713
      %v6442 = vunpack.c.h.b16 %v5713
      %v6443 = vunpack.c.l.b16 %v5714
      %v6444 = vunpack.c.h.b16 %v5714
      %v6445 = vunpack.c.l.b16 %v5715
      %v6446 = vunpack.c.h.b16 %v5715
      %v6447 = vunpack.c.l.b16 %v5716
      %v6448 = vunpack.c.h.b16 %v5716
      %v6449 = vunpack.c.l.b16 %v5717
      %v6450 = vunpack.c.h.b16 %v5717
      %v6451 = vunpack.c.l.b16 %v5718
      %v6452 = vunpack.c.h.b16 %v5718
      %v6453 = vunpack.c.l.b16 %v5719
      %v6454 = vunpack.c.h.b16 %v5719
      %v6455 = vunpack.c.l.b16 %v5720
      %v6456 = vunpack.c.h.b16 %v5720
      %v6457 = vunpack.c.l.b16 %v5721
      %v6458 = vunpack.c.h.b16 %v5721
      %v6459 = vunpack.c.l.b16 %v5722
      %v6460 = vunpack.c.h.b16 %v5722
      %v6461 = vunpack.c.l.b16 %v5723
      %v6462 = vunpack.c.h.b16 %v5723
      %v6463 = vunpack.c.l.b16 %v5724
      %v6464 = vunpack.c.h.b16 %v5724
      %v6465 = vunpack.c.l.b16 %v5725
      %v6466 = vunpack.c.h.b16 %v5725
      %v6467 = vunpack.c.l.b16 %v5726
      %v6468 = vunpack.c.h.b16 %v5726
      %v6469 = vunpack.c.l.b16 %v5727
      %v6470 = vunpack.c.h.b16 %v5727
      %v6471 = vunpack.c.l.b16 %v5728
      %v6472 = vunpack.c.h.b16 %v5728
      %v6473 = vunpack.c.l.b16 %v5729
      %v6474 = vunpack.c.h.b16 %v5729
      %v6475 = vunpack.c.l.b16 %v5730
      %v6476 = vunpack.c.h.b16 %v5730
      %v6477 = vunpack.c.l.b16 %v5731
      %v6478 = vunpack.c.h.b16 %v5731
      %v6479 = vunpack.c.l.b16 %v5732
      %v6480 = vunpack.c.h.b16 %v5732
      %v6481 = vunpack.c.l.b16 %v5733
      %v6482 = vunpack.c.h.b16 %v5733
      %v6483 = vunpack.c.l.b16 %v5734
      %v6484 = vunpack.c.h.b16 %v5734
      %v6485 = vunpack.c.l.b16 %v5735
      %v6486 = vunpack.c.h.b16 %v5735
      %v6487 = vunpack.c.l.b16 %v5736
      %v6488 = vunpack.c.h.b16 %v5736
      %v6489 = vunpack.c.l.b16 %v5737
      %v6490 = vunpack.c.h.b16 %v5737
      %v6491 = vunpack.c.l.b16 %v5738
      %v6492 = vunpack.c.h.b16 %v5738
      %v6493 = vunpack.c.l.b16 %v5739
      %v6494 = vunpack.c.h.b16 %v5739
      %v6495 = vunpack.c.l.b16 %v5740
      %v6496 = vunpack.c.h.b16 %v5740
      %v6497 = vunpack.c.l.b16 %v5741
      %v6498 = vunpack.c.h.b16 %v5741
      %v6499 = vunpack.c.l.b16 %v5742
      %v6500 = vunpack.c.h.b16 %v5742
      %v6501 = vunpack.c.l.b16 %v5743
      %v6502 = vunpack.c.h.b16 %v5743
      %v6503 = vunpack.c.l.b16 %v5744
      %v6504 = vunpack.c.h.b16 %v5744
      %v6505 = vunpack.c.l.b16 %v5745
      %v6506 = vunpack.c.h.b16 %v5745
      %v6507 = vunpack.c.l.b16 %v5746
      %v6508 = vunpack.c.h.b16 %v5746
      %v6509 = vunpack.c.l.b16 %v5747
      %v6510 = vunpack.c.h.b16 %v5747
      %v6511 = vunpack.c.l.b16 %v5748
      %v6512 = vunpack.c.h.b16 %v5748
      %v6513 = vunpack.c.l.b16 %v5749
      %v6514 = vunpack.c.h.b16 %v5749
      %v6515 = vunpack.c.l.b16 %v5750
      %v6516 = vunpack.c.h.b16 %v5750
      %v6517 = vunpack.c.l.b16 %v5751
      %v6518 = vunpack.c.h.b16 %v5751
      %v6519 = vunpack.c.l.b16 %v5752
      %v6520 = vunpack.c.h.b16 %v5752
      %v6521 = vunpack.c.l.b16 %v5753
      %v6522 = vunpack.c.h.b16 %v5753
      %v6523 = vunpack.c.l.b16 %v5754
      %v6524 = vunpack.c.h.b16 %v5754
      %v6525 = vunpack.c.l.b16 %v5755
      %v6526 = vunpack.c.h.b16 %v5755
      %v6527 = vunpack.c.l.b16 %v5756
      %v6528 = vunpack.c.h.b16 %v5756
      %v6529 = vunpack.c.l.b16 %v5757
      %v6530 = vunpack.c.h.b16 %v5757
      %v6531 = vunpack.c.l.b16 %v5758
      %v6532 = vunpack.c.h.b16 %v5758
      %v6533 = vunpack.c.l.b16 %v5759
      %v6534 = vunpack.c.h.b16 %v5759
      %v6535 = vunpack.c.l.b16 %v5760
      %v6536 = vunpack.c.h.b16 %v5760
      %v6537 = vunpack.c.l.b16 %v5761
      %v6538 = vunpack.c.h.b16 %v5761
      %v6539 = vunpack.c.l.b16 %v5762
      %v6540 = vunpack.c.h.b16 %v5762
      %v6541 = vunpack.c.l.b16 %v5763
      %v6542 = vunpack.c.h.b16 %v5763
      %v6543 = vunpack.c.l.b16 %v5764
      %v6544 = vunpack.c.h.b16 %v5764
      %v6545 = vunpack.c.l.b16 %v5765
      %v6546 = vunpack.c.h.b16 %v5765
      %v6547 = vunpack.c.l.b16 %v5766
      %v6548 = vunpack.c.h.b16 %v5766
      %v6549 = vunpack.c.l.b16 %v5767
      %v6550 = vunpack.c.h.b16 %v5767
      %v6551 = vunpack.c.l.b16 %v5768
      %v6552 = vunpack.c.h.b16 %v5768
      %v6553 = vunpack.c.l.b16 %v5769
      %v6554 = vunpack.c.h.b16 %v5769
      %v6555 = vunpack.c.l.b16 %v5770
      %v6556 = vunpack.c.h.b16 %v5770
      %v6557 = vunpack.c.l.b16 %v5771
      %v6558 = vunpack.c.h.b16 %v5771
      %v6559 = vunpack.c.l.b16 %v5772
      %v6560 = vunpack.c.h.b16 %v5772
      %v6561 = vunpack.c.l.b16 %v5773
      %v6562 = vunpack.c.h.b16 %v5773
      %v6563 = vunpack.c.l.b16 %v5774
      %v6564 = vunpack.c.h.b16 %v5774
      %v6565 = vunpack.c.l.b16 %v5775
      %v6566 = vunpack.c.h.b16 %v5775
      %v6567 = vunpack.c.l.b16 %v5776
      %v6568 = vunpack.c.h.b16 %v5776
      %v6569 = vunpack.c.l.b16 %v5777
      %v6570 = vunpack.c.h.b16 %v5777
      %v6571 = vunpack.c.l.b16 %v5778
      %v6572 = vunpack.c.h.b16 %v5778
      %v6573 = vunpack.c.l.b16 %v5779
      %v6574 = vunpack.c.h.b16 %v5779
      %v6575 = vunpack.c.l.b16 %v5780
      %v6576 = vunpack.c.h.b16 %v5780
      %v6577 = vunpack.c.l.b16 %v5781
      %v6578 = vunpack.c.h.b16 %v5781
      %v6579 = vunpack.c.l.b16 %v5782
      %v6580 = vunpack.c.h.b16 %v5782
      %v6581 = vunpack.c.l.b16 %v5783
      %v6582 = vunpack.c.h.b16 %v5783
      %v6583 = vunpack.c.l.b16 %v5784
      %v6584 = vunpack.c.h.b16 %v5784
      %v6585 = vunpack.c.l.b16 %v5785
      %v6586 = vunpack.c.h.b16 %v5785
      %v6587 = vunpack.c.l.b16 %v5786
      %v6588 = vunpack.c.h.b16 %v5786
      %v6589 = vunpack.c.l.b16 %v5787
      %v6590 = vunpack.c.h.b16 %v5787
      %v6591 = vunpack.c.l.b16 %v5788
      %v6592 = vunpack.c.h.b16 %v5788
      %v6593 = vunpack.c.l.b16 %v5789
      %v6594 = vunpack.c.h.b16 %v5789
      %v6595 = vunpack.c.l.b16 %v5790
      %v6596 = vunpack.c.h.b16 %v5790
      %v6597 = vunpack.c.l.b16 %v5791
      %v6598 = vunpack.c.h.b16 %v5791
      %v6599 = vunpack.c.l.b16 %v5792
      %v6600 = vunpack.c.h.b16 %v5792
      %v6601 = vunpack.c.l.b16 %v5793
      %v6602 = vunpack.c.h.b16 %v5793
      %v6603 = vunpack.c.l.b16 %v5794
      %v6604 = vunpack.c.h.b16 %v5794
      %v6605 = vunpack.c.l.b16 %v5795
      %v6606 = vunpack.c.h.b16 %v5795
      %v6607 = vunpack.c.l.b16 %v5796
      %v6608 = vunpack.c.h.b16 %v5796
      %v6609 = vunpack.c.l.b16 %v5797
      %v6610 = vunpack.c.h.b16 %v5797
      %v6611 = vunpack.c.l.b16 %v5798
      %v6612 = vunpack.c.h.b16 %v5798
      %v6613 = vunpack.c.l.b16 %v5799
      %v6614 = vunpack.c.h.b16 %v5799
      %v6615 = vunpack.c.l.b16 %v5800
      %v6616 = vunpack.c.h.b16 %v5800
      %v6617 = vunpack.c.l.b16 %v5801
      %v6618 = vunpack.c.h.b16 %v5801
      %v6619 = vunpack.c.l.b16 %v5802
      %v6620 = vunpack.c.h.b16 %v5802
      %v6621 = vunpack.c.l.b16 %v5803
      %v6622 = vunpack.c.h.b16 %v5803
      %v6623 = vunpack.c.l.b16 %v5804
      %v6624 = vunpack.c.h.b16 %v5804
      %v6625 = vunpack.c.l.b16 %v5805
      %v6626 = vunpack.c.h.b16 %v5805
      %v6627 = vunpack.c.l.b16 %v5806
      %v6628 = vunpack.c.h.b16 %v5806
      %v6629 = vunpack.c.l.b16 %v5807
      %v6630 = vunpack.c.h.b16 %v5807
      %v6631 = vunpack.c.l.b16 %v5808
      %v6632 = vunpack.c.h.b16 %v5808
      %v6633 = vunpack.c.l.b16 %v5809
      %v6634 = vunpack.c.h.b16 %v5809
      %v6635 = vunpack.c.l.b16 %v5810
      %v6636 = vunpack.c.h.b16 %v5810
      %v6637 = vunpack.c.l.b16 %v5811
      %v6638 = vunpack.c.h.b16 %v5811
      %v6639 = vunpack.c.l.b16 %v5812
      %v6640 = vunpack.c.h.b16 %v5812
      %v6641 = vunpack.c.l.b16 %v5813
      %v6642 = vunpack.c.h.b16 %v5813
      %v6643 = vunpack.c.l.b16 %v5814
      %v6644 = vunpack.c.h.b16 %v5814
      %v6645 = vunpack.c.l.b16 %v5815
      %v6646 = vunpack.c.h.b16 %v5815
      %v6647 = vunpack.c.l.b16 %v5816
      %v6648 = vunpack.c.h.b16 %v5816
      %v6649 = vunpack.c.l.b16 %v5817
      %v6650 = vunpack.c.h.b16 %v5817
      %v6651 = vunpack.c.l.b16 %v5818
      %v6652 = vunpack.c.h.b16 %v5818
      %v6653 = vunpack.c.l.b16 %v5819
      %v6654 = vunpack.c.h.b16 %v5819
      %v6655 = vunpack.c.l.b16 %v5820
      %v6656 = vunpack.c.h.b16 %v5820
      %v6657 = vunpack.c.l.b16 %v5821
      %v6658 = vunpack.c.h.b16 %v5821
      %v6659 = vunpack.c.l.b16 %v5822
      %v6660 = vunpack.c.h.b16 %v5822
      %v6661 = vunpack.c.l.b16 %v5823
      %v6662 = vunpack.c.h.b16 %v5823
      %v6663 = vunpack.c.l.b16 %v5824
      %v6664 = vunpack.c.h.b16 %v5824
      %v6665 = vunpack.c.l.b16 %v5825
      %v6666 = vunpack.c.h.b16 %v5825
      %v6667 = vunpack.c.l.b16 %v5826
      %v6668 = vunpack.c.h.b16 %v5826
      %v6669 = vunpack.c.l.b16 %v5827
      %v6670 = vunpack.c.h.b16 %v5827
      %v6671 = vunpack.c.l.b16 %v5828
      %v6672 = vunpack.c.h.b16 %v5828
      %v6673 = vunpack.c.l.b16 %v5829
      %v6674 = vunpack.c.h.b16 %v5829
      %v6675 = vunpack.c.l.b16 %v5830
      %v6676 = vunpack.c.h.b16 %v5830
      %v6677 = vunpack.c.l.b16 %v5831
      %v6678 = vunpack.c.h.b16 %v5831
      %v6679 = vunpack.c.l.b16 %v5832
      %v6680 = vunpack.c.h.b16 %v5832
      %v6681 = vunpack.c.l.b16 %v5833
      %v6682 = vunpack.c.h.b16 %v5833
      %v6683 = vunpack.c.l.b16 %v5834
      %v6684 = vunpack.c.h.b16 %v5834
      %v6685 = vunpack.c.l.b16 %v5835
      %v6686 = vunpack.c.h.b16 %v5835
      %v6687 = vunpack.c.l.b16 %v5836
      %v6688 = vunpack.c.h.b16 %v5836
      %v6689 = vunpack.c.l.b16 %v5837
      %v6690 = vunpack.c.h.b16 %v5837
      %v6691 = vunpack.c.l.b16 %v5838
      %v6692 = vunpack.c.h.b16 %v5838
      %v6693 = vunpack.c.l.b16 %v5839
      %v6694 = vunpack.c.h.b16 %v5839
      %v6695 = vunpack.c.l.b16 %v5840
      %v6696 = vunpack.c.h.b16 %v5840
      %v6697 = vunpack.c.l.b16 %v5841
      %v6698 = vunpack.c.h.b16 %v5841
      %v6699 = vunpack.c.l.b16 %v5842
      %v6700 = vunpack.c.h.b16 %v5842
      %v6701 = vunpack.c.l.b16 %v5843
      %v6702 = vunpack.c.h.b16 %v5843
      %v6703 = vunpack.c.l.b16 %v5844
      %v6704 = vunpack.c.h.b16 %v5844
      %v6705 = vunpack.c.l.b16 %v5845
      %v6706 = vunpack.c.h.b16 %v5845
      %v6707 = vunpack.c.l.b16 %v5846
      %v6708 = vunpack.c.h.b16 %v5846
      %v6709 = vunpack.c.l.b16 %v5847
      %v6710 = vunpack.c.h.b16 %v5847
      %v6711 = vunpack.c.l.b16 %v5848
      %v6712 = vunpack.c.h.b16 %v5848
      %v6713 = vunpack.c.l.b16 %v5849
      %v6714 = vunpack.c.h.b16 %v5849
      %v6715 = vunpack.c.l.b16 %v5850
      %v6716 = vunpack.c.h.b16 %v5850
      %v6717 = vunpack.c.l.b16 %v5851
      %v6718 = vunpack.c.h.b16 %v5851
      %v6719 = vunpack.c.l.b16 %v5852
      %v6720 = vunpack.c.h.b16 %v5852
      %v6721 = vunpack.c.l.b16 %v5853
      %v6722 = vunpack.c.h.b16 %v5853
      %v6723 = vunpack.c.l.b16 %v5854
      %v6724 = vunpack.c.h.b16 %v5854
      %v6725 = vunpack.c.l.b16 %v5855
      %v6726 = vunpack.c.h.b16 %v5855
      %v6727 = vunpack.c.l.b16 %v5856
      %v6728 = vunpack.c.h.b16 %v5856
      %v6729 = vunpack.c.l.b16 %v5857
      %v6730 = vunpack.c.h.b16 %v5857
      %v6731 = vunpack.c.l.b16 %v5858
      %v6732 = vunpack.c.h.b16 %v5858
      %v6733 = vunpack.c.l.b16 %v5859
      %v6734 = vunpack.c.h.b16 %v5859
      %v6735 = vunpack.c.l.b16 %v5860
      %v6736 = vunpack.c.h.b16 %v5860
      %v6737 = vunpack.c.l.b16 %v5861
      %v6738 = vunpack.c.h.b16 %v5861
      %v6739 = vunpack.c.l.b16 %v5862
      %v6740 = vunpack.c.h.b16 %v5862
      %v6741 = vunpack.c.l.b16 %v5863
      %v6742 = vunpack.c.h.b16 %v5863
      %v6743 = vunpack.c.l.b16 %v5864
      %v6744 = vunpack.c.h.b16 %v5864
      %v6745 = vunpack.c.l.b16 %v5865
      %v6746 = vunpack.c.h.b16 %v5865
      %v6747 = vunpack.c.l.b16 %v5866
      %v6748 = vunpack.c.h.b16 %v5866
      %v6749 = vunpack.c.l.b16 %v5867
      %v6750 = vunpack.c.h.b16 %v5867
      %v6751 = vunpack.c.l.b16 %v5868
      %v6752 = vunpack.c.h.b16 %v5868
      %v6753 = vunpack.c.l.b16 %v5869
      %v6754 = vunpack.c.h.b16 %v5869
      %v6755 = vunpack.c.l.b16 %v5870
      %v6756 = vunpack.c.h.b16 %v5870
      %v6757 = vunpack.c.l.b16 %v5871
      %v6758 = vunpack.c.h.b16 %v5871
      %v6759 = vunpack.c.l.b16 %v5872
      %v6760 = vunpack.c.h.b16 %v5872
      %v6761 = vunpack.c.l.b16 %v5873
      %v6762 = vunpack.c.h.b16 %v5873
      %v6763 = vunpack.c.l.b16 %v5874
      %v6764 = vunpack.c.h.b16 %v5874
      %v6765 = vunpack.c.l.b16 %v5875
      %v6766 = vunpack.c.h.b16 %v5875
      %v6767 = vunpack.c.l.b16 %v5876
      %v6768 = vunpack.c.h.b16 %v5876
      %v6769 = vunpack.c.l.b16 %v5877
      %v6770 = vunpack.c.h.b16 %v5877
      %v6771 = vunpack.c.l.b16 %v5878
      %v6772 = vunpack.c.h.b16 %v5878
      %v6773 = vunpack.c.l.b16 %v5879
      %v6774 = vunpack.c.h.b16 %v5879
      %v6775 = vunpack.c.l.b16 %v5880
      %v6776 = vunpack.c.h.b16 %v5880
      %v6777 = vunpack.c.l.b16 %v5881
      %v6778 = vunpack.c.h.b16 %v5881
      %v6779 = vunpack.c.l.b16 %v5882
      %v6780 = vunpack.c.h.b16 %v5882
      %v6781 = vunpack.c.l.b16 %v5883
      %v6782 = vunpack.c.h.b16 %v5883
      %v6783 = vunpack.c.l.b16 %v5884
      %v6784 = vunpack.c.h.b16 %v5884
      %v6785 = vunpack.c.l.b16 %v5885
      %v6786 = vunpack.c.h.b16 %v5885
      %v6787 = vunpack.c.l.b16 %v5886
      %v6788 = vunpack.c.h.b16 %v5886
      %v6789 = vunpack.c.l.b16 %v5887
      %v6790 = vunpack.c.h.b16 %v5887
      %v6791 = vunpack.c.l.b16 %v5888
      %v6792 = vunpack.c.h.b16 %v5888
      %v6793 = vunpack.c.l.b16 %v5889
      %v6794 = vunpack.c.h.b16 %v5889
      %v6795 = vunpack.c.l.b16 %v5890
      %v6796 = vunpack.c.h.b16 %v5890
      %v6797 = vunpack.c.l.b16 %v5891
      %v6798 = vunpack.c.h.b16 %v5891
      %v6799 = vunpack.c.l.b16 %v5892
      %v6800 = vunpack.c.h.b16 %v5892
      %v6801 = vunpack.c.l.b16 %v5893
      %v6802 = vunpack.c.h.b16 %v5893
      %v6803 = vunpack.c.l.b16 %v5894
      %v6804 = vunpack.c.h.b16 %v5894
      %v6805 = vunpack.c.l.b16 %v5895
      %v6806 = vunpack.c.h.b16 %v5895
      %v6807 = vunpack.c.l.b16 %v5896
      %v6808 = vunpack.c.h.b16 %v5896
      %v6809 = vunpack.c.l.b16 %v5897
      %v6810 = vunpack.c.h.b16 %v5897
      %v6811 = vunpack.c.l.b16 %v5898
      %v6812 = vunpack.c.h.b16 %v5898
      %v6813 = vunpack.c.l.b16 %v5899
      %v6814 = vunpack.c.h.b16 %v5899
      %v6815 = vunpack.c.l.b16 %v5900
      %v6816 = vunpack.c.h.b16 %v5900
      %v6817 = vunpack.c.l.b16 %v5901
      %v6818 = vunpack.c.h.b16 %v5901
      %v6819 = vunpack.c.l.b16 %v5902
      %v6820 = vunpack.c.h.b16 %v5902
      %v6821 = vunpack.c.l.b16 %v5903
      %v6822 = vunpack.c.h.b16 %v5903
      %v6823 = vunpack.c.l.b16 %v5904
      %v6824 = vunpack.c.h.b16 %v5904
      %v6825 = vunpack.c.l.b16 %v5905
      %v6826 = vunpack.c.h.b16 %v5905
      %v6827 = vunpack.c.l.b16 %v5906
      %v6828 = vunpack.c.h.b16 %v5906
      %v6829 = vunpack.c.l.b16 %v5907
      %v6830 = vunpack.c.h.b16 %v5907
      %v6831 = vunpack.c.l.b16 %v5908
      %v6832 = vunpack.c.h.b16 %v5908
      %v6833 = vunpack.c.l.b16 %v5909
      %v6834 = vunpack.c.h.b16 %v5909
      %v6835 = vunpack.c.l.b16 %v5910
      %v6836 = vunpack.c.h.b16 %v5910
      %v6837 = vunpack.c.l.b16 %v5911
      %v6838 = vunpack.c.h.b16 %v5911
      %v6839 = vunpack.c.l.b16 %v5912
      %v6840 = vunpack.c.h.b16 %v5912
      %v6841 = vunpack.c.l.b16 %v5913
      %v6842 = vunpack.c.h.b16 %v5913
      %v6843 = vunpack.c.l.b16 %v5914
      %v6844 = vunpack.c.h.b16 %v5914
      %v6845 = vunpack.c.l.b16 %v5915
      %v6846 = vunpack.c.h.b16 %v5915
      %v6847 = vunpack.c.l.b16 %v5916
      %v6848 = vunpack.c.h.b16 %v5916
      %v6849 = vunpack.c.l.b16 %v5917
      %v6850 = vunpack.c.h.b16 %v5917
      %v6851 = vunpack.c.l.b16 %v5918
      %v6852 = vunpack.c.h.b16 %v5918
      %v6853 = vunpack.c.l.b16 %v5919
      %v6854 = vunpack.c.h.b16 %v5919
      %v6855 = vunpack.c.l.b16 %v5920
      %v6856 = vunpack.c.h.b16 %v5920
      %v6857 = vunpack.c.l.b16 %v5921
      %v6858 = vunpack.c.h.b16 %v5921
      %v6859 = vunpack.c.l.b16 %v5922
      %v6860 = vunpack.c.h.b16 %v5922
      %v6861 = vunpack.c.l.b16 %v5923
      %v6862 = vunpack.c.h.b16 %v5923
      %v6863 = vunpack.c.l.b16 %v5924
      %v6864 = vunpack.c.h.b16 %v5924
      %v6865 = vunpack.c.l.b16 %v5925
      %v6866 = vunpack.c.h.b16 %v5925
      %v6867 = vpack.c.b16 %v6359, %v6355
      %v6868 = vpack.c.b16 %v6360, %v6356
      %v6869 = vpack.c.b16 %v6361, %v6357
      %v6870 = vpack.c.b16 %v6362, %v6358
      %v6871 = vpack.c.b16 %v6367, %v6363
      %v6872 = vpack.c.b16 %v6368, %v6364
      %v6873 = vpack.c.b16 %v6369, %v6365
      %v6874 = vpack.c.b16 %v6370, %v6366
      %v6875 = vpack.c.b16 %v6375, %v6371
      %v6876 = vpack.c.b16 %v6376, %v6372
      %v6877 = vpack.c.b16 %v6377, %v6373
      %v6878 = vpack.c.b16 %v6378, %v6374
      %v6879 = vpack.c.b16 %v6383, %v6379
      %v6880 = vpack.c.b16 %v6384, %v6380
      %v6881 = vpack.c.b16 %v6385, %v6381
      %v6882 = vpack.c.b16 %v6386, %v6382
      %v6883 = vpack.c.b16 %v6391, %v6387
      %v6884 = vpack.c.b16 %v6392, %v6388
      %v6885 = vpack.c.b16 %v6393, %v6389
      %v6886 = vpack.c.b16 %v6394, %v6390
      %v6887 = vpack.c.b16 %v6399, %v6395
      %v6888 = vpack.c.b16 %v6400, %v6396
      %v6889 = vpack.c.b16 %v6401, %v6397
      %v6890 = vpack.c.b16 %v6402, %v6398
      %v6891 = vpack.c.b16 %v6407, %v6403
      %v6892 = vpack.c.b16 %v6408, %v6404
      %v6893 = vpack.c.b16 %v6409, %v6405
      %v6894 = vpack.c.b16 %v6410, %v6406
      %v6895 = vpack.c.b16 %v6415, %v6411
      %v6896 = vpack.c.b16 %v6416, %v6412
      %v6897 = vpack.c.b16 %v6417, %v6413
      %v6898 = vpack.c.b16 %v6418, %v6414
      %v6899 = vpack.c.b16 %v6423, %v6419
      %v6900 = vpack.c.b16 %v6424, %v6420
      %v6901 = vpack.c.b16 %v6425, %v6421
      %v6902 = vpack.c.b16 %v6426, %v6422
      %v6903 = vpack.c.b16 %v6431, %v6427
      %v6904 = vpack.c.b16 %v6432, %v6428
      %v6905 = vpack.c.b16 %v6433, %v6429
      %v6906 = vpack.c.b16 %v6434, %v6430
      %v6907 = vpack.c.b16 %v6439, %v6435
      %v6908 = vpack.c.b16 %v6440, %v6436
      %v6909 = vpack.c.b16 %v6441, %v6437
      %v6910 = vpack.c.b16 %v6442, %v6438
      %v6911 = vpack.c.b16 %v6447, %v6443
      %v6912 = vpack.c.b16 %v6448, %v6444
      %v6913 = vpack.c.b16 %v6449, %v6445
      %v6914 = vpack.c.b16 %v6450, %v6446
      %v6915 = vpack.c.b16 %v6455, %v6451
      %v6916 = vpack.c.b16 %v6456, %v6452
      %v6917 = vpack.c.b16 %v6457, %v6453
      %v6918 = vpack.c.b16 %v6458, %v6454
      %v6919 = vpack.c.b16 %v6463, %v6459
      %v6920 = vpack.c.b16 %v6464, %v6460
      %v6921 = vpack.c.b16 %v6465, %v6461
      %v6922 = vpack.c.b16 %v6466, %v6462
      %v6923 = vpack.c.b16 %v6471, %v6467
      %v6924 = vpack.c.b16 %v6472, %v6468
      %v6925 = vpack.c.b16 %v6473, %v6469
      %v6926 = vpack.c.b16 %v6474, %v6470
      %v6927 = vpack.c.b16 %v6479, %v6475
      %v6928 = vpack.c.b16 %v6480, %v6476
      %v6929 = vpack.c.b16 %v6481, %v6477
      %v6930 = vpack.c.b16 %v6482, %v6478
      %v6931 = vpack.c.b16 %v6487, %v6483
      %v6932 = vpack.c.b16 %v6488, %v6484
      %v6933 = vpack.c.b16 %v6489, %v6485
      %v6934 = vpack.c.b16 %v6490, %v6486
      %v6935 = vpack.c.b16 %v6495, %v6491
      %v6936 = vpack.c.b16 %v6496, %v6492
      %v6937 = vpack.c.b16 %v6497, %v6493
      %v6938 = vpack.c.b16 %v6498, %v6494
      %v6939 = vpack.c.b16 %v6503, %v6499
      %v6940 = vpack.c.b16 %v6504, %v6500
      %v6941 = vpack.c.b16 %v6505, %v6501
      %v6942 = vpack.c.b16 %v6506, %v6502
      %v6943 = vpack.c.b16 %v6511, %v6507
      %v6944 = vpack.c.b16 %v6512, %v6508
      %v6945 = vpack.c.b16 %v6513, %v6509
      %v6946 = vpack.c.b16 %v6514, %v6510
      %v6947 = vpack.c.b16 %v6519, %v6515
      %v6948 = vpack.c.b16 %v6520, %v6516
      %v6949 = vpack.c.b16 %v6521, %v6517
      %v6950 = vpack.c.b16 %v6522, %v6518
      %v6951 = vpack.c.b16 %v6527, %v6523
      %v6952 = vpack.c.b16 %v6528, %v6524
      %v6953 = vpack.c.b16 %v6529, %v6525
      %v6954 = vpack.c.b16 %v6530, %v6526
      %v6955 = vpack.c.b16 %v6535, %v6531
      %v6956 = vpack.c.b16 %v6536, %v6532
      %v6957 = vpack.c.b16 %v6537, %v6533
      %v6958 = vpack.c.b16 %v6538, %v6534
      %v6959 = vpack.c.b16 %v6543, %v6539
      %v6960 = vpack.c.b16 %v6544, %v6540
      %v6961 = vpack.c.b16 %v6545, %v6541
      %v6962 = vpack.c.b16 %v6546, %v6542
      %v6963 = vpack.c.b16 %v6551, %v6547
      %v6964 = vpack.c.b16 %v6552, %v6548
      %v6965 = vpack.c.b16 %v6553, %v6549
      %v6966 = vpack.c.b16 %v6554, %v6550
      %v6967 = vpack.c.b16 %v6559, %v6555
      %v6968 = vpack.c.b16 %v6560, %v6556
      %v6969 = vpack.c.b16 %v6561, %v6557
      %v6970 = vpack.c.b16 %v6562, %v6558
      %v6971 = vpack.c.b16 %v6567, %v6563
      %v6972 = vpack.c.b16 %v6568, %v6564
      %v6973 = vpack.c.b16 %v6569, %v6565
      %v6974 = vpack.c.b16 %v6570, %v6566
      %v6975 = vpack.c.b16 %v6575, %v6571
      %v6976 = vpack.c.b16 %v6576, %v6572
      %v6977 = vpack.c.b16 %v6577, %v6573
      %v6978 = vpack.c.b16 %v6578, %v6574
      %v6979 = vpack.c.b16 %v6583, %v6579
      %v6980 = vpack.c.b16 %v6584, %v6580
      %v6981 = vpack.c.b16 %v6585, %v6581
      %v6982 = vpack.c.b16 %v6586, %v6582
      %v6983 = vpack.c.b16 %v6591, %v6587
      %v6984 = vpack.c.b16 %v6592, %v6588
      %v6985 = vpack.c.b16 %v6593, %v6589
      %v6986 = vpack.c.b16 %v6594, %v6590
      %v6987 = vpack.c.b16 %v6599, %v6595
      %v6988 = vpack.c.b16 %v6600, %v6596
      %v6989 = vpack.c.b16 %v6601, %v6597
      %v6990 = vpack.c.b16 %v6602, %v6598
      %v6991 = vpack.c.b16 %v6607, %v6603
      %v6992 = vpack.c.b16 %v6608, %v6604
      %v6993 = vpack.c.b16 %v6609, %v6605
      %v6994 = vpack.c.b16 %v6610, %v6606
      %v6995 = vpack.c.b16 %v6615, %v6611
      %v6996 = vpack.c.b16 %v6616, %v6612
      %v6997 = vpack.c.b16 %v6617, %v6613
      %v6998 = vpack.c.b16 %v6618, %v6614
      %v6999 = vpack.c.b16 %v6623, %v6619
      %v7000 = vpack.c.b16 %v6624, %v6620
      %v7001 = vpack.c.b16 %v6625, %v6621
      %v7002 = vpack.c.b16 %v6626, %v6622
      %v7003 = vpack.c.b16 %v6631, %v6627
      %v7004 = vpack.c.b16 %v6632, %v6628
      %v7005 = vpack.c.b16 %v6633, %v6629
      %v7006 = vpack.c.b16 %v6634, %v6630
      %v7007 = vpack.c.b16 %v6639, %v6635
      %v7008 = vpack.c.b16 %v6640, %v6636
      %v7009 = vpack.c.b16 %v6641, %v6637
      %v7010 = vpack.c.b16 %v6642, %v6638
      %v7011 = vpack.c.b16 %v6647, %v6643
      %v7012 = vpack.c.b16 %v6648, %v6644
      %v7013 = vpack.c.b16 %v6649, %v6645
      %v7014 = vpack.c.b16 %v6650, %v6646
      %v7015 = vpack.c.b16 %v6655, %v6651
      %v7016 = vpack.c.b16 %v6656, %v6652
      %v7017 = vpack.c.b16 %v6657, %v6653
      %v7018 = vpack.c.b16 %v6658, %v6654
      %v7019 = vpack.c.b16 %v6663, %v6659
      %v7020 = vpack.c.b16 %v6664, %v6660
      %v7021 = vpack.c.b16 %v6665, %v6661
      %v7022 = vpack.c.b16 %v6666, %v6662
      %v7023 = vpack.c.b16 %v6671, %v6667
      %v7024 = vpack.c.b16 %v6672, %v6668
      %v7025 = vpack.c.b16 %v6673, %v6669
      %v7026 = vpack.c.b16 %v6674, %v6670
      %v7027 = vpack.c.b16 %v6679, %v6675
      %v7028 = vpack.c.b16 %v6680, %v6676
      %v7029 = vpack.c.b16 %v6681, %v6677
      %v7030 = vpack.c.b16 %v6682, %v6678
      %v7031 = vpack.c.b16 %v6687, %v6683
      %v7032 = vpack.c.b16 %v6688, %v6684
      %v7033 = vpack.c.b16 %v6689, %v6685
      %v7034 = vpack.c.b16 %v6690, %v6686
      %v7035 = vpack.c.b16 %v6695, %v6691
      %v7036 = vpack.c.b16 %v6696, %v6692
      %v7037 = vpack.c.b16 %v6697, %v6693
      %v7038 = vpack.c.b16 %v6698, %v6694
      %v7039 = vpack.c.b16 %v6703, %v6699
      %v7040 = vpack.c.b16 %v6704, %v6700
      %v7041 = vpack.c.b16 %v6705, %v6701
      %v7042 = vpack.c.b16 %v6706, %v6702
      %v7043 = vpack.c.b16 %v6711, %v6707
      %v7044 = vpack.c.b16 %v6712, %v6708
      %v7045 = vpack.c.b16 %v6713, %v6709
      %v7046 = vpack.c.b16 %v6714, %v6710
      %v7047 = vpack.c.b16 %v6719, %v6715
      %v7048 = vpack.c.b16 %v6720, %v6716
      %v7049 = vpack.c.b16 %v6721, %v6717
      %v7050 = vpack.c.b16 %v6722, %v6718
      %v7051 = vpack.c.b16 %v6727, %v6723
      %v7052 = vpack.c.b16 %v6728, %v6724
      %v7053 = vpack.c.b16 %v6729, %v6725
      %v7054 = vpack.c.b16 %v6730, %v6726
      %v7055 = vpack.c.b16 %v6735, %v6731
      %v7056 = vpack.c.b16 %v6736, %v6732
      %v7057 = vpack.c.b16 %v6737, %v6733
      %v7058 = vpack.c.b16 %v6738, %v6734
      %v7059 = vpack.c.b16 %v6743, %v6739
      %v7060 = vpack.c.b16 %v6744, %v6740
      %v7061 = vpack.c.b16 %v6745, %v6741
      %v7062 = vpack.c.b16 %v6746, %v6742
      %v7063 = vpack.c.b16 %v6751, %v6747
      %v7064 = vpack.c.b16 %v6752, %v6748
      %v7065 = vpack.c.b16 %v6753, %v6749
      %v7066 = vpack.c.b16 %v6754, %v6750
      %v7067 = vpack.c.b16 %v6759, %v6755
      %v7068 = vpack.c.b16 %v6760, %v6756
      %v7069 = vpack.c.b16 %v6761, %v6757
      %v7070 = vpack.c.b16 %v6762, %v6758
      %v7071 = vpack.c.b16 %v6767, %v6763
      %v7072 = vpack.c.b16 %v6768, %v6764
      %v7073 = vpack.c.b16 %v6769, %v6765
      %v7074 = vpack.c.b16 %v6770, %v6766
      %v7075 = vpack.c.b16 %v6775, %v6771
      %v7076 = vpack.c.b16 %v6776, %v6772
      %v7077 = vpack.c.b16 %v6777, %v6773
      %v7078 = vpack.c.b16 %v6778, %v6774
      %v7079 = vpack.c.b16 %v6783, %v6779
      %v7080 = vpack.c.b16 %v6784, %v6780
      %v7081 = vpack.c.b16 %v6785, %v6781
      %v7082 = vpack.c.b16 %v6786, %v6782
      %v7083 = vpack.c.b16 %v6791, %v6787
      %v7084 = vpack.c.b16 %v6792, %v6788
      %v7085 = vpack.c.b16 %v6793, %v6789
      %v7086 = vpack.c.b16 %v6794, %v6790
      %v7087 = vpack.c.b16 %v6799, %v6795
      %v7088 = vpack.c.b16 %v6800, %v6796
      %v7089 = vpack.c.b16 %v6801, %v6797
      %v7090 = vpack.c.b16 %v6802, %v6798
      %v7091 = vpack.c.b16 %v6807, %v6803
      %v7092 = vpack.c.b16 %v6808, %v6804
      %v7093 = vpack.c.b16 %v6809, %v6805
      %v7094 = vpack.c.b16 %v6810, %v6806
      %v7095 = vpack.c.b16 %v6815, %v6811
      %v7096 = vpack.c.b16 %v6816, %v6812
      %v7097 = vpack.c.b16 %v6817, %v6813
      %v7098 = vpack.c.b16 %v6818, %v6814
      %v7099 = vpack.c.b16 %v6823, %v6819
      %v7100 = vpack.c.b16 %v6824, %v6820
      %v7101 = vpack.c.b16 %v6825, %v6821
      %v7102 = vpack.c.b16 %v6826, %v6822
      %v7103 = vpack.c.b16 %v6831, %v6827
      %v7104 = vpack.c.b16 %v6832, %v6828
      %v7105 = vpack.c.b16 %v6833, %v6829
      %v7106 = vpack.c.b16 %v6834, %v6830
      %v7107 = vpack.c.b16 %v6839, %v6835
      %v7108 = vpack.c.b16 %v6840, %v6836
      %v7109 = vpack.c.b16 %v6841, %v6837
      %v7110 = vpack.c.b16 %v6842, %v6838
      %v7111 = vpack.c.b16 %v6847, %v6843
      %v7112 = vpack.c.b16 %v6848, %v6844
      %v7113 = vpack.c.b16 %v6849, %v6845
      %v7114 = vpack.c.b16 %v6850, %v6846
      %v7115 = vpack.c.b16 %v6855, %v6851
      %v7116 = vpack.c.b16 %v6856, %v6852
      %v7117 = vpack.c.b16 %v6857, %v6853
      %v7118 = vpack.c.b16 %v6858, %v6854
      %v7119 = vpack.c.b16 %v6863, %v6859
      %v7120 = vpack.c.b16 %v6864, %v6860
      %v7121 = vpack.c.b16 %v6865, %v6861
      %v7122 = vpack.c.b16 %v6866, %v6862
      %7379 = vmatprep.subr.bf16.mxu0 %v6868
      %7380 = vmatpush1.bf16.msra.mxu0 %v6867
      %7381 = vmatprep.subr.bf16.mxu0 %v6872
      %7382 = vmatpush1.bf16.msra.mxu0 %v6871
      %7383 = vmatprep.subr.bf16.mxu0 %v6876
      %7384 = vmatpush1.bf16.msra.mxu0 %v6875
      %7385 = vmatprep.subr.bf16.mxu0 %v6880
      %7386 = vmatpush1.bf16.msra.mxu0 %v6879
      %7387 = vmatprep.subr.bf16.mxu0 %v6884
      %7388 = vmatpush1.bf16.msra.mxu0 %v6883
      %7389 = vmatprep.subr.bf16.mxu0 %v6888
      %7390 = vmatpush1.bf16.msra.mxu0 %v6887
      %7391 = vmatprep.subr.bf16.mxu0 %v6892
      %7392 = vmatpush1.bf16.msra.mxu0 %v6891
      %7393 = vmatprep.subr.bf16.mxu0 %v6896
      %7394 = vmatpush1.bf16.msra.mxu0 %v6895
      %7395 = vmatprep.subr.bf16.mxu0 %v6900
      %7396 = vmatpush1.bf16.msra.mxu0 %v6899
      %7397 = vmatprep.subr.bf16.mxu0 %v6904
      %7398 = vmatpush1.bf16.msra.mxu0 %v6903
      %7399 = vmatprep.subr.bf16.mxu0 %v6908
      %7400 = vmatpush1.bf16.msra.mxu0 %v6907
      %7401 = vmatprep.subr.bf16.mxu0 %v6912
      %7402 = vmatpush1.bf16.msra.mxu0 %v6911
      %7403 = vmatprep.subr.bf16.mxu0 %v6916
      %7404 = vmatpush1.bf16.msra.mxu0 %v6915
      %7405 = vmatprep.subr.bf16.mxu0 %v6920
      %7406 = vmatpush1.bf16.msra.mxu0 %v6919
      %7407 = vmatprep.subr.bf16.mxu0 %v6924
      %7408 = vmatpush1.bf16.msra.mxu0 %v6923
      %7409 = vmatprep.subr.bf16.mxu0 %v6928
      %7410 = vmatpush1.bf16.msra.mxu0 %v6927
      %7411 = vmatprep.mubr.bf16.mxu0 %v5952
      %7412 = vmatmul.mubr.bf16.gmra.mrb[0].mxu0 %v5949
      %v7413 = vpop.f32.mrb[0].mxu0
      %v7414 = vadd.f32 0.0, %v7413
      %v7415 = vpop.f32.mrb[0].mxu0
      %v7416 = vadd.f32 0.0, %v7415
      %v7417 = vpop.f32.mrb[0].mxu0
      %v7418 = vadd.f32 0.0, %v7417
      %v7419 = vpop.f32.mrb[0].mxu0
      %v7420 = vadd.f32 0.0, %v7419
      %7421 = vmatprep.mubr.bf16.mxu0 %v5974
      %7422 = vmatmul.mubr.bf16.gmra.mrb[0].mxu0 %v5972
      %v7423 = vpop.f32.mrb[0].mxu0
      %v7424 = vadd.f32 0.0, %v7423
      %v7425 = vpop.f32.mrb[0].mxu0
      %v7426 = vadd.f32 0.0, %v7425
      %v7427 = vpop.f32.mrb[0].mxu0
      %v7428 = vadd.f32 0.0, %v7427
      %v7429 = vpop.f32.mrb[0].mxu0
      %v7430 = vadd.f32 0.0, %v7429
      %7431 = vmatprep.mubr.bf16.mxu0 %v5990
      %7432 = vmatmul.mubr.bf16.gmra.mrb[0].mxu0 %v5988
      %v7433 = vpop.f32.mrb[0].mxu0
      %v7434 = vadd.f32 0.0, %v7433
      %v7435 = vpop.f32.mrb[0].mxu0
      %v7436 = vadd.f32 0.0, %v7435
      %v7437 = vpop.f32.mrb[0].mxu0
      %v7438 = vadd.f32 0.0, %v7437
      %v7439 = vpop.f32.mrb[0].mxu0
      %v7440 = vadd.f32 0.0, %v7439
      %7441 = vmatprep.mubr.bf16.mxu0 %v6006
      %7442 = vmatmul.mubr.bf16.gmra.mrb[0].mxu0 %v6004
      %v7443 = vpop.f32.mrb[0].mxu0
      %v7444 = vadd.f32 0.0, %v7443
      %v7445 = vpop.f32.mrb[0].mxu0
      %v7446 = vadd.f32 0.0, %v7445
      %v7447 = vpop.f32.mrb[0].mxu0
      %v7448 = vadd.f32 0.0, %v7447
      %v7449 = vpop.f32.mrb[0].mxu0
      %v7450 = vadd.f32 0.0, %v7449
      %7451 = vmatprep.mubr.bf16.mxu0 %v6022
      %7452 = vmatmul.mubr.bf16.gmra.mrb[0].mxu0 %v6020
      %v7453 = vpop.f32.mrb[0].mxu0
      %v7454 = vadd.f32 0.0, %v7453
      %v7455 = vpop.f32.mrb[0].mxu0
      %v7456 = vadd.f32 0.0, %v7455
      %v7457 = vpop.f32.mrb[0].mxu0
      %v7458 = vadd.f32 0.0, %v7457
      %v7459 = vpop.f32.mrb[0].mxu0
      %v7460 = vadd.f32 0.0, %v7459
      %7461 = vmatprep.mubr.bf16.mxu0 %v6038
      %7462 = vmatmul.mubr.bf16.gmra.mrb[0].mxu0 %v6036
      %v7463 = vpop.f32.mrb[0].mxu0
      %v7464 = vadd.f32 0.0, %v7463
      %v7465 = vpop.f32.mrb[0].mxu0
      %v7466 = vadd.f32 0.0, %v7465
      %v7467 = vpop.f32.mrb[0].mxu0
      %v7468 = vadd.f32 0.0, %v7467
      %v7469 = vpop.f32.mrb[0].mxu0
      %v7470 = vadd.f32 0.0, %v7469
      %7471 = vdwg.mxu0
      %7472 = vmatprep.subr.bf16.mxu0 %v6932
      %7473 = vmatpush1.bf16.msra.mxu0 %v6931
      %7474 = vmatprep.subr.bf16.mxu0 %v6936
      %7475 = vmatpush1.bf16.msra.mxu0 %v6935
      %7476 = vmatprep.subr.bf16.mxu0 %v6940
      %7477 = vmatpush1.bf16.msra.mxu0 %v6939
      %7478 = vmatprep.subr.bf16.mxu0 %v6944
      %7479 = vmatpush1.bf16.msra.mxu0 %v6943
      %7480 = vmatprep.subr.bf16.mxu0 %v6948
      %7481 = vmatpush1.bf16.msra.mxu0 %v6947
      %7482 = vmatprep.subr.bf16.mxu0 %v6952
      %7483 = vmatpush1.bf16.msra.mxu0 %v6951
      %7484 = vmatprep.subr.bf16.mxu0 %v6956
      %7485 = vmatpush1.bf16.msra.mxu0 %v6955
      %7486 = vmatprep.subr.bf16.mxu0 %v6960
      %7487 = vmatpush1.bf16.msra.mxu0 %v6959
      %7488 = vmatprep.subr.bf16.mxu0 %v6964
      %7489 = vmatpush1.bf16.msra.mxu0 %v6963
      %7490 = vmatprep.subr.bf16.mxu0 %v6968
      %7491 = vmatpush1.bf16.msra.mxu0 %v6967
      %7492 = vmatprep.subr.bf16.mxu0 %v6972
      %7493 = vmatpush1.bf16.msra.mxu0 %v6971
      %7494 = vmatprep.subr.bf16.mxu0 %v6976
      %7495 = vmatpush1.bf16.msra.mxu0 %v6975
      %7496 = vmatprep.subr.bf16.mxu0 %v6980
      %7497 = vmatpush1.bf16.msra.mxu0 %v6979
      %7498 = vmatprep.subr.bf16.mxu0 %v6984
      %7499 = vmatpush1.bf16.msra.mxu0 %v6983
      %7500 = vmatprep.subr.bf16.mxu0 %v6988
      %7501 = vmatpush1.bf16.msra.mxu0 %v6987
      %7502 = vmatprep.subr.bf16.mxu0 %v6992
      %7503 = vmatpush1.bf16.msra.mxu0 %v6991
      %7504 = vmatprep.mubr.bf16.mxu0 %v5958
      %7505 = vmatmul.mubr.bf16.gmra.mrb[0].mxu0 %v5955
      %v7506 = vpop.f32.mrb[0].mxu0
      %v7507 = vadd.f32 %v7414, %v7506
      %v7508 = vpop.f32.mrb[0].mxu0
      %v7509 = vadd.f32 %v7416, %v7508
      %v7510 = vpop.f32.mrb[0].mxu0
      %v7511 = vadd.f32 %v7418, %v7510
      %v7512 = vpop.f32.mrb[0].mxu0
      %v7513 = vadd.f32 %v7420, %v7512
      %7514 = vmatprep.mubr.bf16.mxu0 %v5978
      %7515 = vmatmul.mubr.bf16.gmra.mrb[0].mxu0 %v5976
      %v7516 = vpop.f32.mrb[0].mxu0
      %v7517 = vadd.f32 %v7424, %v7516
      %v7518 = vpop.f32.mrb[0].mxu0
      %v7519 = vadd.f32 %v7426, %v7518
      %v7520 = vpop.f32.mrb[0].mxu0
      %v7521 = vadd.f32 %v7428, %v7520
      %v7522 = vpop.f32.mrb[0].mxu0
      %v7523 = vadd.f32 %v7430, %v7522
      %7524 = vmatprep.mubr.bf16.mxu0 %v5994
      %7525 = vmatmul.mubr.bf16.gmra.mrb[0].mxu0 %v5992
      %v7526 = vpop.f32.mrb[0].mxu0
      %v7527 = vadd.f32 %v7434, %v7526
      %v7528 = vpop.f32.mrb[0].mxu0
      %v7529 = vadd.f32 %v7436, %v7528
      %v7530 = vpop.f32.mrb[0].mxu0
      %v7531 = vadd.f32 %v7438, %v7530
      %v7532 = vpop.f32.mrb[0].mxu0
      %v7533 = vadd.f32 %v7440, %v7532
      %7534 = vmatprep.mubr.bf16.mxu0 %v6010
      %7535 = vmatmul.mubr.bf16.gmra.mrb[0].mxu0 %v6008
      %v7536 = vpop.f32.mrb[0].mxu0
      %v7537 = vadd.f32 %v7444, %v7536
      %v7538 = vpop.f32.mrb[0].mxu0
      %v7539 = vadd.f32 %v7446, %v7538
      %v7540 = vpop.f32.mrb[0].mxu0
      %v7541 = vadd.f32 %v7448, %v7540
      %v7542 = vpop.f32.mrb[0].mxu0
      %v7543 = vadd.f32 %v7450, %v7542
      %7544 = vmatprep.mubr.bf16.mxu0 %v6026
      %7545 = vmatmul.mubr.bf16.gmra.mrb[0].mxu0 %v6024
      %v7546 = vpop.f32.mrb[0].mxu0
      %v7547 = vadd.f32 %v7454, %v7546
      %v7548 = vpop.f32.mrb[0].mxu0
      %v7549 = vadd.f32 %v7456, %v7548
      %v7550 = vpop.f32.mrb[0].mxu0
      %v7551 = vadd.f32 %v7458, %v7550
      %v7552 = vpop.f32.mrb[0].mxu0
      %v7553 = vadd.f32 %v7460, %v7552
      %7554 = vmatprep.mubr.bf16.mxu0 %v6042
      %7555 = vmatmul.mubr.bf16.gmra.mrb[0].mxu0 %v6040
      %v7556 = vpop.f32.mrb[0].mxu0
      %v7557 = vadd.f32 %v7464, %v7556
      %v7558 = vpop.f32.mrb[0].mxu0
      %v7559 = vadd.f32 %v7466, %v7558
      %v7560 = vpop.f32.mrb[0].mxu0
      %v7561 = vadd.f32 %v7468, %v7560
      %v7562 = vpop.f32.mrb[0].mxu0
      %v7563 = vadd.f32 %v7470, %v7562
      %7564 = vdwg.mxu0
      %7565 = vmatprep.subr.bf16.mxu0 %v6996
      %7566 = vmatpush1.bf16.msra.mxu0 %v6995
      %7567 = vmatprep.subr.bf16.mxu0 %v7000
      %7568 = vmatpush1.bf16.msra.mxu0 %v6999
      %7569 = vmatprep.subr.bf16.mxu0 %v7004
      %7570 = vmatpush1.bf16.msra.mxu0 %v7003
      %7571 = vmatprep.subr.bf16.mxu0 %v7008
      %7572 = vmatpush1.bf16.msra.mxu0 %v7007
      %7573 = vmatprep.subr.bf16.mxu0 %v7012
      %7574 = vmatpush1.bf16.msra.mxu0 %v7011
      %7575 = vmatprep.subr.bf16.mxu0 %v7016
      %7576 = vmatpush1.bf16.msra.mxu0 %v7015
      %7577 = vmatprep.subr.bf16.mxu0 %v7020
      %7578 = vmatpush1.bf16.msra.mxu0 %v7019
      %7579 = vmatprep.subr.bf16.mxu0 %v7024
      %7580 = vmatpush1.bf16.msra.mxu0 %v7023
      %7581 = vmatprep.subr.bf16.mxu0 %v7028
      %7582 = vmatpush1.bf16.msra.mxu0 %v7027
      %7583 = vmatprep.subr.bf16.mxu0 %v7032
      %7584 = vmatpush1.bf16.msra.mxu0 %v7031
      %7585 = vmatprep.subr.bf16.mxu0 %v7036
      %7586 = vmatpush1.bf16.msra.mxu0 %v7035
      %7587 = vmatprep.subr.bf16.mxu0 %v7040
      %7588 = vmatpush1.bf16.msra.mxu0 %v7039
      %7589 = vmatprep.subr.bf16.mxu0 %v7044
      %7590 = vmatpush1.bf16.msra.mxu0 %v7043
      %7591 = vmatprep.subr.bf16.mxu0 %v7048
      %7592 = vmatpush1.bf16.msra.mxu0 %v7047
      %7593 = vmatprep.subr.bf16.mxu0 %v7052
      %7594 = vmatpush1.bf16.msra.mxu0 %v7051
      %7595 = vmatprep.subr.bf16.mxu0 %v7056
      %7596 = vmatpush1.bf16.msra.mxu0 %v7055
      %7597 = vmatprep.mubr.bf16.mxu0 %v5964
      %7598 = vmatmul.mubr.bf16.gmra.mrb[0].mxu0 %v5961
      %v7599 = vpop.f32.mrb[0].mxu0
      %v7600 = vadd.f32 %v7507, %v7599
      %v7601 = vpop.f32.mrb[0].mxu0
      %v7602 = vadd.f32 %v7509, %v7601
      %v7603 = vpop.f32.mrb[0].mxu0
      %v7604 = vadd.f32 %v7511, %v7603
      %v7605 = vpop.f32.mrb[0].mxu0
      %v7606 = vadd.f32 %v7513, %v7605
      %7607 = vmatprep.mubr.bf16.mxu0 %v5982
      %7608 = vmatmul.mubr.bf16.gmra.mrb[0].mxu0 %v5980
      %v7609 = vpop.f32.mrb[0].mxu0
      %v7610 = vadd.f32 %v7517, %v7609
      %v7611 = vpop.f32.mrb[0].mxu0
      %v7612 = vadd.f32 %v7519, %v7611
      %v7613 = vpop.f32.mrb[0].mxu0
      %v7614 = vadd.f32 %v7521, %v7613
      %v7615 = vpop.f32.mrb[0].mxu0
      %v7616 = vadd.f32 %v7523, %v7615
      %7617 = vmatprep.mubr.bf16.mxu0 %v5998
      %7618 = vmatmul.mubr.bf16.gmra.mrb[0].mxu0 %v5996
      %v7619 = vpop.f32.mrb[0].mxu0
      %v7620 = vadd.f32 %v7527, %v7619
      %v7621 = vpop.f32.mrb[0].mxu0
      %v7622 = vadd.f32 %v7529, %v7621
      %v7623 = vpop.f32.mrb[0].mxu0
      %v7624 = vadd.f32 %v7531, %v7623
      %v7625 = vpop.f32.mrb[0].mxu0
      %v7626 = vadd.f32 %v7533, %v7625
      %7627 = vmatprep.mubr.bf16.mxu0 %v6014
      %7628 = vmatmul.mubr.bf16.gmra.mrb[0].mxu0 %v6012
      %v7629 = vpop.f32.mrb[0].mxu0
      %v7630 = vadd.f32 %v7537, %v7629
      %v7631 = vpop.f32.mrb[0].mxu0
      %v7632 = vadd.f32 %v7539, %v7631
      %v7633 = vpop.f32.mrb[0].mxu0
      %v7634 = vadd.f32 %v7541, %v7633
      %v7635 = vpop.f32.mrb[0].mxu0
      %v7636 = vadd.f32 %v7543, %v7635
      %7637 = vmatprep.mubr.bf16.mxu0 %v6030
      %7638 = vmatmul.mubr.bf16.gmra.mrb[0].mxu0 %v6028
      %v7639 = vpop.f32.mrb[0].mxu0
      %v7640 = vadd.f32 %v7547, %v7639
      %v7641 = vpop.f32.mrb[0].mxu0
      %v7642 = vadd.f32 %v7549, %v7641
      %v7643 = vpop.f32.mrb[0].mxu0
      %v7644 = vadd.f32 %v7551, %v7643
      %v7645 = vpop.f32.mrb[0].mxu0
      %v7646 = vadd.f32 %v7553, %v7645
      %7647 = vmatprep.mubr.bf16.mxu0 %v6046
      %7648 = vmatmul.mubr.bf16.gmra.mrb[0].mxu0 %v6044
      %v7649 = vpop.f32.mrb[0].mxu0
      %v7650 = vadd.f32 %v7557, %v7649
      %v7651 = vpop.f32.mrb[0].mxu0
      %v7652 = vadd.f32 %v7559, %v7651
      %v7653 = vpop.f32.mrb[0].mxu0
      %v7654 = vadd.f32 %v7561, %v7653
      %v7655 = vpop.f32.mrb[0].mxu0
      %v7656 = vadd.f32 %v7563, %v7655
      %7657 = vdwg.mxu0
      %7658 = vmatprep.subr.bf16.mxu0 %v7060
      %7659 = vmatpush1.bf16.msra.mxu0 %v7059
      %7660 = vmatprep.subr.bf16.mxu0 %v7064
      %7661 = vmatpush1.bf16.msra.mxu0 %v7063
      %7662 = vmatprep.subr.bf16.mxu0 %v7068
      %7663 = vmatpush1.bf16.msra.mxu0 %v7067
      %7664 = vmatprep.subr.bf16.mxu0 %v7072
      %7665 = vmatpush1.bf16.msra.mxu0 %v7071
      %7666 = vmatprep.subr.bf16.mxu0 %v7076
      %7667 = vmatpush1.bf16.msra.mxu0 %v7075
      %7668 = vmatprep.subr.bf16.mxu0 %v7080
      %7669 = vmatpush1.bf16.msra.mxu0 %v7079
      %7670 = vmatprep.subr.bf16.mxu0 %v7084
      %7671 = vmatpush1.bf16.msra.mxu0 %v7083
      %7672 = vmatprep.subr.bf16.mxu0 %v7088
      %7673 = vmatpush1.bf16.msra.mxu0 %v7087
      %7674 = vmatprep.subr.bf16.mxu0 %v7092
      %7675 = vmatpush1.bf16.msra.mxu0 %v7091
      %7676 = vmatprep.subr.bf16.mxu0 %v7096
      %7677 = vmatpush1.bf16.msra.mxu0 %v7095
      %7678 = vmatprep.subr.bf16.mxu0 %v7100
      %7679 = vmatpush1.bf16.msra.mxu0 %v7099
      %7680 = vmatprep.subr.bf16.mxu0 %v7104
      %7681 = vmatpush1.bf16.msra.mxu0 %v7103
      %7682 = vmatprep.subr.bf16.mxu0 %v7108
      %7683 = vmatpush1.bf16.msra.mxu0 %v7107
      %7684 = vmatprep.subr.bf16.mxu0 %v7112
      %7685 = vmatpush1.bf16.msra.mxu0 %v7111
      %7686 = vmatprep.subr.bf16.mxu0 %v7116
      %7687 = vmatpush1.bf16.msra.mxu0 %v7115
      %7688 = vmatprep.subr.bf16.mxu0 %v7120
      %7689 = vmatpush1.bf16.msra.mxu0 %v7119
      %7690 = vmatprep.mubr.bf16.mxu0 %v5970
      %7691 = vmatmul.mubr.bf16.gmra.mrb[0].mxu0 %v5967
      %v7692 = vpop.f32.mrb[0].mxu0
      %v7693 = vadd.f32 %v7600, %v7692
      %v7694 = vpop.f32.mrb[0].mxu0
      %v7695 = vadd.f32 %v7602, %v7694
      %v7696 = vpop.f32.mrb[0].mxu0
      %v7697 = vadd.f32 %v7604, %v7696
      %v7698 = vpop.f32.mrb[0].mxu0
      %v7699 = vadd.f32 %v7606, %v7698
      %7700 = vmatprep.mubr.bf16.mxu0 %v5986
      %7701 = vmatmul.mubr.bf16.gmra.mrb[0].mxu0 %v5984
      %v7702 = vpop.f32.mrb[0].mxu0
      %v7703 = vadd.f32 %v7610, %v7702
      %v7704 = vpop.f32.mrb[0].mxu0
      %v7705 = vadd.f32 %v7612, %v7704
      %v7706 = vpop.f32.mrb[0].mxu0
      %v7707 = vadd.f32 %v7614, %v7706
      %v7708 = vpop.f32.mrb[0].mxu0
      %v7709 = vadd.f32 %v7616, %v7708
      %7710 = vmatprep.mubr.bf16.mxu0 %v6002
      %7711 = vmatmul.mubr.bf16.gmra.mrb[0].mxu0 %v6000
      %v7712 = vpop.f32.mrb[0].mxu0
      %v7713 = vadd.f32 %v7620, %v7712
      %v7714 = vpop.f32.mrb[0].mxu0
      %v7715 = vadd.f32 %v7622, %v7714
      %v7716 = vpop.f32.mrb[0].mxu0
      %v7717 = vadd.f32 %v7624, %v7716
      %v7718 = vpop.f32.mrb[0].mxu0
      %v7719 = vadd.f32 %v7626, %v7718
      %7720 = vmatprep.mubr.bf16.mxu0 %v6018
      %7721 = vmatmul.mubr.bf16.gmra.mrb[0].mxu0 %v6016
      %v7722 = vpop.f32.mrb[0].mxu0
      %v7723 = vadd.f32 %v7630, %v7722
      %v7724 = vpop.f32.mrb[0].mxu0
      %v7725 = vadd.f32 %v7632, %v7724
      %v7726 = vpop.f32.mrb[0].mxu0
      %v7727 = vadd.f32 %v7634, %v7726
      %v7728 = vpop.f32.mrb[0].mxu0
      %v7729 = vadd.f32 %v7636, %v7728
      %7730 = vmatprep.mubr.bf16.mxu0 %v6034
      %7731 = vmatmul.mubr.bf16.gmra.mrb[0].mxu0 %v6032
      %v7732 = vpop.f32.mrb[0].mxu0
      %v7733 = vadd.f32 %v7640, %v7732
      %v7734 = vpop.f32.mrb[0].mxu0
      %v7735 = vadd.f32 %v7642, %v7734
      %v7736 = vpop.f32.mrb[0].mxu0
      %v7737 = vadd.f32 %v7644, %v7736
      %v7738 = vpop.f32.mrb[0].mxu0
      %v7739 = vadd.f32 %v7646, %v7738
      %7740 = vmatprep.mubr.bf16.mxu0 %v6050
      %7741 = vmatmul.mubr.bf16.gmra.mrb[0].mxu0 %v6048
      %v7742 = vpop.f32.mrb[0].mxu0
      %v7743 = vadd.f32 %v7650, %v7742
      %v7744 = vpop.f32.mrb[0].mxu0
      %v7745 = vadd.f32 %v7652, %v7744
      %v7746 = vpop.f32.mrb[0].mxu0
      %v7747 = vadd.f32 %v7654, %v7746
      %v7748 = vpop.f32.mrb[0].mxu0
      %v7749 = vadd.f32 %v7656, %v7748
      %7750 = vdwg.mxu0
      %7751 = vmatprep.subr.bf16.mxu0 %v6870
      %7752 = vmatpush1.bf16.msra.mxu0 %v6869
      %7753 = vmatprep.subr.bf16.mxu0 %v6874
      %7754 = vmatpush1.bf16.msra.mxu0 %v6873
      %7755 = vmatprep.subr.bf16.mxu0 %v6878
      %7756 = vmatpush1.bf16.msra.mxu0 %v6877
      %7757 = vmatprep.subr.bf16.mxu0 %v6882
      %7758 = vmatpush1.bf16.msra.mxu0 %v6881
      %7759 = vmatprep.subr.bf16.mxu0 %v6886
      %7760 = vmatpush1.bf16.msra.mxu0 %v6885
      %7761 = vmatprep.subr.bf16.mxu0 %v6890
      %7762 = vmatpush1.bf16.msra.mxu0 %v6889
      %7763 = vmatprep.subr.bf16.mxu0 %v6894
      %7764 = vmatpush1.bf16.msra.mxu0 %v6893
      %7765 = vmatprep.subr.bf16.mxu0 %v6898
      %7766 = vmatpush1.bf16.msra.mxu0 %v6897
      %7767 = vmatprep.subr.bf16.mxu0 %v6902
      %7768 = vmatpush1.bf16.msra.mxu0 %v6901
      %7769 = vmatprep.subr.bf16.mxu0 %v6906
      %7770 = vmatpush1.bf16.msra.mxu0 %v6905
      %7771 = vmatprep.subr.bf16.mxu0 %v6910
      %7772 = vmatpush1.bf16.msra.mxu0 %v6909
      %7773 = vmatprep.subr.bf16.mxu0 %v6914
      %7774 = vmatpush1.bf16.msra.mxu0 %v6913
      %7775 = vmatprep.subr.bf16.mxu0 %v6918
      %7776 = vmatpush1.bf16.msra.mxu0 %v6917
      %7777 = vmatprep.subr.bf16.mxu0 %v6922
      %7778 = vmatpush1.bf16.msra.mxu0 %v6921
      %7779 = vmatprep.subr.bf16.mxu0 %v6926
      %7780 = vmatpush1.bf16.msra.mxu0 %v6925
      %7781 = vmatprep.subr.bf16.mxu0 %v6930
      %7782 = vmatpush1.bf16.msra.mxu0 %v6929
      %7783 = vmatprep.mubr.bf16.mxu0 %v5952
      %7784 = vmatmul.mubr.bf16.gmra.mrb[0].mxu0 %v5949
      %v7785 = vpop.f32.mrb[0].mxu0
      %v7786 = vadd.f32 0.0, %v7785
      %v7787 = vpop.f32.mrb[0].mxu0
      %v7788 = vadd.f32 0.0, %v7787
      %v7789 = vpop.f32.mrb[0].mxu0
      %v7790 = vadd.f32 0.0, %v7789
      %v7791 = vpop.f32.mrb[0].mxu0
      %v7792 = vadd.f32 0.0, %v7791
      %7793 = vmatprep.mubr.bf16.mxu0 %v5974
      %7794 = vmatmul.mubr.bf16.gmra.mrb[0].mxu0 %v5972
      %v7795 = vpop.f32.mrb[0].mxu0
      %v7796 = vadd.f32 0.0, %v7795
      %v7797 = vpop.f32.mrb[0].mxu0
      %v7798 = vadd.f32 0.0, %v7797
      %v7799 = vpop.f32.mrb[0].mxu0
      %v7800 = vadd.f32 0.0, %v7799
      %v7801 = vpop.f32.mrb[0].mxu0
      %v7802 = vadd.f32 0.0, %v7801
      %7803 = vmatprep.mubr.bf16.mxu0 %v5990
      %7804 = vmatmul.mubr.bf16.gmra.mrb[0].mxu0 %v5988
      %v7805 = vpop.f32.mrb[0].mxu0
      %v7806 = vadd.f32 0.0, %v7805
      %v7807 = vpop.f32.mrb[0].mxu0
      %v7808 = vadd.f32 0.0, %v7807
      %v7809 = vpop.f32.mrb[0].mxu0
      %v7810 = vadd.f32 0.0, %v7809
      %v7811 = vpop.f32.mrb[0].mxu0
      %v7812 = vadd.f32 0.0, %v7811
      %7813 = vmatprep.mubr.bf16.mxu0 %v6006
      %7814 = vmatmul.mubr.bf16.gmra.mrb[0].mxu0 %v6004
      %v7815 = vpop.f32.mrb[0].mxu0
      %v7816 = vadd.f32 0.0, %v7815
      %v7817 = vpop.f32.mrb[0].mxu0
      %v7818 = vadd.f32 0.0, %v7817
      %v7819 = vpop.f32.mrb[0].mxu0
      %v7820 = vadd.f32 0.0, %v7819
      %v7821 = vpop.f32.mrb[0].mxu0
      %v7822 = vadd.f32 0.0, %v7821
      %7823 = vmatprep.mubr.bf16.mxu0 %v6022
      %7824 = vmatmul.mubr.bf16.gmra.mrb[0].mxu0 %v6020
      %v7825 = vpop.f32.mrb[0].mxu0
      %v7826 = vadd.f32 0.0, %v7825
      %v7827 = vpop.f32.mrb[0].mxu0
      %v7828 = vadd.f32 0.0, %v7827
      %v7829 = vpop.f32.mrb[0].mxu0
      %v7830 = vadd.f32 0.0, %v7829
      %v7831 = vpop.f32.mrb[0].mxu0
      %v7832 = vadd.f32 0.0, %v7831
      %7833 = vmatprep.mubr.bf16.mxu0 %v6038
      %7834 = vmatmul.mubr.bf16.gmra.mrb[0].mxu0 %v6036
      %v7835 = vpop.f32.mrb[0].mxu0
      %v7836 = vadd.f32 0.0, %v7835
      %v7837 = vpop.f32.mrb[0].mxu0
      %v7838 = vadd.f32 0.0, %v7837
      %v7839 = vpop.f32.mrb[0].mxu0
      %v7840 = vadd.f32 0.0, %v7839
      %v7841 = vpop.f32.mrb[0].mxu0
      %v7842 = vadd.f32 0.0, %v7841
      %7843 = vdwg.mxu0
      %7844 = vmatprep.subr.bf16.mxu0 %v6934
      %7845 = vmatpush1.bf16.msra.mxu0 %v6933
      %7846 = vmatprep.subr.bf16.mxu0 %v6938
      %7847 = vmatpush1.bf16.msra.mxu0 %v6937
      %7848 = vmatprep.subr.bf16.mxu0 %v6942
      %7849 = vmatpush1.bf16.msra.mxu0 %v6941
      %7850 = vmatprep.subr.bf16.mxu0 %v6946
      %7851 = vmatpush1.bf16.msra.mxu0 %v6945
      %7852 = vmatprep.subr.bf16.mxu0 %v6950
      %7853 = vmatpush1.bf16.msra.mxu0 %v6949
      %7854 = vmatprep.subr.bf16.mxu0 %v6954
      %7855 = vmatpush1.bf16.msra.mxu0 %v6953
      %7856 = vmatprep.subr.bf16.mxu0 %v6958
      %7857 = vmatpush1.bf16.msra.mxu0 %v6957
      %7858 = vmatprep.subr.bf16.mxu0 %v6962
      %7859 = vmatpush1.bf16.msra.mxu0 %v6961
      %7860 = vmatprep.subr.bf16.mxu0 %v6966
      %7861 = vmatpush1.bf16.msra.mxu0 %v6965
      %7862 = vmatprep.subr.bf16.mxu0 %v6970
      %7863 = vmatpush1.bf16.msra.mxu0 %v6969
      %7864 = vmatprep.subr.bf16.mxu0 %v6974
      %7865 = vmatpush1.bf16.msra.mxu0 %v6973
      %7866 = vmatprep.subr.bf16.mxu0 %v6978
      %7867 = vmatpush1.bf16.msra.mxu0 %v6977
      %7868 = vmatprep.subr.bf16.mxu0 %v6982
      %7869 = vmatpush1.bf16.msra.mxu0 %v6981
      %7870 = vmatprep.subr.bf16.mxu0 %v6986
      %7871 = vmatpush1.bf16.msra.mxu0 %v6985
      %7872 = vmatprep.subr.bf16.mxu0 %v6990
      %7873 = vmatpush1.bf16.msra.mxu0 %v6989
      %7874 = vmatprep.subr.bf16.mxu0 %v6994
      %7875 = vmatpush1.bf16.msra.mxu0 %v6993
      %7876 = vmatprep.mubr.bf16.mxu0 %v5958
      %7877 = vmatmul.mubr.bf16.gmra.mrb[0].mxu0 %v5955
      %v7878 = vpop.f32.mrb[0].mxu0
      %v7879 = vadd.f32 %v7786, %v7878
      %v7880 = vpop.f32.mrb[0].mxu0
      %v7881 = vadd.f32 %v7788, %v7880
      %v7882 = vpop.f32.mrb[0].mxu0
      %v7883 = vadd.f32 %v7790, %v7882
      %v7884 = vpop.f32.mrb[0].mxu0
      %v7885 = vadd.f32 %v7792, %v7884
      %7886 = vmatprep.mubr.bf16.mxu0 %v5978
      %7887 = vmatmul.mubr.bf16.gmra.mrb[0].mxu0 %v5976
      %v7888 = vpop.f32.mrb[0].mxu0
      %v7889 = vadd.f32 %v7796, %v7888
      %v7890 = vpop.f32.mrb[0].mxu0
      %v7891 = vadd.f32 %v7798, %v7890
      %v7892 = vpop.f32.mrb[0].mxu0
      %v7893 = vadd.f32 %v7800, %v7892
      %v7894 = vpop.f32.mrb[0].mxu0
      %v7895 = vadd.f32 %v7802, %v7894
      %7896 = vmatprep.mubr.bf16.mxu0 %v5994
      %7897 = vmatmul.mubr.bf16.gmra.mrb[0].mxu0 %v5992
      %v7898 = vpop.f32.mrb[0].mxu0
      %v7899 = vadd.f32 %v7806, %v7898
      %v7900 = vpop.f32.mrb[0].mxu0
      %v7901 = vadd.f32 %v7808, %v7900
      %v7902 = vpop.f32.mrb[0].mxu0
      %v7903 = vadd.f32 %v7810, %v7902
      %v7904 = vpop.f32.mrb[0].mxu0
      %v7905 = vadd.f32 %v7812, %v7904
      %7906 = vmatprep.mubr.bf16.mxu0 %v6010
      %7907 = vmatmul.mubr.bf16.gmra.mrb[0].mxu0 %v6008
      %v7908 = vpop.f32.mrb[0].mxu0
      %v7909 = vadd.f32 %v7816, %v7908
      %v7910 = vpop.f32.mrb[0].mxu0
      %v7911 = vadd.f32 %v7818, %v7910
      %v7912 = vpop.f32.mrb[0].mxu0
      %v7913 = vadd.f32 %v7820, %v7912
      %v7914 = vpop.f32.mrb[0].mxu0
      %v7915 = vadd.f32 %v7822, %v7914
      %7916 = vmatprep.mubr.bf16.mxu0 %v6026
      %7917 = vmatmul.mubr.bf16.gmra.mrb[0].mxu0 %v6024
      %v7918 = vpop.f32.mrb[0].mxu0
      %v7919 = vadd.f32 %v7826, %v7918
      %v7920 = vpop.f32.mrb[0].mxu0
      %v7921 = vadd.f32 %v7828, %v7920
      %v7922 = vpop.f32.mrb[0].mxu0
      %v7923 = vadd.f32 %v7830, %v7922
      %v7924 = vpop.f32.mrb[0].mxu0
      %v7925 = vadd.f32 %v7832, %v7924
      %7926 = vmatprep.mubr.bf16.mxu0 %v6042
      %7927 = vmatmul.mubr.bf16.gmra.mrb[0].mxu0 %v6040
      %v7928 = vpop.f32.mrb[0].mxu0
      %v7929 = vadd.f32 %v7836, %v7928
      %v7930 = vpop.f32.mrb[0].mxu0
      %v7931 = vadd.f32 %v7838, %v7930
      %v7932 = vpop.f32.mrb[0].mxu0
      %v7933 = vadd.f32 %v7840, %v7932
      %v7934 = vpop.f32.mrb[0].mxu0
      %v7935 = vadd.f32 %v7842, %v7934
      %7936 = vdwg.mxu0
      %7937 = vmatprep.subr.bf16.mxu0 %v6998
      %7938 = vmatpush1.bf16.msra.mxu0 %v6997
      %7939 = vmatprep.subr.bf16.mxu0 %v7002
      %7940 = vmatpush1.bf16.msra.mxu0 %v7001
      %7941 = vmatprep.subr.bf16.mxu0 %v7006
      %7942 = vmatpush1.bf16.msra.mxu0 %v7005
      %7943 = vmatprep.subr.bf16.mxu0 %v7010
      %7944 = vmatpush1.bf16.msra.mxu0 %v7009
      %7945 = vmatprep.subr.bf16.mxu0 %v7014
      %7946 = vmatpush1.bf16.msra.mxu0 %v7013
      %7947 = vmatprep.subr.bf16.mxu0 %v7018
      %7948 = vmatpush1.bf16.msra.mxu0 %v7017
      %7949 = vmatprep.subr.bf16.mxu0 %v7022
      %7950 = vmatpush1.bf16.msra.mxu0 %v7021
      %7951 = vmatprep.subr.bf16.mxu0 %v7026
      %7952 = vmatpush1.bf16.msra.mxu0 %v7025
      %7953 = vmatprep.subr.bf16.mxu0 %v7030
      %7954 = vmatpush1.bf16.msra.mxu0 %v7029
      %7955 = vmatprep.subr.bf16.mxu0 %v7034
      %7956 = vmatpush1.bf16.msra.mxu0 %v7033
      %7957 = vmatprep.subr.bf16.mxu0 %v7038
      %7958 = vmatpush1.bf16.msra.mxu0 %v7037
      %7959 = vmatprep.subr.bf16.mxu0 %v7042
      %7960 = vmatpush1.bf16.msra.mxu0 %v7041
      %7961 = vmatprep.subr.bf16.mxu0 %v7046
      %7962 = vmatpush1.bf16.msra.mxu0 %v7045
      %7963 = vmatprep.subr.bf16.mxu0 %v7050
      %7964 = vmatpush1.bf16.msra.mxu0 %v7049
      %7965 = vmatprep.subr.bf16.mxu0 %v7054
      %7966 = vmatpush1.bf16.msra.mxu0 %v7053
      %7967 = vmatprep.subr.bf16.mxu0 %v7058
      %7968 = vmatpush1.bf16.msra.mxu0 %v7057
      %7969 = vmatprep.mubr.bf16.mxu0 %v5964
      %7970 = vmatmul.mubr.bf16.gmra.mrb[0].mxu0 %v5961
      %v7971 = vpop.f32.mrb[0].mxu0
      %v7972 = vadd.f32 %v7879, %v7971
      %v7973 = vpop.f32.mrb[0].mxu0
      %v7974 = vadd.f32 %v7881, %v7973
      %v7975 = vpop.f32.mrb[0].mxu0
      %v7976 = vadd.f32 %v7883, %v7975
      %v7977 = vpop.f32.mrb[0].mxu0
      %v7978 = vadd.f32 %v7885, %v7977
      %7979 = vmatprep.mubr.bf16.mxu0 %v5982
      %7980 = vmatmul.mubr.bf16.gmra.mrb[0].mxu0 %v5980
      %v7981 = vpop.f32.mrb[0].mxu0
      %v7982 = vadd.f32 %v7889, %v7981
      %v7983 = vpop.f32.mrb[0].mxu0
      %v7984 = vadd.f32 %v7891, %v7983
      %v7985 = vpop.f32.mrb[0].mxu0
      %v7986 = vadd.f32 %v7893, %v7985
      %v7987 = vpop.f32.mrb[0].mxu0
      %v7988 = vadd.f32 %v7895, %v7987
      %7989 = vmatprep.mubr.bf16.mxu0 %v5998
      %7990 = vmatmul.mubr.bf16.gmra.mrb[0].mxu0 %v5996
      %v7991 = vpop.f32.mrb[0].mxu0
      %v7992 = vadd.f32 %v7899, %v7991
      %v7993 = vpop.f32.mrb[0].mxu0
      %v7994 = vadd.f32 %v7901, %v7993
      %v7995 = vpop.f32.mrb[0].mxu0
      %v7996 = vadd.f32 %v7903, %v7995
      %v7997 = vpop.f32.mrb[0].mxu0
      %v7998 = vadd.f32 %v7905, %v7997
      %7999 = vmatprep.mubr.bf16.mxu0 %v6014
      %8000 = vmatmul.mubr.bf16.gmra.mrb[0].mxu0 %v6012
      %v8001 = vpop.f32.mrb[0].mxu0
      %v8002 = vadd.f32 %v7909, %v8001
      %v8003 = vpop.f32.mrb[0].mxu0
      %v8004 = vadd.f32 %v7911, %v8003
      %v8005 = vpop.f32.mrb[0].mxu0
      %v8006 = vadd.f32 %v7913, %v8005
      %v8007 = vpop.f32.mrb[0].mxu0
      %v8008 = vadd.f32 %v7915, %v8007
      %8009 = vmatprep.mubr.bf16.mxu0 %v6030
      %8010 = vmatmul.mubr.bf16.gmra.mrb[0].mxu0 %v6028
      %v8011 = vpop.f32.mrb[0].mxu0
      %v8012 = vadd.f32 %v7919, %v8011
      %v8013 = vpop.f32.mrb[0].mxu0
      %v8014 = vadd.f32 %v7921, %v8013
      %v8015 = vpop.f32.mrb[0].mxu0
      %v8016 = vadd.f32 %v7923, %v8015
      %v8017 = vpop.f32.mrb[0].mxu0
      %v8018 = vadd.f32 %v7925, %v8017
      %8019 = vmatprep.mubr.bf16.mxu0 %v6046
      %8020 = vmatmul.mubr.bf16.gmra.mrb[0].mxu0 %v6044
      %v8021 = vpop.f32.mrb[0].mxu0
      %v8022 = vadd.f32 %v7929, %v8021
      %v8023 = vpop.f32.mrb[0].mxu0
      %v8024 = vadd.f32 %v7931, %v8023
      %v8025 = vpop.f32.mrb[0].mxu0
      %v8026 = vadd.f32 %v7933, %v8025
      %v8027 = vpop.f32.mrb[0].mxu0
      %v8028 = vadd.f32 %v7935, %v8027
      %8029 = vdwg.mxu0
      %8030 = vmatprep.subr.bf16.mxu0 %v7062
      %8031 = vmatpush1.bf16.msra.mxu0 %v7061
      %8032 = vmatprep.subr.bf16.mxu0 %v7066
      %8033 = vmatpush1.bf16.msra.mxu0 %v7065
      %8034 = vmatprep.subr.bf16.mxu0 %v7070
      %8035 = vmatpush1.bf16.msra.mxu0 %v7069
      %8036 = vmatprep.subr.bf16.mxu0 %v7074
      %8037 = vmatpush1.bf16.msra.mxu0 %v7073
      %8038 = vmatprep.subr.bf16.mxu0 %v7078
      %8039 = vmatpush1.bf16.msra.mxu0 %v7077
      %8040 = vmatprep.subr.bf16.mxu0 %v7082
      %8041 = vmatpush1.bf16.msra.mxu0 %v7081
      %8042 = vmatprep.subr.bf16.mxu0 %v7086
      %8043 = vmatpush1.bf16.msra.mxu0 %v7085
      %8044 = vmatprep.subr.bf16.mxu0 %v7090
      %8045 = vmatpush1.bf16.msra.mxu0 %v7089
      %8046 = vmatprep.subr.bf16.mxu0 %v7094
      %8047 = vmatpush1.bf16.msra.mxu0 %v7093
      %8048 = vmatprep.subr.bf16.mxu0 %v7098
      %8049 = vmatpush1.bf16.msra.mxu0 %v7097
      %8050 = vmatprep.subr.bf16.mxu0 %v7102
      %8051 = vmatpush1.bf16.msra.mxu0 %v7101
      %8052 = vmatprep.subr.bf16.mxu0 %v7106
      %8053 = vmatpush1.bf16.msra.mxu0 %v7105
      %8054 = vmatprep.subr.bf16.mxu0 %v7110
      %8055 = vmatpush1.bf16.msra.mxu0 %v7109
      %8056 = vmatprep.subr.bf16.mxu0 %v7114
      %8057 = vmatpush1.bf16.msra.mxu0 %v7113
      %8058 = vmatprep.subr.bf16.mxu0 %v7118
      %8059 = vmatpush1.bf16.msra.mxu0 %v7117
      %8060 = vmatprep.subr.bf16.mxu0 %v7122
      %8061 = vmatpush1.bf16.msra.mxu0 %v7121
      %8062 = vmatprep.mubr.bf16.mxu0 %v5970
      %8063 = vmatmul.mubr.bf16.gmra.mrb[0].mxu0 %v5967
      %v8064 = vpop.f32.mrb[0].mxu0
      %v8065 = vadd.f32 %v7972, %v8064
      %v8066 = vpop.f32.mrb[0].mxu0
      %v8067 = vadd.f32 %v7974, %v8066
      %v8068 = vpop.f32.mrb[0].mxu0
      %v8069 = vadd.f32 %v7976, %v8068
      %v8070 = vpop.f32.mrb[0].mxu0
      %v8071 = vadd.f32 %v7978, %v8070
      %8072 = vmatprep.mubr.bf16.mxu0 %v5986
      %8073 = vmatmul.mubr.bf16.gmra.mrb[0].mxu0 %v5984
      %v8074 = vpop.f32.mrb[0].mxu0
      %v8075 = vadd.f32 %v7982, %v8074
      %v8076 = vpop.f32.mrb[0].mxu0
      %v8077 = vadd.f32 %v7984, %v8076
      %v8078 = vpop.f32.mrb[0].mxu0
      %v8079 = vadd.f32 %v7986, %v8078
      %v8080 = vpop.f32.mrb[0].mxu0
      %v8081 = vadd.f32 %v7988, %v8080
      %8082 = vmatprep.mubr.bf16.mxu0 %v6002
      %8083 = vmatmul.mubr.bf16.gmra.mrb[0].mxu0 %v6000
      %v8084 = vpop.f32.mrb[0].mxu0
      %v8085 = vadd.f32 %v7992, %v8084
      %v8086 = vpop.f32.mrb[0].mxu0
      %v8087 = vadd.f32 %v7994, %v8086
      %v8088 = vpop.f32.mrb[0].mxu0
      %v8089 = vadd.f32 %v7996, %v8088
      %v8090 = vpop.f32.mrb[0].mxu0
      %v8091 = vadd.f32 %v7998, %v8090
      %8092 = vmatprep.mubr.bf16.mxu0 %v6018
      %8093 = vmatmul.mubr.bf16.gmra.mrb[0].mxu0 %v6016
      %v8094 = vpop.f32.mrb[0].mxu0
      %v8095 = vadd.f32 %v8002, %v8094
      %v8096 = vpop.f32.mrb[0].mxu0
      %v8097 = vadd.f32 %v8004, %v8096
      %v8098 = vpop.f32.mrb[0].mxu0
      %v8099 = vadd.f32 %v8006, %v8098
      %v8100 = vpop.f32.mrb[0].mxu0
      %v8101 = vadd.f32 %v8008, %v8100
      %8102 = vmatprep.mubr.bf16.mxu0 %v6034
      %8103 = vmatmul.mubr.bf16.gmra.mrb[0].mxu0 %v6032
      %v8104 = vpop.f32.mrb[0].mxu0
      %v8105 = vadd.f32 %v8012, %v8104
      %v8106 = vpop.f32.mrb[0].mxu0
      %v8107 = vadd.f32 %v8014, %v8106
      %v8108 = vpop.f32.mrb[0].mxu0
      %v8109 = vadd.f32 %v8016, %v8108
      %v8110 = vpop.f32.mrb[0].mxu0
      %v8111 = vadd.f32 %v8018, %v8110
      %8112 = vmatprep.mubr.bf16.mxu0 %v6050
      %8113 = vmatmul.mubr.bf16.gmra.mrb[0].mxu0 %v6048
      %v8114 = vpop.f32.mrb[0].mxu0
      %v8115 = vadd.f32 %v8022, %v8114
      %v8116 = vpop.f32.mrb[0].mxu0
      %v8117 = vadd.f32 %v8024, %v8116
      %v8118 = vpop.f32.mrb[0].mxu0
      %v8119 = vadd.f32 %v8026, %v8118
      %v8120 = vpop.f32.mrb[0].mxu0
      %v8121 = vadd.f32 %v8028, %v8120
      %8122 = vdwg.mxu0
      %v8123 = vadd.f32 %v5235, %v7693
      %v8124 = vadd.f32 %v5237, %v7695
      %v8125 = vadd.f32 %v5607, %v8065
      %v8126 = vadd.f32 %v5609, %v8067
      %v8127 = vadd.f32 %v5239, %v7697
      %v8128 = vadd.f32 %v5241, %v7699
      %v8129 = vadd.f32 %v5611, %v8069
      %v8130 = vadd.f32 %v5613, %v8071
      %v8131 = vadd.f32 %v5245, %v7703
      %v8132 = vadd.f32 %v5247, %v7705
      %v8133 = vadd.f32 %v5617, %v8075
      %v8134 = vadd.f32 %v5619, %v8077
      %v8135 = vadd.f32 %v5249, %v7707
      %v8136 = vadd.f32 %v5251, %v7709
      %v8137 = vadd.f32 %v5621, %v8079
      %v8138 = vadd.f32 %v5623, %v8081
      %v8139 = vadd.f32 %v5255, %v7713
      %v8140 = vadd.f32 %v5257, %v7715
      %v8141 = vadd.f32 %v5627, %v8085
      %v8142 = vadd.f32 %v5629, %v8087
      %v8143 = vadd.f32 %v5259, %v7717
      %v8144 = vadd.f32 %v5261, %v7719
      %v8145 = vadd.f32 %v5631, %v8089
      %v8146 = vadd.f32 %v5633, %v8091
      %v8147 = vadd.f32 %v5265, %v7723
      %v8148 = vadd.f32 %v5267, %v7725
      %v8149 = vadd.f32 %v5637, %v8095
      %v8150 = vadd.f32 %v5639, %v8097
      %v8151 = vadd.f32 %v5269, %v7727
      %v8152 = vadd.f32 %v5271, %v7729
      %v8153 = vadd.f32 %v5641, %v8099
      %v8154 = vadd.f32 %v5643, %v8101
      %v8155 = vadd.f32 %v5275, %v7733
      %v8156 = vadd.f32 %v5277, %v7735
      %v8157 = vadd.f32 %v5647, %v8105
      %v8158 = vadd.f32 %v5649, %v8107
      %v8159 = vadd.f32 %v5279, %v7737
      %v8160 = vadd.f32 %v5281, %v7739
      %v8161 = vadd.f32 %v5651, %v8109
      %v8162 = vadd.f32 %v5653, %v8111
      %v8163 = vadd.f32 %v5285, %v7743
      %v8164 = vadd.f32 %v5287, %v7745
      %v8165 = vadd.f32 %v5657, %v8115
      %v8166 = vadd.f32 %v5659, %v8117
      %v8167 = vadd.f32 %v5289, %v7747
      %v8168 = vadd.f32 %v5291, %v7749
      %v8169 = vadd.f32 %v5661, %v8119
      %v8170 = vadd.f32 %v5663, %v8121
      %v8171 = vld [vmem:[%s3] sm:$0xf]
      %v8173 = vlaneseq
      %v8174 = vshrl.u32 %v8173, 7
      %v8175 = vsub.s32 0, %v8174
      %v8176 = vrot.slane %v8171, %v8175
      %v8177 = vlaneseq
      %v8178 = vshrl.u32 %v8177, 7
      %v8179 = vsub.s32 1, %v8178
      %v8180 = vrot.slane %v8171, %v8179
      %v8181 = vlaneseq
      %v8182 = vshrl.u32 %v8181, 7
      %v8183 = vsub.s32 2, %v8182
      %v8184 = vrot.slane %v8171, %v8183
      %v8185 = vlaneseq
      %v8186 = vshrl.u32 %v8185, 7
      %v8187 = vsub.s32 3, %v8186
      %v8188 = vrot.slane %v8171, %v8187
      %v8193 = vmul.f32 %v8123, %v8176
      %v8194 = vmul.f32 %v8124, %v8180
      %v8195 = vmul.f32 %v8125, %v8184
      %v8196 = vmul.f32 %v8126, %v8188
      %v8197 = vmul.f32 %v8127, %v8176
      %v8198 = vmul.f32 %v8128, %v8180
      %v8199 = vmul.f32 %v8129, %v8184
      %v8200 = vmul.f32 %v8130, %v8188
      %v8201 = vmul.f32 %v8131, %v8176
      %v8202 = vmul.f32 %v8132, %v8180
      %v8203 = vmul.f32 %v8133, %v8184
      %v8204 = vmul.f32 %v8134, %v8188
      %v8205 = vmul.f32 %v8135, %v8176
      %v8206 = vmul.f32 %v8136, %v8180
      %v8207 = vmul.f32 %v8137, %v8184
      %v8208 = vmul.f32 %v8138, %v8188
      %v8209 = vmul.f32 %v8139, %v8176
      %v8210 = vmul.f32 %v8140, %v8180
      %v8211 = vmul.f32 %v8141, %v8184
      %v8212 = vmul.f32 %v8142, %v8188
      %v8213 = vmul.f32 %v8143, %v8176
      %v8214 = vmul.f32 %v8144, %v8180
      %v8215 = vmul.f32 %v8145, %v8184
      %v8216 = vmul.f32 %v8146, %v8188
      %v8217 = vmul.f32 %v8147, %v8176
      %v8218 = vmul.f32 %v8148, %v8180
      %v8219 = vmul.f32 %v8149, %v8184
      %v8220 = vmul.f32 %v8150, %v8188
      %v8221 = vmul.f32 %v8151, %v8176
      %v8222 = vmul.f32 %v8152, %v8180
      %v8223 = vmul.f32 %v8153, %v8184
      %v8224 = vmul.f32 %v8154, %v8188
      %v8225 = vmul.f32 %v8155, %v8176
      %v8226 = vmul.f32 %v8156, %v8180
      %v8227 = vmul.f32 %v8157, %v8184
      %v8228 = vmul.f32 %v8158, %v8188
      %v8229 = vmul.f32 %v8159, %v8176
      %v8230 = vmul.f32 %v8160, %v8180
      %v8231 = vmul.f32 %v8161, %v8184
      %v8232 = vmul.f32 %v8162, %v8188
      %v8233 = vmul.f32 %v8163, %v8176
      %v8234 = vmul.f32 %v8164, %v8180
      %v8235 = vmul.f32 %v8165, %v8184
      %v8236 = vmul.f32 %v8166, %v8188
      %v8237 = vmul.f32 %v8167, %v8176
      %v8238 = vmul.f32 %v8168, %v8180
      %v8239 = vmul.f32 %v8169, %v8184
      %v8240 = vmul.f32 %v8170, %v8188
      %v8241 = vld [vmem:[%s4] sm:$0xf]
      %v8243 = vlaneseq
      %v8244 = vshrl.u32 %v8243, 7
      %v8245 = vsub.s32 0, %v8244
      %v8246 = vrot.slane %v8241, %v8245
      %v8247 = vlaneseq
      %v8248 = vshrl.u32 %v8247, 7
      %v8249 = vsub.s32 1, %v8248
      %v8250 = vrot.slane %v8241, %v8249
      %v8251 = vlaneseq
      %v8252 = vshrl.u32 %v8251, 7
      %v8253 = vsub.s32 2, %v8252
      %v8254 = vrot.slane %v8241, %v8253
      %v8255 = vlaneseq
      %v8256 = vshrl.u32 %v8255, 7
      %v8257 = vsub.s32 3, %v8256
      %v8258 = vrot.slane %v8241, %v8257
      %v8263 = vadd.f32 %v8193, %v8246
      %v8264 = vadd.f32 %v8194, %v8250
      %v8265 = vadd.f32 %v8195, %v8254
      %v8266 = vadd.f32 %v8196, %v8258
      %v8267 = vadd.f32 %v8197, %v8246
      %v8268 = vadd.f32 %v8198, %v8250
      %v8269 = vadd.f32 %v8199, %v8254
      %v8270 = vadd.f32 %v8200, %v8258
      %v8271 = vadd.f32 %v8201, %v8246
      %v8272 = vadd.f32 %v8202, %v8250
      %v8273 = vadd.f32 %v8203, %v8254
      %v8274 = vadd.f32 %v8204, %v8258
      %v8275 = vadd.f32 %v8205, %v8246
      %v8276 = vadd.f32 %v8206, %v8250
      %v8277 = vadd.f32 %v8207, %v8254
      %v8278 = vadd.f32 %v8208, %v8258
      %v8279 = vadd.f32 %v8209, %v8246
      %v8280 = vadd.f32 %v8210, %v8250
      %v8281 = vadd.f32 %v8211, %v8254
      %v8282 = vadd.f32 %v8212, %v8258
      %v8283 = vadd.f32 %v8213, %v8246
      %v8284 = vadd.f32 %v8214, %v8250
      %v8285 = vadd.f32 %v8215, %v8254
      %v8286 = vadd.f32 %v8216, %v8258
      %v8287 = vadd.f32 %v8217, %v8246
      %v8288 = vadd.f32 %v8218, %v8250
      %v8289 = vadd.f32 %v8219, %v8254
      %v8290 = vadd.f32 %v8220, %v8258
      %v8291 = vadd.f32 %v8221, %v8246
      %v8292 = vadd.f32 %v8222, %v8250
      %v8293 = vadd.f32 %v8223, %v8254
      %v8294 = vadd.f32 %v8224, %v8258
      %v8295 = vadd.f32 %v8225, %v8246
      %v8296 = vadd.f32 %v8226, %v8250
      %v8297 = vadd.f32 %v8227, %v8254
      %v8298 = vadd.f32 %v8228, %v8258
      %v8299 = vadd.f32 %v8229, %v8246
      %v8300 = vadd.f32 %v8230, %v8250
      %v8301 = vadd.f32 %v8231, %v8254
      %v8302 = vadd.f32 %v8232, %v8258
      %v8303 = vadd.f32 %v8233, %v8246
      %v8304 = vadd.f32 %v8234, %v8250
      %v8305 = vadd.f32 %v8235, %v8254
      %v8306 = vadd.f32 %v8236, %v8258
      %v8307 = vadd.f32 %v8237, %v8246
      %v8308 = vadd.f32 %v8238, %v8250
      %v8309 = vadd.f32 %v8239, %v8254
      %v8310 = vadd.f32 %v8240, %v8258
      %v8311 = vmax.f32 %v8263, 0.0
      %v8312 = vmax.f32 %v8264, 0.0
      %v8313 = vmax.f32 %v8265, 0.0
      %v8314 = vmax.f32 %v8266, 0.0
      %v8315 = vmax.f32 %v8267, 0.0
      %v8316 = vmax.f32 %v8268, 0.0
      %v8317 = vmax.f32 %v8269, 0.0
      %v8318 = vmax.f32 %v8270, 0.0
      %v8319 = vmax.f32 %v8271, 0.0
      %v8320 = vmax.f32 %v8272, 0.0
      %v8321 = vmax.f32 %v8273, 0.0
      %v8322 = vmax.f32 %v8274, 0.0
      %v8323 = vmax.f32 %v8275, 0.0
      %v8324 = vmax.f32 %v8276, 0.0
      %v8325 = vmax.f32 %v8277, 0.0
      %v8326 = vmax.f32 %v8278, 0.0
      %v8327 = vmax.f32 %v8279, 0.0
      %v8328 = vmax.f32 %v8280, 0.0
      %v8329 = vmax.f32 %v8281, 0.0
      %v8330 = vmax.f32 %v8282, 0.0
      %v8331 = vmax.f32 %v8283, 0.0
      %v8332 = vmax.f32 %v8284, 0.0
      %v8333 = vmax.f32 %v8285, 0.0
      %v8334 = vmax.f32 %v8286, 0.0
      %v8335 = vmax.f32 %v8287, 0.0
      %v8336 = vmax.f32 %v8288, 0.0
      %v8337 = vmax.f32 %v8289, 0.0
      %v8338 = vmax.f32 %v8290, 0.0
      %v8339 = vmax.f32 %v8291, 0.0
      %v8340 = vmax.f32 %v8292, 0.0
      %v8341 = vmax.f32 %v8293, 0.0
      %v8342 = vmax.f32 %v8294, 0.0
      %v8343 = vmax.f32 %v8295, 0.0
      %v8344 = vmax.f32 %v8296, 0.0
      %v8345 = vmax.f32 %v8297, 0.0
      %v8346 = vmax.f32 %v8298, 0.0
      %v8347 = vmax.f32 %v8299, 0.0
      %v8348 = vmax.f32 %v8300, 0.0
      %v8349 = vmax.f32 %v8301, 0.0
      %v8350 = vmax.f32 %v8302, 0.0
      %v8351 = vmax.f32 %v8303, 0.0
      %v8352 = vmax.f32 %v8304, 0.0
      %v8353 = vmax.f32 %v8305, 0.0
      %v8354 = vmax.f32 %v8306, 0.0
      %v8355 = vmax.f32 %v8307, 0.0
      %v8356 = vmax.f32 %v8308, 0.0
      %v8357 = vmax.f32 %v8309, 0.0
      %v8358 = vmax.f32 %v8310, 0.0
      %v8359 = vld [vmem:[%s320] sm:$0xff]
      %v8360 = vld [vmem:[%s320 + $0x8] sm:$0xff]
      %v8361 = vld [vmem:[%s320 + $0x10] sm:$0xff]
      %v8362 = vld [vmem:[%s320 + $0x18] sm:$0xff]
      %v8363 = vld [vmem:[%s320 + $0x20] sm:$0xff]
      %v8364 = vld [vmem:[%s320 + $0x28] sm:$0xff]
      %v8365 = vld [vmem:[%s320 + $0x30] sm:$0xff]
      %v8366 = vld [vmem:[%s320 + $0x38] sm:$0xff]
      %v8367 = vld [vmem:[%s320 + $0x40] sm:$0xff]
      %v8368 = vld [vmem:[%s320 + $0x48] sm:$0xff]
      %v8369 = vld [vmem:[%s320 + $0x50] sm:$0xff]
      %v8370 = vld [vmem:[%s320 + $0x58] sm:$0xff]
      %v8371 = vld [vmem:[%s320 + $0x60] sm:$0xff]
      %v8372 = vld [vmem:[%s320 + $0x68] sm:$0xff]
      %v8373 = vld [vmem:[%s320 + $0x70] sm:$0xff]
      %v8374 = vld [vmem:[%s320 + $0x78] sm:$0xff]
      %v8375 = vld [vmem:[%s320 + $0x80] sm:$0xff]
      %v8376 = vld [vmem:[%s320 + $0x88] sm:$0xff]
      %v8377 = vld [vmem:[%s320 + $0x90] sm:$0xff]
      %v8378 = vld [vmem:[%s320 + $0x98] sm:$0xff]
      %v8379 = vld [vmem:[%s320 + $0xa0] sm:$0xff]
      %v8380 = vld [vmem:[%s320 + $0xa8] sm:$0xff]
      %v8381 = vld [vmem:[%s320 + $0xb0] sm:$0xff]
      %v8382 = vld [vmem:[%s320 + $0xb8] sm:$0xff]
      %v8383 = vunpack.c.l.bf16 %v8359
      %v8384 = vunpack.c.h.bf16 %v8359
      %v8385 = vunpack.c.l.bf16 %v8360
      %v8386 = vunpack.c.h.bf16 %v8360
      %v8387 = vunpack.c.l.bf16 %v8361
      %v8388 = vunpack.c.h.bf16 %v8361
      %v8389 = vunpack.c.l.bf16 %v8362
      %v8390 = vunpack.c.h.bf16 %v8362
      %v8391 = vunpack.c.l.bf16 %v8363
      %v8392 = vunpack.c.h.bf16 %v8363
      %v8393 = vunpack.c.l.bf16 %v8364
      %v8394 = vunpack.c.h.bf16 %v8364
      %v8395 = vunpack.c.l.bf16 %v8365
      %v8396 = vunpack.c.h.bf16 %v8365
      %v8397 = vunpack.c.l.bf16 %v8366
      %v8398 = vunpack.c.h.bf16 %v8366
      %v8399 = vunpack.c.l.bf16 %v8367
      %v8400 = vunpack.c.h.bf16 %v8367
      %v8401 = vunpack.c.l.bf16 %v8368
      %v8402 = vunpack.c.h.bf16 %v8368
      %v8403 = vunpack.c.l.bf16 %v8369
      %v8404 = vunpack.c.h.bf16 %v8369
      %v8405 = vunpack.c.l.bf16 %v8370
      %v8406 = vunpack.c.h.bf16 %v8370
      %v8407 = vunpack.c.l.bf16 %v8371
      %v8408 = vunpack.c.h.bf16 %v8371
      %v8409 = vunpack.c.l.bf16 %v8372
      %v8410 = vunpack.c.h.bf16 %v8372
      %v8411 = vunpack.c.l.bf16 %v8373
      %v8412 = vunpack.c.h.bf16 %v8373
      %v8413 = vunpack.c.l.bf16 %v8374
      %v8414 = vunpack.c.h.bf16 %v8374
      %v8415 = vunpack.c.l.bf16 %v8375
      %v8416 = vunpack.c.h.bf16 %v8375
      %v8417 = vunpack.c.l.bf16 %v8376
      %v8418 = vunpack.c.h.bf16 %v8376
      %v8419 = vunpack.c.l.bf16 %v8377
      %v8420 = vunpack.c.h.bf16 %v8377
      %v8421 = vunpack.c.l.bf16 %v8378
      %v8422 = vunpack.c.h.bf16 %v8378
      %v8423 = vunpack.c.l.bf16 %v8379
      %v8424 = vunpack.c.h.bf16 %v8379
      %v8425 = vunpack.c.l.bf16 %v8380
      %v8426 = vunpack.c.h.bf16 %v8380
      %v8427 = vunpack.c.l.bf16 %v8381
      %v8428 = vunpack.c.h.bf16 %v8381
      %v8429 = vunpack.c.l.bf16 %v8382
      %v8430 = vunpack.c.h.bf16 %v8382
      %v8431 = vadd.f32 %v8311, %v8383
      %v8432 = vadd.f32 %v8312, %v8384
      %v8433 = vadd.f32 %v8313, %v8385
      %v8434 = vadd.f32 %v8314, %v8386
      %v8435 = vadd.f32 %v8315, %v8387
      %v8436 = vadd.f32 %v8316, %v8388
      %v8437 = vadd.f32 %v8317, %v8389
      %v8438 = vadd.f32 %v8318, %v8390
      %v8439 = vadd.f32 %v8319, %v8391
      %v8440 = vadd.f32 %v8320, %v8392
      %v8441 = vadd.f32 %v8321, %v8393
      %v8442 = vadd.f32 %v8322, %v8394
      %v8443 = vadd.f32 %v8323, %v8395
      %v8444 = vadd.f32 %v8324, %v8396
      %v8445 = vadd.f32 %v8325, %v8397
      %v8446 = vadd.f32 %v8326, %v8398
      %v8447 = vadd.f32 %v8327, %v8399
      %v8448 = vadd.f32 %v8328, %v8400
      %v8449 = vadd.f32 %v8329, %v8401
      %v8450 = vadd.f32 %v8330, %v8402
      %v8451 = vadd.f32 %v8331, %v8403
      %v8452 = vadd.f32 %v8332, %v8404
      %v8453 = vadd.f32 %v8333, %v8405
      %v8454 = vadd.f32 %v8334, %v8406
      %v8455 = vadd.f32 %v8335, %v8407
      %v8456 = vadd.f32 %v8336, %v8408
      %v8457 = vadd.f32 %v8337, %v8409
      %v8458 = vadd.f32 %v8338, %v8410
      %v8459 = vadd.f32 %v8339, %v8411
      %v8460 = vadd.f32 %v8340, %v8412
      %v8461 = vadd.f32 %v8341, %v8413
      %v8462 = vadd.f32 %v8342, %v8414
      %v8463 = vadd.f32 %v8343, %v8415
      %v8464 = vadd.f32 %v8344, %v8416
      %v8465 = vadd.f32 %v8345, %v8417
      %v8466 = vadd.f32 %v8346, %v8418
      %v8467 = vadd.f32 %v8347, %v8419
      %v8468 = vadd.f32 %v8348, %v8420
      %v8469 = vadd.f32 %v8349, %v8421
      %v8470 = vadd.f32 %v8350, %v8422
      %v8471 = vadd.f32 %v8351, %v8423
      %v8472 = vadd.f32 %v8352, %v8424
      %v8473 = vadd.f32 %v8353, %v8425
      %v8474 = vadd.f32 %v8354, %v8426
      %v8475 = vadd.f32 %v8355, %v8427
      %v8476 = vadd.f32 %v8356, %v8428
      %v8477 = vadd.f32 %v8357, %v8429
      %v8478 = vadd.f32 %v8358, %v8430
      %v8479 = vpack.c.bf16 %v8435, %v8431
      %v8480 = vpack.c.bf16 %v8436, %v8432
      %v8481 = vpack.c.bf16 %v8437, %v8433
      %v8482 = vpack.c.bf16 %v8438, %v8434
      %v8483 = vpack.c.bf16 %v8443, %v8439
      %v8484 = vpack.c.bf16 %v8444, %v8440
      %v8485 = vpack.c.bf16 %v8445, %v8441
      %v8486 = vpack.c.bf16 %v8446, %v8442
      %v8487 = vpack.c.bf16 %v8451, %v8447
      %v8488 = vpack.c.bf16 %v8452, %v8448
      %v8489 = vpack.c.bf16 %v8453, %v8449
      %v8490 = vpack.c.bf16 %v8454, %v8450
      %v8491 = vpack.c.bf16 %v8459, %v8455
      %v8492 = vpack.c.bf16 %v8460, %v8456
      %v8493 = vpack.c.bf16 %v8461, %v8457
      %v8494 = vpack.c.bf16 %v8462, %v8458
      %v8495 = vpack.c.bf16 %v8467, %v8463
      %v8496 = vpack.c.bf16 %v8468, %v8464
      %v8497 = vpack.c.bf16 %v8469, %v8465
      %v8498 = vpack.c.bf16 %v8470, %v8466
      %v8499 = vpack.c.bf16 %v8475, %v8471
      %v8500 = vpack.c.bf16 %v8476, %v8472
      %v8501 = vpack.c.bf16 %v8477, %v8473
      %v8502 = vpack.c.bf16 %v8478, %v8474
      %vm8503 = vcmask 1040384
      %vm8504 = vsmask.f32 256
      %vm8505 = vmand %vm8503, %vm8504
      %vm8506 = vcmask 1044484
      %vm8507 = vsmask.f32 4352
      %vm8508 = vmand %vm8506, %vm8507
      %vm8509 = vmor %vm8508, %vm8505
      %v8510 = vld [vmem:[#allocation2] sm:$0x11]
      %v8511 = vsel %vm8509, 0, %v8510
      %8512 = vst [vmem:[#allocation2] sm:$0x11] %v8511
      %v8513 = vld [vmem:[#allocation2 + $0x8] sm:$0x11]
      %v8514 = vsel %vm8509, 0, %v8513
      %8515 = vst [vmem:[#allocation2 + $0x8] sm:$0x11] %v8514
      %v8540 = vunpack.c.l.b16 %v8479
      %v8541 = vunpack.c.l.b16 %v8480
      %v8542 = vunpack.c.l.b16 %v8481
      %v8543 = vunpack.c.l.b16 %v8482
      %v8544 = vunpack.c.h.b16 %v8479
      %v8545 = vunpack.c.h.b16 %v8480
      %v8546 = vunpack.c.h.b16 %v8481
      %v8547 = vunpack.c.h.b16 %v8482
      %v8548 = vunpack.c.l.b16 %v8483
      %v8549 = vunpack.c.l.b16 %v8484
      %v8550 = vunpack.c.l.b16 %v8485
      %v8551 = vunpack.c.l.b16 %v8486
      %v8552 = vunpack.c.h.b16 %v8483
      %v8553 = vunpack.c.h.b16 %v8484
      %v8554 = vunpack.c.h.b16 %v8485
      %v8555 = vunpack.c.h.b16 %v8486
      %v8556 = vunpack.c.l.b16 %v8487
      %v8557 = vunpack.c.l.b16 %v8488
      %v8558 = vunpack.c.l.b16 %v8489
      %v8559 = vunpack.c.l.b16 %v8490
      %v8560 = vunpack.c.h.b16 %v8487
      %v8561 = vunpack.c.h.b16 %v8488
      %v8562 = vunpack.c.h.b16 %v8489
      %v8563 = vunpack.c.h.b16 %v8490
      %v8564 = vunpack.c.l.b16 %v8491
      %v8565 = vunpack.c.l.b16 %v8492
      %v8566 = vunpack.c.l.b16 %v8493
      %v8567 = vunpack.c.l.b16 %v8494
      %v8568 = vunpack.c.h.b16 %v8491
      %v8569 = vunpack.c.h.b16 %v8492
      %v8570 = vunpack.c.h.b16 %v8493
      %v8571 = vunpack.c.h.b16 %v8494
      %v8572 = vunpack.c.l.b16 %v8495
      %v8573 = vunpack.c.l.b16 %v8496
      %v8574 = vunpack.c.l.b16 %v8497
      %v8575 = vunpack.c.l.b16 %v8498
      %v8576 = vunpack.c.h.b16 %v8495
      %v8577 = vunpack.c.h.b16 %v8496
      %v8578 = vunpack.c.h.b16 %v8497
      %v8579 = vunpack.c.h.b16 %v8498
      %v8580 = vunpack.c.l.b16 %v8499
      %v8581 = vunpack.c.l.b16 %v8500
      %v8582 = vunpack.c.l.b16 %v8501
      %v8583 = vunpack.c.l.b16 %v8502
      %v8584 = vunpack.c.h.b16 %v8499
      %v8585 = vunpack.c.h.b16 %v8500
      %v8586 = vunpack.c.h.b16 %v8501
      %v8587 = vunpack.c.h.b16 %v8502
      %v8588 = vpack.c.b16 %v8541, %v8540
      %v8589 = vpack.c.b16 %v8543, %v8542
      %v8590 = vpack.c.b16 %v8545, %v8544
      %v8591 = vpack.c.b16 %v8547, %v8546
      %v8592 = vpack.c.b16 %v8549, %v8548
      %v8593 = vpack.c.b16 %v8551, %v8550
      %v8594 = vpack.c.b16 %v8553, %v8552
      %v8595 = vpack.c.b16 %v8555, %v8554
      %v8596 = vpack.c.b16 %v8557, %v8556
      %v8597 = vpack.c.b16 %v8559, %v8558
      %v8598 = vpack.c.b16 %v8561, %v8560
      %v8599 = vpack.c.b16 %v8563, %v8562
      %v8600 = vpack.c.b16 %v8565, %v8564
      %v8601 = vpack.c.b16 %v8567, %v8566
      %v8602 = vpack.c.b16 %v8569, %v8568
      %v8603 = vpack.c.b16 %v8571, %v8570
      %v8604 = vpack.c.b16 %v8573, %v8572
      %v8605 = vpack.c.b16 %v8575, %v8574
      %v8606 = vpack.c.b16 %v8577, %v8576
      %v8607 = vpack.c.b16 %v8579, %v8578
      %v8608 = vpack.c.b16 %v8581, %v8580
      %v8609 = vpack.c.b16 %v8583, %v8582
      %v8610 = vpack.c.b16 %v8585, %v8584
      %v8611 = vpack.c.b16 %v8587, %v8586
      %vm8612 = vsmask.f32 4368
      %vm8613 = vmor %vm8504, %vm8612
      %v8615 = vshrl.u32 %v8588, 16
      %v8617 = vrot.slane %v8615, 7
      %v8618 = vshll.u32 %v8588, 16
      %v8620 = vor.u32 %v8617, %v8618
      %v8622 = vshrl.u32 %v8589, 16
      %v8624 = vrot.slane %v8622, 7
      %v8625 = vshll.u32 %v8589, 16
      %v8627 = vor.u32 %v8624, %v8625
      %v8628 = vrot.slane %v8617, 4
      %v8630 = vshrl.u32 %v8590, 16
      %v8632 = vrot.slane %v8630, 7
      %v8633 = vshll.u32 %v8590, 16
      %v8635 = vor.u32 %v8632, %v8633
      %v8636 = vsel %vm8613, %v8628, %v8635
      %v8637 = vrot.slane %v8624, 4
      %v8639 = vshrl.u32 %v8591, 16
      %v8641 = vrot.slane %v8639, 7
      %v8642 = vshll.u32 %v8591, 16
      %v8644 = vor.u32 %v8641, %v8642
      %v8645 = vsel %vm8613, %v8637, %v8644
      %v8646 = vrot.slane %v8632, 4
      %v8648 = vshrl.u32 %v8592, 16
      %v8650 = vrot.slane %v8648, 7
      %v8651 = vshll.u32 %v8592, 16
      %v8653 = vor.u32 %v8650, %v8651
      %v8654 = vsel %vm8613, %v8646, %v8653
      %v8655 = vrot.slane %v8641, 4
      %v8657 = vshrl.u32 %v8593, 16
      %v8659 = vrot.slane %v8657, 7
      %v8660 = vshll.u32 %v8593, 16
      %v8662 = vor.u32 %v8659, %v8660
      %v8663 = vsel %vm8613, %v8655, %v8662
      %v8664 = vrot.slane %v8650, 4
      %v8666 = vshrl.u32 %v8594, 16
      %v8668 = vrot.slane %v8666, 7
      %v8669 = vshll.u32 %v8594, 16
      %v8671 = vor.u32 %v8668, %v8669
      %v8672 = vsel %vm8613, %v8664, %v8671
      %v8673 = vrot.slane %v8659, 4
      %v8675 = vshrl.u32 %v8595, 16
      %v8677 = vrot.slane %v8675, 7
      %v8678 = vshll.u32 %v8595, 16
      %v8680 = vor.u32 %v8677, %v8678
      %v8681 = vsel %vm8613, %v8673, %v8680
      %v8682 = vrot.slane %v8668, 4
      %v8684 = vshrl.u32 %v8596, 16
      %v8686 = vrot.slane %v8684, 7
      %v8687 = vshll.u32 %v8596, 16
      %v8689 = vor.u32 %v8686, %v8687
      %v8690 = vsel %vm8613, %v8682, %v8689
      %v8691 = vrot.slane %v8677, 4
      %v8693 = vshrl.u32 %v8597, 16
      %v8695 = vrot.slane %v8693, 7
      %v8696 = vshll.u32 %v8597, 16
      %v8698 = vor.u32 %v8695, %v8696
      %v8699 = vsel %vm8613, %v8691, %v8698
      %v8700 = vrot.slane %v8686, 4
      %v8702 = vshrl.u32 %v8598, 16
      %v8704 = vrot.slane %v8702, 7
      %v8705 = vshll.u32 %v8598, 16
      %v8707 = vor.u32 %v8704, %v8705
      %v8708 = vsel %vm8613, %v8700, %v8707
      %v8709 = vrot.slane %v8695, 4
      %v8711 = vshrl.u32 %v8599, 16
      %v8713 = vrot.slane %v8711, 7
      %v8714 = vshll.u32 %v8599, 16
      %v8716 = vor.u32 %v8713, %v8714
      %v8717 = vsel %vm8613, %v8709, %v8716
      %v8718 = vrot.slane %v8704, 4
      %v8720 = vshrl.u32 %v8600, 16
      %v8722 = vrot.slane %v8720, 7
      %v8723 = vshll.u32 %v8600, 16
      %v8725 = vor.u32 %v8722, %v8723
      %v8726 = vsel %vm8613, %v8718, %v8725
      %v8727 = vrot.slane %v8713, 4
      %v8729 = vshrl.u32 %v8601, 16
      %v8731 = vrot.slane %v8729, 7
      %v8732 = vshll.u32 %v8601, 16
      %v8734 = vor.u32 %v8731, %v8732
      %v8735 = vsel %vm8613, %v8727, %v8734
      %v8736 = vrot.slane %v8722, 4
      %v8738 = vshrl.u32 %v8602, 16
      %v8740 = vrot.slane %v8738, 7
      %v8741 = vshll.u32 %v8602, 16
      %v8743 = vor.u32 %v8740, %v8741
      %v8744 = vsel %vm8613, %v8736, %v8743
      %v8745 = vrot.slane %v8731, 4
      %v8747 = vshrl.u32 %v8603, 16
      %v8749 = vrot.slane %v8747, 7
      %v8750 = vshll.u32 %v8603, 16
      %v8752 = vor.u32 %v8749, %v8750
      %v8753 = vsel %vm8613, %v8745, %v8752
      %v8754 = vrot.slane %v8740, 4
      %v8756 = vshrl.u32 %v8604, 16
      %v8758 = vrot.slane %v8756, 7
      %v8759 = vshll.u32 %v8604, 16
      %v8761 = vor.u32 %v8758, %v8759
      %v8762 = vsel %vm8613, %v8754, %v8761
      %v8763 = vrot.slane %v8749, 4
      %v8765 = vshrl.u32 %v8605, 16
      %v8767 = vrot.slane %v8765, 7
      %v8768 = vshll.u32 %v8605, 16
      %v8770 = vor.u32 %v8767, %v8768
      %v8771 = vsel %vm8613, %v8763, %v8770
      %v8772 = vrot.slane %v8758, 4
      %v8774 = vshrl.u32 %v8606, 16
      %v8776 = vrot.slane %v8774, 7
      %v8777 = vshll.u32 %v8606, 16
      %v8779 = vor.u32 %v8776, %v8777
      %v8780 = vsel %vm8613, %v8772, %v8779
      %v8781 = vrot.slane %v8767, 4
      %v8783 = vshrl.u32 %v8607, 16
      %v8785 = vrot.slane %v8783, 7
      %v8786 = vshll.u32 %v8607, 16
      %v8788 = vor.u32 %v8785, %v8786
      %v8789 = vsel %vm8613, %v8781, %v8788
      %v8790 = vrot.slane %v8776, 4
      %v8792 = vshrl.u32 %v8608, 16
      %v8794 = vrot.slane %v8792, 7
      %v8795 = vshll.u32 %v8608, 16
      %v8797 = vor.u32 %v8794, %v8795
      %v8798 = vsel %vm8613, %v8790, %v8797
      %v8799 = vrot.slane %v8785, 4
      %v8801 = vshrl.u32 %v8609, 16
      %v8803 = vrot.slane %v8801, 7
      %v8804 = vshll.u32 %v8609, 16
      %v8806 = vor.u32 %v8803, %v8804
      %v8807 = vsel %vm8613, %v8799, %v8806
      %v8808 = vrot.slane %v8794, 4
      %v8810 = vshrl.u32 %v8610, 16
      %v8812 = vrot.slane %v8810, 7
      %v8813 = vshll.u32 %v8610, 16
      %v8815 = vor.u32 %v8812, %v8813
      %v8816 = vsel %vm8613, %v8808, %v8815
      %v8817 = vrot.slane %v8803, 4
      %v8819 = vshrl.u32 %v8611, 16
      %v8821 = vrot.slane %v8819, 7
      %v8822 = vshll.u32 %v8611, 16
      %v8824 = vor.u32 %v8821, %v8822
      %v8825 = vsel %vm8613, %v8817, %v8824
      %v8826 = vrot.slane %v8812, 4
      %v8827 = vrot.slane %v8821, 4
      %vm8854 = vcmask 1043456
      %vm8855 = vsmask.f32 7938
      %vm8856 = vmand %vm8854, %vm8855
      %vm8857 = vcmask 1047556
      %vm8858 = vsmask.f32 7954
      %vm8859 = vmand %vm8857, %vm8858
      %vm8860 = vmor %vm8859, %vm8856
      %v8861 = vld [vmem:[#allocation2] sm:$0xff]
      %v8862 = vsel %vm8860, %v8620, %v8861
      %8863 = vst [vmem:[#allocation2] sm:$0xff] %v8862
      %v8864 = vld [vmem:[#allocation2 + $0x8] sm:$0xff]
      %v8865 = vsel %vm8860, %v8627, %v8864
      %8866 = vst [vmem:[#allocation2 + $0x8] sm:$0xff] %v8865
      %8867 = vst [vmem:[#allocation2 + $0x10] sm:$0xff] %v8636
      %8868 = vst [vmem:[#allocation2 + $0x18] sm:$0xff] %v8645
      %8869 = vst [vmem:[#allocation2 + $0x20] sm:$0xff] %v8654
      %8870 = vst [vmem:[#allocation2 + $0x28] sm:$0xff] %v8663
      %8871 = vst [vmem:[#allocation2 + $0x30] sm:$0xff] %v8672
      %8872 = vst [vmem:[#allocation2 + $0x38] sm:$0xff] %v8681
      %8873 = vst [vmem:[#allocation2 + $0x40] sm:$0xff] %v8690
      %8874 = vst [vmem:[#allocation2 + $0x48] sm:$0xff] %v8699
      %8875 = vst [vmem:[#allocation2 + $0x50] sm:$0xff] %v8708
      %8876 = vst [vmem:[#allocation2 + $0x58] sm:$0xff] %v8717
      %8877 = vst [vmem:[#allocation2 + $0x60] sm:$0xff] %v8726
      %8878 = vst [vmem:[#allocation2 + $0x68] sm:$0xff] %v8735
      %8879 = vst [vmem:[#allocation2 + $0x70] sm:$0xff] %v8744
      %8880 = vst [vmem:[#allocation2 + $0x78] sm:$0xff] %v8753
      %8881 = vst [vmem:[#allocation2 + $0x80] sm:$0xff] %v8762
      %8882 = vst [vmem:[#allocation2 + $0x88] sm:$0xff] %v8771
      %8883 = vst [vmem:[#allocation2 + $0x90] sm:$0xff] %v8780
      %8884 = vst [vmem:[#allocation2 + $0x98] sm:$0xff] %v8789
      %8885 = vst [vmem:[#allocation2 + $0xa0] sm:$0xff] %v8798
      %8886 = vst [vmem:[#allocation2 + $0xa8] sm:$0xff] %v8807
      %8887 = vst [vmem:[#allocation2 + $0xb0] sm:$0xff] %v8816
      %8888 = vst [vmem:[#allocation2 + $0xb8] sm:$0xff] %v8825
      %v8889 = vld [vmem:[#allocation2 + $0xc0] sm:$0x11]
      %v8890 = vsel %vm8509, %v8826, %v8889
      %8891 = vst [vmem:[#allocation2 + $0xc0] sm:$0x11] %v8890
      %v8892 = vld [vmem:[#allocation2 + $0xc8] sm:$0x11]
      %v8893 = vsel %vm8509, %v8827, %v8892
      %8894 = vst [vmem:[#allocation2 + $0xc8] sm:$0x11] %v8893
      %vm8895 = vmand %vm8503, %vm8855
      %vm8896 = vmand %vm8506, %vm8858
      %vm8897 = vmor %vm8896, %vm8895
      %v8898 = vld [vmem:[#allocation2 + $0xc0] sm:$0x11]
      %v8899 = vsel %vm8897, 0, %v8898
      %8900 = vst [vmem:[#allocation2 + $0xc0] sm:$0x11] %v8899
      %v8901 = vld [vmem:[#allocation2 + $0xc8] sm:$0x11]
      %v8902 = vsel %vm8897, 0, %v8901
      %8903 = vst [vmem:[#allocation2 + $0xc8] sm:$0x11] %v8902
      %v8904 = vld [vmem:[#allocation2] sm:$0xff]
      %v8905 = vld [vmem:[#allocation2 + $0x8] sm:$0xff]
      %v8906 = vld [vmem:[#allocation2 + $0x10] sm:$0xff]
      %v8907 = vld [vmem:[#allocation2 + $0x18] sm:$0xff]
      %v8908 = vld [vmem:[#allocation2 + $0x20] sm:$0xff]
      %v8909 = vld [vmem:[#allocation2 + $0x28] sm:$0xff]
      %v8910 = vld [vmem:[#allocation2 + $0x30] sm:$0xff]
      %v8911 = vld [vmem:[#allocation2 + $0x38] sm:$0xff]
      %v8912 = vld [vmem:[#allocation2 + $0x40] sm:$0xff]
      %v8913 = vld [vmem:[#allocation2 + $0x48] sm:$0xff]
      %v8914 = vld [vmem:[#allocation2 + $0x50] sm:$0xff]
      %v8915 = vld [vmem:[#allocation2 + $0x58] sm:$0xff]
      %v8916 = vld [vmem:[#allocation2 + $0x60] sm:$0xff]
      %v8917 = vld [vmem:[#allocation2 + $0x68] sm:$0xff]
      %v8918 = vld [vmem:[#allocation2 + $0x70] sm:$0xff]
      %v8919 = vld [vmem:[#allocation2 + $0x78] sm:$0xff]
      %v8920 = vld [vmem:[#allocation2 + $0x80] sm:$0xff]
      %v8921 = vld [vmem:[#allocation2 + $0x88] sm:$0xff]
      %v8922 = vld [vmem:[#allocation2 + $0x90] sm:$0xff]
      %v8923 = vld [vmem:[#allocation2 + $0x98] sm:$0xff]
      %v8924 = vld [vmem:[#allocation2 + $0xa0] sm:$0xff]
      %v8925 = vld [vmem:[#allocation2 + $0xa8] sm:$0xff]
      %v8926 = vld [vmem:[#allocation2 + $0xb0] sm:$0xff]
      %v8927 = vld [vmem:[#allocation2 + $0xb8] sm:$0xff]
      %v8928 = vld [vmem:[%s5] sm:$0xff]
      %v8929 = vld [vmem:[%s5 + $0x8] sm:$0xf]
      %v8930 = vld [vmem:[%s5 + $0xc] sm:$0xff]
      %v8931 = vld [vmem:[%s5 + $0x14] sm:$0xf]
      %v8932 = vld [vmem:[%s5 + $0x18] sm:$0xff]
      %v8933 = vld [vmem:[%s5 + $0x20] sm:$0xf]
      %v8934 = vld [vmem:[%s5 + $0x24] sm:$0xff]
      %v8935 = vld [vmem:[%s5 + $0x2c] sm:$0xf]
      %v8936 = vld [vmem:[%s5 + $0x30] sm:$0xff]
      %v8937 = vld [vmem:[%s5 + $0x38] sm:$0xf]
      %v8938 = vld [vmem:[%s5 + $0x3c] sm:$0xff]
      %v8939 = vld [vmem:[%s5 + $0x44] sm:$0xf]
      %v8940 = vld [vmem:[%s5 + $0x48] sm:$0xff]
      %v8941 = vld [vmem:[%s5 + $0x50] sm:$0xf]
      %v8942 = vld [vmem:[%s5 + $0x54] sm:$0xff]
      %v8943 = vld [vmem:[%s5 + $0x5c] sm:$0xf]
      %v8944 = vld [vmem:[%s5 + $0x60] sm:$0xff]
      %v8945 = vld [vmem:[%s5 + $0x68] sm:$0xf]
      %v8946 = vld [vmem:[%s5 + $0x6c] sm:$0xff]
      %v8947 = vld [vmem:[%s5 + $0x74] sm:$0xf]
      %v8948 = vld [vmem:[%s5 + $0x78] sm:$0xff]
      %v8949 = vld [vmem:[%s5 + $0x80] sm:$0xf]
      %v8950 = vld [vmem:[%s5 + $0x84] sm:$0xff]
      %v8951 = vld [vmem:[%s5 + $0x8c] sm:$0xf]
      %v8952 = vld [vmem:[%s5 + $0x90] sm:$0xff]
      %v8953 = vld [vmem:[%s5 + $0x98] sm:$0xf]
      %v8954 = vld [vmem:[%s5 + $0x9c] sm:$0xff]
      %v8955 = vld [vmem:[%s5 + $0xa4] sm:$0xf]
      %v8956 = vld [vmem:[%s5 + $0xa8] sm:$0xff]
      %v8957 = vld [vmem:[%s5 + $0xb0] sm:$0xf]
      %v8958 = vld [vmem:[%s5 + $0xb4] sm:$0xff]
      %v8959 = vld [vmem:[%s5 + $0xbc] sm:$0xf]
      %v8960 = vld [vmem:[%s5 + $0xc0] sm:$0xff]
      %v8961 = vld [vmem:[%s5 + $0xc8] sm:$0xf]
      %v8962 = vld [vmem:[%s5 + $0xcc] sm:$0xff]
      %v8963 = vld [vmem:[%s5 + $0xd4] sm:$0xf]
      %v8964 = vld [vmem:[%s5 + $0xd8] sm:$0xff]
      %v8965 = vld [vmem:[%s5 + $0xe0] sm:$0xf]
      %v8966 = vld [vmem:[%s5 + $0xe4] sm:$0xff]
      %v8967 = vld [vmem:[%s5 + $0xec] sm:$0xf]
      %v8968 = vld [vmem:[%s5 + $0xf0] sm:$0xff]
      %v8969 = vld [vmem:[%s5 + $0xf8] sm:$0xf]
      %v8970 = vld [vmem:[%s5 + $0xfc] sm:$0xff]
      %v8971 = vld [vmem:[%s5 + $0x104] sm:$0xf]
      %v8972 = vld [vmem:[%s5 + $0x108] sm:$0xff]
      %v8973 = vld [vmem:[%s5 + $0x110] sm:$0xf]
      %v8974 = vld [vmem:[%s5 + $0x114] sm:$0xff]
      %v8975 = vld [vmem:[%s5 + $0x11c] sm:$0xf]
      %v8976 = vld [vmem:[%s5 + $0x120] sm:$0xff]
      %v8977 = vld [vmem:[%s5 + $0x128] sm:$0xf]
      %v8978 = vld [vmem:[%s5 + $0x12c] sm:$0xff]
      %v8979 = vld [vmem:[%s5 + $0x134] sm:$0xf]
      %v8980 = vld [vmem:[%s5 + $0x138] sm:$0xff]
      %v8981 = vld [vmem:[%s5 + $0x140] sm:$0xf]
      %v8982 = vld [vmem:[%s5 + $0x144] sm:$0xff]
      %v8983 = vld [vmem:[%s5 + $0x14c] sm:$0xf]
      %v8984 = vld [vmem:[%s5 + $0x150] sm:$0xff]
      %v8985 = vld [vmem:[%s5 + $0x158] sm:$0xf]
      %v8986 = vld [vmem:[%s5 + $0x15c] sm:$0xff]
      %v8987 = vld [vmem:[%s5 + $0x164] sm:$0xf]
      %v8988 = vld [vmem:[%s5 + $0x168] sm:$0xff]
      %v8989 = vld [vmem:[%s5 + $0x170] sm:$0xf]
      %v8990 = vld [vmem:[%s5 + $0x174] sm:$0xff]
      %v8991 = vld [vmem:[%s5 + $0x17c] sm:$0xf]
      %v8992 = vld [vmem:[%s5 + $0x180] sm:$0xff]
      %v8993 = vld [vmem:[%s5 + $0x188] sm:$0xf]
      %v8994 = vld [vmem:[%s5 + $0x18c] sm:$0xff]
      %v8995 = vld [vmem:[%s5 + $0x194] sm:$0xf]
      %v8996 = vld [vmem:[%s5 + $0x198] sm:$0xff]
      %v8997 = vld [vmem:[%s5 + $0x1a0] sm:$0xf]
      %v8998 = vld [vmem:[%s5 + $0x1a4] sm:$0xff]
      %v8999 = vld [vmem:[%s5 + $0x1ac] sm:$0xf]
      %v9000 = vld [vmem:[%s5 + $0x1b0] sm:$0xff]
      %v9001 = vld [vmem:[%s5 + $0x1b8] sm:$0xf]
      %v9002 = vld [vmem:[%s5 + $0x1bc] sm:$0xff]
      %v9003 = vld [vmem:[%s5 + $0x1c4] sm:$0xf]
      %v9004 = vld [vmem:[%s5 + $0x1c8] sm:$0xff]
      %v9005 = vld [vmem:[%s5 + $0x1d0] sm:$0xf]
      %v9006 = vld [vmem:[%s5 + $0x1d4] sm:$0xff]
      %v9007 = vld [vmem:[%s5 + $0x1dc] sm:$0xf]
      %v9008 = vld [vmem:[%s5 + $0x1e0] sm:$0xff]
      %v9009 = vld [vmem:[%s5 + $0x1e8] sm:$0xf]
      %v9010 = vld [vmem:[%s5 + $0x1ec] sm:$0xff]
      %v9011 = vld [vmem:[%s5 + $0x1f4] sm:$0xf]
      %v9012 = vld [vmem:[%s5 + $0x1f8] sm:$0xff]
      %v9013 = vld [vmem:[%s5 + $0x200] sm:$0xf]
      %v9014 = vld [vmem:[%s5 + $0x204] sm:$0xff]
      %v9015 = vld [vmem:[%s5 + $0x20c] sm:$0xf]
      %v9016 = vld [vmem:[%s5 + $0x210] sm:$0xff]
      %v9017 = vld [vmem:[%s5 + $0x218] sm:$0xf]
      %v9018 = vld [vmem:[%s5 + $0x21c] sm:$0xff]
      %v9019 = vld [vmem:[%s5 + $0x224] sm:$0xf]
      %v9020 = vld [vmem:[%s5 + $0x228] sm:$0xff]
      %v9021 = vld [vmem:[%s5 + $0x230] sm:$0xf]
      %v9022 = vld [vmem:[%s5 + $0x234] sm:$0xff]
      %v9023 = vld [vmem:[%s5 + $0x23c] sm:$0xf]
      %v9024 = vld [vmem:[%s5 + $0x240] sm:$0xff]
      %v9025 = vld [vmem:[%s5 + $0x248] sm:$0xf]
      %v9026 = vld [vmem:[%s5 + $0x24c] sm:$0xff]
      %v9027 = vld [vmem:[%s5 + $0x254] sm:$0xf]
      %v9028 = vld [vmem:[%s5 + $0x258] sm:$0xff]
      %v9029 = vld [vmem:[%s5 + $0x260] sm:$0xf]
      %v9030 = vld [vmem:[%s5 + $0x264] sm:$0xff]
      %v9031 = vld [vmem:[%s5 + $0x26c] sm:$0xf]
      %v9032 = vld [vmem:[%s5 + $0x270] sm:$0xff]
      %v9033 = vld [vmem:[%s5 + $0x278] sm:$0xf]
      %v9034 = vld [vmem:[%s5 + $0x27c] sm:$0xff]
      %v9035 = vld [vmem:[%s5 + $0x284] sm:$0xf]
      %v9036 = vld [vmem:[%s5 + $0x288] sm:$0xff]
      %v9037 = vld [vmem:[%s5 + $0x290] sm:$0xf]
      %v9038 = vld [vmem:[%s5 + $0x294] sm:$0xff]
      %v9039 = vld [vmem:[%s5 + $0x29c] sm:$0xf]
      %v9040 = vld [vmem:[%s5 + $0x2a0] sm:$0xff]
      %v9041 = vld [vmem:[%s5 + $0x2a8] sm:$0xf]
      %v9042 = vld [vmem:[%s5 + $0x2ac] sm:$0xff]
      %v9043 = vld [vmem:[%s5 + $0x2b4] sm:$0xf]
      %v9044 = vld [vmem:[%s5 + $0x2b8] sm:$0xff]
      %v9045 = vld [vmem:[%s5 + $0x2c0] sm:$0xf]
      %v9046 = vld [vmem:[%s5 + $0x2c4] sm:$0xff]
      %v9047 = vld [vmem:[%s5 + $0x2cc] sm:$0xf]
      %v9048 = vld [vmem:[%s5 + $0x2d0] sm:$0xff]
      %v9049 = vld [vmem:[%s5 + $0x2d8] sm:$0xf]
      %v9050 = vld [vmem:[%s5 + $0x2dc] sm:$0xff]
      %v9051 = vld [vmem:[%s5 + $0x2e4] sm:$0xf]
      %v9052 = vld [vmem:[%s5 + $0x2e8] sm:$0xff]
      %v9053 = vld [vmem:[%s5 + $0x2f0] sm:$0xf]
      %v9054 = vld [vmem:[%s5 + $0x2f4] sm:$0xff]
      %v9055 = vld [vmem:[%s5 + $0x2fc] sm:$0xf]
      %v9056 = vld [vmem:[#allocation2 + $0xc0] sm:$0x11]
      %v9057 = vld [vmem:[#allocation2 + $0xc8] sm:$0x11]
      %s9058 = scalar_lea.vmem %s5, 768
      %v9059 = vld [vmem:[%s9058] sm:$0xff]
      %v9060 = vld [vmem:[%s9058 + $0x8] sm:$0xf]
      %v9061 = vld [vmem:[%s9058 + $0xc] sm:$0xff]
      %v9062 = vld [vmem:[%s9058 + $0x14] sm:$0xf]
      %v9063 = vld [vmem:[%s9058 + $0x18] sm:$0xff]
      %v9064 = vld [vmem:[%s9058 + $0x20] sm:$0xf]
      %v9065 = vld [vmem:[%s9058 + $0x24] sm:$0xff]
      %v9066 = vld [vmem:[%s9058 + $0x2c] sm:$0xf]
      %v9067 = vld [vmem:[%s9058 + $0x30] sm:$0xff]
      %v9068 = vld [vmem:[%s9058 + $0x38] sm:$0xf]
      %v9069 = vld [vmem:[%s9058 + $0x3c] sm:$0xff]
      %v9070 = vld [vmem:[%s9058 + $0x44] sm:$0xf]
      %v9071 = vld [vmem:[%s9058 + $0x48] sm:$0xff]
      %v9072 = vld [vmem:[%s9058 + $0x50] sm:$0xf]
      %v9073 = vld [vmem:[%s9058 + $0x54] sm:$0xff]
      %v9074 = vld [vmem:[%s9058 + $0x5c] sm:$0xf]
      %v9075 = vld [vmem:[%s9058 + $0x60] sm:$0xff]
      %v9076 = vld [vmem:[%s9058 + $0x68] sm:$0xf]
      %v9077 = vld [vmem:[%s9058 + $0x6c] sm:$0xff]
      %v9078 = vld [vmem:[%s9058 + $0x74] sm:$0xf]
      %v9079 = vld [vmem:[%s9058 + $0x78] sm:$0xff]
      %v9080 = vld [vmem:[%s9058 + $0x80] sm:$0xf]
      %v9081 = vld [vmem:[%s9058 + $0x84] sm:$0xff]
      %v9082 = vld [vmem:[%s9058 + $0x8c] sm:$0xf]
      %v9083 = vld [vmem:[%s9058 + $0x90] sm:$0xff]
      %v9084 = vld [vmem:[%s9058 + $0x98] sm:$0xf]
      %v9085 = vld [vmem:[%s9058 + $0x9c] sm:$0xff]
      %v9086 = vld [vmem:[%s9058 + $0xa4] sm:$0xf]
      %v9087 = vld [vmem:[%s9058 + $0xa8] sm:$0xff]
      %v9088 = vld [vmem:[%s9058 + $0xb0] sm:$0xf]
      %v9089 = vld [vmem:[%s9058 + $0xb4] sm:$0xff]
      %v9090 = vld [vmem:[%s9058 + $0xbc] sm:$0xf]
      %v9091 = vld [vmem:[%s9058 + $0xc0] sm:$0xff]
      %v9092 = vld [vmem:[%s9058 + $0xc8] sm:$0xf]
      %v9093 = vld [vmem:[%s9058 + $0xcc] sm:$0xff]
      %v9094 = vld [vmem:[%s9058 + $0xd4] sm:$0xf]
      %v9095 = vld [vmem:[%s9058 + $0xd8] sm:$0xff]
      %v9096 = vld [vmem:[%s9058 + $0xe0] sm:$0xf]
      %v9097 = vld [vmem:[%s9058 + $0xe4] sm:$0xff]
      %v9098 = vld [vmem:[%s9058 + $0xec] sm:$0xf]
      %v9099 = vld [vmem:[%s9058 + $0xf0] sm:$0xff]
      %v9100 = vld [vmem:[%s9058 + $0xf8] sm:$0xf]
      %v9101 = vld [vmem:[%s9058 + $0xfc] sm:$0xff]
      %v9102 = vld [vmem:[%s9058 + $0x104] sm:$0xf]
      %v9103 = vld [vmem:[%s9058 + $0x108] sm:$0xff]
      %v9104 = vld [vmem:[%s9058 + $0x110] sm:$0xf]
      %v9105 = vld [vmem:[%s9058 + $0x114] sm:$0xff]
      %v9106 = vld [vmem:[%s9058 + $0x11c] sm:$0xf]
      %v9107 = vld [vmem:[%s9058 + $0x120] sm:$0xff]
      %v9108 = vld [vmem:[%s9058 + $0x128] sm:$0xf]
      %v9109 = vld [vmem:[%s9058 + $0x12c] sm:$0xff]
      %v9110 = vld [vmem:[%s9058 + $0x134] sm:$0xf]
      %v9111 = vld [vmem:[%s9058 + $0x138] sm:$0xff]
      %v9112 = vld [vmem:[%s9058 + $0x140] sm:$0xf]
      %v9113 = vld [vmem:[%s9058 + $0x144] sm:$0xff]
      %v9114 = vld [vmem:[%s9058 + $0x14c] sm:$0xf]
      %v9115 = vld [vmem:[%s9058 + $0x150] sm:$0xff]
      %v9116 = vld [vmem:[%s9058 + $0x158] sm:$0xf]
      %v9117 = vld [vmem:[%s9058 + $0x15c] sm:$0xff]
      %v9118 = vld [vmem:[%s9058 + $0x164] sm:$0xf]
      %v9119 = vld [vmem:[%s9058 + $0x168] sm:$0xff]
      %v9120 = vld [vmem:[%s9058 + $0x170] sm:$0xf]
      %v9121 = vld [vmem:[%s9058 + $0x174] sm:$0xff]
      %v9122 = vld [vmem:[%s9058 + $0x17c] sm:$0xf]
      %v9123 = vld [vmem:[%s9058 + $0x180] sm:$0xff]
      %v9124 = vld [vmem:[%s9058 + $0x188] sm:$0xf]
      %v9125 = vld [vmem:[%s9058 + $0x18c] sm:$0xff]
      %v9126 = vld [vmem:[%s9058 + $0x194] sm:$0xf]
      %v9127 = vld [vmem:[%s9058 + $0x198] sm:$0xff]
      %v9128 = vld [vmem:[%s9058 + $0x1a0] sm:$0xf]
      %v9129 = vld [vmem:[%s9058 + $0x1a4] sm:$0xff]
      %v9130 = vld [vmem:[%s9058 + $0x1ac] sm:$0xf]
      %v9131 = vld [vmem:[%s9058 + $0x1b0] sm:$0xff]
      %v9132 = vld [vmem:[%s9058 + $0x1b8] sm:$0xf]
      %v9133 = vld [vmem:[%s9058 + $0x1bc] sm:$0xff]
      %v9134 = vld [vmem:[%s9058 + $0x1c4] sm:$0xf]
      %v9135 = vld [vmem:[%s9058 + $0x1c8] sm:$0xff]
      %v9136 = vld [vmem:[%s9058 + $0x1d0] sm:$0xf]
      %v9137 = vld [vmem:[%s9058 + $0x1d4] sm:$0xff]
      %v9138 = vld [vmem:[%s9058 + $0x1dc] sm:$0xf]
      %v9139 = vld [vmem:[%s9058 + $0x1e0] sm:$0xff]
      %v9140 = vld [vmem:[%s9058 + $0x1e8] sm:$0xf]
      %v9141 = vld [vmem:[%s9058 + $0x1ec] sm:$0xff]
      %v9142 = vld [vmem:[%s9058 + $0x1f4] sm:$0xf]
      %v9143 = vld [vmem:[%s9058 + $0x1f8] sm:$0xff]
      %v9144 = vld [vmem:[%s9058 + $0x200] sm:$0xf]
      %v9145 = vld [vmem:[%s9058 + $0x204] sm:$0xff]
      %v9146 = vld [vmem:[%s9058 + $0x20c] sm:$0xf]
      %v9147 = vld [vmem:[%s9058 + $0x210] sm:$0xff]
      %v9148 = vld [vmem:[%s9058 + $0x218] sm:$0xf]
      %v9149 = vld [vmem:[%s9058 + $0x21c] sm:$0xff]
      %v9150 = vld [vmem:[%s9058 + $0x224] sm:$0xf]
      %v9151 = vld [vmem:[%s9058 + $0x228] sm:$0xff]
      %v9152 = vld [vmem:[%s9058 + $0x230] sm:$0xf]
      %v9153 = vld [vmem:[%s9058 + $0x234] sm:$0xff]
      %v9154 = vld [vmem:[%s9058 + $0x23c] sm:$0xf]
      %v9155 = vld [vmem:[%s9058 + $0x240] sm:$0xff]
      %v9156 = vld [vmem:[%s9058 + $0x248] sm:$0xf]
      %v9157 = vld [vmem:[%s9058 + $0x24c] sm:$0xff]
      %v9158 = vld [vmem:[%s9058 + $0x254] sm:$0xf]
      %v9159 = vld [vmem:[%s9058 + $0x258] sm:$0xff]
      %v9160 = vld [vmem:[%s9058 + $0x260] sm:$0xf]
      %v9161 = vld [vmem:[%s9058 + $0x264] sm:$0xff]
      %v9162 = vld [vmem:[%s9058 + $0x26c] sm:$0xf]
      %v9163 = vld [vmem:[%s9058 + $0x270] sm:$0xff]
      %v9164 = vld [vmem:[%s9058 + $0x278] sm:$0xf]
      %v9165 = vld [vmem:[%s9058 + $0x27c] sm:$0xff]
      %v9166 = vld [vmem:[%s9058 + $0x284] sm:$0xf]
      %v9167 = vld [vmem:[%s9058 + $0x288] sm:$0xff]
      %v9168 = vld [vmem:[%s9058 + $0x290] sm:$0xf]
      %v9169 = vld [vmem:[%s9058 + $0x294] sm:$0xff]
      %v9170 = vld [vmem:[%s9058 + $0x29c] sm:$0xf]
      %v9171 = vld [vmem:[%s9058 + $0x2a0] sm:$0xff]
      %v9172 = vld [vmem:[%s9058 + $0x2a8] sm:$0xf]
      %v9173 = vld [vmem:[%s9058 + $0x2ac] sm:$0xff]
      %v9174 = vld [vmem:[%s9058 + $0x2b4] sm:$0xf]
      %v9175 = vld [vmem:[%s9058 + $0x2b8] sm:$0xff]
      %v9176 = vld [vmem:[%s9058 + $0x2c0] sm:$0xf]
      %v9177 = vld [vmem:[%s9058 + $0x2c4] sm:$0xff]
      %v9178 = vld [vmem:[%s9058 + $0x2cc] sm:$0xf]
      %v9179 = vld [vmem:[%s9058 + $0x2d0] sm:$0xff]
      %v9180 = vld [vmem:[%s9058 + $0x2d8] sm:$0xf]
      %v9181 = vld [vmem:[%s9058 + $0x2dc] sm:$0xff]
      %v9182 = vld [vmem:[%s9058 + $0x2e4] sm:$0xf]
      %v9183 = vld [vmem:[%s9058 + $0x2e8] sm:$0xff]
      %v9184 = vld [vmem:[%s9058 + $0x2f0] sm:$0xf]
      %v9185 = vld [vmem:[%s9058 + $0x2f4] sm:$0xff]
      %v9186 = vld [vmem:[%s9058 + $0x2fc] sm:$0xf]
      %v9213 = vunpack.c.l.b16 %v8904
      %v9214 = vunpack.c.h.b16 %v8904
      %v9215 = vunpack.c.l.b16 %v8905
      %v9216 = vunpack.c.h.b16 %v8905
      %v9217 = vunpack.c.l.b16 %v8906
      %v9218 = vunpack.c.h.b16 %v8906
      %v9219 = vunpack.c.l.b16 %v8907
      %v9220 = vunpack.c.h.b16 %v8907
      %v9221 = vunpack.c.l.b16 %v8908
      %v9222 = vunpack.c.h.b16 %v8908
      %v9223 = vunpack.c.l.b16 %v8909
      %v9224 = vunpack.c.h.b16 %v8909
      %v9225 = vunpack.c.l.b16 %v8910
      %v9226 = vunpack.c.h.b16 %v8910
      %v9227 = vunpack.c.l.b16 %v8911
      %v9228 = vunpack.c.h.b16 %v8911
      %v9229 = vunpack.c.l.b16 %v8912
      %v9230 = vunpack.c.h.b16 %v8912
      %v9231 = vunpack.c.l.b16 %v8913
      %v9232 = vunpack.c.h.b16 %v8913
      %v9233 = vunpack.c.l.b16 %v8914
      %v9234 = vunpack.c.h.b16 %v8914
      %v9235 = vunpack.c.l.b16 %v8915
      %v9236 = vunpack.c.h.b16 %v8915
      %v9237 = vunpack.c.l.b16 %v8916
      %v9238 = vunpack.c.h.b16 %v8916
      %v9239 = vunpack.c.l.b16 %v8917
      %v9240 = vunpack.c.h.b16 %v8917
      %v9241 = vunpack.c.l.b16 %v8918
      %v9242 = vunpack.c.h.b16 %v8918
      %v9243 = vunpack.c.l.b16 %v8919
      %v9244 = vunpack.c.h.b16 %v8919
      %v9245 = vunpack.c.l.b16 %v8920
      %v9246 = vunpack.c.h.b16 %v8920
      %v9247 = vunpack.c.l.b16 %v8921
      %v9248 = vunpack.c.h.b16 %v8921
      %v9249 = vunpack.c.l.b16 %v8922
      %v9250 = vunpack.c.h.b16 %v8922
      %v9251 = vunpack.c.l.b16 %v8923
      %v9252 = vunpack.c.h.b16 %v8923
      %v9253 = vunpack.c.l.b16 %v8924
      %v9254 = vunpack.c.h.b16 %v8924
      %v9255 = vunpack.c.l.b16 %v8925
      %v9256 = vunpack.c.h.b16 %v8925
      %v9257 = vunpack.c.l.b16 %v8926
      %v9258 = vunpack.c.h.b16 %v8926
      %v9259 = vunpack.c.l.b16 %v8927
      %v9260 = vunpack.c.h.b16 %v8927
      %v9261 = vunpack.c.l.b16 %v9056
      %v9262 = vunpack.c.h.b16 %v9056
      %v9263 = vunpack.c.l.b16 %v9057
      %v9264 = vunpack.c.h.b16 %v9057
      %v9265 = vpack.c.b16 %v9217, %v9213
      %v9266 = vpack.c.b16 %v9218, %v9214
      %v9267 = vpack.c.b16 %v9219, %v9215
      %v9268 = vpack.c.b16 %v9220, %v9216
      %v9269 = vpack.c.b16 %v9225, %v9221
      %v9270 = vpack.c.b16 %v9226, %v9222
      %v9271 = vpack.c.b16 %v9227, %v9223
      %v9272 = vpack.c.b16 %v9228, %v9224
      %v9273 = vpack.c.b16 %v9233, %v9229
      %v9274 = vpack.c.b16 %v9234, %v9230
      %v9275 = vpack.c.b16 %v9235, %v9231
      %v9276 = vpack.c.b16 %v9236, %v9232
      %v9277 = vpack.c.b16 %v9241, %v9237
      %v9278 = vpack.c.b16 %v9242, %v9238
      %v9279 = vpack.c.b16 %v9243, %v9239
      %v9280 = vpack.c.b16 %v9244, %v9240
      %v9281 = vpack.c.b16 %v9249, %v9245
      %v9282 = vpack.c.b16 %v9250, %v9246
      %v9283 = vpack.c.b16 %v9251, %v9247
      %v9284 = vpack.c.b16 %v9252, %v9248
      %v9285 = vpack.c.b16 %v9257, %v9253
      %v9286 = vpack.c.b16 %v9258, %v9254
      %v9287 = vpack.c.b16 %v9259, %v9255
      %v9288 = vpack.c.b16 %v9260, %v9256
      %v9289 = vpack.c.b16 %v9261, %v9261
      %v9290 = vpack.c.b16 %v9262, %v9262
      %v9291 = vpack.c.b16 %v9263, %v9263
      %v9292 = vpack.c.b16 %v9264, %v9264
      %v9294 = vshrl.u32 %v9265, 16
      %v9296 = vshll.u32 %v9265, 16
      %v9298 = vrot.slane %v9296, 1
      %v9299 = vor.u32 %v9294, %v9298
      %v9301 = vshll.u32 %v9269, 16
      %v9303 = vrot.slane %v9301, 1
      %v9304 = vsel %vm1104, %v9299, %v9303
      %v9306 = vshrl.u32 %v9266, 16
      %v9308 = vshll.u32 %v9266, 16
      %v9310 = vrot.slane %v9308, 1
      %v9311 = vor.u32 %v9306, %v9310
      %v9313 = vshll.u32 %v9270, 16
      %v9315 = vrot.slane %v9313, 1
      %v9316 = vsel %vm1104, %v9311, %v9315
      %v9318 = vshrl.u32 %v9267, 16
      %v9320 = vshll.u32 %v9267, 16
      %v9322 = vrot.slane %v9320, 1
      %v9323 = vor.u32 %v9318, %v9322
      %v9325 = vshll.u32 %v9271, 16
      %v9327 = vrot.slane %v9325, 1
      %v9328 = vsel %vm1104, %v9323, %v9327
      %v9330 = vshrl.u32 %v9268, 16
      %v9332 = vshll.u32 %v9268, 16
      %v9334 = vrot.slane %v9332, 1
      %v9335 = vor.u32 %v9330, %v9334
      %v9337 = vshll.u32 %v9272, 16
      %v9339 = vrot.slane %v9337, 1
      %v9340 = vsel %vm1104, %v9335, %v9339
      %v9341 = vshrl.u32 %v9269, 16
      %v9343 = vor.u32 %v9341, %v9303
      %v9345 = vshll.u32 %v9273, 16
      %v9347 = vrot.slane %v9345, 1
      %v9348 = vsel %vm1104, %v9343, %v9347
      %v9349 = vshrl.u32 %v9270, 16
      %v9351 = vor.u32 %v9349, %v9315
      %v9353 = vshll.u32 %v9274, 16
      %v9355 = vrot.slane %v9353, 1
      %v9356 = vsel %vm1104, %v9351, %v9355
      %v9357 = vshrl.u32 %v9271, 16
      %v9359 = vor.u32 %v9357, %v9327
      %v9361 = vshll.u32 %v9275, 16
      %v9363 = vrot.slane %v9361, 1
      %v9364 = vsel %vm1104, %v9359, %v9363
      %v9365 = vshrl.u32 %v9272, 16
      %v9367 = vor.u32 %v9365, %v9339
      %v9369 = vshll.u32 %v9276, 16
      %v9371 = vrot.slane %v9369, 1
      %v9372 = vsel %vm1104, %v9367, %v9371
      %v9373 = vshrl.u32 %v9273, 16
      %v9375 = vor.u32 %v9373, %v9347
      %v9377 = vshll.u32 %v9277, 16
      %v9379 = vrot.slane %v9377, 1
      %v9380 = vsel %vm1104, %v9375, %v9379
      %v9381 = vshrl.u32 %v9274, 16
      %v9383 = vor.u32 %v9381, %v9355
      %v9385 = vshll.u32 %v9278, 16
      %v9387 = vrot.slane %v9385, 1
      %v9388 = vsel %vm1104, %v9383, %v9387
      %v9389 = vshrl.u32 %v9275, 16
      %v9391 = vor.u32 %v9389, %v9363
      %v9393 = vshll.u32 %v9279, 16
      %v9395 = vrot.slane %v9393, 1
      %v9396 = vsel %vm1104, %v9391, %v9395
      %v9397 = vshrl.u32 %v9276, 16
      %v9399 = vor.u32 %v9397, %v9371
      %v9401 = vshll.u32 %v9280, 16
      %v9403 = vrot.slane %v9401, 1
      %v9404 = vsel %vm1104, %v9399, %v9403
      %v9405 = vshrl.u32 %v9277, 16
      %v9407 = vor.u32 %v9405, %v9379
      %v9409 = vshll.u32 %v9281, 16
      %v9411 = vrot.slane %v9409, 1
      %v9412 = vsel %vm1104, %v9407, %v9411
      %v9413 = vshrl.u32 %v9278, 16
      %v9415 = vor.u32 %v9413, %v9387
      %v9417 = vshll.u32 %v9282, 16
      %v9419 = vrot.slane %v9417, 1
      %v9420 = vsel %vm1104, %v9415, %v9419
      %v9421 = vshrl.u32 %v9279, 16
      %v9423 = vor.u32 %v9421, %v9395
      %v9425 = vshll.u32 %v9283, 16
      %v9427 = vrot.slane %v9425, 1
      %v9428 = vsel %vm1104, %v9423, %v9427
      %v9429 = vshrl.u32 %v9280, 16
      %v9431 = vor.u32 %v9429, %v9403
      %v9433 = vshll.u32 %v9284, 16
      %v9435 = vrot.slane %v9433, 1
      %v9436 = vsel %vm1104, %v9431, %v9435
      %v9437 = vshrl.u32 %v9281, 16
      %v9439 = vor.u32 %v9437, %v9411
      %v9441 = vshll.u32 %v9285, 16
      %v9443 = vrot.slane %v9441, 1
      %v9444 = vsel %vm1104, %v9439, %v9443
      %v9445 = vshrl.u32 %v9282, 16
      %v9447 = vor.u32 %v9445, %v9419
      %v9449 = vshll.u32 %v9286, 16
      %v9451 = vrot.slane %v9449, 1
      %v9452 = vsel %vm1104, %v9447, %v9451
      %v9453 = vshrl.u32 %v9283, 16
      %v9455 = vor.u32 %v9453, %v9427
      %v9457 = vshll.u32 %v9287, 16
      %v9459 = vrot.slane %v9457, 1
      %v9460 = vsel %vm1104, %v9455, %v9459
      %v9461 = vshrl.u32 %v9284, 16
      %v9463 = vor.u32 %v9461, %v9435
      %v9465 = vshll.u32 %v9288, 16
      %v9467 = vrot.slane %v9465, 1
      %v9468 = vsel %vm1104, %v9463, %v9467
      %v9469 = vshrl.u32 %v9285, 16
      %v9471 = vor.u32 %v9469, %v9443
      %v9473 = vshll.u32 %v9289, 16
      %v9475 = vrot.slane %v9473, 1
      %v9476 = vsel %vm1104, %v9471, %v9475
      %v9477 = vshrl.u32 %v9286, 16
      %v9479 = vor.u32 %v9477, %v9451
      %v9481 = vshll.u32 %v9290, 16
      %v9483 = vrot.slane %v9481, 1
      %v9484 = vsel %vm1104, %v9479, %v9483
      %v9485 = vshrl.u32 %v9287, 16
      %v9487 = vor.u32 %v9485, %v9459
      %v9489 = vshll.u32 %v9291, 16
      %v9491 = vrot.slane %v9489, 1
      %v9492 = vsel %vm1104, %v9487, %v9491
      %v9493 = vshrl.u32 %v9288, 16
      %v9495 = vor.u32 %v9493, %v9467
      %v9497 = vshll.u32 %v9292, 16
      %v9499 = vrot.slane %v9497, 1
      %v9500 = vsel %vm1104, %v9495, %v9499
      %v9653 = vunpack.c.l.b16 %v9059
      %v9654 = vunpack.c.h.b16 %v9059
      %v9655 = vunpack.c.l.b16 %v9060
      %v9656 = vunpack.c.l.b16 %v9061
      %v9657 = vunpack.c.h.b16 %v9061
      %v9658 = vunpack.c.l.b16 %v9062
      %v9659 = vunpack.c.l.b16 %v9063
      %v9660 = vunpack.c.h.b16 %v9063
      %v9661 = vunpack.c.l.b16 %v9064
      %v9662 = vunpack.c.l.b16 %v9065
      %v9663 = vunpack.c.h.b16 %v9065
      %v9664 = vunpack.c.l.b16 %v9066
      %v9665 = vunpack.c.l.b16 %v9067
      %v9666 = vunpack.c.h.b16 %v9067
      %v9667 = vunpack.c.l.b16 %v9068
      %v9668 = vunpack.c.l.b16 %v9069
      %v9669 = vunpack.c.h.b16 %v9069
      %v9670 = vunpack.c.l.b16 %v9070
      %v9671 = vunpack.c.l.b16 %v9071
      %v9672 = vunpack.c.h.b16 %v9071
      %v9673 = vunpack.c.l.b16 %v9072
      %v9674 = vunpack.c.l.b16 %v9073
      %v9675 = vunpack.c.h.b16 %v9073
      %v9676 = vunpack.c.l.b16 %v9074
      %v9677 = vunpack.c.l.b16 %v9075
      %v9678 = vunpack.c.h.b16 %v9075
      %v9679 = vunpack.c.l.b16 %v9076
      %v9680 = vunpack.c.l.b16 %v9077
      %v9681 = vunpack.c.h.b16 %v9077
      %v9682 = vunpack.c.l.b16 %v9078
      %v9683 = vunpack.c.l.b16 %v9079
      %v9684 = vunpack.c.h.b16 %v9079
      %v9685 = vunpack.c.l.b16 %v9080
      %v9686 = vunpack.c.l.b16 %v9081
      %v9687 = vunpack.c.h.b16 %v9081
      %v9688 = vunpack.c.l.b16 %v9082
      %v9689 = vunpack.c.l.b16 %v9083
      %v9690 = vunpack.c.h.b16 %v9083
      %v9691 = vunpack.c.l.b16 %v9084
      %v9692 = vunpack.c.l.b16 %v9085
      %v9693 = vunpack.c.h.b16 %v9085
      %v9694 = vunpack.c.l.b16 %v9086
      %v9695 = vunpack.c.l.b16 %v9087
      %v9696 = vunpack.c.h.b16 %v9087
      %v9697 = vunpack.c.l.b16 %v9088
      %v9698 = vunpack.c.l.b16 %v9089
      %v9699 = vunpack.c.h.b16 %v9089
      %v9700 = vunpack.c.l.b16 %v9090
      %v9701 = vunpack.c.l.b16 %v9091
      %v9702 = vunpack.c.h.b16 %v9091
      %v9703 = vunpack.c.l.b16 %v9092
      %v9704 = vunpack.c.l.b16 %v9093
      %v9705 = vunpack.c.h.b16 %v9093
      %v9706 = vunpack.c.l.b16 %v9094
      %v9707 = vunpack.c.l.b16 %v9095
      %v9708 = vunpack.c.h.b16 %v9095
      %v9709 = vunpack.c.l.b16 %v9096
      %v9710 = vunpack.c.l.b16 %v9097
      %v9711 = vunpack.c.h.b16 %v9097
      %v9712 = vunpack.c.l.b16 %v9098
      %v9713 = vunpack.c.l.b16 %v9099
      %v9714 = vunpack.c.h.b16 %v9099
      %v9715 = vunpack.c.l.b16 %v9100
      %v9716 = vunpack.c.l.b16 %v9101
      %v9717 = vunpack.c.h.b16 %v9101
      %v9718 = vunpack.c.l.b16 %v9102
      %v9719 = vunpack.c.l.b16 %v9103
      %v9720 = vunpack.c.h.b16 %v9103
      %v9721 = vunpack.c.l.b16 %v9104
      %v9722 = vunpack.c.l.b16 %v9105
      %v9723 = vunpack.c.h.b16 %v9105
      %v9724 = vunpack.c.l.b16 %v9106
      %v9725 = vunpack.c.l.b16 %v9107
      %v9726 = vunpack.c.h.b16 %v9107
      %v9727 = vunpack.c.l.b16 %v9108
      %v9728 = vunpack.c.l.b16 %v9109
      %v9729 = vunpack.c.h.b16 %v9109
      %v9730 = vunpack.c.l.b16 %v9110
      %v9731 = vunpack.c.l.b16 %v9111
      %v9732 = vunpack.c.h.b16 %v9111
      %v9733 = vunpack.c.l.b16 %v9112
      %v9734 = vunpack.c.l.b16 %v9113
      %v9735 = vunpack.c.h.b16 %v9113
      %v9736 = vunpack.c.l.b16 %v9114
      %v9737 = vunpack.c.l.b16 %v9115
      %v9738 = vunpack.c.h.b16 %v9115
      %v9739 = vunpack.c.l.b16 %v9116
      %v9740 = vunpack.c.l.b16 %v9117
      %v9741 = vunpack.c.h.b16 %v9117
      %v9742 = vunpack.c.l.b16 %v9118
      %v9743 = vunpack.c.l.b16 %v9119
      %v9744 = vunpack.c.h.b16 %v9119
      %v9745 = vunpack.c.l.b16 %v9120
      %v9746 = vunpack.c.l.b16 %v9121
      %v9747 = vunpack.c.h.b16 %v9121
      %v9748 = vunpack.c.l.b16 %v9122
      %v9749 = vunpack.c.l.b16 %v9123
      %v9750 = vunpack.c.h.b16 %v9123
      %v9751 = vunpack.c.l.b16 %v9124
      %v9752 = vunpack.c.l.b16 %v9125
      %v9753 = vunpack.c.h.b16 %v9125
      %v9754 = vunpack.c.l.b16 %v9126
      %v9755 = vunpack.c.l.b16 %v9127
      %v9756 = vunpack.c.h.b16 %v9127
      %v9757 = vunpack.c.l.b16 %v9128
      %v9758 = vunpack.c.l.b16 %v9129
      %v9759 = vunpack.c.h.b16 %v9129
      %v9760 = vunpack.c.l.b16 %v9130
      %v9761 = vunpack.c.l.b16 %v9131
      %v9762 = vunpack.c.h.b16 %v9131
      %v9763 = vunpack.c.l.b16 %v9132
      %v9764 = vunpack.c.l.b16 %v9133
      %v9765 = vunpack.c.h.b16 %v9133
      %v9766 = vunpack.c.l.b16 %v9134
      %v9767 = vunpack.c.l.b16 %v9135
      %v9768 = vunpack.c.h.b16 %v9135
      %v9769 = vunpack.c.l.b16 %v9136
      %v9770 = vunpack.c.l.b16 %v9137
      %v9771 = vunpack.c.h.b16 %v9137
      %v9772 = vunpack.c.l.b16 %v9138
      %v9773 = vunpack.c.l.b16 %v9139
      %v9774 = vunpack.c.h.b16 %v9139
      %v9775 = vunpack.c.l.b16 %v9140
      %v9776 = vunpack.c.l.b16 %v9141
      %v9777 = vunpack.c.h.b16 %v9141
      %v9778 = vunpack.c.l.b16 %v9142
      %v9779 = vunpack.c.l.b16 %v9143
      %v9780 = vunpack.c.h.b16 %v9143
      %v9781 = vunpack.c.l.b16 %v9144
      %v9782 = vunpack.c.l.b16 %v9145
      %v9783 = vunpack.c.h.b16 %v9145
      %v9784 = vunpack.c.l.b16 %v9146
      %v9785 = vunpack.c.l.b16 %v9147
      %v9786 = vunpack.c.h.b16 %v9147
      %v9787 = vunpack.c.l.b16 %v9148
      %v9788 = vunpack.c.l.b16 %v9149
      %v9789 = vunpack.c.h.b16 %v9149
      %v9790 = vunpack.c.l.b16 %v9150
      %v9791 = vunpack.c.l.b16 %v9151
      %v9792 = vunpack.c.h.b16 %v9151
      %v9793 = vunpack.c.l.b16 %v9152
      %v9794 = vunpack.c.l.b16 %v9153
      %v9795 = vunpack.c.h.b16 %v9153
      %v9796 = vunpack.c.l.b16 %v9154
      %v9797 = vunpack.c.l.b16 %v9155
      %v9798 = vunpack.c.h.b16 %v9155
      %v9799 = vunpack.c.l.b16 %v9156
      %v9800 = vunpack.c.l.b16 %v9157
      %v9801 = vunpack.c.h.b16 %v9157
      %v9802 = vunpack.c.l.b16 %v9158
      %v9803 = vunpack.c.l.b16 %v9159
      %v9804 = vunpack.c.h.b16 %v9159
      %v9805 = vunpack.c.l.b16 %v9160
      %v9806 = vunpack.c.l.b16 %v9161
      %v9807 = vunpack.c.h.b16 %v9161
      %v9808 = vunpack.c.l.b16 %v9162
      %v9809 = vunpack.c.l.b16 %v9163
      %v9810 = vunpack.c.h.b16 %v9163
      %v9811 = vunpack.c.l.b16 %v9164
      %v9812 = vunpack.c.l.b16 %v9165
      %v9813 = vunpack.c.h.b16 %v9165
      %v9814 = vunpack.c.l.b16 %v9166
      %v9815 = vunpack.c.l.b16 %v9167
      %v9816 = vunpack.c.h.b16 %v9167
      %v9817 = vunpack.c.l.b16 %v9168
      %v9818 = vunpack.c.l.b16 %v9169
      %v9819 = vunpack.c.h.b16 %v9169
      %v9820 = vunpack.c.l.b16 %v9170
      %v9821 = vunpack.c.l.b16 %v9171
      %v9822 = vunpack.c.h.b16 %v9171
      %v9823 = vunpack.c.l.b16 %v9172
      %v9824 = vunpack.c.l.b16 %v9173
      %v9825 = vunpack.c.h.b16 %v9173
      %v9826 = vunpack.c.l.b16 %v9174
      %v9827 = vunpack.c.l.b16 %v9175
      %v9828 = vunpack.c.h.b16 %v9175
      %v9829 = vunpack.c.l.b16 %v9176
      %v9830 = vunpack.c.l.b16 %v9177
      %v9831 = vunpack.c.h.b16 %v9177
      %v9832 = vunpack.c.l.b16 %v9178
      %v9833 = vunpack.c.l.b16 %v9179
      %v9834 = vunpack.c.h.b16 %v9179
      %v9835 = vunpack.c.l.b16 %v9180
      %v9836 = vunpack.c.l.b16 %v9181
      %v9837 = vunpack.c.h.b16 %v9181
      %v9838 = vunpack.c.l.b16 %v9182
      %v9839 = vunpack.c.l.b16 %v9183
      %v9840 = vunpack.c.h.b16 %v9183
      %v9841 = vunpack.c.l.b16 %v9184
      %v9842 = vunpack.c.l.b16 %v9185
      %v9843 = vunpack.c.h.b16 %v9185
      %v9844 = vunpack.c.l.b16 %v9186
      %v9845 = vpack.c.b16 %v9656, %v9653
      %v9846 = vpack.c.b16 %v9657, %v9654
      %v9847 = vpack.c.b16 %v9658, %v9655
      %v9848 = vpack.c.b16 %v9662, %v9659
      %v9849 = vpack.c.b16 %v9663, %v9660
      %v9850 = vpack.c.b16 %v9664, %v9661
      %v9851 = vpack.c.b16 %v9668, %v9665
      %v9852 = vpack.c.b16 %v9669, %v9666
      %v9853 = vpack.c.b16 %v9670, %v9667
      %v9854 = vpack.c.b16 %v9674, %v9671
      %v9855 = vpack.c.b16 %v9675, %v9672
      %v9856 = vpack.c.b16 %v9676, %v9673
      %v9857 = vpack.c.b16 %v9680, %v9677
      %v9858 = vpack.c.b16 %v9681, %v9678
      %v9859 = vpack.c.b16 %v9682, %v9679
      %v9860 = vpack.c.b16 %v9686, %v9683
      %v9861 = vpack.c.b16 %v9687, %v9684
      %v9862 = vpack.c.b16 %v9688, %v9685
      %v9863 = vpack.c.b16 %v9692, %v9689
      %v9864 = vpack.c.b16 %v9693, %v9690
      %v9865 = vpack.c.b16 %v9694, %v9691
      %v9866 = vpack.c.b16 %v9698, %v9695
      %v9867 = vpack.c.b16 %v9699, %v9696
      %v9868 = vpack.c.b16 %v9700, %v9697
      %v9869 = vpack.c.b16 %v9704, %v9701
      %v9870 = vpack.c.b16 %v9705, %v9702
      %v9871 = vpack.c.b16 %v9706, %v9703
      %v9872 = vpack.c.b16 %v9710, %v9707
      %v9873 = vpack.c.b16 %v9711, %v9708
      %v9874 = vpack.c.b16 %v9712, %v9709
      %v9875 = vpack.c.b16 %v9716, %v9713
      %v9876 = vpack.c.b16 %v9717, %v9714
      %v9877 = vpack.c.b16 %v9718, %v9715
      %v9878 = vpack.c.b16 %v9722, %v9719
      %v9879 = vpack.c.b16 %v9723, %v9720
      %v9880 = vpack.c.b16 %v9724, %v9721
      %v9881 = vpack.c.b16 %v9728, %v9725
      %v9882 = vpack.c.b16 %v9729, %v9726
      %v9883 = vpack.c.b16 %v9730, %v9727
      %v9884 = vpack.c.b16 %v9734, %v9731
      %v9885 = vpack.c.b16 %v9735, %v9732
      %v9886 = vpack.c.b16 %v9736, %v9733
      %v9887 = vpack.c.b16 %v9740, %v9737
      %v9888 = vpack.c.b16 %v9741, %v9738
      %v9889 = vpack.c.b16 %v9742, %v9739
      %v9890 = vpack.c.b16 %v9746, %v9743
      %v9891 = vpack.c.b16 %v9747, %v9744
      %v9892 = vpack.c.b16 %v9748, %v9745
      %v9893 = vpack.c.b16 %v9752, %v9749
      %v9894 = vpack.c.b16 %v9753, %v9750
      %v9895 = vpack.c.b16 %v9754, %v9751
      %v9896 = vpack.c.b16 %v9758, %v9755
      %v9897 = vpack.c.b16 %v9759, %v9756
      %v9898 = vpack.c.b16 %v9760, %v9757
      %v9899 = vpack.c.b16 %v9764, %v9761
      %v9900 = vpack.c.b16 %v9765, %v9762
      %v9901 = vpack.c.b16 %v9766, %v9763
      %v9902 = vpack.c.b16 %v9770, %v9767
      %v9903 = vpack.c.b16 %v9771, %v9768
      %v9904 = vpack.c.b16 %v9772, %v9769
      %v9905 = vpack.c.b16 %v9776, %v9773
      %v9906 = vpack.c.b16 %v9777, %v9774
      %v9907 = vpack.c.b16 %v9778, %v9775
      %v9908 = vpack.c.b16 %v9782, %v9779
      %v9909 = vpack.c.b16 %v9783, %v9780
      %v9910 = vpack.c.b16 %v9784, %v9781
      %v9911 = vpack.c.b16 %v9788, %v9785
      %v9912 = vpack.c.b16 %v9789, %v9786
      %v9913 = vpack.c.b16 %v9790, %v9787
      %v9914 = vpack.c.b16 %v9794, %v9791
      %v9915 = vpack.c.b16 %v9795, %v9792
      %v9916 = vpack.c.b16 %v9796, %v9793
      %v9917 = vpack.c.b16 %v9800, %v9797
      %v9918 = vpack.c.b16 %v9801, %v9798
      %v9919 = vpack.c.b16 %v9802, %v9799
      %v9920 = vpack.c.b16 %v9806, %v9803
      %v9921 = vpack.c.b16 %v9807, %v9804
      %v9922 = vpack.c.b16 %v9808, %v9805
      %v9923 = vpack.c.b16 %v9812, %v9809
      %v9924 = vpack.c.b16 %v9813, %v9810
      %v9925 = vpack.c.b16 %v9814, %v9811
      %v9926 = vpack.c.b16 %v9818, %v9815
      %v9927 = vpack.c.b16 %v9819, %v9816
      %v9928 = vpack.c.b16 %v9820, %v9817
      %v9929 = vpack.c.b16 %v9824, %v9821
      %v9930 = vpack.c.b16 %v9825, %v9822
      %v9931 = vpack.c.b16 %v9826, %v9823
      %v9932 = vpack.c.b16 %v9830, %v9827
      %v9933 = vpack.c.b16 %v9831, %v9828
      %v9934 = vpack.c.b16 %v9832, %v9829
      %v9935 = vpack.c.b16 %v9836, %v9833
      %v9936 = vpack.c.b16 %v9837, %v9834
      %v9937 = vpack.c.b16 %v9838, %v9835
      %v9938 = vpack.c.b16 %v9842, %v9839
      %v9939 = vpack.c.b16 %v9843, %v9840
      %v9940 = vpack.c.b16 %v9844, %v9841
      %10037 = vmatprep.subr.bf16.mxu0 %v9846
      %10038 = vmatpush1.bf16.msra.mxu0 %v9845
      %10039 = vmatprep.subr.bf16.mxu0 %v9849
      %10040 = vmatpush1.bf16.msra.mxu0 %v9848
      %10041 = vmatprep.subr.bf16.mxu0 %v9852
      %10042 = vmatpush1.bf16.msra.mxu0 %v9851
      %10043 = vmatprep.subr.bf16.mxu0 %v9855
      %10044 = vmatpush1.bf16.msra.mxu0 %v9854
      %10045 = vmatprep.subr.bf16.mxu0 %v9858
      %10046 = vmatpush1.bf16.msra.mxu0 %v9857
      %10047 = vmatprep.subr.bf16.mxu0 %v9861
      %10048 = vmatpush1.bf16.msra.mxu0 %v9860
      %10049 = vmatprep.subr.bf16.mxu0 %v9864
      %10050 = vmatpush1.bf16.msra.mxu0 %v9863
      %10051 = vmatprep.subr.bf16.mxu0 %v9867
      %10052 = vmatpush1.bf16.msra.mxu0 %v9866
      %10053 = vmatprep.subr.bf16.mxu0 %v9870
      %10054 = vmatpush1.bf16.msra.mxu0 %v9869
      %10055 = vmatprep.subr.bf16.mxu0 %v9873
      %10056 = vmatpush1.bf16.msra.mxu0 %v9872
      %10057 = vmatprep.subr.bf16.mxu0 %v9876
      %10058 = vmatpush1.bf16.msra.mxu0 %v9875
      %10059 = vmatprep.subr.bf16.mxu0 %v9879
      %10060 = vmatpush1.bf16.msra.mxu0 %v9878
      %10061 = vmatprep.subr.bf16.mxu0 %v9882
      %10062 = vmatpush1.bf16.msra.mxu0 %v9881
      %10063 = vmatprep.subr.bf16.mxu0 %v9885
      %10064 = vmatpush1.bf16.msra.mxu0 %v9884
      %10065 = vmatprep.subr.bf16.mxu0 %v9888
      %10066 = vmatpush1.bf16.msra.mxu0 %v9887
      %10067 = vmatprep.subr.bf16.mxu0 %v9891
      %10068 = vmatpush1.bf16.msra.mxu0 %v9890
      %10069 = vmatprep.mubr.bf16.mxu0 %v9316
      %10070 = vmatmul.mubr.bf16.gmra.mrb[0].mxu0 %v9304
      %v10071 = vpop.f32.mrb[0].mxu0
      %v10072 = vadd.f32 0.0, %v10071
      %v10073 = vpop.f32.mrb[0].mxu0
      %v10074 = vadd.f32 0.0, %v10073
      %v10075 = vpop.f32.mrb[0].mxu0
      %v10076 = vadd.f32 0.0, %v10075
      %v10077 = vpop.f32.mrb[0].mxu0
      %v10078 = vadd.f32 0.0, %v10077
      %10079 = vmatprep.mubr.bf16.mxu0 %v9356
      %10080 = vmatmul.mubr.bf16.gmra.mrb[0].mxu0 %v9348
      %v10081 = vpop.f32.mrb[0].mxu0
      %v10082 = vadd.f32 0.0, %v10081
      %v10083 = vpop.f32.mrb[0].mxu0
      %v10084 = vadd.f32 0.0, %v10083
      %v10085 = vpop.f32.mrb[0].mxu0
      %v10086 = vadd.f32 0.0, %v10085
      %v10087 = vpop.f32.mrb[0].mxu0
      %v10088 = vadd.f32 0.0, %v10087
      %10089 = vmatprep.mubr.bf16.mxu0 %v9388
      %10090 = vmatmul.mubr.bf16.gmra.mrb[0].mxu0 %v9380
      %v10091 = vpop.f32.mrb[0].mxu0
      %v10092 = vadd.f32 0.0, %v10091
      %v10093 = vpop.f32.mrb[0].mxu0
      %v10094 = vadd.f32 0.0, %v10093
      %v10095 = vpop.f32.mrb[0].mxu0
      %v10096 = vadd.f32 0.0, %v10095
      %v10097 = vpop.f32.mrb[0].mxu0
      %v10098 = vadd.f32 0.0, %v10097
      %10099 = vmatprep.mubr.bf16.mxu0 %v9420
      %10100 = vmatmul.mubr.bf16.gmra.mrb[0].mxu0 %v9412
      %v10101 = vpop.f32.mrb[0].mxu0
      %v10102 = vadd.f32 0.0, %v10101
      %v10103 = vpop.f32.mrb[0].mxu0
      %v10104 = vadd.f32 0.0, %v10103
      %v10105 = vpop.f32.mrb[0].mxu0
      %v10106 = vadd.f32 0.0, %v10105
      %v10107 = vpop.f32.mrb[0].mxu0
      %v10108 = vadd.f32 0.0, %v10107
      %10109 = vmatprep.mubr.bf16.mxu0 %v9452
      %10110 = vmatmul.mubr.bf16.gmra.mrb[0].mxu0 %v9444
      %v10111 = vpop.f32.mrb[0].mxu0
      %v10112 = vadd.f32 0.0, %v10111
      %v10113 = vpop.f32.mrb[0].mxu0
      %v10114 = vadd.f32 0.0, %v10113
      %v10115 = vpop.f32.mrb[0].mxu0
      %v10116 = vadd.f32 0.0, %v10115
      %v10117 = vpop.f32.mrb[0].mxu0
      %v10118 = vadd.f32 0.0, %v10117
      %10119 = vmatprep.mubr.bf16.mxu0 %v9484
      %10120 = vmatmul.mubr.bf16.gmra.mrb[0].mxu0 %v9476
      %v10121 = vpop.f32.mrb[0].mxu0
      %v10122 = vadd.f32 0.0, %v10121
      %v10123 = vpop.f32.mrb[0].mxu0
      %v10124 = vadd.f32 0.0, %v10123
      %v10125 = vpop.f32.mrb[0].mxu0
      %v10126 = vadd.f32 0.0, %v10125
      %v10127 = vpop.f32.mrb[0].mxu0
      %v10128 = vadd.f32 0.0, %v10127
      %10129 = vdwg.mxu0
      %10130 = vmatprep.subr.bf16.mxu0 %v9894
      %10131 = vmatpush1.bf16.msra.mxu0 %v9893
      %10132 = vmatprep.subr.bf16.mxu0 %v9897
      %10133 = vmatpush1.bf16.msra.mxu0 %v9896
      %10134 = vmatprep.subr.bf16.mxu0 %v9900
      %10135 = vmatpush1.bf16.msra.mxu0 %v9899
      %10136 = vmatprep.subr.bf16.mxu0 %v9903
      %10137 = vmatpush1.bf16.msra.mxu0 %v9902
      %10138 = vmatprep.subr.bf16.mxu0 %v9906
      %10139 = vmatpush1.bf16.msra.mxu0 %v9905
      %10140 = vmatprep.subr.bf16.mxu0 %v9909
      %10141 = vmatpush1.bf16.msra.mxu0 %v9908
      %10142 = vmatprep.subr.bf16.mxu0 %v9912
      %10143 = vmatpush1.bf16.msra.mxu0 %v9911
      %10144 = vmatprep.subr.bf16.mxu0 %v9915
      %10145 = vmatpush1.bf16.msra.mxu0 %v9914
      %10146 = vmatprep.subr.bf16.mxu0 %v9918
      %10147 = vmatpush1.bf16.msra.mxu0 %v9917
      %10148 = vmatprep.subr.bf16.mxu0 %v9921
      %10149 = vmatpush1.bf16.msra.mxu0 %v9920
      %10150 = vmatprep.subr.bf16.mxu0 %v9924
      %10151 = vmatpush1.bf16.msra.mxu0 %v9923
      %10152 = vmatprep.subr.bf16.mxu0 %v9927
      %10153 = vmatpush1.bf16.msra.mxu0 %v9926
      %10154 = vmatprep.subr.bf16.mxu0 %v9930
      %10155 = vmatpush1.bf16.msra.mxu0 %v9929
      %10156 = vmatprep.subr.bf16.mxu0 %v9933
      %10157 = vmatpush1.bf16.msra.mxu0 %v9932
      %10158 = vmatprep.subr.bf16.mxu0 %v9936
      %10159 = vmatpush1.bf16.msra.mxu0 %v9935
      %10160 = vmatprep.subr.bf16.mxu0 %v9939
      %10161 = vmatpush1.bf16.msra.mxu0 %v9938
      %10162 = vmatprep.mubr.bf16.mxu0 %v9340
      %10163 = vmatmul.mubr.bf16.gmra.mrb[0].mxu0 %v9328
      %v10164 = vpop.f32.mrb[0].mxu0
      %v10165 = vadd.f32 %v10072, %v10164
      %v10166 = vpop.f32.mrb[0].mxu0
      %v10167 = vadd.f32 %v10074, %v10166
      %v10168 = vpop.f32.mrb[0].mxu0
      %v10169 = vadd.f32 %v10076, %v10168
      %v10170 = vpop.f32.mrb[0].mxu0
      %v10171 = vadd.f32 %v10078, %v10170
      %10172 = vmatprep.mubr.bf16.mxu0 %v9372
      %10173 = vmatmul.mubr.bf16.gmra.mrb[0].mxu0 %v9364
      %v10174 = vpop.f32.mrb[0].mxu0
      %v10175 = vadd.f32 %v10082, %v10174
      %v10176 = vpop.f32.mrb[0].mxu0
      %v10177 = vadd.f32 %v10084, %v10176
      %v10178 = vpop.f32.mrb[0].mxu0
      %v10179 = vadd.f32 %v10086, %v10178
      %v10180 = vpop.f32.mrb[0].mxu0
      %v10181 = vadd.f32 %v10088, %v10180
      %10182 = vmatprep.mubr.bf16.mxu0 %v9404
      %10183 = vmatmul.mubr.bf16.gmra.mrb[0].mxu0 %v9396
      %v10184 = vpop.f32.mrb[0].mxu0
      %v10185 = vadd.f32 %v10092, %v10184
      %v10186 = vpop.f32.mrb[0].mxu0
      %v10187 = vadd.f32 %v10094, %v10186
      %v10188 = vpop.f32.mrb[0].mxu0
      %v10189 = vadd.f32 %v10096, %v10188
      %v10190 = vpop.f32.mrb[0].mxu0
      %v10191 = vadd.f32 %v10098, %v10190
      %10192 = vmatprep.mubr.bf16.mxu0 %v9436
      %10193 = vmatmul.mubr.bf16.gmra.mrb[0].mxu0 %v9428
      %v10194 = vpop.f32.mrb[0].mxu0
      %v10195 = vadd.f32 %v10102, %v10194
      %v10196 = vpop.f32.mrb[0].mxu0
      %v10197 = vadd.f32 %v10104, %v10196
      %v10198 = vpop.f32.mrb[0].mxu0
      %v10199 = vadd.f32 %v10106, %v10198
      %v10200 = vpop.f32.mrb[0].mxu0
      %v10201 = vadd.f32 %v10108, %v10200
      %10202 = vmatprep.mubr.bf16.mxu0 %v9468
      %10203 = vmatmul.mubr.bf16.gmra.mrb[0].mxu0 %v9460
      %v10204 = vpop.f32.mrb[0].mxu0
      %v10205 = vadd.f32 %v10112, %v10204
      %v10206 = vpop.f32.mrb[0].mxu0
      %v10207 = vadd.f32 %v10114, %v10206
      %v10208 = vpop.f32.mrb[0].mxu0
      %v10209 = vadd.f32 %v10116, %v10208
      %v10210 = vpop.f32.mrb[0].mxu0
      %v10211 = vadd.f32 %v10118, %v10210
      %10212 = vmatprep.mubr.bf16.mxu0 %v9500
      %10213 = vmatmul.mubr.bf16.gmra.mrb[0].mxu0 %v9492
      %v10214 = vpop.f32.mrb[0].mxu0
      %v10215 = vadd.f32 %v10122, %v10214
      %v10216 = vpop.f32.mrb[0].mxu0
      %v10217 = vadd.f32 %v10124, %v10216
      %v10218 = vpop.f32.mrb[0].mxu0
      %v10219 = vadd.f32 %v10126, %v10218
      %v10220 = vpop.f32.mrb[0].mxu0
      %v10221 = vadd.f32 %v10128, %v10220
      %10222 = vdwg.mxu0
      %10223 = vmatprep.subr.bf16.mxu0 0
      %10224 = vmatpush1.bf16.msra.mxu0 %v9847
      %10225 = vmatprep.subr.bf16.mxu0 0
      %10226 = vmatpush1.bf16.msra.mxu0 %v9850
      %10227 = vmatprep.subr.bf16.mxu0 0
      %10228 = vmatpush1.bf16.msra.mxu0 %v9853
      %10229 = vmatprep.subr.bf16.mxu0 0
      %10230 = vmatpush1.bf16.msra.mxu0 %v9856
      %10231 = vmatprep.subr.bf16.mxu0 0
      %10232 = vmatpush1.bf16.msra.mxu0 %v9859
      %10233 = vmatprep.subr.bf16.mxu0 0
      %10234 = vmatpush1.bf16.msra.mxu0 %v9862
      %10235 = vmatprep.subr.bf16.mxu0 0
      %10236 = vmatpush1.bf16.msra.mxu0 %v9865
      %10237 = vmatprep.subr.bf16.mxu0 0
      %10238 = vmatpush1.bf16.msra.mxu0 %v9868
      %10239 = vmatprep.subr.bf16.mxu0 0
      %10240 = vmatpush1.bf16.msra.mxu0 %v9871
      %10241 = vmatprep.subr.bf16.mxu0 0
      %10242 = vmatpush1.bf16.msra.mxu0 %v9874
      %10243 = vmatprep.subr.bf16.mxu0 0
      %10244 = vmatpush1.bf16.msra.mxu0 %v9877
      %10245 = vmatprep.subr.bf16.mxu0 0
      %10246 = vmatpush1.bf16.msra.mxu0 %v9880
      %10247 = vmatprep.subr.bf16.mxu0 0
      %10248 = vmatpush1.bf16.msra.mxu0 %v9883
      %10249 = vmatprep.subr.bf16.mxu0 0
      %10250 = vmatpush1.bf16.msra.mxu0 %v9886
      %10251 = vmatprep.subr.bf16.mxu0 0
      %10252 = vmatpush1.bf16.msra.mxu0 %v9889
      %10253 = vmatprep.subr.bf16.mxu0 0
      %10254 = vmatpush1.bf16.msra.mxu0 %v9892
      %10255 = vmatprep.mubr.bf16.mxu0 %v9316
      %10256 = vmatmul.mubr.bf16.gmra.mrb[0].mxu0 %v9304
      %v10257 = vpop.f32.mrb[0].mxu0
      %v10258 = vadd.f32 0.0, %v10257
      %v10259 = vpop.f32.mrb[0].mxu0
      %v10260 = vpop.f32.mrb[0].mxu0
      %v10261 = vadd.f32 0.0, %v10260
      %v10262 = vpop.f32.mrb[0].mxu0
      %10263 = vmatprep.mubr.bf16.mxu0 %v9356
      %10264 = vmatmul.mubr.bf16.gmra.mrb[0].mxu0 %v9348
      %v10265 = vpop.f32.mrb[0].mxu0
      %v10266 = vadd.f32 0.0, %v10265
      %v10267 = vpop.f32.mrb[0].mxu0
      %v10268 = vpop.f32.mrb[0].mxu0
      %v10269 = vadd.f32 0.0, %v10268
      %v10270 = vpop.f32.mrb[0].mxu0
      %10271 = vmatprep.mubr.bf16.mxu0 %v9388
      %10272 = vmatmul.mubr.bf16.gmra.mrb[0].mxu0 %v9380
      %v10273 = vpop.f32.mrb[0].mxu0
      %v10274 = vadd.f32 0.0, %v10273
      %v10275 = vpop.f32.mrb[0].mxu0
      %v10276 = vpop.f32.mrb[0].mxu0
      %v10277 = vadd.f32 0.0, %v10276
      %v10278 = vpop.f32.mrb[0].mxu0
      %10279 = vmatprep.mubr.bf16.mxu0 %v9420
      %10280 = vmatmul.mubr.bf16.gmra.mrb[0].mxu0 %v9412
      %v10281 = vpop.f32.mrb[0].mxu0
      %v10282 = vadd.f32 0.0, %v10281
      %v10283 = vpop.f32.mrb[0].mxu0
      %v10284 = vpop.f32.mrb[0].mxu0
      %v10285 = vadd.f32 0.0, %v10284
      %v10286 = vpop.f32.mrb[0].mxu0
      %10287 = vmatprep.mubr.bf16.mxu0 %v9452
      %10288 = vmatmul.mubr.bf16.gmra.mrb[0].mxu0 %v9444
      %v10289 = vpop.f32.mrb[0].mxu0
      %v10290 = vadd.f32 0.0, %v10289
      %v10291 = vpop.f32.mrb[0].mxu0
      %v10292 = vpop.f32.mrb[0].mxu0
      %v10293 = vadd.f32 0.0, %v10292
      %v10294 = vpop.f32.mrb[0].mxu0
      %10295 = vmatprep.mubr.bf16.mxu0 %v9484
      %10296 = vmatmul.mubr.bf16.gmra.mrb[0].mxu0 %v9476
      %v10297 = vpop.f32.mrb[0].mxu0
      %v10298 = vadd.f32 0.0, %v10297
      %v10299 = vpop.f32.mrb[0].mxu0
      %v10300 = vpop.f32.mrb[0].mxu0
      %v10301 = vadd.f32 0.0, %v10300
      %v10302 = vpop.f32.mrb[0].mxu0
      %10303 = vdwg.mxu0
      %10304 = vmatprep.subr.bf16.mxu0 0
      %10305 = vmatpush1.bf16.msra.mxu0 %v9895
      %10306 = vmatprep.subr.bf16.mxu0 0
      %10307 = vmatpush1.bf16.msra.mxu0 %v9898
      %10308 = vmatprep.subr.bf16.mxu0 0
      %10309 = vmatpush1.bf16.msra.mxu0 %v9901
      %10310 = vmatprep.subr.bf16.mxu0 0
      %10311 = vmatpush1.bf16.msra.mxu0 %v9904
      %10312 = vmatprep.subr.bf16.mxu0 0
      %10313 = vmatpush1.bf16.msra.mxu0 %v9907
      %10314 = vmatprep.subr.bf16.mxu0 0
      %10315 = vmatpush1.bf16.msra.mxu0 %v9910
      %10316 = vmatprep.subr.bf16.mxu0 0
      %10317 = vmatpush1.bf16.msra.mxu0 %v9913
      %10318 = vmatprep.subr.bf16.mxu0 0
      %10319 = vmatpush1.bf16.msra.mxu0 %v9916
      %10320 = vmatprep.subr.bf16.mxu0 0
      %10321 = vmatpush1.bf16.msra.mxu0 %v9919
      %10322 = vmatprep.subr.bf16.mxu0 0
      %10323 = vmatpush1.bf16.msra.mxu0 %v9922
      %10324 = vmatprep.subr.bf16.mxu0 0
      %10325 = vmatpush1.bf16.msra.mxu0 %v9925
      %10326 = vmatprep.subr.bf16.mxu0 0
      %10327 = vmatpush1.bf16.msra.mxu0 %v9928
      %10328 = vmatprep.subr.bf16.mxu0 0
      %10329 = vmatpush1.bf16.msra.mxu0 %v9931
      %10330 = vmatprep.subr.bf16.mxu0 0
      %10331 = vmatpush1.bf16.msra.mxu0 %v9934
      %10332 = vmatprep.subr.bf16.mxu0 0
      %10333 = vmatpush1.bf16.msra.mxu0 %v9937
      %10334 = vmatprep.subr.bf16.mxu0 0
      %10335 = vmatpush1.bf16.msra.mxu0 %v9940
      %10336 = vmatprep.mubr.bf16.mxu0 %v9340
      %10337 = vmatmul.mubr.bf16.gmra.mrb[0].mxu0 %v9328
      %v10338 = vpop.f32.mrb[0].mxu0
      %v10339 = vadd.f32 %v10258, %v10338
      %v10340 = vpop.f32.mrb[0].mxu0
      %v10341 = vpop.f32.mrb[0].mxu0
      %v10342 = vadd.f32 %v10261, %v10341
      %v10343 = vpop.f32.mrb[0].mxu0
      %10344 = vmatprep.mubr.bf16.mxu0 %v9372
      %10345 = vmatmul.mubr.bf16.gmra.mrb[0].mxu0 %v9364
      %v10346 = vpop.f32.mrb[0].mxu0
      %v10347 = vadd.f32 %v10266, %v10346
      %v10348 = vpop.f32.mrb[0].mxu0
      %v10349 = vpop.f32.mrb[0].mxu0
      %v10350 = vadd.f32 %v10269, %v10349
      %v10351 = vpop.f32.mrb[0].mxu0
      %10352 = vmatprep.mubr.bf16.mxu0 %v9404
      %10353 = vmatmul.mubr.bf16.gmra.mrb[0].mxu0 %v9396
      %v10354 = vpop.f32.mrb[0].mxu0
      %v10355 = vadd.f32 %v10274, %v10354
      %v10356 = vpop.f32.mrb[0].mxu0
      %v10357 = vpop.f32.mrb[0].mxu0
      %v10358 = vadd.f32 %v10277, %v10357
      %v10359 = vpop.f32.mrb[0].mxu0
      %10360 = vmatprep.mubr.bf16.mxu0 %v9436
      %10361 = vmatmul.mubr.bf16.gmra.mrb[0].mxu0 %v9428
      %v10362 = vpop.f32.mrb[0].mxu0
      %v10363 = vadd.f32 %v10282, %v10362
      %v10364 = vpop.f32.mrb[0].mxu0
      %v10365 = vpop.f32.mrb[0].mxu0
      %v10366 = vadd.f32 %v10285, %v10365
      %v10367 = vpop.f32.mrb[0].mxu0
      %10368 = vmatprep.mubr.bf16.mxu0 %v9468
      %10369 = vmatmul.mubr.bf16.gmra.mrb[0].mxu0 %v9460
      %v10370 = vpop.f32.mrb[0].mxu0
      %v10371 = vadd.f32 %v10290, %v10370
      %v10372 = vpop.f32.mrb[0].mxu0
      %v10373 = vpop.f32.mrb[0].mxu0
      %v10374 = vadd.f32 %v10293, %v10373
      %v10375 = vpop.f32.mrb[0].mxu0
      %10376 = vmatprep.mubr.bf16.mxu0 %v9500
      %10377 = vmatmul.mubr.bf16.gmra.mrb[0].mxu0 %v9492
      %v10378 = vpop.f32.mrb[0].mxu0
      %v10379 = vadd.f32 %v10298, %v10378
      %v10380 = vpop.f32.mrb[0].mxu0
      %v10381 = vpop.f32.mrb[0].mxu0
      %v10382 = vadd.f32 %v10301, %v10381
      %v10383 = vpop.f32.mrb[0].mxu0
      %10384 = vdwg.mxu0
      %v10537 = vunpack.c.l.b16 %v8928
      %v10538 = vunpack.c.h.b16 %v8928
      %v10539 = vunpack.c.l.b16 %v8929
      %v10540 = vunpack.c.l.b16 %v8930
      %v10541 = vunpack.c.h.b16 %v8930
      %v10542 = vunpack.c.l.b16 %v8931
      %v10543 = vunpack.c.l.b16 %v8932
      %v10544 = vunpack.c.h.b16 %v8932
      %v10545 = vunpack.c.l.b16 %v8933
      %v10546 = vunpack.c.l.b16 %v8934
      %v10547 = vunpack.c.h.b16 %v8934
      %v10548 = vunpack.c.l.b16 %v8935
      %v10549 = vunpack.c.l.b16 %v8936
      %v10550 = vunpack.c.h.b16 %v8936
      %v10551 = vunpack.c.l.b16 %v8937
      %v10552 = vunpack.c.l.b16 %v8938
      %v10553 = vunpack.c.h.b16 %v8938
      %v10554 = vunpack.c.l.b16 %v8939
      %v10555 = vunpack.c.l.b16 %v8940
      %v10556 = vunpack.c.h.b16 %v8940
      %v10557 = vunpack.c.l.b16 %v8941
      %v10558 = vunpack.c.l.b16 %v8942
      %v10559 = vunpack.c.h.b16 %v8942
      %v10560 = vunpack.c.l.b16 %v8943
      %v10561 = vunpack.c.l.b16 %v8944
      %v10562 = vunpack.c.h.b16 %v8944
      %v10563 = vunpack.c.l.b16 %v8945
      %v10564 = vunpack.c.l.b16 %v8946
      %v10565 = vunpack.c.h.b16 %v8946
      %v10566 = vunpack.c.l.b16 %v8947
      %v10567 = vunpack.c.l.b16 %v8948
      %v10568 = vunpack.c.h.b16 %v8948
      %v10569 = vunpack.c.l.b16 %v8949
      %v10570 = vunpack.c.l.b16 %v8950
      %v10571 = vunpack.c.h.b16 %v8950
      %v10572 = vunpack.c.l.b16 %v8951
      %v10573 = vunpack.c.l.b16 %v8952
      %v10574 = vunpack.c.h.b16 %v8952
      %v10575 = vunpack.c.l.b16 %v8953
      %v10576 = vunpack.c.l.b16 %v8954
      %v10577 = vunpack.c.h.b16 %v8954
      %v10578 = vunpack.c.l.b16 %v8955
      %v10579 = vunpack.c.l.b16 %v8956
      %v10580 = vunpack.c.h.b16 %v8956
      %v10581 = vunpack.c.l.b16 %v8957
      %v10582 = vunpack.c.l.b16 %v8958
      %v10583 = vunpack.c.h.b16 %v8958
      %v10584 = vunpack.c.l.b16 %v8959
      %v10585 = vunpack.c.l.b16 %v8960
      %v10586 = vunpack.c.h.b16 %v8960
      %v10587 = vunpack.c.l.b16 %v8961
      %v10588 = vunpack.c.l.b16 %v8962
      %v10589 = vunpack.c.h.b16 %v8962
      %v10590 = vunpack.c.l.b16 %v8963
      %v10591 = vunpack.c.l.b16 %v8964
      %v10592 = vunpack.c.h.b16 %v8964
      %v10593 = vunpack.c.l.b16 %v8965
      %v10594 = vunpack.c.l.b16 %v8966
      %v10595 = vunpack.c.h.b16 %v8966
      %v10596 = vunpack.c.l.b16 %v8967
      %v10597 = vunpack.c.l.b16 %v8968
      %v10598 = vunpack.c.h.b16 %v8968
      %v10599 = vunpack.c.l.b16 %v8969
      %v10600 = vunpack.c.l.b16 %v8970
      %v10601 = vunpack.c.h.b16 %v8970
      %v10602 = vunpack.c.l.b16 %v8971
      %v10603 = vunpack.c.l.b16 %v8972
      %v10604 = vunpack.c.h.b16 %v8972
      %v10605 = vunpack.c.l.b16 %v8973
      %v10606 = vunpack.c.l.b16 %v8974
      %v10607 = vunpack.c.h.b16 %v8974
      %v10608 = vunpack.c.l.b16 %v8975
      %v10609 = vunpack.c.l.b16 %v8976
      %v10610 = vunpack.c.h.b16 %v8976
      %v10611 = vunpack.c.l.b16 %v8977
      %v10612 = vunpack.c.l.b16 %v8978
      %v10613 = vunpack.c.h.b16 %v8978
      %v10614 = vunpack.c.l.b16 %v8979
      %v10615 = vunpack.c.l.b16 %v8980
      %v10616 = vunpack.c.h.b16 %v8980
      %v10617 = vunpack.c.l.b16 %v8981
      %v10618 = vunpack.c.l.b16 %v8982
      %v10619 = vunpack.c.h.b16 %v8982
      %v10620 = vunpack.c.l.b16 %v8983
      %v10621 = vunpack.c.l.b16 %v8984
      %v10622 = vunpack.c.h.b16 %v8984
      %v10623 = vunpack.c.l.b16 %v8985
      %v10624 = vunpack.c.l.b16 %v8986
      %v10625 = vunpack.c.h.b16 %v8986
      %v10626 = vunpack.c.l.b16 %v8987
      %v10627 = vunpack.c.l.b16 %v8988
      %v10628 = vunpack.c.h.b16 %v8988
      %v10629 = vunpack.c.l.b16 %v8989
      %v10630 = vunpack.c.l.b16 %v8990
      %v10631 = vunpack.c.h.b16 %v8990
      %v10632 = vunpack.c.l.b16 %v8991
      %v10633 = vunpack.c.l.b16 %v8992
      %v10634 = vunpack.c.h.b16 %v8992
      %v10635 = vunpack.c.l.b16 %v8993
      %v10636 = vunpack.c.l.b16 %v8994
      %v10637 = vunpack.c.h.b16 %v8994
      %v10638 = vunpack.c.l.b16 %v8995
      %v10639 = vunpack.c.l.b16 %v8996
      %v10640 = vunpack.c.h.b16 %v8996
      %v10641 = vunpack.c.l.b16 %v8997
      %v10642 = vunpack.c.l.b16 %v8998
      %v10643 = vunpack.c.h.b16 %v8998
      %v10644 = vunpack.c.l.b16 %v8999
      %v10645 = vunpack.c.l.b16 %v9000
      %v10646 = vunpack.c.h.b16 %v9000
      %v10647 = vunpack.c.l.b16 %v9001
      %v10648 = vunpack.c.l.b16 %v9002
      %v10649 = vunpack.c.h.b16 %v9002
      %v10650 = vunpack.c.l.b16 %v9003
      %v10651 = vunpack.c.l.b16 %v9004
      %v10652 = vunpack.c.h.b16 %v9004
      %v10653 = vunpack.c.l.b16 %v9005
      %v10654 = vunpack.c.l.b16 %v9006
      %v10655 = vunpack.c.h.b16 %v9006
      %v10656 = vunpack.c.l.b16 %v9007
      %v10657 = vunpack.c.l.b16 %v9008
      %v10658 = vunpack.c.h.b16 %v9008
      %v10659 = vunpack.c.l.b16 %v9009
      %v10660 = vunpack.c.l.b16 %v9010
      %v10661 = vunpack.c.h.b16 %v9010
      %v10662 = vunpack.c.l.b16 %v9011
      %v10663 = vunpack.c.l.b16 %v9012
      %v10664 = vunpack.c.h.b16 %v9012
      %v10665 = vunpack.c.l.b16 %v9013
      %v10666 = vunpack.c.l.b16 %v9014
      %v10667 = vunpack.c.h.b16 %v9014
      %v10668 = vunpack.c.l.b16 %v9015
      %v10669 = vunpack.c.l.b16 %v9016
      %v10670 = vunpack.c.h.b16 %v9016
      %v10671 = vunpack.c.l.b16 %v9017
      %v10672 = vunpack.c.l.b16 %v9018
      %v10673 = vunpack.c.h.b16 %v9018
      %v10674 = vunpack.c.l.b16 %v9019
      %v10675 = vunpack.c.l.b16 %v9020
      %v10676 = vunpack.c.h.b16 %v9020
      %v10677 = vunpack.c.l.b16 %v9021
      %v10678 = vunpack.c.l.b16 %v9022
      %v10679 = vunpack.c.h.b16 %v9022
      %v10680 = vunpack.c.l.b16 %v9023
      %v10681 = vunpack.c.l.b16 %v9024
      %v10682 = vunpack.c.h.b16 %v9024
      %v10683 = vunpack.c.l.b16 %v9025
      %v10684 = vunpack.c.l.b16 %v9026
      %v10685 = vunpack.c.h.b16 %v9026
      %v10686 = vunpack.c.l.b16 %v9027
      %v10687 = vunpack.c.l.b16 %v9028
      %v10688 = vunpack.c.h.b16 %v9028
      %v10689 = vunpack.c.l.b16 %v9029
      %v10690 = vunpack.c.l.b16 %v9030
      %v10691 = vunpack.c.h.b16 %v9030
      %v10692 = vunpack.c.l.b16 %v9031
      %v10693 = vunpack.c.l.b16 %v9032
      %v10694 = vunpack.c.h.b16 %v9032
      %v10695 = vunpack.c.l.b16 %v9033
      %v10696 = vunpack.c.l.b16 %v9034
      %v10697 = vunpack.c.h.b16 %v9034
      %v10698 = vunpack.c.l.b16 %v9035
      %v10699 = vunpack.c.l.b16 %v9036
      %v10700 = vunpack.c.h.b16 %v9036
      %v10701 = vunpack.c.l.b16 %v9037
      %v10702 = vunpack.c.l.b16 %v9038
      %v10703 = vunpack.c.h.b16 %v9038
      %v10704 = vunpack.c.l.b16 %v9039
      %v10705 = vunpack.c.l.b16 %v9040
      %v10706 = vunpack.c.h.b16 %v9040
      %v10707 = vunpack.c.l.b16 %v9041
      %v10708 = vunpack.c.l.b16 %v9042
      %v10709 = vunpack.c.h.b16 %v9042
      %v10710 = vunpack.c.l.b16 %v9043
      %v10711 = vunpack.c.l.b16 %v9044
      %v10712 = vunpack.c.h.b16 %v9044
      %v10713 = vunpack.c.l.b16 %v9045
      %v10714 = vunpack.c.l.b16 %v9046
      %v10715 = vunpack.c.h.b16 %v9046
      %v10716 = vunpack.c.l.b16 %v9047
      %v10717 = vunpack.c.l.b16 %v9048
      %v10718 = vunpack.c.h.b16 %v9048
      %v10719 = vunpack.c.l.b16 %v9049
      %v10720 = vunpack.c.l.b16 %v9050
      %v10721 = vunpack.c.h.b16 %v9050
      %v10722 = vunpack.c.l.b16 %v9051
      %v10723 = vunpack.c.l.b16 %v9052
      %v10724 = vunpack.c.h.b16 %v9052
      %v10725 = vunpack.c.l.b16 %v9053
      %v10726 = vunpack.c.l.b16 %v9054
      %v10727 = vunpack.c.h.b16 %v9054
      %v10728 = vunpack.c.l.b16 %v9055
      %v10729 = vpack.c.b16 %v10540, %v10537
      %v10730 = vpack.c.b16 %v10541, %v10538
      %v10731 = vpack.c.b16 %v10542, %v10539
      %v10732 = vpack.c.b16 %v10546, %v10543
      %v10733 = vpack.c.b16 %v10547, %v10544
      %v10734 = vpack.c.b16 %v10548, %v10545
      %v10735 = vpack.c.b16 %v10552, %v10549
      %v10736 = vpack.c.b16 %v10553, %v10550
      %v10737 = vpack.c.b16 %v10554, %v10551
      %v10738 = vpack.c.b16 %v10558, %v10555
      %v10739 = vpack.c.b16 %v10559, %v10556
      %v10740 = vpack.c.b16 %v10560, %v10557
      %v10741 = vpack.c.b16 %v10564, %v10561
      %v10742 = vpack.c.b16 %v10565, %v10562
      %v10743 = vpack.c.b16 %v10566, %v10563
      %v10744 = vpack.c.b16 %v10570, %v10567
      %v10745 = vpack.c.b16 %v10571, %v10568
      %v10746 = vpack.c.b16 %v10572, %v10569
      %v10747 = vpack.c.b16 %v10576, %v10573
      %v10748 = vpack.c.b16 %v10577, %v10574
      %v10749 = vpack.c.b16 %v10578, %v10575
      %v10750 = vpack.c.b16 %v10582, %v10579
      %v10751 = vpack.c.b16 %v10583, %v10580
      %v10752 = vpack.c.b16 %v10584, %v10581
      %v10753 = vpack.c.b16 %v10588, %v10585
      %v10754 = vpack.c.b16 %v10589, %v10586
      %v10755 = vpack.c.b16 %v10590, %v10587
      %v10756 = vpack.c.b16 %v10594, %v10591
      %v10757 = vpack.c.b16 %v10595, %v10592
      %v10758 = vpack.c.b16 %v10596, %v10593
      %v10759 = vpack.c.b16 %v10600, %v10597
      %v10760 = vpack.c.b16 %v10601, %v10598
      %v10761 = vpack.c.b16 %v10602, %v10599
      %v10762 = vpack.c.b16 %v10606, %v10603
      %v10763 = vpack.c.b16 %v10607, %v10604
      %v10764 = vpack.c.b16 %v10608, %v10605
      %v10765 = vpack.c.b16 %v10612, %v10609
      %v10766 = vpack.c.b16 %v10613, %v10610
      %v10767 = vpack.c.b16 %v10614, %v10611
      %v10768 = vpack.c.b16 %v10618, %v10615
      %v10769 = vpack.c.b16 %v10619, %v10616
      %v10770 = vpack.c.b16 %v10620, %v10617
      %v10771 = vpack.c.b16 %v10624, %v10621
      %v10772 = vpack.c.b16 %v10625, %v10622
      %v10773 = vpack.c.b16 %v10626, %v10623
      %v10774 = vpack.c.b16 %v10630, %v10627
      %v10775 = vpack.c.b16 %v10631, %v10628
      %v10776 = vpack.c.b16 %v10632, %v10629
      %v10777 = vpack.c.b16 %v10636, %v10633
      %v10778 = vpack.c.b16 %v10637, %v10634
      %v10779 = vpack.c.b16 %v10638, %v10635
      %v10780 = vpack.c.b16 %v10642, %v10639
      %v10781 = vpack.c.b16 %v10643, %v10640
      %v10782 = vpack.c.b16 %v10644, %v10641
      %v10783 = vpack.c.b16 %v10648, %v10645
      %v10784 = vpack.c.b16 %v10649, %v10646
      %v10785 = vpack.c.b16 %v10650, %v10647
      %v10786 = vpack.c.b16 %v10654, %v10651
      %v10787 = vpack.c.b16 %v10655, %v10652
      %v10788 = vpack.c.b16 %v10656, %v10653
      %v10789 = vpack.c.b16 %v10660, %v10657
      %v10790 = vpack.c.b16 %v10661, %v10658
      %v10791 = vpack.c.b16 %v10662, %v10659
      %v10792 = vpack.c.b16 %v10666, %v10663
      %v10793 = vpack.c.b16 %v10667, %v10664
      %v10794 = vpack.c.b16 %v10668, %v10665
      %v10795 = vpack.c.b16 %v10672, %v10669
      %v10796 = vpack.c.b16 %v10673, %v10670
      %v10797 = vpack.c.b16 %v10674, %v10671
      %v10798 = vpack.c.b16 %v10678, %v10675
      %v10799 = vpack.c.b16 %v10679, %v10676
      %v10800 = vpack.c.b16 %v10680, %v10677
      %v10801 = vpack.c.b16 %v10684, %v10681
      %v10802 = vpack.c.b16 %v10685, %v10682
      %v10803 = vpack.c.b16 %v10686, %v10683
      %v10804 = vpack.c.b16 %v10690, %v10687
      %v10805 = vpack.c.b16 %v10691, %v10688
      %v10806 = vpack.c.b16 %v10692, %v10689
      %v10807 = vpack.c.b16 %v10696, %v10693
      %v10808 = vpack.c.b16 %v10697, %v10694
      %v10809 = vpack.c.b16 %v10698, %v10695
      %v10810 = vpack.c.b16 %v10702, %v10699
      %v10811 = vpack.c.b16 %v10703, %v10700
      %v10812 = vpack.c.b16 %v10704, %v10701
      %v10813 = vpack.c.b16 %v10708, %v10705
      %v10814 = vpack.c.b16 %v10709, %v10706
      %v10815 = vpack.c.b16 %v10710, %v10707
      %v10816 = vpack.c.b16 %v10714, %v10711
      %v10817 = vpack.c.b16 %v10715, %v10712
      %v10818 = vpack.c.b16 %v10716, %v10713
      %v10819 = vpack.c.b16 %v10720, %v10717
      %v10820 = vpack.c.b16 %v10721, %v10718
      %v10821 = vpack.c.b16 %v10722, %v10719
      %v10822 = vpack.c.b16 %v10726, %v10723
      %v10823 = vpack.c.b16 %v10727, %v10724
      %v10824 = vpack.c.b16 %v10728, %v10725
      %10921 = vmatprep.subr.bf16.mxu0 %v10730
      %10922 = vmatpush1.bf16.msra.mxu0 %v10729
      %10923 = vmatprep.subr.bf16.mxu0 %v10733
      %10924 = vmatpush1.bf16.msra.mxu0 %v10732
      %10925 = vmatprep.subr.bf16.mxu0 %v10736
      %10926 = vmatpush1.bf16.msra.mxu0 %v10735
      %10927 = vmatprep.subr.bf16.mxu0 %v10739
      %10928 = vmatpush1.bf16.msra.mxu0 %v10738
      %10929 = vmatprep.subr.bf16.mxu0 %v10742
      %10930 = vmatpush1.bf16.msra.mxu0 %v10741
      %10931 = vmatprep.subr.bf16.mxu0 %v10745
      %10932 = vmatpush1.bf16.msra.mxu0 %v10744
      %10933 = vmatprep.subr.bf16.mxu0 %v10748
      %10934 = vmatpush1.bf16.msra.mxu0 %v10747
      %10935 = vmatprep.subr.bf16.mxu0 %v10751
      %10936 = vmatpush1.bf16.msra.mxu0 %v10750
      %10937 = vmatprep.subr.bf16.mxu0 %v10754
      %10938 = vmatpush1.bf16.msra.mxu0 %v10753
      %10939 = vmatprep.subr.bf16.mxu0 %v10757
      %10940 = vmatpush1.bf16.msra.mxu0 %v10756
      %10941 = vmatprep.subr.bf16.mxu0 %v10760
      %10942 = vmatpush1.bf16.msra.mxu0 %v10759
      %10943 = vmatprep.subr.bf16.mxu0 %v10763
      %10944 = vmatpush1.bf16.msra.mxu0 %v10762
      %10945 = vmatprep.subr.bf16.mxu0 %v10766
      %10946 = vmatpush1.bf16.msra.mxu0 %v10765
      %10947 = vmatprep.subr.bf16.mxu0 %v10769
      %10948 = vmatpush1.bf16.msra.mxu0 %v10768
      %10949 = vmatprep.subr.bf16.mxu0 %v10772
      %10950 = vmatpush1.bf16.msra.mxu0 %v10771
      %10951 = vmatprep.subr.bf16.mxu0 %v10775
      %10952 = vmatpush1.bf16.msra.mxu0 %v10774
      %10953 = vmatprep.mubr.bf16.mxu0 %v9266
      %10954 = vmatmul.mubr.bf16.gmra.mrb[0].mxu0 %v9265
      %v10955 = vpop.f32.mrb[0].mxu0
      %v10956 = vadd.f32 %v10165, %v10955
      %v10957 = vpop.f32.mrb[0].mxu0
      %v10958 = vadd.f32 %v10167, %v10957
      %v10959 = vpop.f32.mrb[0].mxu0
      %v10960 = vadd.f32 %v10169, %v10959
      %v10961 = vpop.f32.mrb[0].mxu0
      %v10962 = vadd.f32 %v10171, %v10961
      %10963 = vmatprep.mubr.bf16.mxu0 %v9270
      %10964 = vmatmul.mubr.bf16.gmra.mrb[0].mxu0 %v9269
      %v10965 = vpop.f32.mrb[0].mxu0
      %v10966 = vadd.f32 %v10175, %v10965
      %v10967 = vpop.f32.mrb[0].mxu0
      %v10968 = vadd.f32 %v10177, %v10967
      %v10969 = vpop.f32.mrb[0].mxu0
      %v10970 = vadd.f32 %v10179, %v10969
      %v10971 = vpop.f32.mrb[0].mxu0
      %v10972 = vadd.f32 %v10181, %v10971
      %10973 = vmatprep.mubr.bf16.mxu0 %v9274
      %10974 = vmatmul.mubr.bf16.gmra.mrb[0].mxu0 %v9273
      %v10975 = vpop.f32.mrb[0].mxu0
      %v10976 = vadd.f32 %v10185, %v10975
      %v10977 = vpop.f32.mrb[0].mxu0
      %v10978 = vadd.f32 %v10187, %v10977
      %v10979 = vpop.f32.mrb[0].mxu0
      %v10980 = vadd.f32 %v10189, %v10979
      %v10981 = vpop.f32.mrb[0].mxu0
      %v10982 = vadd.f32 %v10191, %v10981
      %10983 = vmatprep.mubr.bf16.mxu0 %v9278
      %10984 = vmatmul.mubr.bf16.gmra.mrb[0].mxu0 %v9277
      %v10985 = vpop.f32.mrb[0].mxu0
      %v10986 = vadd.f32 %v10195, %v10985
      %v10987 = vpop.f32.mrb[0].mxu0
      %v10988 = vadd.f32 %v10197, %v10987
      %v10989 = vpop.f32.mrb[0].mxu0
      %v10990 = vadd.f32 %v10199, %v10989
      %v10991 = vpop.f32.mrb[0].mxu0
      %v10992 = vadd.f32 %v10201, %v10991
      %10993 = vmatprep.mubr.bf16.mxu0 %v9282
      %10994 = vmatmul.mubr.bf16.gmra.mrb[0].mxu0 %v9281
      %v10995 = vpop.f32.mrb[0].mxu0
      %v10996 = vadd.f32 %v10205, %v10995
      %v10997 = vpop.f32.mrb[0].mxu0
      %v10998 = vadd.f32 %v10207, %v10997
      %v10999 = vpop.f32.mrb[0].mxu0
      %v11000 = vadd.f32 %v10209, %v10999
      %v11001 = vpop.f32.mrb[0].mxu0
      %v11002 = vadd.f32 %v10211, %v11001
      %11003 = vmatprep.mubr.bf16.mxu0 %v9286
      %11004 = vmatmul.mubr.bf16.gmra.mrb[0].mxu0 %v9285
      %v11005 = vpop.f32.mrb[0].mxu0
      %v11006 = vadd.f32 %v10215, %v11005
      %v11007 = vpop.f32.mrb[0].mxu0
      %v11008 = vadd.f32 %v10217, %v11007
      %v11009 = vpop.f32.mrb[0].mxu0
      %v11010 = vadd.f32 %v10219, %v11009
      %v11011 = vpop.f32.mrb[0].mxu0
      %v11012 = vadd.f32 %v10221, %v11011
      %11013 = vdwg.mxu0
      %11014 = vmatprep.subr.bf16.mxu0 %v10778
      %11015 = vmatpush1.bf16.msra.mxu0 %v10777
      %11016 = vmatprep.subr.bf16.mxu0 %v10781
      %11017 = vmatpush1.bf16.msra.mxu0 %v10780
      %11018 = vmatprep.subr.bf16.mxu0 %v10784
      %11019 = vmatpush1.bf16.msra.mxu0 %v10783
      %11020 = vmatprep.subr.bf16.mxu0 %v10787
      %11021 = vmatpush1.bf16.msra.mxu0 %v10786
      %11022 = vmatprep.subr.bf16.mxu0 %v10790
      %11023 = vmatpush1.bf16.msra.mxu0 %v10789
      %11024 = vmatprep.subr.bf16.mxu0 %v10793
      %11025 = vmatpush1.bf16.msra.mxu0 %v10792
      %11026 = vmatprep.subr.bf16.mxu0 %v10796
      %11027 = vmatpush1.bf16.msra.mxu0 %v10795
      %11028 = vmatprep.subr.bf16.mxu0 %v10799
      %11029 = vmatpush1.bf16.msra.mxu0 %v10798
      %11030 = vmatprep.subr.bf16.mxu0 %v10802
      %11031 = vmatpush1.bf16.msra.mxu0 %v10801
      %11032 = vmatprep.subr.bf16.mxu0 %v10805
      %11033 = vmatpush1.bf16.msra.mxu0 %v10804
      %11034 = vmatprep.subr.bf16.mxu0 %v10808
      %11035 = vmatpush1.bf16.msra.mxu0 %v10807
      %11036 = vmatprep.subr.bf16.mxu0 %v10811
      %11037 = vmatpush1.bf16.msra.mxu0 %v10810
      %11038 = vmatprep.subr.bf16.mxu0 %v10814
      %11039 = vmatpush1.bf16.msra.mxu0 %v10813
      %11040 = vmatprep.subr.bf16.mxu0 %v10817
      %11041 = vmatpush1.bf16.msra.mxu0 %v10816
      %11042 = vmatprep.subr.bf16.mxu0 %v10820
      %11043 = vmatpush1.bf16.msra.mxu0 %v10819
      %11044 = vmatprep.subr.bf16.mxu0 %v10823
      %11045 = vmatpush1.bf16.msra.mxu0 %v10822
      %11046 = vmatprep.mubr.bf16.mxu0 %v9268
      %11047 = vmatmul.mubr.bf16.gmra.mrb[0].mxu0 %v9267
      %v11048 = vpop.f32.mrb[0].mxu0
      %v11049 = vadd.f32 %v10956, %v11048
      %v11050 = vpop.f32.mrb[0].mxu0
      %v11051 = vadd.f32 %v10958, %v11050
      %v11052 = vpop.f32.mrb[0].mxu0
      %v11053 = vadd.f32 %v10960, %v11052
      %v11054 = vpop.f32.mrb[0].mxu0
      %v11055 = vadd.f32 %v10962, %v11054
      %11056 = vmatprep.mubr.bf16.mxu0 %v9272
      %11057 = vmatmul.mubr.bf16.gmra.mrb[0].mxu0 %v9271
      %v11058 = vpop.f32.mrb[0].mxu0
      %v11059 = vadd.f32 %v10966, %v11058
      %v11060 = vpop.f32.mrb[0].mxu0
      %v11061 = vadd.f32 %v10968, %v11060
      %v11062 = vpop.f32.mrb[0].mxu0
      %v11063 = vadd.f32 %v10970, %v11062
      %v11064 = vpop.f32.mrb[0].mxu0
      %v11065 = vadd.f32 %v10972, %v11064
      %11066 = vmatprep.mubr.bf16.mxu0 %v9276
      %11067 = vmatmul.mubr.bf16.gmra.mrb[0].mxu0 %v9275
      %v11068 = vpop.f32.mrb[0].mxu0
      %v11069 = vadd.f32 %v10976, %v11068
      %v11070 = vpop.f32.mrb[0].mxu0
      %v11071 = vadd.f32 %v10978, %v11070
      %v11072 = vpop.f32.mrb[0].mxu0
      %v11073 = vadd.f32 %v10980, %v11072
      %v11074 = vpop.f32.mrb[0].mxu0
      %v11075 = vadd.f32 %v10982, %v11074
      %11076 = vmatprep.mubr.bf16.mxu0 %v9280
      %11077 = vmatmul.mubr.bf16.gmra.mrb[0].mxu0 %v9279
      %v11078 = vpop.f32.mrb[0].mxu0
      %v11079 = vadd.f32 %v10986, %v11078
      %v11080 = vpop.f32.mrb[0].mxu0
      %v11081 = vadd.f32 %v10988, %v11080
      %v11082 = vpop.f32.mrb[0].mxu0
      %v11083 = vadd.f32 %v10990, %v11082
      %v11084 = vpop.f32.mrb[0].mxu0
      %v11085 = vadd.f32 %v10992, %v11084
      %11086 = vmatprep.mubr.bf16.mxu0 %v9284
      %11087 = vmatmul.mubr.bf16.gmra.mrb[0].mxu0 %v9283
      %v11088 = vpop.f32.mrb[0].mxu0
      %v11089 = vadd.f32 %v10996, %v11088
      %v11090 = vpop.f32.mrb[0].mxu0
      %v11091 = vadd.f32 %v10998, %v11090
      %v11092 = vpop.f32.mrb[0].mxu0
      %v11093 = vadd.f32 %v11000, %v11092
      %v11094 = vpop.f32.mrb[0].mxu0
      %v11095 = vadd.f32 %v11002, %v11094
      %11096 = vmatprep.mubr.bf16.mxu0 %v9288
      %11097 = vmatmul.mubr.bf16.gmra.mrb[0].mxu0 %v9287
      %v11098 = vpop.f32.mrb[0].mxu0
      %v11099 = vadd.f32 %v11006, %v11098
      %v11100 = vpop.f32.mrb[0].mxu0
      %v11101 = vadd.f32 %v11008, %v11100
      %v11102 = vpop.f32.mrb[0].mxu0
      %v11103 = vadd.f32 %v11010, %v11102
      %v11104 = vpop.f32.mrb[0].mxu0
      %v11105 = vadd.f32 %v11012, %v11104
      %11106 = vdwg.mxu0
      %11107 = vmatprep.subr.bf16.mxu0 0
      %11108 = vmatpush1.bf16.msra.mxu0 %v10731
      %11109 = vmatprep.subr.bf16.mxu0 0
      %11110 = vmatpush1.bf16.msra.mxu0 %v10734
      %11111 = vmatprep.subr.bf16.mxu0 0
      %11112 = vmatpush1.bf16.msra.mxu0 %v10737
      %11113 = vmatprep.subr.bf16.mxu0 0
      %11114 = vmatpush1.bf16.msra.mxu0 %v10740
      %11115 = vmatprep.subr.bf16.mxu0 0
      %11116 = vmatpush1.bf16.msra.mxu0 %v10743
      %11117 = vmatprep.subr.bf16.mxu0 0
      %11118 = vmatpush1.bf16.msra.mxu0 %v10746
      %11119 = vmatprep.subr.bf16.mxu0 0
      %11120 = vmatpush1.bf16.msra.mxu0 %v10749
      %11121 = vmatprep.subr.bf16.mxu0 0
      %11122 = vmatpush1.bf16.msra.mxu0 %v10752
      %11123 = vmatprep.subr.bf16.mxu0 0
      %11124 = vmatpush1.bf16.msra.mxu0 %v10755
      %11125 = vmatprep.subr.bf16.mxu0 0
      %11126 = vmatpush1.bf16.msra.mxu0 %v10758
      %11127 = vmatprep.subr.bf16.mxu0 0
      %11128 = vmatpush1.bf16.msra.mxu0 %v10761
      %11129 = vmatprep.subr.bf16.mxu0 0
      %11130 = vmatpush1.bf16.msra.mxu0 %v10764
      %11131 = vmatprep.subr.bf16.mxu0 0
      %11132 = vmatpush1.bf16.msra.mxu0 %v10767
      %11133 = vmatprep.subr.bf16.mxu0 0
      %11134 = vmatpush1.bf16.msra.mxu0 %v10770
      %11135 = vmatprep.subr.bf16.mxu0 0
      %11136 = vmatpush1.bf16.msra.mxu0 %v10773
      %11137 = vmatprep.subr.bf16.mxu0 0
      %11138 = vmatpush1.bf16.msra.mxu0 %v10776
      %11139 = vmatprep.mubr.bf16.mxu0 %v9266
      %11140 = vmatmul.mubr.bf16.gmra.mrb[0].mxu0 %v9265
      %v11141 = vpop.f32.mrb[0].mxu0
      %v11142 = vadd.f32 %v10339, %v11141
      %v11143 = vpop.f32.mrb[0].mxu0
      %v11144 = vpop.f32.mrb[0].mxu0
      %v11145 = vadd.f32 %v10342, %v11144
      %v11146 = vpop.f32.mrb[0].mxu0
      %11147 = vmatprep.mubr.bf16.mxu0 %v9270
      %11148 = vmatmul.mubr.bf16.gmra.mrb[0].mxu0 %v9269
      %v11149 = vpop.f32.mrb[0].mxu0
      %v11150 = vadd.f32 %v10347, %v11149
      %v11151 = vpop.f32.mrb[0].mxu0
      %v11152 = vpop.f32.mrb[0].mxu0
      %v11153 = vadd.f32 %v10350, %v11152
      %v11154 = vpop.f32.mrb[0].mxu0
      %11155 = vmatprep.mubr.bf16.mxu0 %v9274
      %11156 = vmatmul.mubr.bf16.gmra.mrb[0].mxu0 %v9273
      %v11157 = vpop.f32.mrb[0].mxu0
      %v11158 = vadd.f32 %v10355, %v11157
      %v11159 = vpop.f32.mrb[0].mxu0
      %v11160 = vpop.f32.mrb[0].mxu0
      %v11161 = vadd.f32 %v10358, %v11160
      %v11162 = vpop.f32.mrb[0].mxu0
      %11163 = vmatprep.mubr.bf16.mxu0 %v9278
      %11164 = vmatmul.mubr.bf16.gmra.mrb[0].mxu0 %v9277
      %v11165 = vpop.f32.mrb[0].mxu0
      %v11166 = vadd.f32 %v10363, %v11165
      %v11167 = vpop.f32.mrb[0].mxu0
      %v11168 = vpop.f32.mrb[0].mxu0
      %v11169 = vadd.f32 %v10366, %v11168
      %v11170 = vpop.f32.mrb[0].mxu0
      %11171 = vmatprep.mubr.bf16.mxu0 %v9282
      %11172 = vmatmul.mubr.bf16.gmra.mrb[0].mxu0 %v9281
      %v11173 = vpop.f32.mrb[0].mxu0
      %v11174 = vadd.f32 %v10371, %v11173
      %v11175 = vpop.f32.mrb[0].mxu0
      %v11176 = vpop.f32.mrb[0].mxu0
      %v11177 = vadd.f32 %v10374, %v11176
      %v11178 = vpop.f32.mrb[0].mxu0
      %11179 = vmatprep.mubr.bf16.mxu0 %v9286
      %11180 = vmatmul.mubr.bf16.gmra.mrb[0].mxu0 %v9285
      %v11181 = vpop.f32.mrb[0].mxu0
      %v11182 = vadd.f32 %v10379, %v11181
      %v11183 = vpop.f32.mrb[0].mxu0
      %v11184 = vpop.f32.mrb[0].mxu0
      %v11185 = vadd.f32 %v10382, %v11184
      %v11186 = vpop.f32.mrb[0].mxu0
      %11187 = vdwg.mxu0
      %11188 = vmatprep.subr.bf16.mxu0 0
      %11189 = vmatpush1.bf16.msra.mxu0 %v10779
      %11190 = vmatprep.subr.bf16.mxu0 0
      %11191 = vmatpush1.bf16.msra.mxu0 %v10782
      %11192 = vmatprep.subr.bf16.mxu0 0
      %11193 = vmatpush1.bf16.msra.mxu0 %v10785
      %11194 = vmatprep.subr.bf16.mxu0 0
      %11195 = vmatpush1.bf16.msra.mxu0 %v10788
      %11196 = vmatprep.subr.bf16.mxu0 0
      %11197 = vmatpush1.bf16.msra.mxu0 %v10791
      %11198 = vmatprep.subr.bf16.mxu0 0
      %11199 = vmatpush1.bf16.msra.mxu0 %v10794
      %11200 = vmatprep.subr.bf16.mxu0 0
      %11201 = vmatpush1.bf16.msra.mxu0 %v10797
      %11202 = vmatprep.subr.bf16.mxu0 0
      %11203 = vmatpush1.bf16.msra.mxu0 %v10800
      %11204 = vmatprep.subr.bf16.mxu0 0
      %11205 = vmatpush1.bf16.msra.mxu0 %v10803
      %11206 = vmatprep.subr.bf16.mxu0 0
      %11207 = vmatpush1.bf16.msra.mxu0 %v10806
      %11208 = vmatprep.subr.bf16.mxu0 0
      %11209 = vmatpush1.bf16.msra.mxu0 %v10809
      %11210 = vmatprep.subr.bf16.mxu0 0
      %11211 = vmatpush1.bf16.msra.mxu0 %v10812
      %11212 = vmatprep.subr.bf16.mxu0 0
      %11213 = vmatpush1.bf16.msra.mxu0 %v10815
      %11214 = vmatprep.subr.bf16.mxu0 0
      %11215 = vmatpush1.bf16.msra.mxu0 %v10818
      %11216 = vmatprep.subr.bf16.mxu0 0
      %11217 = vmatpush1.bf16.msra.mxu0 %v10821
      %11218 = vmatprep.subr.bf16.mxu0 0
      %11219 = vmatpush1.bf16.msra.mxu0 %v10824
      %11220 = vmatprep.mubr.bf16.mxu0 %v9268
      %11221 = vmatmul.mubr.bf16.gmra.mrb[0].mxu0 %v9267
      %v11222 = vpop.f32.mrb[0].mxu0
      %v11223 = vadd.f32 %v11142, %v11222
      %v11224 = vpop.f32.mrb[0].mxu0
      %v11225 = vpop.f32.mrb[0].mxu0
      %v11226 = vadd.f32 %v11145, %v11225
      %v11227 = vpop.f32.mrb[0].mxu0
      %11228 = vmatprep.mubr.bf16.mxu0 %v9272
      %11229 = vmatmul.mubr.bf16.gmra.mrb[0].mxu0 %v9271
      %v11230 = vpop.f32.mrb[0].mxu0
      %v11231 = vadd.f32 %v11150, %v11230
      %v11232 = vpop.f32.mrb[0].mxu0
      %v11233 = vpop.f32.mrb[0].mxu0
      %v11234 = vadd.f32 %v11153, %v11233
      %v11235 = vpop.f32.mrb[0].mxu0
      %11236 = vmatprep.mubr.bf16.mxu0 %v9276
      %11237 = vmatmul.mubr.bf16.gmra.mrb[0].mxu0 %v9275
      %v11238 = vpop.f32.mrb[0].mxu0
      %v11239 = vadd.f32 %v11158, %v11238
      %v11240 = vpop.f32.mrb[0].mxu0
      %v11241 = vpop.f32.mrb[0].mxu0
      %v11242 = vadd.f32 %v11161, %v11241
      %v11243 = vpop.f32.mrb[0].mxu0
      %11244 = vmatprep.mubr.bf16.mxu0 %v9280
      %11245 = vmatmul.mubr.bf16.gmra.mrb[0].mxu0 %v9279
      %v11246 = vpop.f32.mrb[0].mxu0
      %v11247 = vadd.f32 %v11166, %v11246
      %v11248 = vpop.f32.mrb[0].mxu0
      %v11249 = vpop.f32.mrb[0].mxu0
      %v11250 = vadd.f32 %v11169, %v11249
      %v11251 = vpop.f32.mrb[0].mxu0
      %11252 = vmatprep.mubr.bf16.mxu0 %v9284
      %11253 = vmatmul.mubr.bf16.gmra.mrb[0].mxu0 %v9283
      %v11254 = vpop.f32.mrb[0].mxu0
      %v11255 = vadd.f32 %v11174, %v11254
      %v11256 = vpop.f32.mrb[0].mxu0
      %v11257 = vpop.f32.mrb[0].mxu0
      %v11258 = vadd.f32 %v11177, %v11257
      %v11259 = vpop.f32.mrb[0].mxu0
      %11260 = vmatprep.mubr.bf16.mxu0 %v9288
      %11261 = vmatmul.mubr.bf16.gmra.mrb[0].mxu0 %v9287
      %v11262 = vpop.f32.mrb[0].mxu0
      %v11263 = vadd.f32 %v11182, %v11262
      %v11264 = vpop.f32.mrb[0].mxu0
      %v11265 = vpop.f32.mrb[0].mxu0
      %v11266 = vadd.f32 %v11185, %v11265
      %v11267 = vpop.f32.mrb[0].mxu0
      %11268 = vdwg.mxu0
      %v11269 = vld [vmem:[#allocation2] sm:$0xee]
      %v11270 = vld [vmem:[#allocation2 + $0x8] sm:$0xee]
      %s11271 = scalar_lea.vmem %s5, 1536
      %v11272 = vld [vmem:[%s11271] sm:$0xff]
      %v11273 = vld [vmem:[%s11271 + $0x8] sm:$0xf]
      %v11274 = vld [vmem:[%s11271 + $0xc] sm:$0xff]
      %v11275 = vld [vmem:[%s11271 + $0x14] sm:$0xf]
      %v11276 = vld [vmem:[%s11271 + $0x18] sm:$0xff]
      %v11277 = vld [vmem:[%s11271 + $0x20] sm:$0xf]
      %v11278 = vld [vmem:[%s11271 + $0x24] sm:$0xff]
      %v11279 = vld [vmem:[%s11271 + $0x2c] sm:$0xf]
      %v11280 = vld [vmem:[%s11271 + $0x30] sm:$0xff]
      %v11281 = vld [vmem:[%s11271 + $0x38] sm:$0xf]
      %v11282 = vld [vmem:[%s11271 + $0x3c] sm:$0xff]
      %v11283 = vld [vmem:[%s11271 + $0x44] sm:$0xf]
      %v11284 = vld [vmem:[%s11271 + $0x48] sm:$0xff]
      %v11285 = vld [vmem:[%s11271 + $0x50] sm:$0xf]
      %v11286 = vld [vmem:[%s11271 + $0x54] sm:$0xff]
      %v11287 = vld [vmem:[%s11271 + $0x5c] sm:$0xf]
      %v11288 = vld [vmem:[%s11271 + $0x60] sm:$0xff]
      %v11289 = vld [vmem:[%s11271 + $0x68] sm:$0xf]
      %v11290 = vld [vmem:[%s11271 + $0x6c] sm:$0xff]
      %v11291 = vld [vmem:[%s11271 + $0x74] sm:$0xf]
      %v11292 = vld [vmem:[%s11271 + $0x78] sm:$0xff]
      %v11293 = vld [vmem:[%s11271 + $0x80] sm:$0xf]
      %v11294 = vld [vmem:[%s11271 + $0x84] sm:$0xff]
      %v11295 = vld [vmem:[%s11271 + $0x8c] sm:$0xf]
      %v11296 = vld [vmem:[%s11271 + $0x90] sm:$0xff]
      %v11297 = vld [vmem:[%s11271 + $0x98] sm:$0xf]
      %v11298 = vld [vmem:[%s11271 + $0x9c] sm:$0xff]
      %v11299 = vld [vmem:[%s11271 + $0xa4] sm:$0xf]
      %v11300 = vld [vmem:[%s11271 + $0xa8] sm:$0xff]
      %v11301 = vld [vmem:[%s11271 + $0xb0] sm:$0xf]
      %v11302 = vld [vmem:[%s11271 + $0xb4] sm:$0xff]
      %v11303 = vld [vmem:[%s11271 + $0xbc] sm:$0xf]
      %v11304 = vld [vmem:[%s11271 + $0xc0] sm:$0xff]
      %v11305 = vld [vmem:[%s11271 + $0xc8] sm:$0xf]
      %v11306 = vld [vmem:[%s11271 + $0xcc] sm:$0xff]
      %v11307 = vld [vmem:[%s11271 + $0xd4] sm:$0xf]
      %v11308 = vld [vmem:[%s11271 + $0xd8] sm:$0xff]
      %v11309 = vld [vmem:[%s11271 + $0xe0] sm:$0xf]
      %v11310 = vld [vmem:[%s11271 + $0xe4] sm:$0xff]
      %v11311 = vld [vmem:[%s11271 + $0xec] sm:$0xf]
      %v11312 = vld [vmem:[%s11271 + $0xf0] sm:$0xff]
      %v11313 = vld [vmem:[%s11271 + $0xf8] sm:$0xf]
      %v11314 = vld [vmem:[%s11271 + $0xfc] sm:$0xff]
      %v11315 = vld [vmem:[%s11271 + $0x104] sm:$0xf]
      %v11316 = vld [vmem:[%s11271 + $0x108] sm:$0xff]
      %v11317 = vld [vmem:[%s11271 + $0x110] sm:$0xf]
      %v11318 = vld [vmem:[%s11271 + $0x114] sm:$0xff]
      %v11319 = vld [vmem:[%s11271 + $0x11c] sm:$0xf]
      %v11320 = vld [vmem:[%s11271 + $0x120] sm:$0xff]
      %v11321 = vld [vmem:[%s11271 + $0x128] sm:$0xf]
      %v11322 = vld [vmem:[%s11271 + $0x12c] sm:$0xff]
      %v11323 = vld [vmem:[%s11271 + $0x134] sm:$0xf]
      %v11324 = vld [vmem:[%s11271 + $0x138] sm:$0xff]
      %v11325 = vld [vmem:[%s11271 + $0x140] sm:$0xf]
      %v11326 = vld [vmem:[%s11271 + $0x144] sm:$0xff]
      %v11327 = vld [vmem:[%s11271 + $0x14c] sm:$0xf]
      %v11328 = vld [vmem:[%s11271 + $0x150] sm:$0xff]
      %v11329 = vld [vmem:[%s11271 + $0x158] sm:$0xf]
      %v11330 = vld [vmem:[%s11271 + $0x15c] sm:$0xff]
      %v11331 = vld [vmem:[%s11271 + $0x164] sm:$0xf]
      %v11332 = vld [vmem:[%s11271 + $0x168] sm:$0xff]
      %v11333 = vld [vmem:[%s11271 + $0x170] sm:$0xf]
      %v11334 = vld [vmem:[%s11271 + $0x174] sm:$0xff]
      %v11335 = vld [vmem:[%s11271 + $0x17c] sm:$0xf]
      %v11336 = vld [vmem:[%s11271 + $0x180] sm:$0xff]
      %v11337 = vld [vmem:[%s11271 + $0x188] sm:$0xf]
      %v11338 = vld [vmem:[%s11271 + $0x18c] sm:$0xff]
      %v11339 = vld [vmem:[%s11271 + $0x194] sm:$0xf]
      %v11340 = vld [vmem:[%s11271 + $0x198] sm:$0xff]
      %v11341 = vld [vmem:[%s11271 + $0x1a0] sm:$0xf]
      %v11342 = vld [vmem:[%s11271 + $0x1a4] sm:$0xff]
      %v11343 = vld [vmem:[%s11271 + $0x1ac] sm:$0xf]
      %v11344 = vld [vmem:[%s11271 + $0x1b0] sm:$0xff]
      %v11345 = vld [vmem:[%s11271 + $0x1b8] sm:$0xf]
      %v11346 = vld [vmem:[%s11271 + $0x1bc] sm:$0xff]
      %v11347 = vld [vmem:[%s11271 + $0x1c4] sm:$0xf]
      %v11348 = vld [vmem:[%s11271 + $0x1c8] sm:$0xff]
      %v11349 = vld [vmem:[%s11271 + $0x1d0] sm:$0xf]
      %v11350 = vld [vmem:[%s11271 + $0x1d4] sm:$0xff]
      %v11351 = vld [vmem:[%s11271 + $0x1dc] sm:$0xf]
      %v11352 = vld [vmem:[%s11271 + $0x1e0] sm:$0xff]
      %v11353 = vld [vmem:[%s11271 + $0x1e8] sm:$0xf]
      %v11354 = vld [vmem:[%s11271 + $0x1ec] sm:$0xff]
      %v11355 = vld [vmem:[%s11271 + $0x1f4] sm:$0xf]
      %v11356 = vld [vmem:[%s11271 + $0x1f8] sm:$0xff]
      %v11357 = vld [vmem:[%s11271 + $0x200] sm:$0xf]
      %v11358 = vld [vmem:[%s11271 + $0x204] sm:$0xff]
      %v11359 = vld [vmem:[%s11271 + $0x20c] sm:$0xf]
      %v11360 = vld [vmem:[%s11271 + $0x210] sm:$0xff]
      %v11361 = vld [vmem:[%s11271 + $0x218] sm:$0xf]
      %v11362 = vld [vmem:[%s11271 + $0x21c] sm:$0xff]
      %v11363 = vld [vmem:[%s11271 + $0x224] sm:$0xf]
      %v11364 = vld [vmem:[%s11271 + $0x228] sm:$0xff]
      %v11365 = vld [vmem:[%s11271 + $0x230] sm:$0xf]
      %v11366 = vld [vmem:[%s11271 + $0x234] sm:$0xff]
      %v11367 = vld [vmem:[%s11271 + $0x23c] sm:$0xf]
      %v11368 = vld [vmem:[%s11271 + $0x240] sm:$0xff]
      %v11369 = vld [vmem:[%s11271 + $0x248] sm:$0xf]
      %v11370 = vld [vmem:[%s11271 + $0x24c] sm:$0xff]
      %v11371 = vld [vmem:[%s11271 + $0x254] sm:$0xf]
      %v11372 = vld [vmem:[%s11271 + $0x258] sm:$0xff]
      %v11373 = vld [vmem:[%s11271 + $0x260] sm:$0xf]
      %v11374 = vld [vmem:[%s11271 + $0x264] sm:$0xff]
      %v11375 = vld [vmem:[%s11271 + $0x26c] sm:$0xf]
      %v11376 = vld [vmem:[%s11271 + $0x270] sm:$0xff]
      %v11377 = vld [vmem:[%s11271 + $0x278] sm:$0xf]
      %v11378 = vld [vmem:[%s11271 + $0x27c] sm:$0xff]
      %v11379 = vld [vmem:[%s11271 + $0x284] sm:$0xf]
      %v11380 = vld [vmem:[%s11271 + $0x288] sm:$0xff]
      %v11381 = vld [vmem:[%s11271 + $0x290] sm:$0xf]
      %v11382 = vld [vmem:[%s11271 + $0x294] sm:$0xff]
      %v11383 = vld [vmem:[%s11271 + $0x29c] sm:$0xf]
      %v11384 = vld [vmem:[%s11271 + $0x2a0] sm:$0xff]
      %v11385 = vld [vmem:[%s11271 + $0x2a8] sm:$0xf]
      %v11386 = vld [vmem:[%s11271 + $0x2ac] sm:$0xff]
      %v11387 = vld [vmem:[%s11271 + $0x2b4] sm:$0xf]
      %v11388 = vld [vmem:[%s11271 + $0x2b8] sm:$0xff]
      %v11389 = vld [vmem:[%s11271 + $0x2c0] sm:$0xf]
      %v11390 = vld [vmem:[%s11271 + $0x2c4] sm:$0xff]
      %v11391 = vld [vmem:[%s11271 + $0x2cc] sm:$0xf]
      %v11392 = vld [vmem:[%s11271 + $0x2d0] sm:$0xff]
      %v11393 = vld [vmem:[%s11271 + $0x2d8] sm:$0xf]
      %v11394 = vld [vmem:[%s11271 + $0x2dc] sm:$0xff]
      %v11395 = vld [vmem:[%s11271 + $0x2e4] sm:$0xf]
      %v11396 = vld [vmem:[%s11271 + $0x2e8] sm:$0xff]
      %v11397 = vld [vmem:[%s11271 + $0x2f0] sm:$0xf]
      %v11398 = vld [vmem:[%s11271 + $0x2f4] sm:$0xff]
      %v11399 = vld [vmem:[%s11271 + $0x2fc] sm:$0xf]
      %v11402 = vunpack.c.l.b16 %v11269
      %v11403 = vunpack.c.h.b16 %v11269
      %v11404 = vunpack.c.l.b16 %v11270
      %v11405 = vunpack.c.h.b16 %v11270
      %v11406 = vpack.c.b16 %v9217, %v11402
      %v11407 = vpack.c.b16 %v9218, %v11403
      %v11408 = vpack.c.b16 %v9219, %v11404
      %v11409 = vpack.c.b16 %v9220, %v11405
      %v11410 = vrot.slane %v11406, 1
      %v11411 = vrot.slane %v9269, 1
      %v11412 = vsel %vm5946, %v11410, %v11411
      %v11413 = vrot.slane %v11407, 1
      %v11414 = vrot.slane %v9270, 1
      %v11415 = vsel %vm5946, %v11413, %v11414
      %v11416 = vrot.slane %v11408, 1
      %v11417 = vrot.slane %v9271, 1
      %v11418 = vsel %vm5946, %v11416, %v11417
      %v11419 = vrot.slane %v11409, 1
      %v11420 = vrot.slane %v9272, 1
      %v11421 = vsel %vm5946, %v11419, %v11420
      %v11422 = vrot.slane %v9273, 1
      %v11423 = vsel %vm5946, %v11411, %v11422
      %v11424 = vrot.slane %v9274, 1
      %v11425 = vsel %vm5946, %v11414, %v11424
      %v11426 = vrot.slane %v9275, 1
      %v11427 = vsel %vm5946, %v11417, %v11426
      %v11428 = vrot.slane %v9276, 1
      %v11429 = vsel %vm5946, %v11420, %v11428
      %v11430 = vrot.slane %v9277, 1
      %v11431 = vsel %vm5946, %v11422, %v11430
      %v11432 = vrot.slane %v9278, 1
      %v11433 = vsel %vm5946, %v11424, %v11432
      %v11434 = vrot.slane %v9279, 1
      %v11435 = vsel %vm5946, %v11426, %v11434
      %v11436 = vrot.slane %v9280, 1
      %v11437 = vsel %vm5946, %v11428, %v11436
      %v11438 = vrot.slane %v9281, 1
      %v11439 = vsel %vm5946, %v11430, %v11438
      %v11440 = vrot.slane %v9282, 1
      %v11441 = vsel %vm5946, %v11432, %v11440
      %v11442 = vrot.slane %v9283, 1
      %v11443 = vsel %vm5946, %v11434, %v11442
      %v11444 = vrot.slane %v9284, 1
      %v11445 = vsel %vm5946, %v11436, %v11444
      %v11446 = vrot.slane %v9285, 1
      %v11447 = vsel %vm5946, %v11438, %v11446
      %v11448 = vrot.slane %v9286, 1
      %v11449 = vsel %vm5946, %v11440, %v11448
      %v11450 = vrot.slane %v9287, 1
      %v11451 = vsel %vm5946, %v11442, %v11450
      %v11452 = vrot.slane %v9288, 1
      %v11453 = vsel %vm5946, %v11444, %v11452
      %v11454 = vrot.slane %v9289, 1
      %v11455 = vsel %vm5946, %v11446, %v11454
      %v11456 = vrot.slane %v9290, 1
      %v11457 = vsel %vm5946, %v11448, %v11456
      %v11458 = vrot.slane %v9291, 1
      %v11459 = vsel %vm5946, %v11450, %v11458
      %v11460 = vrot.slane %v9292, 1
      %v11461 = vsel %vm5946, %v11452, %v11460
      %v11614 = vunpack.c.l.b16 %v11272
      %v11615 = vunpack.c.h.b16 %v11272
      %v11616 = vunpack.c.l.b16 %v11273
      %v11617 = vunpack.c.l.b16 %v11274
      %v11618 = vunpack.c.h.b16 %v11274
      %v11619 = vunpack.c.l.b16 %v11275
      %v11620 = vunpack.c.l.b16 %v11276
      %v11621 = vunpack.c.h.b16 %v11276
      %v11622 = vunpack.c.l.b16 %v11277
      %v11623 = vunpack.c.l.b16 %v11278
      %v11624 = vunpack.c.h.b16 %v11278
      %v11625 = vunpack.c.l.b16 %v11279
      %v11626 = vunpack.c.l.b16 %v11280
      %v11627 = vunpack.c.h.b16 %v11280
      %v11628 = vunpack.c.l.b16 %v11281
      %v11629 = vunpack.c.l.b16 %v11282
      %v11630 = vunpack.c.h.b16 %v11282
      %v11631 = vunpack.c.l.b16 %v11283
      %v11632 = vunpack.c.l.b16 %v11284
      %v11633 = vunpack.c.h.b16 %v11284
      %v11634 = vunpack.c.l.b16 %v11285
      %v11635 = vunpack.c.l.b16 %v11286
      %v11636 = vunpack.c.h.b16 %v11286
      %v11637 = vunpack.c.l.b16 %v11287
      %v11638 = vunpack.c.l.b16 %v11288
      %v11639 = vunpack.c.h.b16 %v11288
      %v11640 = vunpack.c.l.b16 %v11289
      %v11641 = vunpack.c.l.b16 %v11290
      %v11642 = vunpack.c.h.b16 %v11290
      %v11643 = vunpack.c.l.b16 %v11291
      %v11644 = vunpack.c.l.b16 %v11292
      %v11645 = vunpack.c.h.b16 %v11292
      %v11646 = vunpack.c.l.b16 %v11293
      %v11647 = vunpack.c.l.b16 %v11294
      %v11648 = vunpack.c.h.b16 %v11294
      %v11649 = vunpack.c.l.b16 %v11295
      %v11650 = vunpack.c.l.b16 %v11296
      %v11651 = vunpack.c.h.b16 %v11296
      %v11652 = vunpack.c.l.b16 %v11297
      %v11653 = vunpack.c.l.b16 %v11298
      %v11654 = vunpack.c.h.b16 %v11298
      %v11655 = vunpack.c.l.b16 %v11299
      %v11656 = vunpack.c.l.b16 %v11300
      %v11657 = vunpack.c.h.b16 %v11300
      %v11658 = vunpack.c.l.b16 %v11301
      %v11659 = vunpack.c.l.b16 %v11302
      %v11660 = vunpack.c.h.b16 %v11302
      %v11661 = vunpack.c.l.b16 %v11303
      %v11662 = vunpack.c.l.b16 %v11304
      %v11663 = vunpack.c.h.b16 %v11304
      %v11664 = vunpack.c.l.b16 %v11305
      %v11665 = vunpack.c.l.b16 %v11306
      %v11666 = vunpack.c.h.b16 %v11306
      %v11667 = vunpack.c.l.b16 %v11307
      %v11668 = vunpack.c.l.b16 %v11308
      %v11669 = vunpack.c.h.b16 %v11308
      %v11670 = vunpack.c.l.b16 %v11309
      %v11671 = vunpack.c.l.b16 %v11310
      %v11672 = vunpack.c.h.b16 %v11310
      %v11673 = vunpack.c.l.b16 %v11311
      %v11674 = vunpack.c.l.b16 %v11312
      %v11675 = vunpack.c.h.b16 %v11312
      %v11676 = vunpack.c.l.b16 %v11313
      %v11677 = vunpack.c.l.b16 %v11314
      %v11678 = vunpack.c.h.b16 %v11314
      %v11679 = vunpack.c.l.b16 %v11315
      %v11680 = vunpack.c.l.b16 %v11316
      %v11681 = vunpack.c.h.b16 %v11316
      %v11682 = vunpack.c.l.b16 %v11317
      %v11683 = vunpack.c.l.b16 %v11318
      %v11684 = vunpack.c.h.b16 %v11318
      %v11685 = vunpack.c.l.b16 %v11319
      %v11686 = vunpack.c.l.b16 %v11320
      %v11687 = vunpack.c.h.b16 %v11320
      %v11688 = vunpack.c.l.b16 %v11321
      %v11689 = vunpack.c.l.b16 %v11322
      %v11690 = vunpack.c.h.b16 %v11322
      %v11691 = vunpack.c.l.b16 %v11323
      %v11692 = vunpack.c.l.b16 %v11324
      %v11693 = vunpack.c.h.b16 %v11324
      %v11694 = vunpack.c.l.b16 %v11325
      %v11695 = vunpack.c.l.b16 %v11326
      %v11696 = vunpack.c.h.b16 %v11326
      %v11697 = vunpack.c.l.b16 %v11327
      %v11698 = vunpack.c.l.b16 %v11328
      %v11699 = vunpack.c.h.b16 %v11328
      %v11700 = vunpack.c.l.b16 %v11329
      %v11701 = vunpack.c.l.b16 %v11330
      %v11702 = vunpack.c.h.b16 %v11330
      %v11703 = vunpack.c.l.b16 %v11331
      %v11704 = vunpack.c.l.b16 %v11332
      %v11705 = vunpack.c.h.b16 %v11332
      %v11706 = vunpack.c.l.b16 %v11333
      %v11707 = vunpack.c.l.b16 %v11334
      %v11708 = vunpack.c.h.b16 %v11334
      %v11709 = vunpack.c.l.b16 %v11335
      %v11710 = vunpack.c.l.b16 %v11336
      %v11711 = vunpack.c.h.b16 %v11336
      %v11712 = vunpack.c.l.b16 %v11337
      %v11713 = vunpack.c.l.b16 %v11338
      %v11714 = vunpack.c.h.b16 %v11338
      %v11715 = vunpack.c.l.b16 %v11339
      %v11716 = vunpack.c.l.b16 %v11340
      %v11717 = vunpack.c.h.b16 %v11340
      %v11718 = vunpack.c.l.b16 %v11341
      %v11719 = vunpack.c.l.b16 %v11342
      %v11720 = vunpack.c.h.b16 %v11342
      %v11721 = vunpack.c.l.b16 %v11343
      %v11722 = vunpack.c.l.b16 %v11344
      %v11723 = vunpack.c.h.b16 %v11344
      %v11724 = vunpack.c.l.b16 %v11345
      %v11725 = vunpack.c.l.b16 %v11346
      %v11726 = vunpack.c.h.b16 %v11346
      %v11727 = vunpack.c.l.b16 %v11347
      %v11728 = vunpack.c.l.b16 %v11348
      %v11729 = vunpack.c.h.b16 %v11348
      %v11730 = vunpack.c.l.b16 %v11349
      %v11731 = vunpack.c.l.b16 %v11350
      %v11732 = vunpack.c.h.b16 %v11350
      %v11733 = vunpack.c.l.b16 %v11351
      %v11734 = vunpack.c.l.b16 %v11352
      %v11735 = vunpack.c.h.b16 %v11352
      %v11736 = vunpack.c.l.b16 %v11353
      %v11737 = vunpack.c.l.b16 %v11354
      %v11738 = vunpack.c.h.b16 %v11354
      %v11739 = vunpack.c.l.b16 %v11355
      %v11740 = vunpack.c.l.b16 %v11356
      %v11741 = vunpack.c.h.b16 %v11356
      %v11742 = vunpack.c.l.b16 %v11357
      %v11743 = vunpack.c.l.b16 %v11358
      %v11744 = vunpack.c.h.b16 %v11358
      %v11745 = vunpack.c.l.b16 %v11359
      %v11746 = vunpack.c.l.b16 %v11360
      %v11747 = vunpack.c.h.b16 %v11360
      %v11748 = vunpack.c.l.b16 %v11361
      %v11749 = vunpack.c.l.b16 %v11362
      %v11750 = vunpack.c.h.b16 %v11362
      %v11751 = vunpack.c.l.b16 %v11363
      %v11752 = vunpack.c.l.b16 %v11364
      %v11753 = vunpack.c.h.b16 %v11364
      %v11754 = vunpack.c.l.b16 %v11365
      %v11755 = vunpack.c.l.b16 %v11366
      %v11756 = vunpack.c.h.b16 %v11366
      %v11757 = vunpack.c.l.b16 %v11367
      %v11758 = vunpack.c.l.b16 %v11368
      %v11759 = vunpack.c.h.b16 %v11368
      %v11760 = vunpack.c.l.b16 %v11369
      %v11761 = vunpack.c.l.b16 %v11370
      %v11762 = vunpack.c.h.b16 %v11370
      %v11763 = vunpack.c.l.b16 %v11371
      %v11764 = vunpack.c.l.b16 %v11372
      %v11765 = vunpack.c.h.b16 %v11372
      %v11766 = vunpack.c.l.b16 %v11373
      %v11767 = vunpack.c.l.b16 %v11374
      %v11768 = vunpack.c.h.b16 %v11374
      %v11769 = vunpack.c.l.b16 %v11375
      %v11770 = vunpack.c.l.b16 %v11376
      %v11771 = vunpack.c.h.b16 %v11376
      %v11772 = vunpack.c.l.b16 %v11377
      %v11773 = vunpack.c.l.b16 %v11378
      %v11774 = vunpack.c.h.b16 %v11378
      %v11775 = vunpack.c.l.b16 %v11379
      %v11776 = vunpack.c.l.b16 %v11380
      %v11777 = vunpack.c.h.b16 %v11380
      %v11778 = vunpack.c.l.b16 %v11381
      %v11779 = vunpack.c.l.b16 %v11382
      %v11780 = vunpack.c.h.b16 %v11382
      %v11781 = vunpack.c.l.b16 %v11383
      %v11782 = vunpack.c.l.b16 %v11384
      %v11783 = vunpack.c.h.b16 %v11384
      %v11784 = vunpack.c.l.b16 %v11385
      %v11785 = vunpack.c.l.b16 %v11386
      %v11786 = vunpack.c.h.b16 %v11386
      %v11787 = vunpack.c.l.b16 %v11387
      %v11788 = vunpack.c.l.b16 %v11388
      %v11789 = vunpack.c.h.b16 %v11388
      %v11790 = vunpack.c.l.b16 %v11389
      %v11791 = vunpack.c.l.b16 %v11390
      %v11792 = vunpack.c.h.b16 %v11390
      %v11793 = vunpack.c.l.b16 %v11391
      %v11794 = vunpack.c.l.b16 %v11392
      %v11795 = vunpack.c.h.b16 %v11392
      %v11796 = vunpack.c.l.b16 %v11393
      %v11797 = vunpack.c.l.b16 %v11394
      %v11798 = vunpack.c.h.b16 %v11394
      %v11799 = vunpack.c.l.b16 %v11395
      %v11800 = vunpack.c.l.b16 %v11396
      %v11801 = vunpack.c.h.b16 %v11396
      %v11802 = vunpack.c.l.b16 %v11397
      %v11803 = vunpack.c.l.b16 %v11398
      %v11804 = vunpack.c.h.b16 %v11398
      %v11805 = vunpack.c.l.b16 %v11399
      %v11806 = vpack.c.b16 %v11617, %v11614
      %v11807 = vpack.c.b16 %v11618, %v11615
      %v11808 = vpack.c.b16 %v11619, %v11616
      %v11809 = vpack.c.b16 %v11623, %v11620
      %v11810 = vpack.c.b16 %v11624, %v11621
      %v11811 = vpack.c.b16 %v11625, %v11622
      %v11812 = vpack.c.b16 %v11629, %v11626
      %v11813 = vpack.c.b16 %v11630, %v11627
      %v11814 = vpack.c.b16 %v11631, %v11628
      %v11815 = vpack.c.b16 %v11635, %v11632
      %v11816 = vpack.c.b16 %v11636, %v11633
      %v11817 = vpack.c.b16 %v11637, %v11634
      %v11818 = vpack.c.b16 %v11641, %v11638
      %v11819 = vpack.c.b16 %v11642, %v11639
      %v11820 = vpack.c.b16 %v11643, %v11640
      %v11821 = vpack.c.b16 %v11647, %v11644
      %v11822 = vpack.c.b16 %v11648, %v11645
      %v11823 = vpack.c.b16 %v11649, %v11646
      %v11824 = vpack.c.b16 %v11653, %v11650
      %v11825 = vpack.c.b16 %v11654, %v11651
      %v11826 = vpack.c.b16 %v11655, %v11652
      %v11827 = vpack.c.b16 %v11659, %v11656
      %v11828 = vpack.c.b16 %v11660, %v11657
      %v11829 = vpack.c.b16 %v11661, %v11658
      %v11830 = vpack.c.b16 %v11665, %v11662
      %v11831 = vpack.c.b16 %v11666, %v11663
      %v11832 = vpack.c.b16 %v11667, %v11664
      %v11833 = vpack.c.b16 %v11671, %v11668
      %v11834 = vpack.c.b16 %v11672, %v11669
      %v11835 = vpack.c.b16 %v11673, %v11670
      %v11836 = vpack.c.b16 %v11677, %v11674
      %v11837 = vpack.c.b16 %v11678, %v11675
      %v11838 = vpack.c.b16 %v11679, %v11676
      %v11839 = vpack.c.b16 %v11683, %v11680
      %v11840 = vpack.c.b16 %v11684, %v11681
      %v11841 = vpack.c.b16 %v11685, %v11682
      %v11842 = vpack.c.b16 %v11689, %v11686
      %v11843 = vpack.c.b16 %v11690, %v11687
      %v11844 = vpack.c.b16 %v11691, %v11688
      %v11845 = vpack.c.b16 %v11695, %v11692
      %v11846 = vpack.c.b16 %v11696, %v11693
      %v11847 = vpack.c.b16 %v11697, %v11694
      %v11848 = vpack.c.b16 %v11701, %v11698
      %v11849 = vpack.c.b16 %v11702, %v11699
      %v11850 = vpack.c.b16 %v11703, %v11700
      %v11851 = vpack.c.b16 %v11707, %v11704
      %v11852 = vpack.c.b16 %v11708, %v11705
      %v11853 = vpack.c.b16 %v11709, %v11706
      %v11854 = vpack.c.b16 %v11713, %v11710
      %v11855 = vpack.c.b16 %v11714, %v11711
      %v11856 = vpack.c.b16 %v11715, %v11712
      %v11857 = vpack.c.b16 %v11719, %v11716
      %v11858 = vpack.c.b16 %v11720, %v11717
      %v11859 = vpack.c.b16 %v11721, %v11718
      %v11860 = vpack.c.b16 %v11725, %v11722
      %v11861 = vpack.c.b16 %v11726, %v11723
      %v11862 = vpack.c.b16 %v11727, %v11724
      %v11863 = vpack.c.b16 %v11731, %v11728
      %v11864 = vpack.c.b16 %v11732, %v11729
      %v11865 = vpack.c.b16 %v11733, %v11730
      %v11866 = vpack.c.b16 %v11737, %v11734
      %v11867 = vpack.c.b16 %v11738, %v11735
      %v11868 = vpack.c.b16 %v11739, %v11736
      %v11869 = vpack.c.b16 %v11743, %v11740
      %v11870 = vpack.c.b16 %v11744, %v11741
      %v11871 = vpack.c.b16 %v11745, %v11742
      %v11872 = vpack.c.b16 %v11749, %v11746
      %v11873 = vpack.c.b16 %v11750, %v11747
      %v11874 = vpack.c.b16 %v11751, %v11748
      %v11875 = vpack.c.b16 %v11755, %v11752
      %v11876 = vpack.c.b16 %v11756, %v11753
      %v11877 = vpack.c.b16 %v11757, %v11754
      %v11878 = vpack.c.b16 %v11761, %v11758
      %v11879 = vpack.c.b16 %v11762, %v11759
      %v11880 = vpack.c.b16 %v11763, %v11760
      %v11881 = vpack.c.b16 %v11767, %v11764
      %v11882 = vpack.c.b16 %v11768, %v11765
      %v11883 = vpack.c.b16 %v11769, %v11766
      %v11884 = vpack.c.b16 %v11773, %v11770
      %v11885 = vpack.c.b16 %v11774, %v11771
      %v11886 = vpack.c.b16 %v11775, %v11772
      %v11887 = vpack.c.b16 %v11779, %v11776
      %v11888 = vpack.c.b16 %v11780, %v11777
      %v11889 = vpack.c.b16 %v11781, %v11778
      %v11890 = vpack.c.b16 %v11785, %v11782
      %v11891 = vpack.c.b16 %v11786, %v11783
      %v11892 = vpack.c.b16 %v11787, %v11784
      %v11893 = vpack.c.b16 %v11791, %v11788
      %v11894 = vpack.c.b16 %v11792, %v11789
      %v11895 = vpack.c.b16 %v11793, %v11790
      %v11896 = vpack.c.b16 %v11797, %v11794
      %v11897 = vpack.c.b16 %v11798, %v11795
      %v11898 = vpack.c.b16 %v11799, %v11796
      %v11899 = vpack.c.b16 %v11803, %v11800
      %v11900 = vpack.c.b16 %v11804, %v11801
      %v11901 = vpack.c.b16 %v11805, %v11802
      %11998 = vmatprep.subr.bf16.mxu0 %v11807
      %11999 = vmatpush1.bf16.msra.mxu0 %v11806
      %12000 = vmatprep.subr.bf16.mxu0 %v11810
      %12001 = vmatpush1.bf16.msra.mxu0 %v11809
      %12002 = vmatprep.subr.bf16.mxu0 %v11813
      %12003 = vmatpush1.bf16.msra.mxu0 %v11812
      %12004 = vmatprep.subr.bf16.mxu0 %v11816
      %12005 = vmatpush1.bf16.msra.mxu0 %v11815
      %12006 = vmatprep.subr.bf16.mxu0 %v11819
      %12007 = vmatpush1.bf16.msra.mxu0 %v11818
      %12008 = vmatprep.subr.bf16.mxu0 %v11822
      %12009 = vmatpush1.bf16.msra.mxu0 %v11821
      %12010 = vmatprep.subr.bf16.mxu0 %v11825
      %12011 = vmatpush1.bf16.msra.mxu0 %v11824
      %12012 = vmatprep.subr.bf16.mxu0 %v11828
      %12013 = vmatpush1.bf16.msra.mxu0 %v11827
      %12014 = vmatprep.subr.bf16.mxu0 %v11831
      %12015 = vmatpush1.bf16.msra.mxu0 %v11830
      %12016 = vmatprep.subr.bf16.mxu0 %v11834
      %12017 = vmatpush1.bf16.msra.mxu0 %v11833
      %12018 = vmatprep.subr.bf16.mxu0 %v11837
      %12019 = vmatpush1.bf16.msra.mxu0 %v11836
      %12020 = vmatprep.subr.bf16.mxu0 %v11840
      %12021 = vmatpush1.bf16.msra.mxu0 %v11839
      %12022 = vmatprep.subr.bf16.mxu0 %v11843
      %12023 = vmatpush1.bf16.msra.mxu0 %v11842
      %12024 = vmatprep.subr.bf16.mxu0 %v11846
      %12025 = vmatpush1.bf16.msra.mxu0 %v11845
      %12026 = vmatprep.subr.bf16.mxu0 %v11849
      %12027 = vmatpush1.bf16.msra.mxu0 %v11848
      %12028 = vmatprep.subr.bf16.mxu0 %v11852
      %12029 = vmatpush1.bf16.msra.mxu0 %v11851
      %12030 = vmatprep.mubr.bf16.mxu0 %v11415
      %12031 = vmatmul.mubr.bf16.gmra.mrb[0].mxu0 %v11412
      %v12032 = vpop.f32.mrb[0].mxu0
      %v12033 = vadd.f32 0.0, %v12032
      %v12034 = vpop.f32.mrb[0].mxu0
      %v12035 = vadd.f32 0.0, %v12034
      %v12036 = vpop.f32.mrb[0].mxu0
      %v12037 = vadd.f32 0.0, %v12036
      %v12038 = vpop.f32.mrb[0].mxu0
      %v12039 = vadd.f32 0.0, %v12038
      %12040 = vmatprep.mubr.bf16.mxu0 %v11425
      %12041 = vmatmul.mubr.bf16.gmra.mrb[0].mxu0 %v11423
      %v12042 = vpop.f32.mrb[0].mxu0
      %v12043 = vadd.f32 0.0, %v12042
      %v12044 = vpop.f32.mrb[0].mxu0
      %v12045 = vadd.f32 0.0, %v12044
      %v12046 = vpop.f32.mrb[0].mxu0
      %v12047 = vadd.f32 0.0, %v12046
      %v12048 = vpop.f32.mrb[0].mxu0
      %v12049 = vadd.f32 0.0, %v12048
      %12050 = vmatprep.mubr.bf16.mxu0 %v11433
      %12051 = vmatmul.mubr.bf16.gmra.mrb[0].mxu0 %v11431
      %v12052 = vpop.f32.mrb[0].mxu0
      %v12053 = vadd.f32 0.0, %v12052
      %v12054 = vpop.f32.mrb[0].mxu0
      %v12055 = vadd.f32 0.0, %v12054
      %v12056 = vpop.f32.mrb[0].mxu0
      %v12057 = vadd.f32 0.0, %v12056
      %v12058 = vpop.f32.mrb[0].mxu0
      %v12059 = vadd.f32 0.0, %v12058
      %12060 = vmatprep.mubr.bf16.mxu0 %v11441
      %12061 = vmatmul.mubr.bf16.gmra.mrb[0].mxu0 %v11439
      %v12062 = vpop.f32.mrb[0].mxu0
      %v12063 = vadd.f32 0.0, %v12062
      %v12064 = vpop.f32.mrb[0].mxu0
      %v12065 = vadd.f32 0.0, %v12064
      %v12066 = vpop.f32.mrb[0].mxu0
      %v12067 = vadd.f32 0.0, %v12066
      %v12068 = vpop.f32.mrb[0].mxu0
      %v12069 = vadd.f32 0.0, %v12068
      %12070 = vmatprep.mubr.bf16.mxu0 %v11449
      %12071 = vmatmul.mubr.bf16.gmra.mrb[0].mxu0 %v11447
      %v12072 = vpop.f32.mrb[0].mxu0
      %v12073 = vadd.f32 0.0, %v12072
      %v12074 = vpop.f32.mrb[0].mxu0
      %v12075 = vadd.f32 0.0, %v12074
      %v12076 = vpop.f32.mrb[0].mxu0
      %v12077 = vadd.f32 0.0, %v12076
      %v12078 = vpop.f32.mrb[0].mxu0
      %v12079 = vadd.f32 0.0, %v12078
      %12080 = vmatprep.mubr.bf16.mxu0 %v11457
      %12081 = vmatmul.mubr.bf16.gmra.mrb[0].mxu0 %v11455
      %v12082 = vpop.f32.mrb[0].mxu0
      %v12083 = vadd.f32 0.0, %v12082
      %v12084 = vpop.f32.mrb[0].mxu0
      %v12085 = vadd.f32 0.0, %v12084
      %v12086 = vpop.f32.mrb[0].mxu0
      %v12087 = vadd.f32 0.0, %v12086
      %v12088 = vpop.f32.mrb[0].mxu0
      %v12089 = vadd.f32 0.0, %v12088
      %12090 = vdwg.mxu0
      %12091 = vmatprep.subr.bf16.mxu0 %v11855
      %12092 = vmatpush1.bf16.msra.mxu0 %v11854
      %12093 = vmatprep.subr.bf16.mxu0 %v11858
      %12094 = vmatpush1.bf16.msra.mxu0 %v11857
      %12095 = vmatprep.subr.bf16.mxu0 %v11861
      %12096 = vmatpush1.bf16.msra.mxu0 %v11860
      %12097 = vmatprep.subr.bf16.mxu0 %v11864
      %12098 = vmatpush1.bf16.msra.mxu0 %v11863
      %12099 = vmatprep.subr.bf16.mxu0 %v11867
      %12100 = vmatpush1.bf16.msra.mxu0 %v11866
      %12101 = vmatprep.subr.bf16.mxu0 %v11870
      %12102 = vmatpush1.bf16.msra.mxu0 %v11869
      %12103 = vmatprep.subr.bf16.mxu0 %v11873
      %12104 = vmatpush1.bf16.msra.mxu0 %v11872
      %12105 = vmatprep.subr.bf16.mxu0 %v11876
      %12106 = vmatpush1.bf16.msra.mxu0 %v11875
      %12107 = vmatprep.subr.bf16.mxu0 %v11879
      %12108 = vmatpush1.bf16.msra.mxu0 %v11878
      %12109 = vmatprep.subr.bf16.mxu0 %v11882
      %12110 = vmatpush1.bf16.msra.mxu0 %v11881
      %12111 = vmatprep.subr.bf16.mxu0 %v11885
      %12112 = vmatpush1.bf16.msra.mxu0 %v11884
      %12113 = vmatprep.subr.bf16.mxu0 %v11888
      %12114 = vmatpush1.bf16.msra.mxu0 %v11887
      %12115 = vmatprep.subr.bf16.mxu0 %v11891
      %12116 = vmatpush1.bf16.msra.mxu0 %v11890
      %12117 = vmatprep.subr.bf16.mxu0 %v11894
      %12118 = vmatpush1.bf16.msra.mxu0 %v11893
      %12119 = vmatprep.subr.bf16.mxu0 %v11897
      %12120 = vmatpush1.bf16.msra.mxu0 %v11896
      %12121 = vmatprep.subr.bf16.mxu0 %v11900
      %12122 = vmatpush1.bf16.msra.mxu0 %v11899
      %12123 = vmatprep.mubr.bf16.mxu0 %v11421
      %12124 = vmatmul.mubr.bf16.gmra.mrb[0].mxu0 %v11418
      %v12125 = vpop.f32.mrb[0].mxu0
      %v12126 = vadd.f32 %v12033, %v12125
      %v12127 = vpop.f32.mrb[0].mxu0
      %v12128 = vadd.f32 %v12035, %v12127
      %v12129 = vpop.f32.mrb[0].mxu0
      %v12130 = vadd.f32 %v12037, %v12129
      %v12131 = vpop.f32.mrb[0].mxu0
      %v12132 = vadd.f32 %v12039, %v12131
      %12133 = vmatprep.mubr.bf16.mxu0 %v11429
      %12134 = vmatmul.mubr.bf16.gmra.mrb[0].mxu0 %v11427
      %v12135 = vpop.f32.mrb[0].mxu0
      %v12136 = vadd.f32 %v12043, %v12135
      %v12137 = vpop.f32.mrb[0].mxu0
      %v12138 = vadd.f32 %v12045, %v12137
      %v12139 = vpop.f32.mrb[0].mxu0
      %v12140 = vadd.f32 %v12047, %v12139
      %v12141 = vpop.f32.mrb[0].mxu0
      %v12142 = vadd.f32 %v12049, %v12141
      %12143 = vmatprep.mubr.bf16.mxu0 %v11437
      %12144 = vmatmul.mubr.bf16.gmra.mrb[0].mxu0 %v11435
      %v12145 = vpop.f32.mrb[0].mxu0
      %v12146 = vadd.f32 %v12053, %v12145
      %v12147 = vpop.f32.mrb[0].mxu0
      %v12148 = vadd.f32 %v12055, %v12147
      %v12149 = vpop.f32.mrb[0].mxu0
      %v12150 = vadd.f32 %v12057, %v12149
      %v12151 = vpop.f32.mrb[0].mxu0
      %v12152 = vadd.f32 %v12059, %v12151
      %12153 = vmatprep.mubr.bf16.mxu0 %v11445
      %12154 = vmatmul.mubr.bf16.gmra.mrb[0].mxu0 %v11443
      %v12155 = vpop.f32.mrb[0].mxu0
      %v12156 = vadd.f32 %v12063, %v12155
      %v12157 = vpop.f32.mrb[0].mxu0
      %v12158 = vadd.f32 %v12065, %v12157
      %v12159 = vpop.f32.mrb[0].mxu0
      %v12160 = vadd.f32 %v12067, %v12159
      %v12161 = vpop.f32.mrb[0].mxu0
      %v12162 = vadd.f32 %v12069, %v12161
      %12163 = vmatprep.mubr.bf16.mxu0 %v11453
      %12164 = vmatmul.mubr.bf16.gmra.mrb[0].mxu0 %v11451
      %v12165 = vpop.f32.mrb[0].mxu0
      %v12166 = vadd.f32 %v12073, %v12165
      %v12167 = vpop.f32.mrb[0].mxu0
      %v12168 = vadd.f32 %v12075, %v12167
      %v12169 = vpop.f32.mrb[0].mxu0
      %v12170 = vadd.f32 %v12077, %v12169
      %v12171 = vpop.f32.mrb[0].mxu0
      %v12172 = vadd.f32 %v12079, %v12171
      %12173 = vmatprep.mubr.bf16.mxu0 %v11461
      %12174 = vmatmul.mubr.bf16.gmra.mrb[0].mxu0 %v11459
      %v12175 = vpop.f32.mrb[0].mxu0
      %v12176 = vadd.f32 %v12083, %v12175
      %v12177 = vpop.f32.mrb[0].mxu0
      %v12178 = vadd.f32 %v12085, %v12177
      %v12179 = vpop.f32.mrb[0].mxu0
      %v12180 = vadd.f32 %v12087, %v12179
      %v12181 = vpop.f32.mrb[0].mxu0
      %v12182 = vadd.f32 %v12089, %v12181
      %12183 = vdwg.mxu0
      %12184 = vmatprep.subr.bf16.mxu0 0
      %12185 = vmatpush1.bf16.msra.mxu0 %v11808
      %12186 = vmatprep.subr.bf16.mxu0 0
      %12187 = vmatpush1.bf16.msra.mxu0 %v11811
      %12188 = vmatprep.subr.bf16.mxu0 0
      %12189 = vmatpush1.bf16.msra.mxu0 %v11814
      %12190 = vmatprep.subr.bf16.mxu0 0
      %12191 = vmatpush1.bf16.msra.mxu0 %v11817
      %12192 = vmatprep.subr.bf16.mxu0 0
      %12193 = vmatpush1.bf16.msra.mxu0 %v11820
      %12194 = vmatprep.subr.bf16.mxu0 0
      %12195 = vmatpush1.bf16.msra.mxu0 %v11823
      %12196 = vmatprep.subr.bf16.mxu0 0
      %12197 = vmatpush1.bf16.msra.mxu0 %v11826
      %12198 = vmatprep.subr.bf16.mxu0 0
      %12199 = vmatpush1.bf16.msra.mxu0 %v11829
      %12200 = vmatprep.subr.bf16.mxu0 0
      %12201 = vmatpush1.bf16.msra.mxu0 %v11832
      %12202 = vmatprep.subr.bf16.mxu0 0
      %12203 = vmatpush1.bf16.msra.mxu0 %v11835
      %12204 = vmatprep.subr.bf16.mxu0 0
      %12205 = vmatpush1.bf16.msra.mxu0 %v11838
      %12206 = vmatprep.subr.bf16.mxu0 0
      %12207 = vmatpush1.bf16.msra.mxu0 %v11841
      %12208 = vmatprep.subr.bf16.mxu0 0
      %12209 = vmatpush1.bf16.msra.mxu0 %v11844
      %12210 = vmatprep.subr.bf16.mxu0 0
      %12211 = vmatpush1.bf16.msra.mxu0 %v11847
      %12212 = vmatprep.subr.bf16.mxu0 0
      %12213 = vmatpush1.bf16.msra.mxu0 %v11850
      %12214 = vmatprep.subr.bf16.mxu0 0
      %12215 = vmatpush1.bf16.msra.mxu0 %v11853
      %12216 = vmatprep.mubr.bf16.mxu0 %v11415
      %12217 = vmatmul.mubr.bf16.gmra.mrb[0].mxu0 %v11412
      %v12218 = vpop.f32.mrb[0].mxu0
      %v12219 = vadd.f32 0.0, %v12218
      %v12220 = vpop.f32.mrb[0].mxu0
      %v12221 = vpop.f32.mrb[0].mxu0
      %v12222 = vadd.f32 0.0, %v12221
      %v12223 = vpop.f32.mrb[0].mxu0
      %12224 = vmatprep.mubr.bf16.mxu0 %v11425
      %12225 = vmatmul.mubr.bf16.gmra.mrb[0].mxu0 %v11423
      %v12226 = vpop.f32.mrb[0].mxu0
      %v12227 = vadd.f32 0.0, %v12226
      %v12228 = vpop.f32.mrb[0].mxu0
      %v12229 = vpop.f32.mrb[0].mxu0
      %v12230 = vadd.f32 0.0, %v12229
      %v12231 = vpop.f32.mrb[0].mxu0
      %12232 = vmatprep.mubr.bf16.mxu0 %v11433
      %12233 = vmatmul.mubr.bf16.gmra.mrb[0].mxu0 %v11431
      %v12234 = vpop.f32.mrb[0].mxu0
      %v12235 = vadd.f32 0.0, %v12234
      %v12236 = vpop.f32.mrb[0].mxu0
      %v12237 = vpop.f32.mrb[0].mxu0
      %v12238 = vadd.f32 0.0, %v12237
      %v12239 = vpop.f32.mrb[0].mxu0
      %12240 = vmatprep.mubr.bf16.mxu0 %v11441
      %12241 = vmatmul.mubr.bf16.gmra.mrb[0].mxu0 %v11439
      %v12242 = vpop.f32.mrb[0].mxu0
      %v12243 = vadd.f32 0.0, %v12242
      %v12244 = vpop.f32.mrb[0].mxu0
      %v12245 = vpop.f32.mrb[0].mxu0
      %v12246 = vadd.f32 0.0, %v12245
      %v12247 = vpop.f32.mrb[0].mxu0
      %12248 = vmatprep.mubr.bf16.mxu0 %v11449
      %12249 = vmatmul.mubr.bf16.gmra.mrb[0].mxu0 %v11447
      %v12250 = vpop.f32.mrb[0].mxu0
      %v12251 = vadd.f32 0.0, %v12250
      %v12252 = vpop.f32.mrb[0].mxu0
      %v12253 = vpop.f32.mrb[0].mxu0
      %v12254 = vadd.f32 0.0, %v12253
      %v12255 = vpop.f32.mrb[0].mxu0
      %12256 = vmatprep.mubr.bf16.mxu0 %v11457
      %12257 = vmatmul.mubr.bf16.gmra.mrb[0].mxu0 %v11455
      %v12258 = vpop.f32.mrb[0].mxu0
      %v12259 = vadd.f32 0.0, %v12258
      %v12260 = vpop.f32.mrb[0].mxu0
      %v12261 = vpop.f32.mrb[0].mxu0
      %v12262 = vadd.f32 0.0, %v12261
      %v12263 = vpop.f32.mrb[0].mxu0
      %12264 = vdwg.mxu0
      %12265 = vmatprep.subr.bf16.mxu0 0
      %12266 = vmatpush1.bf16.msra.mxu0 %v11856
      %12267 = vmatprep.subr.bf16.mxu0 0
      %12268 = vmatpush1.bf16.msra.mxu0 %v11859
      %12269 = vmatprep.subr.bf16.mxu0 0
      %12270 = vmatpush1.bf16.msra.mxu0 %v11862
      %12271 = vmatprep.subr.bf16.mxu0 0
      %12272 = vmatpush1.bf16.msra.mxu0 %v11865
      %12273 = vmatprep.subr.bf16.mxu0 0
      %12274 = vmatpush1.bf16.msra.mxu0 %v11868
      %12275 = vmatprep.subr.bf16.mxu0 0
      %12276 = vmatpush1.bf16.msra.mxu0 %v11871
      %12277 = vmatprep.subr.bf16.mxu0 0
      %12278 = vmatpush1.bf16.msra.mxu0 %v11874
      %12279 = vmatprep.subr.bf16.mxu0 0
      %12280 = vmatpush1.bf16.msra.mxu0 %v11877
      %12281 = vmatprep.subr.bf16.mxu0 0
      %12282 = vmatpush1.bf16.msra.mxu0 %v11880
      %12283 = vmatprep.subr.bf16.mxu0 0
      %12284 = vmatpush1.bf16.msra.mxu0 %v11883
      %12285 = vmatprep.subr.bf16.mxu0 0
      %12286 = vmatpush1.bf16.msra.mxu0 %v11886
      %12287 = vmatprep.subr.bf16.mxu0 0
      %12288 = vmatpush1.bf16.msra.mxu0 %v11889
      %12289 = vmatprep.subr.bf16.mxu0 0
      %12290 = vmatpush1.bf16.msra.mxu0 %v11892
      %12291 = vmatprep.subr.bf16.mxu0 0
      %12292 = vmatpush1.bf16.msra.mxu0 %v11895
      %12293 = vmatprep.subr.bf16.mxu0 0
      %12294 = vmatpush1.bf16.msra.mxu0 %v11898
      %12295 = vmatprep.subr.bf16.mxu0 0
      %12296 = vmatpush1.bf16.msra.mxu0 %v11901
      %12297 = vmatprep.mubr.bf16.mxu0 %v11421
      %12298 = vmatmul.mubr.bf16.gmra.mrb[0].mxu0 %v11418
      %v12299 = vpop.f32.mrb[0].mxu0
      %v12300 = vadd.f32 %v12219, %v12299
      %v12301 = vpop.f32.mrb[0].mxu0
      %v12302 = vpop.f32.mrb[0].mxu0
      %v12303 = vadd.f32 %v12222, %v12302
      %v12304 = vpop.f32.mrb[0].mxu0
      %12305 = vmatprep.mubr.bf16.mxu0 %v11429
      %12306 = vmatmul.mubr.bf16.gmra.mrb[0].mxu0 %v11427
      %v12307 = vpop.f32.mrb[0].mxu0
      %v12308 = vadd.f32 %v12227, %v12307
      %v12309 = vpop.f32.mrb[0].mxu0
      %v12310 = vpop.f32.mrb[0].mxu0
      %v12311 = vadd.f32 %v12230, %v12310
      %v12312 = vpop.f32.mrb[0].mxu0
      %12313 = vmatprep.mubr.bf16.mxu0 %v11437
      %12314 = vmatmul.mubr.bf16.gmra.mrb[0].mxu0 %v11435
      %v12315 = vpop.f32.mrb[0].mxu0
      %v12316 = vadd.f32 %v12235, %v12315
      %v12317 = vpop.f32.mrb[0].mxu0
      %v12318 = vpop.f32.mrb[0].mxu0
      %v12319 = vadd.f32 %v12238, %v12318
      %v12320 = vpop.f32.mrb[0].mxu0
      %12321 = vmatprep.mubr.bf16.mxu0 %v11445
      %12322 = vmatmul.mubr.bf16.gmra.mrb[0].mxu0 %v11443
      %v12323 = vpop.f32.mrb[0].mxu0
      %v12324 = vadd.f32 %v12243, %v12323
      %v12325 = vpop.f32.mrb[0].mxu0
      %v12326 = vpop.f32.mrb[0].mxu0
      %v12327 = vadd.f32 %v12246, %v12326
      %v12328 = vpop.f32.mrb[0].mxu0
      %12329 = vmatprep.mubr.bf16.mxu0 %v11453
      %12330 = vmatmul.mubr.bf16.gmra.mrb[0].mxu0 %v11451
      %v12331 = vpop.f32.mrb[0].mxu0
      %v12332 = vadd.f32 %v12251, %v12331
      %v12333 = vpop.f32.mrb[0].mxu0
      %v12334 = vpop.f32.mrb[0].mxu0
      %v12335 = vadd.f32 %v12254, %v12334
      %v12336 = vpop.f32.mrb[0].mxu0
      %12337 = vmatprep.mubr.bf16.mxu0 %v11461
      %12338 = vmatmul.mubr.bf16.gmra.mrb[0].mxu0 %v11459
      %v12339 = vpop.f32.mrb[0].mxu0
      %v12340 = vadd.f32 %v12259, %v12339
      %v12341 = vpop.f32.mrb[0].mxu0
      %v12342 = vpop.f32.mrb[0].mxu0
      %v12343 = vadd.f32 %v12262, %v12342
      %v12344 = vpop.f32.mrb[0].mxu0
      %12345 = vdwg.mxu0
      %v12346 = vadd.f32 %v11049, %v12126
      %v12347 = vadd.f32 %v11051, %v12128
      %v12348 = vadd.f32 %v11223, %v12300
      %v12349 = vadd.f32 %v11053, %v12130
      %v12350 = vadd.f32 %v11055, %v12132
      %v12351 = vadd.f32 %v11226, %v12303
      %v12352 = vadd.f32 %v11059, %v12136
      %v12353 = vadd.f32 %v11061, %v12138
      %v12354 = vadd.f32 %v11231, %v12308
      %v12355 = vadd.f32 %v11063, %v12140
      %v12356 = vadd.f32 %v11065, %v12142
      %v12357 = vadd.f32 %v11234, %v12311
      %v12358 = vadd.f32 %v11069, %v12146
      %v12359 = vadd.f32 %v11071, %v12148
      %v12360 = vadd.f32 %v11239, %v12316
      %v12361 = vadd.f32 %v11073, %v12150
      %v12362 = vadd.f32 %v11075, %v12152
      %v12363 = vadd.f32 %v11242, %v12319
      %v12364 = vadd.f32 %v11079, %v12156
      %v12365 = vadd.f32 %v11081, %v12158
      %v12366 = vadd.f32 %v11247, %v12324
      %v12367 = vadd.f32 %v11083, %v12160
      %v12368 = vadd.f32 %v11085, %v12162
      %v12369 = vadd.f32 %v11250, %v12327
      %v12370 = vadd.f32 %v11089, %v12166
      %v12371 = vadd.f32 %v11091, %v12168
      %v12372 = vadd.f32 %v11255, %v12332
      %v12373 = vadd.f32 %v11093, %v12170
      %v12374 = vadd.f32 %v11095, %v12172
      %v12375 = vadd.f32 %v11258, %v12335
      %v12376 = vadd.f32 %v11099, %v12176
      %v12377 = vadd.f32 %v11101, %v12178
      %v12378 = vadd.f32 %v11263, %v12340
      %v12379 = vadd.f32 %v11103, %v12180
      %v12380 = vadd.f32 %v11105, %v12182
      %v12381 = vadd.f32 %v11266, %v12343
      %v12382 = vld [vmem:[%s6] sm:$0x7]
      %v12384 = vlaneseq
      %v12385 = vshrl.u32 %v12384, 7
      %v12386 = vsub.s32 0, %v12385
      %v12387 = vrot.slane %v12382, %v12386
      %v12388 = vlaneseq
      %v12389 = vshrl.u32 %v12388, 7
      %v12390 = vsub.s32 1, %v12389
      %v12391 = vrot.slane %v12382, %v12390
      %v12392 = vlaneseq
      %v12393 = vshrl.u32 %v12392, 7
      %v12394 = vsub.s32 2, %v12393
      %v12395 = vrot.slane %v12382, %v12394
      %v12399 = vmul.f32 %v12346, %v12387
      %v12400 = vmul.f32 %v12347, %v12391
      %v12401 = vmul.f32 %v12348, %v12395
      %v12402 = vmul.f32 %v12349, %v12387
      %v12403 = vmul.f32 %v12350, %v12391
      %v12404 = vmul.f32 %v12351, %v12395
      %v12405 = vmul.f32 %v12352, %v12387
      %v12406 = vmul.f32 %v12353, %v12391
      %v12407 = vmul.f32 %v12354, %v12395
      %v12408 = vmul.f32 %v12355, %v12387
      %v12409 = vmul.f32 %v12356, %v12391
      %v12410 = vmul.f32 %v12357, %v12395
      %v12411 = vmul.f32 %v12358, %v12387
      %v12412 = vmul.f32 %v12359, %v12391
      %v12413 = vmul.f32 %v12360, %v12395
      %v12414 = vmul.f32 %v12361, %v12387
      %v12415 = vmul.f32 %v12362, %v12391
      %v12416 = vmul.f32 %v12363, %v12395
      %v12417 = vmul.f32 %v12364, %v12387
      %v12418 = vmul.f32 %v12365, %v12391
      %v12419 = vmul.f32 %v12366, %v12395
      %v12420 = vmul.f32 %v12367, %v12387
      %v12421 = vmul.f32 %v12368, %v12391
      %v12422 = vmul.f32 %v12369, %v12395
      %v12423 = vmul.f32 %v12370, %v12387
      %v12424 = vmul.f32 %v12371, %v12391
      %v12425 = vmul.f32 %v12372, %v12395
      %v12426 = vmul.f32 %v12373, %v12387
      %v12427 = vmul.f32 %v12374, %v12391
      %v12428 = vmul.f32 %v12375, %v12395
      %v12429 = vmul.f32 %v12376, %v12387
      %v12430 = vmul.f32 %v12377, %v12391
      %v12431 = vmul.f32 %v12378, %v12395
      %v12432 = vmul.f32 %v12379, %v12387
      %v12433 = vmul.f32 %v12380, %v12391
      %v12434 = vmul.f32 %v12381, %v12395
      %v12435 = vld [vmem:[%s7] sm:$0x7]
      %v12437 = vlaneseq
      %v12438 = vshrl.u32 %v12437, 7
      %v12439 = vsub.s32 0, %v12438
      %v12440 = vrot.slane %v12435, %v12439
      %v12441 = vlaneseq
      %v12442 = vshrl.u32 %v12441, 7
      %v12443 = vsub.s32 1, %v12442
      %v12444 = vrot.slane %v12435, %v12443
      %v12445 = vlaneseq
      %v12446 = vshrl.u32 %v12445, 7
      %v12447 = vsub.s32 2, %v12446
      %v12448 = vrot.slane %v12435, %v12447
      %v12452 = vadd.f32 %v12399, %v12440
      %v12453 = vadd.f32 %v12400, %v12444
      %v12454 = vadd.f32 %v12401, %v12448
      %v12455 = vadd.f32 %v12402, %v12440
      %v12456 = vadd.f32 %v12403, %v12444
      %v12457 = vadd.f32 %v12404, %v12448
      %v12458 = vadd.f32 %v12405, %v12440
      %v12459 = vadd.f32 %v12406, %v12444
      %v12460 = vadd.f32 %v12407, %v12448
      %v12461 = vadd.f32 %v12408, %v12440
      %v12462 = vadd.f32 %v12409, %v12444
      %v12463 = vadd.f32 %v12410, %v12448
      %v12464 = vadd.f32 %v12411, %v12440
      %v12465 = vadd.f32 %v12412, %v12444
      %v12466 = vadd.f32 %v12413, %v12448
      %v12467 = vadd.f32 %v12414, %v12440
      %v12468 = vadd.f32 %v12415, %v12444
      %v12469 = vadd.f32 %v12416, %v12448
      %v12470 = vadd.f32 %v12417, %v12440
      %v12471 = vadd.f32 %v12418, %v12444
      %v12472 = vadd.f32 %v12419, %v12448
      %v12473 = vadd.f32 %v12420, %v12440
      %v12474 = vadd.f32 %v12421, %v12444
      %v12475 = vadd.f32 %v12422, %v12448
      %v12476 = vadd.f32 %v12423, %v12440
      %v12477 = vadd.f32 %v12424, %v12444
      %v12478 = vadd.f32 %v12425, %v12448
      %v12479 = vadd.f32 %v12426, %v12440
      %v12480 = vadd.f32 %v12427, %v12444
      %v12481 = vadd.f32 %v12428, %v12448
      %v12482 = vadd.f32 %v12429, %v12440
      %v12483 = vadd.f32 %v12430, %v12444
      %v12484 = vadd.f32 %v12431, %v12448
      %v12485 = vadd.f32 %v12432, %v12440
      %v12486 = vadd.f32 %v12433, %v12444
      %v12487 = vadd.f32 %v12434, %v12448
      %v12488 = vmax.f32 %v12452, 0.0
      %v12489 = vmax.f32 %v12453, 0.0
      %v12490 = vmax.f32 %v12454, 0.0
      %v12491 = vmax.f32 %v12455, 0.0
      %v12492 = vmax.f32 %v12456, 0.0
      %v12493 = vmax.f32 %v12457, 0.0
      %v12494 = vmax.f32 %v12458, 0.0
      %v12495 = vmax.f32 %v12459, 0.0
      %v12496 = vmax.f32 %v12460, 0.0
      %v12497 = vmax.f32 %v12461, 0.0
      %v12498 = vmax.f32 %v12462, 0.0
      %v12499 = vmax.f32 %v12463, 0.0
      %v12500 = vmax.f32 %v12464, 0.0
      %v12501 = vmax.f32 %v12465, 0.0
      %v12502 = vmax.f32 %v12466, 0.0
      %v12503 = vmax.f32 %v12467, 0.0
      %v12504 = vmax.f32 %v12468, 0.0
      %v12505 = vmax.f32 %v12469, 0.0
      %v12506 = vmax.f32 %v12470, 0.0
      %v12507 = vmax.f32 %v12471, 0.0
      %v12508 = vmax.f32 %v12472, 0.0
      %v12509 = vmax.f32 %v12473, 0.0
      %v12510 = vmax.f32 %v12474, 0.0
      %v12511 = vmax.f32 %v12475, 0.0
      %v12512 = vmax.f32 %v12476, 0.0
      %v12513 = vmax.f32 %v12477, 0.0
      %v12514 = vmax.f32 %v12478, 0.0
      %v12515 = vmax.f32 %v12479, 0.0
      %v12516 = vmax.f32 %v12480, 0.0
      %v12517 = vmax.f32 %v12481, 0.0
      %v12518 = vmax.f32 %v12482, 0.0
      %v12519 = vmax.f32 %v12483, 0.0
      %v12520 = vmax.f32 %v12484, 0.0
      %v12521 = vmax.f32 %v12485, 0.0
      %v12522 = vmax.f32 %v12486, 0.0
      %v12523 = vmax.f32 %v12487, 0.0
      %v12524 = vpack.c.bf16 %v12491, %v12488
      %v12525 = vpack.c.bf16 %v12492, %v12489
      %v12526 = vpack.c.bf16 %v12493, %v12490
      %v12527 = vpack.c.bf16 %v12497, %v12494
      %v12528 = vpack.c.bf16 %v12498, %v12495
      %v12529 = vpack.c.bf16 %v12499, %v12496
      %v12530 = vpack.c.bf16 %v12503, %v12500
      %v12531 = vpack.c.bf16 %v12504, %v12501
      %v12532 = vpack.c.bf16 %v12505, %v12502
      %v12533 = vpack.c.bf16 %v12509, %v12506
      %v12534 = vpack.c.bf16 %v12510, %v12507
      %v12535 = vpack.c.bf16 %v12511, %v12508
      %v12536 = vpack.c.bf16 %v12515, %v12512
      %v12537 = vpack.c.bf16 %v12516, %v12513
      %v12538 = vpack.c.bf16 %v12517, %v12514
      %v12539 = vpack.c.bf16 %v12521, %v12518
      %v12540 = vpack.c.bf16 %v12522, %v12519
      %v12541 = vpack.c.bf16 %v12523, %v12520
      %v12560 = vunpack.c.l.b16 %v12524
      %v12561 = vunpack.c.l.b16 %v12525
      %v12562 = vunpack.c.l.b16 %v12526
      %v12563 = vunpack.c.h.b16 %v12524
      %v12564 = vunpack.c.h.b16 %v12525
      %v12565 = vunpack.c.h.b16 %v12526
      %v12566 = vunpack.c.l.b16 %v12527
      %v12567 = vunpack.c.l.b16 %v12528
      %v12568 = vunpack.c.l.b16 %v12529
      %v12569 = vunpack.c.h.b16 %v12527
      %v12570 = vunpack.c.h.b16 %v12528
      %v12571 = vunpack.c.h.b16 %v12529
      %v12572 = vunpack.c.l.b16 %v12530
      %v12573 = vunpack.c.l.b16 %v12531
      %v12574 = vunpack.c.l.b16 %v12532
      %v12575 = vunpack.c.h.b16 %v12530
      %v12576 = vunpack.c.h.b16 %v12531
      %v12577 = vunpack.c.h.b16 %v12532
      %v12578 = vunpack.c.l.b16 %v12533
      %v12579 = vunpack.c.l.b16 %v12534
      %v12580 = vunpack.c.l.b16 %v12535
      %v12581 = vunpack.c.h.b16 %v12533
      %v12582 = vunpack.c.h.b16 %v12534
      %v12583 = vunpack.c.h.b16 %v12535
      %v12584 = vunpack.c.l.b16 %v12536
      %v12585 = vunpack.c.l.b16 %v12537
      %v12586 = vunpack.c.l.b16 %v12538
      %v12587 = vunpack.c.h.b16 %v12536
      %v12588 = vunpack.c.h.b16 %v12537
      %v12589 = vunpack.c.h.b16 %v12538
      %v12590 = vunpack.c.l.b16 %v12539
      %v12591 = vunpack.c.l.b16 %v12540
      %v12592 = vunpack.c.l.b16 %v12541
      %v12593 = vunpack.c.h.b16 %v12539
      %v12594 = vunpack.c.h.b16 %v12540
      %v12595 = vunpack.c.h.b16 %v12541
      %v12596 = vpack.c.b16 %v12561, %v12560
      %v12597 = vpack.c.b16 %v12562, %v12562
      %v12598 = vpack.c.b16 %v12564, %v12563
      %v12599 = vpack.c.b16 %v12565, %v12565
      %v12600 = vpack.c.b16 %v12567, %v12566
      %v12601 = vpack.c.b16 %v12568, %v12568
      %v12602 = vpack.c.b16 %v12570, %v12569
      %v12603 = vpack.c.b16 %v12571, %v12571
      %v12604 = vpack.c.b16 %v12573, %v12572
      %v12605 = vpack.c.b16 %v12574, %v12574
      %v12606 = vpack.c.b16 %v12576, %v12575
      %v12607 = vpack.c.b16 %v12577, %v12577
      %v12608 = vpack.c.b16 %v12579, %v12578
      %v12609 = vpack.c.b16 %v12580, %v12580
      %v12610 = vpack.c.b16 %v12582, %v12581
      %v12611 = vpack.c.b16 %v12583, %v12583
      %v12612 = vpack.c.b16 %v12585, %v12584
      %v12613 = vpack.c.b16 %v12586, %v12586
      %v12614 = vpack.c.b16 %v12588, %v12587
      %v12615 = vpack.c.b16 %v12589, %v12589
      %v12616 = vpack.c.b16 %v12591, %v12590
      %v12617 = vpack.c.b16 %v12592, %v12592
      %v12618 = vpack.c.b16 %v12594, %v12593
      %v12619 = vpack.c.b16 %v12595, %v12595
      %12644 = vst [vmem:[%s325] sm:$0xff] %v12596
      %12645 = vst [vmem:[%s325 + $0x8] sm:$0xf] %v12597
      %12646 = vst [vmem:[%s325 + $0xc] sm:$0xff] %v12598
      %12647 = vst [vmem:[%s325 + $0x14] sm:$0xf] %v12599
      %12648 = vst [vmem:[%s325 + $0x18] sm:$0xff] %v12600
      %12649 = vst [vmem:[%s325 + $0x20] sm:$0xf] %v12601
      %12650 = vst [vmem:[%s325 + $0x24] sm:$0xff] %v12602
      %12651 = vst [vmem:[%s325 + $0x2c] sm:$0xf] %v12603
      %12652 = vst [vmem:[%s325 + $0x30] sm:$0xff] %v12604
      %12653 = vst [vmem:[%s325 + $0x38] sm:$0xf] %v12605
      %12654 = vst [vmem:[%s325 + $0x3c] sm:$0xff] %v12606
      %12655 = vst [vmem:[%s325 + $0x44] sm:$0xf] %v12607
      %12656 = vst [vmem:[%s325 + $0x48] sm:$0xff] %v12608
      %12657 = vst [vmem:[%s325 + $0x50] sm:$0xf] %v12609
      %12658 = vst [vmem:[%s325 + $0x54] sm:$0xff] %v12610
      %12659 = vst [vmem:[%s325 + $0x5c] sm:$0xf] %v12611
      %12660 = vst [vmem:[%s325 + $0x60] sm:$0xff] %v12612
      %12661 = vst [vmem:[%s325 + $0x68] sm:$0xf] %v12613
      %12662 = vst [vmem:[%s325 + $0x6c] sm:$0xff] %v12614
      %12663 = vst [vmem:[%s325 + $0x74] sm:$0xf] %v12615
      %12664 = vst [vmem:[%s325 + $0x78] sm:$0xff] %v12616
      %12665 = vst [vmem:[%s325 + $0x80] sm:$0xf] %v12617
      %12666 = vst [vmem:[%s325 + $0x84] sm:$0xff] %v12618
      %12667 = vst [vmem:[%s325 + $0x8c] sm:$0xf] %v12619
      %p12668 = scmp.lt.s32.totalorder %s19, 1
      %s12669 = scalar_select %p12668, %s19, 1
      %s12670 = smul.addr %s12669, 36
      %s12671 = smul.addr %s12670, 4
      %s12672 = scalar_lea.vmem %s8, %s12671
      // Predicated region
      $region53: #{_ec_forward.1} parent=51 // pred_check
        %p12673 = pneg %p215
      $region54: #{_ec_forward.1} parent=51 // pred_check_branch
        %12675 = sbr.rel (%p12673) target = $region56
      $region55: #{_ec_forward.1} parent=51 // pred_region
        _
      $region56: #{_ec_forward.1} parent=51 // pred_fallthru
        _
    $region52: #{_ec_forward.1} parent=5 // pred_fallthru
      _
    %p12676 = scmp.le.s32.totalorder 2, %s14
    // Predicated region
    $region57: #{_ec_forward.1} parent=5 // pred_check
      %p12677 = pneg %p12676
    $region58: #{_ec_forward.1} parent=5 // pred_check_branch
      %12679 = sbr.rel (%p12677) target = $region60
    $region59: #{_ec_forward.1} parent=5 // pred_region
      %s12680 = ssub.s32 %s14, 2
      // Predicated region
      $region61: #{_ec_forward.1} parent=59 // pred_check
        %p12681 = pneg %p221
      $region62: #{_ec_forward.1} parent=59 // pred_check_branch
        %12683 = sbr.rel (%p12681) target = $region64
      $region63: #{_ec_forward.1} parent=59 // pred_region
        %p12684 = scmp.lt.s32.totalorder %s20, 1
        %s12685 = scalar_select %p12684, %s20, 1
        %s12686 = smul.addr %s12685, 36
        %s12687 = smul.addr %s12686, 4
        %s12688 = scalar_lea.vmem %s8, %s12687
      $region64: #{_ec_forward.1} parent=59 // pred_fallthru
        _
    $region60: #{_ec_forward.1} parent=5 // pred_fallthru
      _
  $region6: #{_ec_forward.1} parent=0 // loop_footer
    %s18 = sadd.s32 1, %s14
  $region7: #{_ec_forward.1} parent=0 // loop_footer_branch
    %13 = sbr.rel target = $region3
  $region8: #{_ec_forward.1} parent=0 // loop_exit
    _

</llo_original>
